<compile_context>
chip_gen: v5e
topology: v5e:2x2
jax: 0.10.0
libtpu: 0.0.40
codegen_flags: <defaults>
</compile_context>

<pallas_src>
from functools import partial

import jax
import jax.numpy as jnp
from jax import lax
from jax.experimental import pallas as pl
from jax.experimental.pallas import tpu as pltpu


# ----------------------------------------------------------------------------
# Pallas kernels: tiled matmul + BN-bias (+residual) (+ReLU) epilogue
# ----------------------------------------------------------------------------
def _mm_bias_kernel(x_ref, w_ref, b_ref, o_ref, acc_ref, *, relu):
    k = pl.program_id(2)

    @pl.when(k == 0)
    def _init():
        acc_ref[...] = jnp.zeros_like(acc_ref)

    acc_ref[...] += jnp.dot(x_ref[...], w_ref[...],
                            preferred_element_type=jnp.float32)

    @pl.when(k == pl.num_programs(2) - 1)
    def _fin():
        out = acc_ref[...] + b_ref[...]
        if relu:
            out = jnp.maximum(out, 0.0)
        o_ref[...] = out.astype(o_ref.dtype)


def _mm_bias_res_kernel(x_ref, w_ref, b_ref, r_ref, o_ref, acc_ref, *, relu):
    k = pl.program_id(2)

    @pl.when(k == 0)
    def _init():
        acc_ref[...] = jnp.zeros_like(acc_ref)

    acc_ref[...] += jnp.dot(x_ref[...], w_ref[...],
                            preferred_element_type=jnp.float32)

    @pl.when(k == pl.num_programs(2) - 1)
    def _fin():
        out = acc_ref[...] + b_ref[...] + r_ref[...].astype(jnp.float32)
        if relu:
            out = jnp.maximum(out, 0.0)
        o_ref[...] = out.astype(o_ref.dtype)


def _round_up(x, m):
    return (x + m - 1) // m * m


def _pad_tile(dim, cap, align):
    """Return (padded_dim, tile) with tile % align == 0 and tile | padded_dim."""
    if dim <= cap:
        t = _round_up(dim, align)
        return t, t
    return _round_up(dim, cap), cap


def fused_matmul(x, w, bias, res=None, *, relu=True,
                 tm_cap=512, tk_cap=512, tn_cap=256):
    """maybe_relu(x @ w + bias [+ res]) with bf16 MXU inputs, f32 accumulation.

    x: (M, K)  w: (K, N)  bias: (N,)  res: optional (M, N).  Returns (M, N) bf16.
    """
    M, K = x.shape
    K2, N = w.shape
    assert K == K2
    Mp, tm = _pad_tile(M, tm_cap, 16)    # M is second-minor of bf16 tiles
    Kp, tk = _pad_tile(K, tk_cap, 128)   # lane dim of x / second-minor of w
    Np, tn = _pad_tile(N, tn_cap, 128)   # lane-dense output stores

    xb = jnp.pad(x, ((0, Mp - M), (0, Kp - K))).astype(jnp.bfloat16)
    wb = jnp.pad(w, ((0, Kp - K), (0, Np - N))).astype(jnp.bfloat16)
    bb = jnp.pad(bias.reshape(1, -1).astype(jnp.float32),
                 ((0, 0), (0, Np - N)))

    in_specs = [
        pl.BlockSpec((tm, tk), lambda i, j, k: (i, k)),
        pl.BlockSpec((tk, tn), lambda i, j, k: (k, j)),
        pl.BlockSpec((1, tn), lambda i, j, k: (0, j)),
    ]
    args = [xb, wb, bb]
    bytes_accessed = Mp * Kp * 2 + Kp * Np * 2 + Np * 4 + Mp * Np * 2
    if res is not None:
        rb = jnp.pad(res, ((0, Mp - M), (0, Np - N))).astype(jnp.bfloat16)
        in_specs.append(pl.BlockSpec((tm, tn), lambda i, j, k: (i, j)))
        args.append(rb)
        bytes_accessed += Mp * Np * 2
        kern = partial(_mm_bias_res_kernel, relu=relu)
    else:
        kern = partial(_mm_bias_kernel, relu=relu)

    grid = (Mp // tm, Np // tn, Kp // tk)
    out = pl.pallas_call(
        kern,
        out_shape=jax.ShapeDtypeStruct((Mp, Np), jnp.bfloat16),
        grid_spec=pltpu.PrefetchScalarGridSpec(
            num_scalar_prefetch=0,
            grid=grid,
            in_specs=in_specs,
            out_specs=pl.BlockSpec((tm, tn), lambda i, j, k: (i, j)),
            scratch_shapes=[pltpu.VMEM((tm, tn), jnp.float32)],
        ),
        compiler_params=pltpu.CompilerParams(
            dimension_semantics=("parallel", "parallel", "arbitrary")),
        cost_estimate=pl.CostEstimate(
            flops=2 * Mp * Kp * Np,
            transcendentals=0,
            bytes_accessed=int(bytes_accessed)),
    )(*args)
    return out[:M, :N]


# ----------------------------------------------------------------------------
# Pallas kernel: adaptive avg-pool(1,1) + flatten + Linear(feat -> embed)
# ----------------------------------------------------------------------------
def _pool_embed_kernel(x_ref, w_ref, b_ref, o_ref):
    feat = jnp.mean(x_ref[...].astype(jnp.float32), axis=1)          # (N, C)
    o_ref[...] = (
        jnp.dot(feat, w_ref[...], preferred_element_type=jnp.float32)
        + b_ref[...]
    )


def pool_embed(x_nhwc_flat, w, b):
    """x: (N, HW, C) bf16, w: (C, E) f32, b: (1, E) f32 -> (N, E) f32."""
    N, HW, C = x_nhwc_flat.shape
    E = w.shape[1]
    return pl.pallas_call(
        _pool_embed_kernel,
        out_shape=jax.ShapeDtypeStruct((N, E), jnp.float32),
        grid=(1,),
        in_specs=[
            pl.BlockSpec((N, HW, C), lambda i: (0, 0, 0)),
            pl.BlockSpec((C, E), lambda i: (0, 0)),
            pl.BlockSpec((1, E), lambda i: (0, 0)),
        ],
        out_specs=pl.BlockSpec((N, E), lambda i: (0, 0)),
    )(x_nhwc_flat, w, b)


# ----------------------------------------------------------------------------
# Glue: NHWC conv wrapper (1x1 convs are pure reshapes; 3x3/7x7 use im2col)
# ----------------------------------------------------------------------------
def im2col_nhwc(x, kh, kw, stride, pad):
    # TODO(synk): for 3x3/7x7 convs im2col is still materialized by XLA before
    #             the kernel (kh*kw read amplification); a halo-tile kernel
    #             with 9 shifted dots would remove it.
    N, H, W, C = x.shape
    xp = jnp.pad(x, ((0, 0), (pad, pad), (pad, pad), (0, 0)))
    Hp, Wp = H + 2 * pad, W + 2 * pad
    Ho = (Hp - kh) // stride + 1
    Wo = (Wp - kw) // stride + 1
    patches = []
    for i in range(kh):
        for j in range(kw):
            patches.append(
                xp[:, i:i + stride * Ho:stride, j:j + stride * Wo:stride, :])
    cols = jnp.concatenate(patches, axis=-1)          # (N,Ho,Wo,kh*kw*C)
    return cols.reshape(N * Ho * Wo, kh * kw * C), Ho, Wo


def conv_bn(x, w, scale, bias, *, stride=1, pad=0, relu=True, residual=None):
    """Conv2d(no bias) + folded eval-BatchNorm (+residual) (+ReLU).  NHWC.

    x: (N,H,W,Cin); w: (Cout,Cin,kh,kw) (PyTorch layout); scale/bias: (Cout,).
    """
    N, H, W, Cin = x.shape
    Cout, _, kh, kw = w.shape
    if kh == 1 and kw == 1 and pad == 0:
        xs = x[:, ::stride, ::stride, :] if stride > 1 else x
        Ho, Wo = xs.shape[1], xs.shape[2]
        cols = xs.reshape(N * Ho * Wo, Cin)
        wm = w.reshape(Cout, Cin).T                                  # (K, Cout)
    else:
        cols, Ho, Wo = im2col_nhwc(x, kh, kw, stride, pad)
        wm = w.transpose(2, 3, 1, 0).reshape(kh * kw * Cin, Cout)    # (K, Cout)
    wm = wm * scale.reshape(1, -1)          # fold BN scale into the weights
    res = None
    if residual is not None:
        res = residual.reshape(N * Ho * Wo, Cout)                    # no transpose
    out = fused_matmul(cols, wm, bias, res, relu=relu)
    return out.reshape(N, Ho, Wo, Cout)


def maxpool_3x3_s2(x):
    # TODO(synk): MaxPool2d(3,2,1) kept in plain JAX (reduce_window), not Pallas.
    return lax.reduce_window(
        x, -jnp.inf, lax.max,
        window_dimensions=(1, 3, 3, 1),
        window_strides=(1, 2, 2, 1),
        padding=((0, 0), (1, 1), (1, 1), (0, 0)),
    )


# ----------------------------------------------------------------------------
# Deterministic parameter construction (ResNet-50 structure, scaled width)
# ----------------------------------------------------------------------------
def _make_conv(key, cout, cin, k):
    std = (2.0 / (cin * k * k)) ** 0.5
    return (std * jax.random.normal(key, (cout, cin, k, k))).astype(jnp.float32)


def _make_bn(key, c, eps=1e-5):
    k1, k2, k3, k4 = jax.random.split(key, 4)
    gamma = 1.0 + 0.1 * jax.random.normal(k1, (c,))
    beta = 0.1 * jax.random.normal(k2, (c,))
    mean = 0.1 * jax.random.normal(k3, (c,))
    var = 1.0 + 0.1 * jnp.abs(jax.random.normal(k4, (c,)))
    scale = gamma / jnp.sqrt(var + eps)
    bias = beta - mean * scale
    return scale.astype(jnp.float32), bias.astype(jnp.float32)


def init_encoder(key, base_width=8, embed_size=32, blocks=(3, 4, 6, 3)):
    keys = iter(jax.random.split(key, 160))
    params = {}
    params["stem_w"] = _make_conv(next(keys), base_width, 3, 7)
    params["stem_s"], params["stem_b"] = _make_bn(next(keys), base_width)

    inplanes = base_width
    stages = []
    for si, nblocks in enumerate(blocks):
        planes = base_width * (2 ** si)
        stage_stride = 1 if si == 0 else 2
        blist = []
        for bi in range(nblocks):
            bstride = stage_stride if bi == 0 else 1
            bp = {}
            bp["w1"] = _make_conv(next(keys), planes, inplanes, 1)
            bp["s1"], bp["b1"] = _make_bn(next(keys), planes)
            bp["w2"] = _make_conv(next(keys), planes, planes, 3)
            bp["s2"], bp["b2"] = _make_bn(next(keys), planes)
            bp["w3"] = _make_conv(next(keys), planes * 4, planes, 1)
            bp["s3"], bp["b3"] = _make_bn(next(keys), planes * 4)
            if bi == 0 and (bstride != 1 or inplanes != planes * 4):
                bp["wd"] = _make_conv(next(keys), planes * 4, inplanes, 1)
                bp["sd"], bp["bd"] = _make_bn(next(keys), planes * 4)
            inplanes = planes * 4
            blist.append(bp)
        stages.append({"stride": stage_stride, "blocks": blist})
    params["stages"] = stages

    feat_dim = inplanes                       # = 32 * base_width (2048 scaled)
    kw_, kb_ = jax.random.split(next(keys))
    bound = 1.0 / (feat_dim ** 0.5)           # PyTorch nn.Linear default init
    params["embed_w"] = jax.random.uniform(
        kw_, (feat_dim, embed_size), minval=-bound, maxval=bound,
        dtype=jnp.float32)
    params["embed_b"] = jax.random.uniform(
        kb_, (1, embed_size), minval=-bound, maxval=bound, dtype=jnp.float32)
    return params


# ----------------------------------------------------------------------------
# EncoderCNN forward (NHWC internally; NCHW at the API boundary)
# ----------------------------------------------------------------------------
def _bottleneck(x, bp, stride):
    identity = x
    out = conv_bn(x, bp["w1"], bp["s1"], bp["b1"], stride=1, pad=0, relu=True)
    out = conv_bn(out, bp["w2"], bp["s2"], bp["b2"], stride=stride, pad=1,
                  relu=True)
    if "wd" in bp:
        identity = conv_bn(x, bp["wd"], bp["sd"], bp["bd"],
                           stride=stride, pad=0, relu=False)
    # conv3 + BN + residual add + ReLU fused in one tiled Pallas kernel
    out = conv_bn(out, bp["w3"], bp["s3"], bp["b3"],
                  stride=1, pad=0, relu=True, residual=identity)
    return out


def encoder_forward(images_nchw, params):
    x = images_nchw.transpose(0, 2, 3, 1)    # single NCHW -> NHWC transpose
    # stem: conv7x7/2 + BN + ReLU, then maxpool3x3/2
    x = conv_bn(x, params["stem_w"], params["stem_s"], params["stem_b"],
                stride=2, pad=3, relu=True)
    x = maxpool_3x3_s2(x)
    # 4 bottleneck stages, [3, 4, 6, 3]
    for stage in params["stages"]:
        for bi, bp in enumerate(stage["blocks"]):
            stride = stage["stride"] if bi == 0 else 1
            x = _bottleneck(x, bp, stride)
    # adaptive avg pool (1,1) + flatten + Linear -> one Pallas kernel (NHWC in)
    N, H, W, C = x.shape
    x_flat = x.reshape(N, H * W, C)          # free in NHWC (no transpose)
    return pool_embed(x_flat, params["embed_w"], params["embed_b"])


# ----------------------------------------------------------------------------
# Main
# ----------------------------------------------------------------------------
if __name__ == "__main__":
    key = jax.random.PRNGKey(0)
    k_params, k_img = jax.random.split(key)

    BASE_WIDTH = 8        # scaled-down (ResNet-50 uses 64)
    EMBED_SIZE = 32
    params = init_encoder(k_params, base_width=BASE_WIDTH,
                          embed_size=EMBED_SIZE)

    images = jax.random.normal(k_img, (2, 3, 32, 32), dtype=jnp.float32)  # NCHW

    fwd = jax.jit(lambda imgs: encoder_forward(imgs, params))
    features = jax.block_until_ready(fwd(images))

    assert features.shape == (2, EMBED_SIZE), features.shape
    assert features.dtype == jnp.float32
    assert bool(jnp.all(jnp.isfinite(features)))
    print("KERNEL_OK")
</pallas_src>

<mosaic_0001>
module attributes {stable_mosaic.version = 11 : i64} {
  func.func @_mm_bias_kernel(%arg0: i32, %arg1: i32, %arg2: i32, %arg3: memref<512x256xbf16, #tpu.memory_space<vmem>>, %arg4: memref<256x128xbf16, #tpu.memory_space<vmem>>, %arg5: memref<1x128xf32, #tpu.memory_space<vmem>>, %arg6: memref<512x128xbf16, #tpu.memory_space<vmem>>, %arg7: memref<512x128xf32, #tpu.memory_space<vmem>>) attributes {dimension_semantics = [#tpu.dimension_semantics<parallel>, #tpu.dimension_semantics<parallel>, #tpu.dimension_semantics<arbitrary>], iteration_bounds = array<i64: 1, 1, 1>, scalar_prefetch = 0 : i64, scratch_operands = 1 : i64, tpu.core_type = #tpu.core_type<tc>, window_params = [{transform_indices = @transform_0, window_bounds = array<i64: 512, 256>}, {transform_indices = @transform_1, window_bounds = array<i64: 256, 128>}, {transform_indices = @transform_2, window_bounds = array<i64: 1, 128>}, {transform_indices = @transform_3, window_bounds = array<i64: 512, 128>}]} {
    %c0_i32 = arith.constant 0 : i32
    %0 = arith.cmpi eq, %arg2, %c0_i32 : i32
    %1 = arith.extui %0 : i1 to i32
    %c0_i32_0 = arith.constant 0 : i32
    %2 = arith.cmpi ne, %1, %c0_i32_0 : i32
    scf.if %2 {
      %cst_10 = arith.constant 0.000000e+00 : f32
      %12 = vector.broadcast %cst_10 : f32 to vector<512x128xf32>
      %c0_11 = arith.constant 0 : index
      %c0_12 = arith.constant 0 : index
      %13 = vector.load %arg7[%c0_11, %c0_12] : memref<512x128xf32, #tpu.memory_space<vmem>>, vector<512x128xf32>
      tpu.vector_store %arg7[%c0_11, %c0_12], %12 {strides = array<i32>} : memref<512x128xf32, #tpu.memory_space<vmem>>, vector<512x128xf32>,
    } else {
    }
    %c0 = arith.constant 0 : index
    %c0_1 = arith.constant 0 : index
    %3 = vector.load %arg7[%c0, %c0_1] : memref<512x128xf32, #tpu.memory_space<vmem>>, vector<512x128xf32>
    %c0_2 = arith.constant 0 : index
    %c0_3 = arith.constant 0 : index
    %4 = vector.load %arg3[%c0_2, %c0_3] : memref<512x256xbf16, #tpu.memory_space<vmem>>, vector<512x256xbf16>
    %c0_4 = arith.constant 0 : index
    %c0_5 = arith.constant 0 : index
    %5 = vector.load %arg4[%c0_4, %c0_5] : memref<256x128xbf16, #tpu.memory_space<vmem>>, vector<256x128xbf16>
    %cst = arith.constant dense<0.000000e+00> : vector<512x128xf32>
    %6 = tpu.matmul %4, %5, %cst {dimension_numbers = #tpu.dot_dimension_numbers<[1], [0], [0], [1], [0, 0, 1, 1], [], []>} : vector<512x256xbf16>, vector<256x128xbf16>, vector<512x128xf32> -> vector<512x128xf32>
    %7 = arith.addf %3, %6 : vector<512x128xf32>
    %c0_6 = arith.constant 0 : index
    %c0_7 = arith.constant 0 : index
    %8 = vector.load %arg7[%c0_6, %c0_7] : memref<512x128xf32, #tpu.memory_space<vmem>>, vector<512x128xf32>
    tpu.vector_store %arg7[%c0_6, %c0_7], %7 {strides = array<i32>} : memref<512x128xf32, #tpu.memory_space<vmem>>, vector<512x128xf32>,
    %c0_i32_8 = arith.constant 0 : i32
    %9 = arith.cmpi eq, %arg2, %c0_i32_8 : i32
    %10 = arith.extui %9 : i1 to i32
    %c0_i32_9 = arith.constant 0 : i32
    %11 = arith.cmpi ne, %10, %c0_i32_9 : i32
    scf.if %11 {
      %c0_10 = arith.constant 0 : index
      %c0_11 = arith.constant 0 : index
      %12 = vector.load %arg7[%c0_10, %c0_11] : memref<512x128xf32, #tpu.memory_space<vmem>>, vector<512x128xf32>
      %c0_12 = arith.constant 0 : index
      %c0_13 = arith.constant 0 : index
      %13 = vector.load %arg5[%c0_12, %c0_13] : memref<1x128xf32, #tpu.memory_space<vmem>>, vector<1x128xf32>
      %14 = vector.broadcast %13 : vector<1x128xf32> to vector<512x128xf32>
      %15 = arith.addf %12, %14 : vector<512x128xf32>
      %cst_14 = arith.constant 0.000000e+00 : f32
      %16 = vector.broadcast %cst_14 : f32 to vector<512x128xf32>
      %17 = arith.maximumf %15, %16 : vector<512x128xf32>
      %18 = arith.truncf %17 : vector<512x128xf32> to vector<512x128xbf16>
      %c0_15 = arith.constant 0 : index
      %c0_16 = arith.constant 0 : index
      %19 = vector.load %arg6[%c0_15, %c0_16] : memref<512x128xbf16, #tpu.memory_space<vmem>>, vector<512x128xbf16>
      tpu.vector_store %arg6[%c0_15, %c0_16], %18 {strides = array<i32>} : memref<512x128xbf16, #tpu.memory_space<vmem>>, vector<512x128xbf16>,
    } else {
    }
    return
  }
  func.func @transform_0(%arg0: i32, %arg1: i32, %arg2: i32) -> (i32, i32) {
    %c0_i32 = arith.constant 0 : i32
    return %arg0, %arg2 : i32, i32
  }
  func.func @transform_1(%arg0: i32, %arg1: i32, %arg2: i32) -> (i32, i32) {
    %c0_i32 = arith.constant 0 : i32
    return %arg2, %arg1 : i32, i32
  }
  func.func @transform_2(%arg0: i32, %arg1: i32, %arg2: i32) -> (i32, i32) {
    %c0_i32 = arith.constant 0 : i32
    %c0_i32_0 = arith.constant 0 : i32
    return %c0_i32, %arg1 : i32, i32
  }
  func.func @transform_3(%arg0: i32, %arg1: i32, %arg2: i32) -> (i32, i32) {
    %c0_i32 = arith.constant 0 : i32
    return %arg0, %arg1 : i32, i32
  }
}

module attributes {stable_mosaic.version = 11 : i64} {
  func.func @_mm_bias_kernel(%arg0: i32, %arg1: i32, %arg2: i32, %arg3: memref<128x128xbf16, #tpu.memory_space<vmem>>, %arg4: memref<128x128xbf16, #tpu.memory_space<vmem>>, %arg5: memref<1x128xf32, #tpu.memory_space<vmem>>, %arg6: memref<128x128xbf16, #tpu.memory_space<vmem>>, %arg7: memref<128x128xf32, #tpu.memory_space<vmem>>) attributes {dimension_semantics = [#tpu.dimension_semantics<parallel>, #tpu.dimension_semantics<parallel>, #tpu.dimension_semantics<arbitrary>], iteration_bounds = array<i64: 1, 1, 1>, scalar_prefetch = 0 : i64, scratch_operands = 1 : i64, tpu.core_type = #tpu.core_type<tc>, window_params = [{transform_indices = @transform_0, window_bounds = array<i64: 128, 128>}, {transform_indices = @transform_1, window_bounds = array<i64: 128, 128>}, {transform_indices = @transform_2, window_bounds = array<i64: 1, 128>}, {transform_indices = @transform_3, window_bounds = array<i64: 128, 128>}]} {
    %c0_i32 = arith.constant 0 : i32
    %0 = arith.cmpi eq, %arg2, %c0_i32 : i32
    %1 = arith.extui %0 : i1 to i32
    %c0_i32_0 = arith.constant 0 : i32
    %2 = arith.cmpi ne, %1, %c0_i32_0 : i32
    scf.if %2 {
      %cst_10 = arith.constant 0.000000e+00 : f32
      %12 = vector.broadcast %cst_10 : f32 to vector<128x128xf32>
      %c0_11 = arith.constant 0 : index
      %c0_12 = arith.constant 0 : index
      %13 = vector.load %arg7[%c0_11, %c0_12] : memref<128x128xf32, #tpu.memory_space<vmem>>, vector<128x128xf32>
      tpu.vector_store %arg7[%c0_11, %c0_12], %12 {strides = array<i32>} : memref<128x128xf32, #tpu.memory_space<vmem>>, vector<128x128xf32>,
    } else {
    }
    %c0 = arith.constant 0 : index
    %c0_1 = arith.constant 0 : index
    %3 = vector.load %arg7[%c0, %c0_1] : memref<128x128xf32, #tpu.memory_space<vmem>>, vector<128x128xf32>
    %c0_2 = arith.constant 0 : index
    %c0_3 = arith.constant 0 : index
    %4 = vector.load %arg3[%c0_2, %c0_3] : memref<128x128xbf16, #tpu.memory_space<vmem>>, vector<128x128xbf16>
    %c0_4 = arith.constant 0 : index
    %c0_5 = arith.constant 0 : index
    %5 = vector.load %arg4[%c0_4, %c0_5] : memref<128x128xbf16, #tpu.memory_space<vmem>>, vector<128x128xbf16>
    %cst = arith.constant dense<0.000000e+00> : vector<128x128xf32>
    %6 = tpu.matmul %4, %5, %cst {dimension_numbers = #tpu.dot_dimension_numbers<[1], [0], [0], [1], [0, 0, 1, 1], [], []>} : vector<128x128xbf16>, vector<128x128xbf16>, vector<128x128xf32> -> vector<128x128xf32>
    %7 = arith.addf %3, %6 : vector<128x128xf32>
    %c0_6 = arith.constant 0 : index
    %c0_7 = arith.constant 0 : index
    %8 = vector.load %arg7[%c0_6, %c0_7] : memref<128x128xf32, #tpu.memory_space<vmem>>, vector<128x128xf32>
    tpu.vector_store %arg7[%c0_6, %c0_7], %7 {strides = array<i32>} : memref<128x128xf32, #tpu.memory_space<vmem>>, vector<128x128xf32>,
    %c0_i32_8 = arith.constant 0 : i32
    %9 = arith.cmpi eq, %arg2, %c0_i32_8 : i32
    %10 = arith.extui %9 : i1 to i32
    %c0_i32_9 = arith.constant 0 : i32
    %11 = arith.cmpi ne, %10, %c0_i32_9 : i32
    scf.if %11 {
      %c0_10 = arith.constant 0 : index
      %c0_11 = arith.constant 0 : index
      %12 = vector.load %arg7[%c0_10, %c0_11] : memref<128x128xf32, #tpu.memory_space<vmem>>, vector<128x128xf32>
      %c0_12 = arith.constant 0 : index
      %c0_13 = arith.constant 0 : index
      %13 = vector.load %arg5[%c0_12, %c0_13] : memref<1x128xf32, #tpu.memory_space<vmem>>, vector<1x128xf32>
      %14 = vector.broadcast %13 : vector<1x128xf32> to vector<128x128xf32>
      %15 = arith.addf %12, %14 : vector<128x128xf32>
      %cst_14 = arith.constant 0.000000e+00 : f32
      %16 = vector.broadcast %cst_14 : f32 to vector<128x128xf32>
      %17 = arith.maximumf %15, %16 : vector<128x128xf32>
      %18 = arith.truncf %17 : vector<128x128xf32> to vector<128x128xbf16>
      %c0_15 = arith.constant 0 : index
      %c0_16 = arith.constant 0 : index
      %19 = vector.load %arg6[%c0_15, %c0_16] : memref<128x128xbf16, #tpu.memory_space<vmem>>, vector<128x128xbf16>
      tpu.vector_store %arg6[%c0_15, %c0_16], %18 {strides = array<i32>} : memref<128x128xbf16, #tpu.memory_space<vmem>>, vector<128x128xbf16>,
    } else {
    }
    return
  }
  func.func @transform_0(%arg0: i32, %arg1: i32, %arg2: i32) -> (i32, i32) {
    %c0_i32 = arith.constant 0 : i32
    return %arg0, %arg2 : i32, i32
  }
  func.func @transform_1(%arg0: i32, %arg1: i32, %arg2: i32) -> (i32, i32) {
    %c0_i32 = arith.constant 0 : i32
    return %arg2, %arg1 : i32, i32
  }
  func.func @transform_2(%arg0: i32, %arg1: i32, %arg2: i32) -> (i32, i32) {
    %c0_i32 = arith.constant 0 : i32
    %c0_i32_0 = arith.constant 0 : i32
    return %c0_i32, %arg1 : i32, i32
  }
  func.func @transform_3(%arg0: i32, %arg1: i32, %arg2: i32) -> (i32, i32) {
    %c0_i32 = arith.constant 0 : i32
    return %arg0, %arg1 : i32, i32
  }
}

module attributes {stable_mosaic.version = 11 : i64} {
  func.func @_mm_bias_kernel(%arg0: i32, %arg1: i32, %arg2: i32, %arg3: memref<128x128xbf16, #tpu.memory_space<vmem>>, %arg4: memref<128x128xbf16, #tpu.memory_space<vmem>>, %arg5: memref<1x128xf32, #tpu.memory_space<vmem>>, %arg6: memref<128x128xbf16, #tpu.memory_space<vmem>>, %arg7: memref<128x128xf32, #tpu.memory_space<vmem>>) attributes {dimension_semantics = [#tpu.dimension_semantics<parallel>, #tpu.dimension_semantics<parallel>, #tpu.dimension_semantics<arbitrary>], iteration_bounds = array<i64: 1, 1, 1>, scalar_prefetch = 0 : i64, scratch_operands = 1 : i64, tpu.core_type = #tpu.core_type<tc>, window_params = [{transform_indices = @transform_0, window_bounds = array<i64: 128, 128>}, {transform_indices = @transform_1, window_bounds = array<i64: 128, 128>}, {transform_indices = @transform_2, window_bounds = array<i64: 1, 128>}, {transform_indices = @transform_3, window_bounds = array<i64: 128, 128>}]} {
    %c0_i32 = arith.constant 0 : i32
    %0 = arith.cmpi eq, %arg2, %c0_i32 : i32
    %1 = arith.extui %0 : i1 to i32
    %c0_i32_0 = arith.constant 0 : i32
    %2 = arith.cmpi ne, %1, %c0_i32_0 : i32
    scf.if %2 {
      %cst_10 = arith.constant 0.000000e+00 : f32
      %12 = vector.broadcast %cst_10 : f32 to vector<128x128xf32>
      %c0_11 = arith.constant 0 : index
      %c0_12 = arith.constant 0 : index
      %13 = vector.load %arg7[%c0_11, %c0_12] : memref<128x128xf32, #tpu.memory_space<vmem>>, vector<128x128xf32>
      tpu.vector_store %arg7[%c0_11, %c0_12], %12 {strides = array<i32>} : memref<128x128xf32, #tpu.memory_space<vmem>>, vector<128x128xf32>,
    } else {
    }
    %c0 = arith.constant 0 : index
    %c0_1 = arith.constant 0 : index
    %3 = vector.load %arg7[%c0, %c0_1] : memref<128x128xf32, #tpu.memory_space<vmem>>, vector<128x128xf32>
    %c0_2 = arith.constant 0 : index
    %c0_3 = arith.constant 0 : index
    %4 = vector.load %arg3[%c0_2, %c0_3] : memref<128x128xbf16, #tpu.memory_space<vmem>>, vector<128x128xbf16>
    %c0_4 = arith.constant 0 : index
    %c0_5 = arith.constant 0 : index
    %5 = vector.load %arg4[%c0_4, %c0_5] : memref<128x128xbf16, #tpu.memory_space<vmem>>, vector<128x128xbf16>
    %cst = arith.constant dense<0.000000e+00> : vector<128x128xf32>
    %6 = tpu.matmul %4, %5, %cst {dimension_numbers = #tpu.dot_dimension_numbers<[1], [0], [0], [1], [0, 0, 1, 1], [], []>} : vector<128x128xbf16>, vector<128x128xbf16>, vector<128x128xf32> -> vector<128x128xf32>
    %7 = arith.addf %3, %6 : vector<128x128xf32>
    %c0_6 = arith.constant 0 : index
    %c0_7 = arith.constant 0 : index
    %8 = vector.load %arg7[%c0_6, %c0_7] : memref<128x128xf32, #tpu.memory_space<vmem>>, vector<128x128xf32>
    tpu.vector_store %arg7[%c0_6, %c0_7], %7 {strides = array<i32>} : memref<128x128xf32, #tpu.memory_space<vmem>>, vector<128x128xf32>,
    %c0_i32_8 = arith.constant 0 : i32
    %9 = arith.cmpi eq, %arg2, %c0_i32_8 : i32
    %10 = arith.extui %9 : i1 to i32
    %c0_i32_9 = arith.constant 0 : i32
    %11 = arith.cmpi ne, %10, %c0_i32_9 : i32
    scf.if %11 {
      %c0_10 = arith.constant 0 : index
      %c0_11 = arith.constant 0 : index
      %12 = vector.load %arg7[%c0_10, %c0_11] : memref<128x128xf32, #tpu.memory_space<vmem>>, vector<128x128xf32>
      %c0_12 = arith.constant 0 : index
      %c0_13 = arith.constant 0 : index
      %13 = vector.load %arg5[%c0_12, %c0_13] : memref<1x128xf32, #tpu.memory_space<vmem>>, vector<1x128xf32>
      %14 = vector.broadcast %13 : vector<1x128xf32> to vector<128x128xf32>
      %15 = arith.addf %12, %14 : vector<128x128xf32>
      %16 = arith.truncf %15 : vector<128x128xf32> to vector<128x128xbf16>
      %c0_14 = arith.constant 0 : index
      %c0_15 = arith.constant 0 : index
      %17 = vector.load %arg6[%c0_14, %c0_15] : memref<128x128xbf16, #tpu.memory_space<vmem>>, vector<128x128xbf16>
      tpu.vector_store %arg6[%c0_14, %c0_15], %16 {strides = array<i32>} : memref<128x128xbf16, #tpu.memory_space<vmem>>, vector<128x128xbf16>,
    } else {
    }
    return
  }
  func.func @transform_0(%arg0: i32, %arg1: i32, %arg2: i32) -> (i32, i32) {
    %c0_i32 = arith.constant 0 : i32
    return %arg0, %arg2 : i32, i32
  }
  func.func @transform_1(%arg0: i32, %arg1: i32, %arg2: i32) -> (i32, i32) {
    %c0_i32 = arith.constant 0 : i32
    return %arg2, %arg1 : i32, i32
  }
  func.func @transform_2(%arg0: i32, %arg1: i32, %arg2: i32) -> (i32, i32) {
    %c0_i32 = arith.constant 0 : i32
    %c0_i32_0 = arith.constant 0 : i32
    return %c0_i32, %arg1 : i32, i32
  }
  func.func @transform_3(%arg0: i32, %arg1: i32, %arg2: i32) -> (i32, i32) {
    %c0_i32 = arith.constant 0 : i32
    return %arg0, %arg1 : i32, i32
  }
}

module attributes {stable_mosaic.version = 11 : i64} {
  func.func @_mm_bias_res_kernel(%arg0: i32, %arg1: i32, %arg2: i32, %arg3: memref<128x128xbf16, #tpu.memory_space<vmem>>, %arg4: memref<128x128xbf16, #tpu.memory_space<vmem>>, %arg5: memref<1x128xf32, #tpu.memory_space<vmem>>, %arg6: memref<128x128xbf16, #tpu.memory_space<vmem>>, %arg7: memref<128x128xbf16, #tpu.memory_space<vmem>>, %arg8: memref<128x128xf32, #tpu.memory_space<vmem>>) attributes {dimension_semantics = [#tpu.dimension_semantics<parallel>, #tpu.dimension_semantics<parallel>, #tpu.dimension_semantics<arbitrary>], iteration_bounds = array<i64: 1, 1, 1>, scalar_prefetch = 0 : i64, scratch_operands = 1 : i64, tpu.core_type = #tpu.core_type<tc>, window_params = [{transform_indices = @transform_0, window_bounds = array<i64: 128, 128>}, {transform_indices = @transform_1, window_bounds = array<i64: 128, 128>}, {transform_indices = @transform_2, window_bounds = array<i64: 1, 128>}, {transform_indices = @transform_3, window_bounds = array<i64: 128, 128>}, {transform_indices = @transform_4, window_bounds = array<i64: 128, 128>}]} {
    %c0_i32 = arith.constant 0 : i32
    %0 = arith.cmpi eq, %arg2, %c0_i32 : i32
    %1 = arith.extui %0 : i1 to i32
    %c0_i32_0 = arith.constant 0 : i32
    %2 = arith.cmpi ne, %1, %c0_i32_0 : i32
    scf.if %2 {
      %cst_10 = arith.constant 0.000000e+00 : f32
      %12 = vector.broadcast %cst_10 : f32 to vector<128x128xf32>
      %c0_11 = arith.constant 0 : index
      %c0_12 = arith.constant 0 : index
      %13 = vector.load %arg8[%c0_11, %c0_12] : memref<128x128xf32, #tpu.memory_space<vmem>>, vector<128x128xf32>
      tpu.vector_store %arg8[%c0_11, %c0_12], %12 {strides = array<i32>} : memref<128x128xf32, #tpu.memory_space<vmem>>, vector<128x128xf32>,
    } else {
    }
    %c0 = arith.constant 0 : index
    %c0_1 = arith.constant 0 : index
    %3 = vector.load %arg8[%c0, %c0_1] : memref<128x128xf32, #tpu.memory_space<vmem>>, vector<128x128xf32>
    %c0_2 = arith.constant 0 : index
    %c0_3 = arith.constant 0 : index
    %4 = vector.load %arg3[%c0_2, %c0_3] : memref<128x128xbf16, #tpu.memory_space<vmem>>, vector<128x128xbf16>
    %c0_4 = arith.constant 0 : index
    %c0_5 = arith.constant 0 : index
    %5 = vector.load %arg4[%c0_4, %c0_5] : memref<128x128xbf16, #tpu.memory_space<vmem>>, vector<128x128xbf16>
    %cst = arith.constant dense<0.000000e+00> : vector<128x128xf32>
    %6 = tpu.matmul %4, %5, %cst {dimension_numbers = #tpu.dot_dimension_numbers<[1], [0], [0], [1], [0, 0, 1, 1], [], []>} : vector<128x128xbf16>, vector<128x128xbf16>, vector<128x128xf32> -> vector<128x128xf32>
    %7 = arith.addf %3, %6 : vector<128x128xf32>
    %c0_6 = arith.constant 0 : index
    %c0_7 = arith.constant 0 : index
    %8 = vector.load %arg8[%c0_6, %c0_7] : memref<128x128xf32, #tpu.memory_space<vmem>>, vector<128x128xf32>
    tpu.vector_store %arg8[%c0_6, %c0_7], %7 {strides = array<i32>} : memref<128x128xf32, #tpu.memory_space<vmem>>, vector<128x128xf32>,
    %c0_i32_8 = arith.constant 0 : i32
    %9 = arith.cmpi eq, %arg2, %c0_i32_8 : i32
    %10 = arith.extui %9 : i1 to i32
    %c0_i32_9 = arith.constant 0 : i32
    %11 = arith.cmpi ne, %10, %c0_i32_9 : i32
    scf.if %11 {
      %c0_10 = arith.constant 0 : index
      %c0_11 = arith.constant 0 : index
      %12 = vector.load %arg8[%c0_10, %c0_11] : memref<128x128xf32, #tpu.memory_space<vmem>>, vector<128x128xf32>
      %c0_12 = arith.constant 0 : index
      %c0_13 = arith.constant 0 : index
      %13 = vector.load %arg5[%c0_12, %c0_13] : memref<1x128xf32, #tpu.memory_space<vmem>>, vector<1x128xf32>
      %14 = vector.broadcast %13 : vector<1x128xf32> to vector<128x128xf32>
      %15 = arith.addf %12, %14 : vector<128x128xf32>
      %c0_14 = arith.constant 0 : index
      %c0_15 = arith.constant 0 : index
      %16 = vector.load %arg6[%c0_14, %c0_15] : memref<128x128xbf16, #tpu.memory_space<vmem>>, vector<128x128xbf16>
      %17 = arith.extf %16 : vector<128x128xbf16> to vector<128x128xf32>
      %18 = arith.addf %15, %17 : vector<128x128xf32>
      %cst_16 = arith.constant 0.000000e+00 : f32
      %19 = vector.broadcast %cst_16 : f32 to vector<128x128xf32>
      %20 = arith.maximumf %18, %19 : vector<128x128xf32>
      %21 = arith.truncf %20 : vector<128x128xf32> to vector<128x128xbf16>
      %c0_17 = arith.constant 0 : index
      %c0_18 = arith.constant 0 : index
      %22 = vector.load %arg7[%c0_17, %c0_18] : memref<128x128xbf16, #tpu.memory_space<vmem>>, vector<128x128xbf16>
      tpu.vector_store %arg7[%c0_17, %c0_18], %21 {strides = array<i32>} : memref<128x128xbf16, #tpu.memory_space<vmem>>, vector<128x128xbf16>,
    } else {
    }
    return
  }
  func.func @transform_0(%arg0: i32, %arg1: i32, %arg2: i32) -> (i32, i32) {
    %c0_i32 = arith.constant 0 : i32
    return %arg0, %arg2 : i32, i32
  }
  func.func @transform_1(%arg0: i32, %arg1: i32, %arg2: i32) -> (i32, i32) {
    %c0_i32 = arith.constant 0 : i32
    return %arg2, %arg1 : i32, i32
  }
  func.func @transform_2(%arg0: i32, %arg1: i32, %arg2: i32) -> (i32, i32) {
    %c0_i32 = arith.constant 0 : i32
    %c0_i32_0 = arith.constant 0 : i32
    return %c0_i32, %arg1 : i32, i32
  }
  func.func @transform_3(%arg0: i32, %arg1: i32, %arg2: i32) -> (i32, i32) {
    %c0_i32 = arith.constant 0 : i32
    return %arg0, %arg1 : i32, i32
  }
  func.func @transform_4(%arg0: i32, %arg1: i32, %arg2: i32) -> (i32, i32) {
    %c0_i32 = arith.constant 0 : i32
    return %arg0, %arg1 : i32, i32
  }
}

module attributes {stable_mosaic.version = 11 : i64} {
  func.func @_mm_bias_kernel(%arg0: i32, %arg1: i32, %arg2: i32, %arg3: memref<32x128xbf16, #tpu.memory_space<vmem>>, %arg4: memref<128x128xbf16, #tpu.memory_space<vmem>>, %arg5: memref<1x128xf32, #tpu.memory_space<vmem>>, %arg6: memref<32x128xbf16, #tpu.memory_space<vmem>>, %arg7: memref<32x128xf32, #tpu.memory_space<vmem>>) attributes {dimension_semantics = [#tpu.dimension_semantics<parallel>, #tpu.dimension_semantics<parallel>, #tpu.dimension_semantics<arbitrary>], iteration_bounds = array<i64: 1, 1, 1>, scalar_prefetch = 0 : i64, scratch_operands = 1 : i64, tpu.core_type = #tpu.core_type<tc>, window_params = [{transform_indices = @transform_0, window_bounds = array<i64: 32, 128>}, {transform_indices = @transform_1, window_bounds = array<i64: 128, 128>}, {transform_indices = @transform_2, window_bounds = array<i64: 1, 128>}, {transform_indices = @transform_3, window_bounds = array<i64: 32, 128>}]} {
    %c0_i32 = arith.constant 0 : i32
    %0 = arith.cmpi eq, %arg2, %c0_i32 : i32
    %1 = arith.extui %0 : i1 to i32
    %c0_i32_0 = arith.constant 0 : i32
    %2 = arith.cmpi ne, %1, %c0_i32_0 : i32
    scf.if %2 {
      %cst_10 = arith.constant 0.000000e+00 : f32
      %12 = vector.broadcast %cst_10 : f32 to vector<32x128xf32>
      %c0_11 = arith.constant 0 : index
      %c0_12 = arith.constant 0 : index
      %13 = vector.load %arg7[%c0_11, %c0_12] : memref<32x128xf32, #tpu.memory_space<vmem>>, vector<32x128xf32>
      tpu.vector_store %arg7[%c0_11, %c0_12], %12 {strides = array<i32>} : memref<32x128xf32, #tpu.memory_space<vmem>>, vector<32x128xf32>,
    } else {
    }
    %c0 = arith.constant 0 : index
    %c0_1 = arith.constant 0 : index
    %3 = vector.load %arg7[%c0, %c0_1] : memref<32x128xf32, #tpu.memory_space<vmem>>, vector<32x128xf32>
    %c0_2 = arith.constant 0 : index
    %c0_3 = arith.constant 0 : index
    %4 = vector.load %arg3[%c0_2, %c0_3] : memref<32x128xbf16, #tpu.memory_space<vmem>>, vector<32x128xbf16>
    %c0_4 = arith.constant 0 : index
    %c0_5 = arith.constant 0 : index
    %5 = vector.load %arg4[%c0_4, %c0_5] : memref<128x128xbf16, #tpu.memory_space<vmem>>, vector<128x128xbf16>
    %cst = arith.constant dense<0.000000e+00> : vector<32x128xf32>
    %6 = tpu.matmul %4, %5, %cst {dimension_numbers = #tpu.dot_dimension_numbers<[1], [0], [0], [1], [0, 0, 1, 1], [], []>} : vector<32x128xbf16>, vector<128x128xbf16>, vector<32x128xf32> -> vector<32x128xf32>
    %7 = arith.addf %3, %6 : vector<32x128xf32>
    %c0_6 = arith.constant 0 : index
    %c0_7 = arith.constant 0 : index
    %8 = vector.load %arg7[%c0_6, %c0_7] : memref<32x128xf32, #tpu.memory_space<vmem>>, vector<32x128xf32>
    tpu.vector_store %arg7[%c0_6, %c0_7], %7 {strides = array<i32>} : memref<32x128xf32, #tpu.memory_space<vmem>>, vector<32x128xf32>,
    %c0_i32_8 = arith.constant 0 : i32
    %9 = arith.cmpi eq, %arg2, %c0_i32_8 : i32
    %10 = arith.extui %9 : i1 to i32
    %c0_i32_9 = arith.constant 0 : i32
    %11 = arith.cmpi ne, %10, %c0_i32_9 : i32
    scf.if %11 {
      %c0_10 = arith.constant 0 : index
      %c0_11 = arith.constant 0 : index
      %12 = vector.load %arg7[%c0_10, %c0_11] : memref<32x128xf32, #tpu.memory_space<vmem>>, vector<32x128xf32>
      %c0_12 = arith.constant 0 : index
      %c0_13 = arith.constant 0 : index
      %13 = vector.load %arg5[%c0_12, %c0_13] : memref<1x128xf32, #tpu.memory_space<vmem>>, vector<1x128xf32>
      %14 = vector.broadcast %13 : vector<1x128xf32> to vector<32x128xf32>
      %15 = arith.addf %12, %14 : vector<32x128xf32>
      %16 = arith.truncf %15 : vector<32x128xf32> to vector<32x128xbf16>
      %c0_14 = arith.constant 0 : index
      %c0_15 = arith.constant 0 : index
      %17 = vector.load %arg6[%c0_14, %c0_15] : memref<32x128xbf16, #tpu.memory_space<vmem>>, vector<32x128xbf16>
      tpu.vector_store %arg6[%c0_14, %c0_15], %16 {strides = array<i32>} : memref<32x128xbf16, #tpu.memory_space<vmem>>, vector<32x128xbf16>,
    } else {
    }
    return
  }
  func.func @transform_0(%arg0: i32, %arg1: i32, %arg2: i32) -> (i32, i32) {
    %c0_i32 = arith.constant 0 : i32
    return %arg0, %arg2 : i32, i32
  }
  func.func @transform_1(%arg0: i32, %arg1: i32, %arg2: i32) -> (i32, i32) {
    %c0_i32 = arith.constant 0 : i32
    return %arg2, %arg1 : i32, i32
  }
  func.func @transform_2(%arg0: i32, %arg1: i32, %arg2: i32) -> (i32, i32) {
    %c0_i32 = arith.constant 0 : i32
    %c0_i32_0 = arith.constant 0 : i32
    return %c0_i32, %arg1 : i32, i32
  }
  func.func @transform_3(%arg0: i32, %arg1: i32, %arg2: i32) -> (i32, i32) {
    %c0_i32 = arith.constant 0 : i32
    return %arg0, %arg1 : i32, i32
  }
}

module attributes {stable_mosaic.version = 11 : i64} {
  func.func @_mm_bias_kernel(%arg0: i32, %arg1: i32, %arg2: i32, %arg3: memref<32x256xbf16, #tpu.memory_space<vmem>>, %arg4: memref<256x128xbf16, #tpu.memory_space<vmem>>, %arg5: memref<1x128xf32, #tpu.memory_space<vmem>>, %arg6: memref<32x128xbf16, #tpu.memory_space<vmem>>, %arg7: memref<32x128xf32, #tpu.memory_space<vmem>>) attributes {dimension_semantics = [#tpu.dimension_semantics<parallel>, #tpu.dimension_semantics<parallel>, #tpu.dimension_semantics<arbitrary>], iteration_bounds = array<i64: 1, 1, 1>, scalar_prefetch = 0 : i64, scratch_operands = 1 : i64, tpu.core_type = #tpu.core_type<tc>, window_params = [{transform_indices = @transform_0, window_bounds = array<i64: 32, 256>}, {transform_indices = @transform_1, window_bounds = array<i64: 256, 128>}, {transform_indices = @transform_2, window_bounds = array<i64: 1, 128>}, {transform_indices = @transform_3, window_bounds = array<i64: 32, 128>}]} {
    %c0_i32 = arith.constant 0 : i32
    %0 = arith.cmpi eq, %arg2, %c0_i32 : i32
    %1 = arith.extui %0 : i1 to i32
    %c0_i32_0 = arith.constant 0 : i32
    %2 = arith.cmpi ne, %1, %c0_i32_0 : i32
    scf.if %2 {
      %cst_10 = arith.constant 0.000000e+00 : f32
      %12 = vector.broadcast %cst_10 : f32 to vector<32x128xf32>
      %c0_11 = arith.constant 0 : index
      %c0_12 = arith.constant 0 : index
      %13 = vector.load %arg7[%c0_11, %c0_12] : memref<32x128xf32, #tpu.memory_space<vmem>>, vector<32x128xf32>
      tpu.vector_store %arg7[%c0_11, %c0_12], %12 {strides = array<i32>} : memref<32x128xf32, #tpu.memory_space<vmem>>, vector<32x128xf32>,
    } else {
    }
    %c0 = arith.constant 0 : index
    %c0_1 = arith.constant 0 : index
    %3 = vector.load %arg7[%c0, %c0_1] : memref<32x128xf32, #tpu.memory_space<vmem>>, vector<32x128xf32>
    %c0_2 = arith.constant 0 : index
    %c0_3 = arith.constant 0 : index
    %4 = vector.load %arg3[%c0_2, %c0_3] : memref<32x256xbf16, #tpu.memory_space<vmem>>, vector<32x256xbf16>
    %c0_4 = arith.constant 0 : index
    %c0_5 = arith.constant 0 : index
    %5 = vector.load %arg4[%c0_4, %c0_5] : memref<256x128xbf16, #tpu.memory_space<vmem>>, vector<256x128xbf16>
    %cst = arith.constant dense<0.000000e+00> : vector<32x128xf32>
    %6 = tpu.matmul %4, %5, %cst {dimension_numbers = #tpu.dot_dimension_numbers<[1], [0], [0], [1], [0, 0, 1, 1], [], []>} : vector<32x256xbf16>, vector<256x128xbf16>, vector<32x128xf32> -> vector<32x128xf32>
    %7 = arith.addf %3, %6 : vector<32x128xf32>
    %c0_6 = arith.constant 0 : index
    %c0_7 = arith.constant 0 : index
    %8 = vector.load %arg7[%c0_6, %c0_7] : memref<32x128xf32, #tpu.memory_space<vmem>>, vector<32x128xf32>
    tpu.vector_store %arg7[%c0_6, %c0_7], %7 {strides = array<i32>} : memref<32x128xf32, #tpu.memory_space<vmem>>, vector<32x128xf32>,
    %c0_i32_8 = arith.constant 0 : i32
    %9 = arith.cmpi eq, %arg2, %c0_i32_8 : i32
    %10 = arith.extui %9 : i1 to i32
    %c0_i32_9 = arith.constant 0 : i32
    %11 = arith.cmpi ne, %10, %c0_i32_9 : i32
    scf.if %11 {
      %c0_10 = arith.constant 0 : index
      %c0_11 = arith.constant 0 : index
      %12 = vector.load %arg7[%c0_10, %c0_11] : memref<32x128xf32, #tpu.memory_space<vmem>>, vector<32x128xf32>
      %c0_12 = arith.constant 0 : index
      %c0_13 = arith.constant 0 : index
      %13 = vector.load %arg5[%c0_12, %c0_13] : memref<1x128xf32, #tpu.memory_space<vmem>>, vector<1x128xf32>
      %14 = vector.broadcast %13 : vector<1x128xf32> to vector<32x128xf32>
      %15 = arith.addf %12, %14 : vector<32x128xf32>
      %cst_14 = arith.constant 0.000000e+00 : f32
      %16 = vector.broadcast %cst_14 : f32 to vector<32x128xf32>
      %17 = arith.maximumf %15, %16 : vector<32x128xf32>
      %18 = arith.truncf %17 : vector<32x128xf32> to vector<32x128xbf16>
      %c0_15 = arith.constant 0 : index
      %c0_16 = arith.constant 0 : index
      %19 = vector.load %arg6[%c0_15, %c0_16] : memref<32x128xbf16, #tpu.memory_space<vmem>>, vector<32x128xbf16>
      tpu.vector_store %arg6[%c0_15, %c0_16], %18 {strides = array<i32>} : memref<32x128xbf16, #tpu.memory_space<vmem>>, vector<32x128xbf16>,
    } else {
    }
    return
  }
  func.func @transform_0(%arg0: i32, %arg1: i32, %arg2: i32) -> (i32, i32) {
    %c0_i32 = arith.constant 0 : i32
    return %arg0, %arg2 : i32, i32
  }
  func.func @transform_1(%arg0: i32, %arg1: i32, %arg2: i32) -> (i32, i32) {
    %c0_i32 = arith.constant 0 : i32
    return %arg2, %arg1 : i32, i32
  }
  func.func @transform_2(%arg0: i32, %arg1: i32, %arg2: i32) -> (i32, i32) {
    %c0_i32 = arith.constant 0 : i32
    %c0_i32_0 = arith.constant 0 : i32
    return %c0_i32, %arg1 : i32, i32
  }
  func.func @transform_3(%arg0: i32, %arg1: i32, %arg2: i32) -> (i32, i32) {
    %c0_i32 = arith.constant 0 : i32
    return %arg0, %arg1 : i32, i32
  }
}

module attributes {stable_mosaic.version = 11 : i64} {
  func.func @_mm_bias_kernel(%arg0: i32, %arg1: i32, %arg2: i32, %arg3: memref<32x128xbf16, #tpu.memory_space<vmem>>, %arg4: memref<128x128xbf16, #tpu.memory_space<vmem>>, %arg5: memref<1x128xf32, #tpu.memory_space<vmem>>, %arg6: memref<32x128xbf16, #tpu.memory_space<vmem>>, %arg7: memref<32x128xf32, #tpu.memory_space<vmem>>) attributes {dimension_semantics = [#tpu.dimension_semantics<parallel>, #tpu.dimension_semantics<parallel>, #tpu.dimension_semantics<arbitrary>], iteration_bounds = array<i64: 1, 1, 1>, scalar_prefetch = 0 : i64, scratch_operands = 1 : i64, tpu.core_type = #tpu.core_type<tc>, window_params = [{transform_indices = @transform_0, window_bounds = array<i64: 32, 128>}, {transform_indices = @transform_1, window_bounds = array<i64: 128, 128>}, {transform_indices = @transform_2, window_bounds = array<i64: 1, 128>}, {transform_indices = @transform_3, window_bounds = array<i64: 32, 128>}]} {
    %c0_i32 = arith.constant 0 : i32
    %0 = arith.cmpi eq, %arg2, %c0_i32 : i32
    %1 = arith.extui %0 : i1 to i32
    %c0_i32_0 = arith.constant 0 : i32
    %2 = arith.cmpi ne, %1, %c0_i32_0 : i32
    scf.if %2 {
      %cst_10 = arith.constant 0.000000e+00 : f32
      %12 = vector.broadcast %cst_10 : f32 to vector<32x128xf32>
      %c0_11 = arith.constant 0 : index
      %c0_12 = arith.constant 0 : index
      %13 = vector.load %arg7[%c0_11, %c0_12] : memref<32x128xf32, #tpu.memory_space<vmem>>, vector<32x128xf32>
      tpu.vector_store %arg7[%c0_11, %c0_12], %12 {strides = array<i32>} : memref<32x128xf32, #tpu.memory_space<vmem>>, vector<32x128xf32>,
    } else {
    }
    %c0 = arith.constant 0 : index
    %c0_1 = arith.constant 0 : index
    %3 = vector.load %arg7[%c0, %c0_1] : memref<32x128xf32, #tpu.memory_space<vmem>>, vector<32x128xf32>
    %c0_2 = arith.constant 0 : index
    %c0_3 = arith.constant 0 : index
    %4 = vector.load %arg3[%c0_2, %c0_3] : memref<32x128xbf16, #tpu.memory_space<vmem>>, vector<32x128xbf16>
    %c0_4 = arith.constant 0 : index
    %c0_5 = arith.constant 0 : index
    %5 = vector.load %arg4[%c0_4, %c0_5] : memref<128x128xbf16, #tpu.memory_space<vmem>>, vector<128x128xbf16>
    %cst = arith.constant dense<0.000000e+00> : vector<32x128xf32>
    %6 = tpu.matmul %4, %5, %cst {dimension_numbers = #tpu.dot_dimension_numbers<[1], [0], [0], [1], [0, 0, 1, 1], [], []>} : vector<32x128xbf16>, vector<128x128xbf16>, vector<32x128xf32> -> vector<32x128xf32>
    %7 = arith.addf %3, %6 : vector<32x128xf32>
    %c0_6 = arith.constant 0 : index
    %c0_7 = arith.constant 0 : index
    %8 = vector.load %arg7[%c0_6, %c0_7] : memref<32x128xf32, #tpu.memory_space<vmem>>, vector<32x128xf32>
    tpu.vector_store %arg7[%c0_6, %c0_7], %7 {strides = array<i32>} : memref<32x128xf32, #tpu.memory_space<vmem>>, vector<32x128xf32>,
    %c0_i32_8 = arith.constant 0 : i32
    %9 = arith.cmpi eq, %arg2, %c0_i32_8 : i32
    %10 = arith.extui %9 : i1 to i32
    %c0_i32_9 = arith.constant 0 : i32
    %11 = arith.cmpi ne, %10, %c0_i32_9 : i32
    scf.if %11 {
      %c0_10 = arith.constant 0 : index
      %c0_11 = arith.constant 0 : index
      %12 = vector.load %arg7[%c0_10, %c0_11] : memref<32x128xf32, #tpu.memory_space<vmem>>, vector<32x128xf32>
      %c0_12 = arith.constant 0 : index
      %c0_13 = arith.constant 0 : index
      %13 = vector.load %arg5[%c0_12, %c0_13] : memref<1x128xf32, #tpu.memory_space<vmem>>, vector<1x128xf32>
      %14 = vector.broadcast %13 : vector<1x128xf32> to vector<32x128xf32>
      %15 = arith.addf %12, %14 : vector<32x128xf32>
      %cst_14 = arith.constant 0.000000e+00 : f32
      %16 = vector.broadcast %cst_14 : f32 to vector<32x128xf32>
      %17 = arith.maximumf %15, %16 : vector<32x128xf32>
      %18 = arith.truncf %17 : vector<32x128xf32> to vector<32x128xbf16>
      %c0_15 = arith.constant 0 : index
      %c0_16 = arith.constant 0 : index
      %19 = vector.load %arg6[%c0_15, %c0_16] : memref<32x128xbf16, #tpu.memory_space<vmem>>, vector<32x128xbf16>
      tpu.vector_store %arg6[%c0_15, %c0_16], %18 {strides = array<i32>} : memref<32x128xbf16, #tpu.memory_space<vmem>>, vector<32x128xbf16>,
    } else {
    }
    return
  }
  func.func @transform_0(%arg0: i32, %arg1: i32, %arg2: i32) -> (i32, i32) {
    %c0_i32 = arith.constant 0 : i32
    return %arg0, %arg2 : i32, i32
  }
  func.func @transform_1(%arg0: i32, %arg1: i32, %arg2: i32) -> (i32, i32) {
    %c0_i32 = arith.constant 0 : i32
    return %arg2, %arg1 : i32, i32
  }
  func.func @transform_2(%arg0: i32, %arg1: i32, %arg2: i32) -> (i32, i32) {
    %c0_i32 = arith.constant 0 : i32
    %c0_i32_0 = arith.constant 0 : i32
    return %c0_i32, %arg1 : i32, i32
  }
  func.func @transform_3(%arg0: i32, %arg1: i32, %arg2: i32) -> (i32, i32) {
    %c0_i32 = arith.constant 0 : i32
    return %arg0, %arg1 : i32, i32
  }
}

module attributes {stable_mosaic.version = 11 : i64} {
  func.func @_mm_bias_res_kernel(%arg0: i32, %arg1: i32, %arg2: i32, %arg3: memref<32x128xbf16, #tpu.memory_space<vmem>>, %arg4: memref<128x128xbf16, #tpu.memory_space<vmem>>, %arg5: memref<1x128xf32, #tpu.memory_space<vmem>>, %arg6: memref<32x128xbf16, #tpu.memory_space<vmem>>, %arg7: memref<32x128xbf16, #tpu.memory_space<vmem>>, %arg8: memref<32x128xf32, #tpu.memory_space<vmem>>) attributes {dimension_semantics = [#tpu.dimension_semantics<parallel>, #tpu.dimension_semantics<parallel>, #tpu.dimension_semantics<arbitrary>], iteration_bounds = array<i64: 1, 1, 1>, scalar_prefetch = 0 : i64, scratch_operands = 1 : i64, tpu.core_type = #tpu.core_type<tc>, window_params = [{transform_indices = @transform_0, window_bounds = array<i64: 32, 128>}, {transform_indices = @transform_1, window_bounds = array<i64: 128, 128>}, {transform_indices = @transform_2, window_bounds = array<i64: 1, 128>}, {transform_indices = @transform_3, window_bounds = array<i64: 32, 128>}, {transform_indices = @transform_4, window_bounds = array<i64: 32, 128>}]} {
    %c0_i32 = arith.constant 0 : i32
    %0 = arith.cmpi eq, %arg2, %c0_i32 : i32
    %1 = arith.extui %0 : i1 to i32
    %c0_i32_0 = arith.constant 0 : i32
    %2 = arith.cmpi ne, %1, %c0_i32_0 : i32
    scf.if %2 {
      %cst_10 = arith.constant 0.000000e+00 : f32
      %12 = vector.broadcast %cst_10 : f32 to vector<32x128xf32>
      %c0_11 = arith.constant 0 : index
      %c0_12 = arith.constant 0 : index
      %13 = vector.load %arg8[%c0_11, %c0_12] : memref<32x128xf32, #tpu.memory_space<vmem>>, vector<32x128xf32>
      tpu.vector_store %arg8[%c0_11, %c0_12], %12 {strides = array<i32>} : memref<32x128xf32, #tpu.memory_space<vmem>>, vector<32x128xf32>,
    } else {
    }
    %c0 = arith.constant 0 : index
    %c0_1 = arith.constant 0 : index
    %3 = vector.load %arg8[%c0, %c0_1] : memref<32x128xf32, #tpu.memory_space<vmem>>, vector<32x128xf32>
    %c0_2 = arith.constant 0 : index
    %c0_3 = arith.constant 0 : index
    %4 = vector.load %arg3[%c0_2, %c0_3] : memref<32x128xbf16, #tpu.memory_space<vmem>>, vector<32x128xbf16>
    %c0_4 = arith.constant 0 : index
    %c0_5 = arith.constant 0 : index
    %5 = vector.load %arg4[%c0_4, %c0_5] : memref<128x128xbf16, #tpu.memory_space<vmem>>, vector<128x128xbf16>
    %cst = arith.constant dense<0.000000e+00> : vector<32x128xf32>
    %6 = tpu.matmul %4, %5, %cst {dimension_numbers = #tpu.dot_dimension_numbers<[1], [0], [0], [1], [0, 0, 1, 1], [], []>} : vector<32x128xbf16>, vector<128x128xbf16>, vector<32x128xf32> -> vector<32x128xf32>
    %7 = arith.addf %3, %6 : vector<32x128xf32>
    %c0_6 = arith.constant 0 : index
    %c0_7 = arith.constant 0 : index
    %8 = vector.load %arg8[%c0_6, %c0_7] : memref<32x128xf32, #tpu.memory_space<vmem>>, vector<32x128xf32>
    tpu.vector_store %arg8[%c0_6, %c0_7], %7 {strides = array<i32>} : memref<32x128xf32, #tpu.memory_space<vmem>>, vector<32x128xf32>,
    %c0_i32_8 = arith.constant 0 : i32
    %9 = arith.cmpi eq, %arg2, %c0_i32_8 : i32
    %10 = arith.extui %9 : i1 to i32
    %c0_i32_9 = arith.constant 0 : i32
    %11 = arith.cmpi ne, %10, %c0_i32_9 : i32
    scf.if %11 {
      %c0_10 = arith.constant 0 : index
      %c0_11 = arith.constant 0 : index
      %12 = vector.load %arg8[%c0_10, %c0_11] : memref<32x128xf32, #tpu.memory_space<vmem>>, vector<32x128xf32>
      %c0_12 = arith.constant 0 : index
      %c0_13 = arith.constant 0 : index
      %13 = vector.load %arg5[%c0_12, %c0_13] : memref<1x128xf32, #tpu.memory_space<vmem>>, vector<1x128xf32>
      %14 = vector.broadcast %13 : vector<1x128xf32> to vector<32x128xf32>
      %15 = arith.addf %12, %14 : vector<32x128xf32>
      %c0_14 = arith.constant 0 : index
      %c0_15 = arith.constant 0 : index
      %16 = vector.load %arg6[%c0_14, %c0_15] : memref<32x128xbf16, #tpu.memory_space<vmem>>, vector<32x128xbf16>
      %17 = arith.extf %16 : vector<32x128xbf16> to vector<32x128xf32>
      %18 = arith.addf %15, %17 : vector<32x128xf32>
      %cst_16 = arith.constant 0.000000e+00 : f32
      %19 = vector.broadcast %cst_16 : f32 to vector<32x128xf32>
      %20 = arith.maximumf %18, %19 : vector<32x128xf32>
      %21 = arith.truncf %20 : vector<32x128xf32> to vector<32x128xbf16>
      %c0_17 = arith.constant 0 : index
      %c0_18 = arith.constant 0 : index
      %22 = vector.load %arg7[%c0_17, %c0_18] : memref<32x128xbf16, #tpu.memory_space<vmem>>, vector<32x128xbf16>
      tpu.vector_store %arg7[%c0_17, %c0_18], %21 {strides = array<i32>} : memref<32x128xbf16, #tpu.memory_space<vmem>>, vector<32x128xbf16>,
    } else {
    }
    return
  }
  func.func @transform_0(%arg0: i32, %arg1: i32, %arg2: i32) -> (i32, i32) {
    %c0_i32 = arith.constant 0 : i32
    return %arg0, %arg2 : i32, i32
  }
  func.func @transform_1(%arg0: i32, %arg1: i32, %arg2: i32) -> (i32, i32) {
    %c0_i32 = arith.constant 0 : i32
    return %arg2, %arg1 : i32, i32
  }
  func.func @transform_2(%arg0: i32, %arg1: i32, %arg2: i32) -> (i32, i32) {
    %c0_i32 = arith.constant 0 : i32
    %c0_i32_0 = arith.constant 0 : i32
    return %c0_i32, %arg1 : i32, i32
  }
  func.func @transform_3(%arg0: i32, %arg1: i32, %arg2: i32) -> (i32, i32) {
    %c0_i32 = arith.constant 0 : i32
    return %arg0, %arg1 : i32, i32
  }
  func.func @transform_4(%arg0: i32, %arg1: i32, %arg2: i32) -> (i32, i32) {
    %c0_i32 = arith.constant 0 : i32
    return %arg0, %arg1 : i32, i32
  }
}

module attributes {stable_mosaic.version = 11 : i64} {
  func.func @_mm_bias_kernel(%arg0: i32, %arg1: i32, %arg2: i32, %arg3: memref<16x384xbf16, #tpu.memory_space<vmem>>, %arg4: memref<384x128xbf16, #tpu.memory_space<vmem>>, %arg5: memref<1x128xf32, #tpu.memory_space<vmem>>, %arg6: memref<16x128xbf16, #tpu.memory_space<vmem>>, %arg7: memref<16x128xf32, #tpu.memory_space<vmem>>) attributes {dimension_semantics = [#tpu.dimension_semantics<parallel>, #tpu.dimension_semantics<parallel>, #tpu.dimension_semantics<arbitrary>], iteration_bounds = array<i64: 1, 1, 1>, scalar_prefetch = 0 : i64, scratch_operands = 1 : i64, tpu.core_type = #tpu.core_type<tc>, window_params = [{transform_indices = @transform_0, window_bounds = array<i64: 16, 384>}, {transform_indices = @transform_1, window_bounds = array<i64: 384, 128>}, {transform_indices = @transform_2, window_bounds = array<i64: 1, 128>}, {transform_indices = @transform_3, window_bounds = array<i64: 16, 128>}]} {
    %c0_i32 = arith.constant 0 : i32
    %0 = arith.cmpi eq, %arg2, %c0_i32 : i32
    %1 = arith.extui %0 : i1 to i32
    %c0_i32_0 = arith.constant 0 : i32
    %2 = arith.cmpi ne, %1, %c0_i32_0 : i32
    scf.if %2 {
      %cst_10 = arith.constant 0.000000e+00 : f32
      %12 = vector.broadcast %cst_10 : f32 to vector<16x128xf32>
      %c0_11 = arith.constant 0 : index
      %c0_12 = arith.constant 0 : index
      %13 = vector.load %arg7[%c0_11, %c0_12] : memref<16x128xf32, #tpu.memory_space<vmem>>, vector<16x128xf32>
      tpu.vector_store %arg7[%c0_11, %c0_12], %12 {strides = array<i32>} : memref<16x128xf32, #tpu.memory_space<vmem>>, vector<16x128xf32>,
    } else {
    }
    %c0 = arith.constant 0 : index
    %c0_1 = arith.constant 0 : index
    %3 = vector.load %arg7[%c0, %c0_1] : memref<16x128xf32, #tpu.memory_space<vmem>>, vector<16x128xf32>
    %c0_2 = arith.constant 0 : index
    %c0_3 = arith.constant 0 : index
    %4 = vector.load %arg3[%c0_2, %c0_3] : memref<16x384xbf16, #tpu.memory_space<vmem>>, vector<16x384xbf16>
    %c0_4 = arith.constant 0 : index
    %c0_5 = arith.constant 0 : index
    %5 = vector.load %arg4[%c0_4, %c0_5] : memref<384x128xbf16, #tpu.memory_space<vmem>>, vector<384x128xbf16>
    %cst = arith.constant dense<0.000000e+00> : vector<16x128xf32>
    %6 = tpu.matmul %4, %5, %cst {dimension_numbers = #tpu.dot_dimension_numbers<[1], [0], [0], [1], [0, 0, 1, 1], [], []>} : vector<16x384xbf16>, vector<384x128xbf16>, vector<16x128xf32> -> vector<16x128xf32>
    %7 = arith.addf %3, %6 : vector<16x128xf32>
    %c0_6 = arith.constant 0 : index
    %c0_7 = arith.constant 0 : index
    %8 = vector.load %arg7[%c0_6, %c0_7] : memref<16x128xf32, #tpu.memory_space<vmem>>, vector<16x128xf32>
    tpu.vector_store %arg7[%c0_6, %c0_7], %7 {strides = array<i32>} : memref<16x128xf32, #tpu.memory_space<vmem>>, vector<16x128xf32>,
    %c0_i32_8 = arith.constant 0 : i32
    %9 = arith.cmpi eq, %arg2, %c0_i32_8 : i32
    %10 = arith.extui %9 : i1 to i32
    %c0_i32_9 = arith.constant 0 : i32
    %11 = arith.cmpi ne, %10, %c0_i32_9 : i32
    scf.if %11 {
      %c0_10 = arith.constant 0 : index
      %c0_11 = arith.constant 0 : index
      %12 = vector.load %arg7[%c0_10, %c0_11] : memref<16x128xf32, #tpu.memory_space<vmem>>, vector<16x128xf32>
      %c0_12 = arith.constant 0 : index
      %c0_13 = arith.constant 0 : index
      %13 = vector.load %arg5[%c0_12, %c0_13] : memref<1x128xf32, #tpu.memory_space<vmem>>, vector<1x128xf32>
      %14 = vector.broadcast %13 : vector<1x128xf32> to vector<16x128xf32>
      %15 = arith.addf %12, %14 : vector<16x128xf32>
      %cst_14 = arith.constant 0.000000e+00 : f32
      %16 = vector.broadcast %cst_14 : f32 to vector<16x128xf32>
      %17 = arith.maximumf %15, %16 : vector<16x128xf32>
      %18 = arith.truncf %17 : vector<16x128xf32> to vector<16x128xbf16>
      %c0_15 = arith.constant 0 : index
      %c0_16 = arith.constant 0 : index
      %19 = vector.load %arg6[%c0_15, %c0_16] : memref<16x128xbf16, #tpu.memory_space<vmem>>, vector<16x128xbf16>
      tpu.vector_store %arg6[%c0_15, %c0_16], %18 {strides = array<i32>} : memref<16x128xbf16, #tpu.memory_space<vmem>>, vector<16x128xbf16>,
    } else {
    }
    return
  }
  func.func @transform_0(%arg0: i32, %arg1: i32, %arg2: i32) -> (i32, i32) {
    %c0_i32 = arith.constant 0 : i32
    return %arg0, %arg2 : i32, i32
  }
  func.func @transform_1(%arg0: i32, %arg1: i32, %arg2: i32) -> (i32, i32) {
    %c0_i32 = arith.constant 0 : i32
    return %arg2, %arg1 : i32, i32
  }
  func.func @transform_2(%arg0: i32, %arg1: i32, %arg2: i32) -> (i32, i32) {
    %c0_i32 = arith.constant 0 : i32
    %c0_i32_0 = arith.constant 0 : i32
    return %c0_i32, %arg1 : i32, i32
  }
  func.func @transform_3(%arg0: i32, %arg1: i32, %arg2: i32) -> (i32, i32) {
    %c0_i32 = arith.constant 0 : i32
    return %arg0, %arg1 : i32, i32
  }
}

module attributes {stable_mosaic.version = 11 : i64} {
  func.func @_mm_bias_res_kernel(%arg0: i32, %arg1: i32, %arg2: i32, %arg3: memref<16x128xbf16, #tpu.memory_space<vmem>>, %arg4: memref<128x128xbf16, #tpu.memory_space<vmem>>, %arg5: memref<1x128xf32, #tpu.memory_space<vmem>>, %arg6: memref<16x128xbf16, #tpu.memory_space<vmem>>, %arg7: memref<16x128xbf16, #tpu.memory_space<vmem>>, %arg8: memref<16x128xf32, #tpu.memory_space<vmem>>) attributes {dimension_semantics = [#tpu.dimension_semantics<parallel>, #tpu.dimension_semantics<parallel>, #tpu.dimension_semantics<arbitrary>], iteration_bounds = array<i64: 1, 1, 1>, scalar_prefetch = 0 : i64, scratch_operands = 1 : i64, tpu.core_type = #tpu.core_type<tc>, window_params = [{transform_indices = @transform_0, window_bounds = array<i64: 16, 128>}, {transform_indices = @transform_1, window_bounds = array<i64: 128, 128>}, {transform_indices = @transform_2, window_bounds = array<i64: 1, 128>}, {transform_indices = @transform_3, window_bounds = array<i64: 16, 128>}, {transform_indices = @transform_4, window_bounds = array<i64: 16, 128>}]} {
    %c0_i32 = arith.constant 0 : i32
    %0 = arith.cmpi eq, %arg2, %c0_i32 : i32
    %1 = arith.extui %0 : i1 to i32
    %c0_i32_0 = arith.constant 0 : i32
    %2 = arith.cmpi ne, %1, %c0_i32_0 : i32
    scf.if %2 {
      %cst_10 = arith.constant 0.000000e+00 : f32
      %12 = vector.broadcast %cst_10 : f32 to vector<16x128xf32>
      %c0_11 = arith.constant 0 : index
      %c0_12 = arith.constant 0 : index
      %13 = vector.load %arg8[%c0_11, %c0_12] : memref<16x128xf32, #tpu.memory_space<vmem>>, vector<16x128xf32>
      tpu.vector_store %arg8[%c0_11, %c0_12], %12 {strides = array<i32>} : memref<16x128xf32, #tpu.memory_space<vmem>>, vector<16x128xf32>,
    } else {
    }
    %c0 = arith.constant 0 : index
    %c0_1 = arith.constant 0 : index
    %3 = vector.load %arg8[%c0, %c0_1] : memref<16x128xf32, #tpu.memory_space<vmem>>, vector<16x128xf32>
    %c0_2 = arith.constant 0 : index
    %c0_3 = arith.constant 0 : index
    %4 = vector.load %arg3[%c0_2, %c0_3] : memref<16x128xbf16, #tpu.memory_space<vmem>>, vector<16x128xbf16>
    %c0_4 = arith.constant 0 : index
    %c0_5 = arith.constant 0 : index
    %5 = vector.load %arg4[%c0_4, %c0_5] : memref<128x128xbf16, #tpu.memory_space<vmem>>, vector<128x128xbf16>
    %cst = arith.constant dense<0.000000e+00> : vector<16x128xf32>
    %6 = tpu.matmul %4, %5, %cst {dimension_numbers = #tpu.dot_dimension_numbers<[1], [0], [0], [1], [0, 0, 1, 1], [], []>} : vector<16x128xbf16>, vector<128x128xbf16>, vector<16x128xf32> -> vector<16x128xf32>
    %7 = arith.addf %3, %6 : vector<16x128xf32>
    %c0_6 = arith.constant 0 : index
    %c0_7 = arith.constant 0 : index
    %8 = vector.load %arg8[%c0_6, %c0_7] : memref<16x128xf32, #tpu.memory_space<vmem>>, vector<16x128xf32>
    tpu.vector_store %arg8[%c0_6, %c0_7], %7 {strides = array<i32>} : memref<16x128xf32, #tpu.memory_space<vmem>>, vector<16x128xf32>,
    %c0_i32_8 = arith.constant 0 : i32
    %9 = arith.cmpi eq, %arg2, %c0_i32_8 : i32
    %10 = arith.extui %9 : i1 to i32
    %c0_i32_9 = arith.constant 0 : i32
    %11 = arith.cmpi ne, %10, %c0_i32_9 : i32
    scf.if %11 {
      %c0_10 = arith.constant 0 : index
      %c0_11 = arith.constant 0 : index
      %12 = vector.load %arg8[%c0_10, %c0_11] : memref<16x128xf32, #tpu.memory_space<vmem>>, vector<16x128xf32>
      %c0_12 = arith.constant 0 : index
      %c0_13 = arith.constant 0 : index
      %13 = vector.load %arg5[%c0_12, %c0_13] : memref<1x128xf32, #tpu.memory_space<vmem>>, vector<1x128xf32>
      %14 = vector.broadcast %13 : vector<1x128xf32> to vector<16x128xf32>
      %15 = arith.addf %12, %14 : vector<16x128xf32>
      %c0_14 = arith.constant 0 : index
      %c0_15 = arith.constant 0 : index
      %16 = vector.load %arg6[%c0_14, %c0_15] : memref<16x128xbf16, #tpu.memory_space<vmem>>, vector<16x128xbf16>
      %17 = arith.extf %16 : vector<16x128xbf16> to vector<16x128xf32>
      %18 = arith.addf %15, %17 : vector<16x128xf32>
      %cst_16 = arith.constant 0.000000e+00 : f32
      %19 = vector.broadcast %cst_16 : f32 to vector<16x128xf32>
      %20 = arith.maximumf %18, %19 : vector<16x128xf32>
      %21 = arith.truncf %20 : vector<16x128xf32> to vector<16x128xbf16>
      %c0_17 = arith.constant 0 : index
      %c0_18 = arith.constant 0 : index
      %22 = vector.load %arg7[%c0_17, %c0_18] : memref<16x128xbf16, #tpu.memory_space<vmem>>, vector<16x128xbf16>
      tpu.vector_store %arg7[%c0_17, %c0_18], %21 {strides = array<i32>} : memref<16x128xbf16, #tpu.memory_space<vmem>>, vector<16x128xbf16>,
    } else {
    }
    return
  }
  func.func @transform_0(%arg0: i32, %arg1: i32, %arg2: i32) -> (i32, i32) {
    %c0_i32 = arith.constant 0 : i32
    return %arg0, %arg2 : i32, i32
  }
  func.func @transform_1(%arg0: i32, %arg1: i32, %arg2: i32) -> (i32, i32) {
    %c0_i32 = arith.constant 0 : i32
    return %arg2, %arg1 : i32, i32
  }
  func.func @transform_2(%arg0: i32, %arg1: i32, %arg2: i32) -> (i32, i32) {
    %c0_i32 = arith.constant 0 : i32
    %c0_i32_0 = arith.constant 0 : i32
    return %c0_i32, %arg1 : i32, i32
  }
  func.func @transform_3(%arg0: i32, %arg1: i32, %arg2: i32) -> (i32, i32) {
    %c0_i32 = arith.constant 0 : i32
    return %arg0, %arg1 : i32, i32
  }
  func.func @transform_4(%arg0: i32, %arg1: i32, %arg2: i32) -> (i32, i32) {
    %c0_i32 = arith.constant 0 : i32
    return %arg0, %arg1 : i32, i32
  }
}

module attributes {stable_mosaic.version = 11 : i64} {
  func.func @_mm_bias_kernel(%arg0: i32, %arg1: i32, %arg2: i32, %arg3: memref<16x128xbf16, #tpu.memory_space<vmem>>, %arg4: memref<128x128xbf16, #tpu.memory_space<vmem>>, %arg5: memref<1x128xf32, #tpu.memory_space<vmem>>, %arg6: memref<16x128xbf16, #tpu.memory_space<vmem>>, %arg7: memref<16x128xf32, #tpu.memory_space<vmem>>) attributes {dimension_semantics = [#tpu.dimension_semantics<parallel>, #tpu.dimension_semantics<parallel>, #tpu.dimension_semantics<arbitrary>], iteration_bounds = array<i64: 1, 1, 1>, scalar_prefetch = 0 : i64, scratch_operands = 1 : i64, tpu.core_type = #tpu.core_type<tc>, window_params = [{transform_indices = @transform_0, window_bounds = array<i64: 16, 128>}, {transform_indices = @transform_1, window_bounds = array<i64: 128, 128>}, {transform_indices = @transform_2, window_bounds = array<i64: 1, 128>}, {transform_indices = @transform_3, window_bounds = array<i64: 16, 128>}]} {
    %c0_i32 = arith.constant 0 : i32
    %0 = arith.cmpi eq, %arg2, %c0_i32 : i32
    %1 = arith.extui %0 : i1 to i32
    %c0_i32_0 = arith.constant 0 : i32
    %2 = arith.cmpi ne, %1, %c0_i32_0 : i32
    scf.if %2 {
      %cst_10 = arith.constant 0.000000e+00 : f32
      %12 = vector.broadcast %cst_10 : f32 to vector<16x128xf32>
      %c0_11 = arith.constant 0 : index
      %c0_12 = arith.constant 0 : index
      %13 = vector.load %arg7[%c0_11, %c0_12] : memref<16x128xf32, #tpu.memory_space<vmem>>, vector<16x128xf32>
      tpu.vector_store %arg7[%c0_11, %c0_12], %12 {strides = array<i32>} : memref<16x128xf32, #tpu.memory_space<vmem>>, vector<16x128xf32>,
    } else {
    }
    %c0 = arith.constant 0 : index
    %c0_1 = arith.constant 0 : index
    %3 = vector.load %arg7[%c0, %c0_1] : memref<16x128xf32, #tpu.memory_space<vmem>>, vector<16x128xf32>
    %c0_2 = arith.constant 0 : index
    %c0_3 = arith.constant 0 : index
    %4 = vector.load %arg3[%c0_2, %c0_3] : memref<16x128xbf16, #tpu.memory_space<vmem>>, vector<16x128xbf16>
    %c0_4 = arith.constant 0 : index
    %c0_5 = arith.constant 0 : index
    %5 = vector.load %arg4[%c0_4, %c0_5] : memref<128x128xbf16, #tpu.memory_space<vmem>>, vector<128x128xbf16>
    %cst = arith.constant dense<0.000000e+00> : vector<16x128xf32>
    %6 = tpu.matmul %4, %5, %cst {dimension_numbers = #tpu.dot_dimension_numbers<[1], [0], [0], [1], [0, 0, 1, 1], [], []>} : vector<16x128xbf16>, vector<128x128xbf16>, vector<16x128xf32> -> vector<16x128xf32>
    %7 = arith.addf %3, %6 : vector<16x128xf32>
    %c0_6 = arith.constant 0 : index
    %c0_7 = arith.constant 0 : index
    %8 = vector.load %arg7[%c0_6, %c0_7] : memref<16x128xf32, #tpu.memory_space<vmem>>, vector<16x128xf32>
    tpu.vector_store %arg7[%c0_6, %c0_7], %7 {strides = array<i32>} : memref<16x128xf32, #tpu.memory_space<vmem>>, vector<16x128xf32>,
    %c0_i32_8 = arith.constant 0 : i32
    %9 = arith.cmpi eq, %arg2, %c0_i32_8 : i32
    %10 = arith.extui %9 : i1 to i32
    %c0_i32_9 = arith.constant 0 : i32
    %11 = arith.cmpi ne, %10, %c0_i32_9 : i32
    scf.if %11 {
      %c0_10 = arith.constant 0 : index
      %c0_11 = arith.constant 0 : index
      %12 = vector.load %arg7[%c0_10, %c0_11] : memref<16x128xf32, #tpu.memory_space<vmem>>, vector<16x128xf32>
      %c0_12 = arith.constant 0 : index
      %c0_13 = arith.constant 0 : index
      %13 = vector.load %arg5[%c0_12, %c0_13] : memref<1x128xf32, #tpu.memory_space<vmem>>, vector<1x128xf32>
      %14 = vector.broadcast %13 : vector<1x128xf32> to vector<16x128xf32>
      %15 = arith.addf %12, %14 : vector<16x128xf32>
      %cst_14 = arith.constant 0.000000e+00 : f32
      %16 = vector.broadcast %cst_14 : f32 to vector<16x128xf32>
      %17 = arith.maximumf %15, %16 : vector<16x128xf32>
      %18 = arith.truncf %17 : vector<16x128xf32> to vector<16x128xbf16>
      %c0_15 = arith.constant 0 : index
      %c0_16 = arith.constant 0 : index
      %19 = vector.load %arg6[%c0_15, %c0_16] : memref<16x128xbf16, #tpu.memory_space<vmem>>, vector<16x128xbf16>
      tpu.vector_store %arg6[%c0_15, %c0_16], %18 {strides = array<i32>} : memref<16x128xbf16, #tpu.memory_space<vmem>>, vector<16x128xbf16>,
    } else {
    }
    return
  }
  func.func @transform_0(%arg0: i32, %arg1: i32, %arg2: i32) -> (i32, i32) {
    %c0_i32 = arith.constant 0 : i32
    return %arg0, %arg2 : i32, i32
  }
  func.func @transform_1(%arg0: i32, %arg1: i32, %arg2: i32) -> (i32, i32) {
    %c0_i32 = arith.constant 0 : i32
    return %arg2, %arg1 : i32, i32
  }
  func.func @transform_2(%arg0: i32, %arg1: i32, %arg2: i32) -> (i32, i32) {
    %c0_i32 = arith.constant 0 : i32
    %c0_i32_0 = arith.constant 0 : i32
    return %c0_i32, %arg1 : i32, i32
  }
  func.func @transform_3(%arg0: i32, %arg1: i32, %arg2: i32) -> (i32, i32) {
    %c0_i32 = arith.constant 0 : i32
    return %arg0, %arg1 : i32, i32
  }
}

module attributes {stable_mosaic.version = 11 : i64} {
  func.func @_mm_bias_kernel(%arg0: i32, %arg1: i32, %arg2: i32, %arg3: memref<16x128xbf16, #tpu.memory_space<vmem>>, %arg4: memref<128x128xbf16, #tpu.memory_space<vmem>>, %arg5: memref<1x128xf32, #tpu.memory_space<vmem>>, %arg6: memref<16x128xbf16, #tpu.memory_space<vmem>>, %arg7: memref<16x128xf32, #tpu.memory_space<vmem>>) attributes {dimension_semantics = [#tpu.dimension_semantics<parallel>, #tpu.dimension_semantics<parallel>, #tpu.dimension_semantics<arbitrary>], iteration_bounds = array<i64: 1, 1, 1>, scalar_prefetch = 0 : i64, scratch_operands = 1 : i64, tpu.core_type = #tpu.core_type<tc>, window_params = [{transform_indices = @transform_0, window_bounds = array<i64: 16, 128>}, {transform_indices = @transform_1, window_bounds = array<i64: 128, 128>}, {transform_indices = @transform_2, window_bounds = array<i64: 1, 128>}, {transform_indices = @transform_3, window_bounds = array<i64: 16, 128>}]} {
    %c0_i32 = arith.constant 0 : i32
    %0 = arith.cmpi eq, %arg2, %c0_i32 : i32
    %1 = arith.extui %0 : i1 to i32
    %c0_i32_0 = arith.constant 0 : i32
    %2 = arith.cmpi ne, %1, %c0_i32_0 : i32
    scf.if %2 {
      %cst_10 = arith.constant 0.000000e+00 : f32
      %12 = vector.broadcast %cst_10 : f32 to vector<16x128xf32>
      %c0_11 = arith.constant 0 : index
      %c0_12 = arith.constant 0 : index
      %13 = vector.load %arg7[%c0_11, %c0_12] : memref<16x128xf32, #tpu.memory_space<vmem>>, vector<16x128xf32>
      tpu.vector_store %arg7[%c0_11, %c0_12], %12 {strides = array<i32>} : memref<16x128xf32, #tpu.memory_space<vmem>>, vector<16x128xf32>,
    } else {
    }
    %c0 = arith.constant 0 : index
    %c0_1 = arith.constant 0 : index
    %3 = vector.load %arg7[%c0, %c0_1] : memref<16x128xf32, #tpu.memory_space<vmem>>, vector<16x128xf32>
    %c0_2 = arith.constant 0 : index
    %c0_3 = arith.constant 0 : index
    %4 = vector.load %arg3[%c0_2, %c0_3] : memref<16x128xbf16, #tpu.memory_space<vmem>>, vector<16x128xbf16>
    %c0_4 = arith.constant 0 : index
    %c0_5 = arith.constant 0 : index
    %5 = vector.load %arg4[%c0_4, %c0_5] : memref<128x128xbf16, #tpu.memory_space<vmem>>, vector<128x128xbf16>
    %cst = arith.constant dense<0.000000e+00> : vector<16x128xf32>
    %6 = tpu.matmul %4, %5, %cst {dimension_numbers = #tpu.dot_dimension_numbers<[1], [0], [0], [1], [0, 0, 1, 1], [], []>} : vector<16x128xbf16>, vector<128x128xbf16>, vector<16x128xf32> -> vector<16x128xf32>
    %7 = arith.addf %3, %6 : vector<16x128xf32>
    %c0_6 = arith.constant 0 : index
    %c0_7 = arith.constant 0 : index
    %8 = vector.load %arg7[%c0_6, %c0_7] : memref<16x128xf32, #tpu.memory_space<vmem>>, vector<16x128xf32>
    tpu.vector_store %arg7[%c0_6, %c0_7], %7 {strides = array<i32>} : memref<16x128xf32, #tpu.memory_space<vmem>>, vector<16x128xf32>,
    %c0_i32_8 = arith.constant 0 : i32
    %9 = arith.cmpi eq, %arg2, %c0_i32_8 : i32
    %10 = arith.extui %9 : i1 to i32
    %c0_i32_9 = arith.constant 0 : i32
    %11 = arith.cmpi ne, %10, %c0_i32_9 : i32
    scf.if %11 {
      %c0_10 = arith.constant 0 : index
      %c0_11 = arith.constant 0 : index
      %12 = vector.load %arg7[%c0_10, %c0_11] : memref<16x128xf32, #tpu.memory_space<vmem>>, vector<16x128xf32>
      %c0_12 = arith.constant 0 : index
      %c0_13 = arith.constant 0 : index
      %13 = vector.load %arg5[%c0_12, %c0_13] : memref<1x128xf32, #tpu.memory_space<vmem>>, vector<1x128xf32>
      %14 = vector.broadcast %13 : vector<1x128xf32> to vector<16x128xf32>
      %15 = arith.addf %12, %14 : vector<16x128xf32>
      %16 = arith.truncf %15 : vector<16x128xf32> to vector<16x128xbf16>
      %c0_14 = arith.constant 0 : index
      %c0_15 = arith.constant 0 : index
      %17 = vector.load %arg6[%c0_14, %c0_15] : memref<16x128xbf16, #tpu.memory_space<vmem>>, vector<16x128xbf16>
      tpu.vector_store %arg6[%c0_14, %c0_15], %16 {strides = array<i32>} : memref<16x128xbf16, #tpu.memory_space<vmem>>, vector<16x128xbf16>,
    } else {
    }
    return
  }
  func.func @transform_0(%arg0: i32, %arg1: i32, %arg2: i32) -> (i32, i32) {
    %c0_i32 = arith.constant 0 : i32
    return %arg0, %arg2 : i32, i32
  }
  func.func @transform_1(%arg0: i32, %arg1: i32, %arg2: i32) -> (i32, i32) {
    %c0_i32 = arith.constant 0 : i32
    return %arg2, %arg1 : i32, i32
  }
  func.func @transform_2(%arg0: i32, %arg1: i32, %arg2: i32) -> (i32, i32) {
    %c0_i32 = arith.constant 0 : i32
    %c0_i32_0 = arith.constant 0 : i32
    return %c0_i32, %arg1 : i32, i32
  }
  func.func @transform_3(%arg0: i32, %arg1: i32, %arg2: i32) -> (i32, i32) {
    %c0_i32 = arith.constant 0 : i32
    return %arg0, %arg1 : i32, i32
  }
}

module attributes {stable_mosaic.version = 11 : i64} {
  func.func @_mm_bias_kernel(%arg0: i32, %arg1: i32, %arg2: i32, %arg3: memref<16x512xbf16, #tpu.memory_space<vmem>>, %arg4: memref<512x128xbf16, #tpu.memory_space<vmem>>, %arg5: memref<1x128xf32, #tpu.memory_space<vmem>>, %arg6: memref<16x128xbf16, #tpu.memory_space<vmem>>, %arg7: memref<16x128xf32, #tpu.memory_space<vmem>>) attributes {dimension_semantics = [#tpu.dimension_semantics<parallel>, #tpu.dimension_semantics<parallel>, #tpu.dimension_semantics<arbitrary>], iteration_bounds = array<i64: 1, 1, 2>, scalar_prefetch = 0 : i64, scratch_operands = 1 : i64, tpu.core_type = #tpu.core_type<tc>, window_params = [{transform_indices = @transform_0, window_bounds = array<i64: 16, 512>}, {transform_indices = @transform_1, window_bounds = array<i64: 512, 128>}, {transform_indices = @transform_2, window_bounds = array<i64: 1, 128>}, {transform_indices = @transform_3, window_bounds = array<i64: 16, 128>}]} {
    %c0_i32 = arith.constant 0 : i32
    %0 = arith.cmpi eq, %arg2, %c0_i32 : i32
    %1 = arith.extui %0 : i1 to i32
    %c0_i32_0 = arith.constant 0 : i32
    %2 = arith.cmpi ne, %1, %c0_i32_0 : i32
    scf.if %2 {
      %cst_9 = arith.constant 0.000000e+00 : f32
      %12 = vector.broadcast %cst_9 : f32 to vector<16x128xf32>
      %c0_10 = arith.constant 0 : index
      %c0_11 = arith.constant 0 : index
      %13 = vector.load %arg7[%c0_10, %c0_11] : memref<16x128xf32, #tpu.memory_space<vmem>>, vector<16x128xf32>
      tpu.vector_store %arg7[%c0_10, %c0_11], %12 {strides = array<i32>} : memref<16x128xf32, #tpu.memory_space<vmem>>, vector<16x128xf32>,
    } else {
    }
    %c0 = arith.constant 0 : index
    %c0_1 = arith.constant 0 : index
    %3 = vector.load %arg7[%c0, %c0_1] : memref<16x128xf32, #tpu.memory_space<vmem>>, vector<16x128xf32>
    %c0_2 = arith.constant 0 : index
    %c0_3 = arith.constant 0 : index
    %4 = vector.load %arg3[%c0_2, %c0_3] : memref<16x512xbf16, #tpu.memory_space<vmem>>, vector<16x512xbf16>
    %c0_4 = arith.constant 0 : index
    %c0_5 = arith.constant 0 : index
    %5 = vector.load %arg4[%c0_4, %c0_5] : memref<512x128xbf16, #tpu.memory_space<vmem>>, vector<512x128xbf16>
    %cst = arith.constant dense<0.000000e+00> : vector<16x128xf32>
    %6 = tpu.matmul %4, %5, %cst {dimension_numbers = #tpu.dot_dimension_numbers<[1], [0], [0], [1], [0, 0, 1, 1], [], []>} : vector<16x512xbf16>, vector<512x128xbf16>, vector<16x128xf32> -> vector<16x128xf32>
    %7 = arith.addf %3, %6 : vector<16x128xf32>
    %c0_6 = arith.constant 0 : index
    %c0_7 = arith.constant 0 : index
    %8 = vector.load %arg7[%c0_6, %c0_7] : memref<16x128xf32, #tpu.memory_space<vmem>>, vector<16x128xf32>
    tpu.vector_store %arg7[%c0_6, %c0_7], %7 {strides = array<i32>} : memref<16x128xf32, #tpu.memory_space<vmem>>, vector<16x128xf32>,
    %c1_i32 = arith.constant 1 : i32
    %9 = arith.cmpi eq, %arg2, %c1_i32 : i32
    %10 = arith.extui %9 : i1 to i32
    %c0_i32_8 = arith.constant 0 : i32
    %11 = arith.cmpi ne, %10, %c0_i32_8 : i32
    scf.if %11 {
      %c0_9 = arith.constant 0 : index
      %c0_10 = arith.constant 0 : index
      %12 = vector.load %arg7[%c0_9, %c0_10] : memref<16x128xf32, #tpu.memory_space<vmem>>, vector<16x128xf32>
      %c0_11 = arith.constant 0 : index
      %c0_12 = arith.constant 0 : index
      %13 = vector.load %arg5[%c0_11, %c0_12] : memref<1x128xf32, #tpu.memory_space<vmem>>, vector<1x128xf32>
      %14 = vector.broadcast %13 : vector<1x128xf32> to vector<16x128xf32>
      %15 = arith.addf %12, %14 : vector<16x128xf32>
      %cst_13 = arith.constant 0.000000e+00 : f32
      %16 = vector.broadcast %cst_13 : f32 to vector<16x128xf32>
      %17 = arith.maximumf %15, %16 : vector<16x128xf32>
      %18 = arith.truncf %17 : vector<16x128xf32> to vector<16x128xbf16>
      %c0_14 = arith.constant 0 : index
      %c0_15 = arith.constant 0 : index
      %19 = vector.load %arg6[%c0_14, %c0_15] : memref<16x128xbf16, #tpu.memory_space<vmem>>, vector<16x128xbf16>
      tpu.vector_store %arg6[%c0_14, %c0_15], %18 {strides = array<i32>} : memref<16x128xbf16, #tpu.memory_space<vmem>>, vector<16x128xbf16>,
    } else {
    }
    return
  }
  func.func @transform_0(%arg0: i32, %arg1: i32, %arg2: i32) -> (i32, i32) {
    %c0_i32 = arith.constant 0 : i32
    return %arg0, %arg2 : i32, i32
  }
  func.func @transform_1(%arg0: i32, %arg1: i32, %arg2: i32) -> (i32, i32) {
    %c0_i32 = arith.constant 0 : i32
    return %arg2, %arg1 : i32, i32
  }
  func.func @transform_2(%arg0: i32, %arg1: i32, %arg2: i32) -> (i32, i32) {
    %c0_i32 = arith.constant 0 : i32
    %c0_i32_0 = arith.constant 0 : i32
    return %c0_i32, %arg1 : i32, i32
  }
  func.func @transform_3(%arg0: i32, %arg1: i32, %arg2: i32) -> (i32, i32) {
    %c0_i32 = arith.constant 0 : i32
    return %arg0, %arg1 : i32, i32
  }
}

module attributes {stable_mosaic.version = 11 : i64} {
  func.func @_mm_bias_kernel(%arg0: i32, %arg1: i32, %arg2: i32, %arg3: memref<16x128xbf16, #tpu.memory_space<vmem>>, %arg4: memref<128x256xbf16, #tpu.memory_space<vmem>>, %arg5: memref<1x256xf32, #tpu.memory_space<vmem>>, %arg6: memref<16x256xbf16, #tpu.memory_space<vmem>>, %arg7: memref<16x256xf32, #tpu.memory_space<vmem>>) attributes {dimension_semantics = [#tpu.dimension_semantics<parallel>, #tpu.dimension_semantics<parallel>, #tpu.dimension_semantics<arbitrary>], iteration_bounds = array<i64: 1, 1, 1>, scalar_prefetch = 0 : i64, scratch_operands = 1 : i64, tpu.core_type = #tpu.core_type<tc>, window_params = [{transform_indices = @transform_0, window_bounds = array<i64: 16, 128>}, {transform_indices = @transform_1, window_bounds = array<i64: 128, 256>}, {transform_indices = @transform_2, window_bounds = array<i64: 1, 256>}, {transform_indices = @transform_3, window_bounds = array<i64: 16, 256>}]} {
    %c0_i32 = arith.constant 0 : i32
    %0 = arith.cmpi eq, %arg2, %c0_i32 : i32
    %1 = arith.extui %0 : i1 to i32
    %c0_i32_0 = arith.constant 0 : i32
    %2 = arith.cmpi ne, %1, %c0_i32_0 : i32
    scf.if %2 {
      %cst_10 = arith.constant 0.000000e+00 : f32
      %12 = vector.broadcast %cst_10 : f32 to vector<16x256xf32>
      %c0_11 = arith.constant 0 : index
      %c0_12 = arith.constant 0 : index
      %13 = vector.load %arg7[%c0_11, %c0_12] : memref<16x256xf32, #tpu.memory_space<vmem>>, vector<16x256xf32>
      tpu.vector_store %arg7[%c0_11, %c0_12], %12 {strides = array<i32>} : memref<16x256xf32, #tpu.memory_space<vmem>>, vector<16x256xf32>,
    } else {
    }
    %c0 = arith.constant 0 : index
    %c0_1 = arith.constant 0 : index
    %3 = vector.load %arg7[%c0, %c0_1] : memref<16x256xf32, #tpu.memory_space<vmem>>, vector<16x256xf32>
    %c0_2 = arith.constant 0 : index
    %c0_3 = arith.constant 0 : index
    %4 = vector.load %arg3[%c0_2, %c0_3] : memref<16x128xbf16, #tpu.memory_space<vmem>>, vector<16x128xbf16>
    %c0_4 = arith.constant 0 : index
    %c0_5 = arith.constant 0 : index
    %5 = vector.load %arg4[%c0_4, %c0_5] : memref<128x256xbf16, #tpu.memory_space<vmem>>, vector<128x256xbf16>
    %cst = arith.constant dense<0.000000e+00> : vector<16x256xf32>
    %6 = tpu.matmul %4, %5, %cst {dimension_numbers = #tpu.dot_dimension_numbers<[1], [0], [0], [1], [0, 0, 1, 1], [], []>} : vector<16x128xbf16>, vector<128x256xbf16>, vector<16x256xf32> -> vector<16x256xf32>
    %7 = arith.addf %3, %6 : vector<16x256xf32>
    %c0_6 = arith.constant 0 : index
    %c0_7 = arith.constant 0 : index
    %8 = vector.load %arg7[%c0_6, %c0_7] : memref<16x256xf32, #tpu.memory_space<vmem>>, vector<16x256xf32>
    tpu.vector_store %arg7[%c0_6, %c0_7], %7 {strides = array<i32>} : memref<16x256xf32, #tpu.memory_space<vmem>>, vector<16x256xf32>,
    %c0_i32_8 = arith.constant 0 : i32
    %9 = arith.cmpi eq, %arg2, %c0_i32_8 : i32
    %10 = arith.extui %9 : i1 to i32
    %c0_i32_9 = arith.constant 0 : i32
    %11 = arith.cmpi ne, %10, %c0_i32_9 : i32
    scf.if %11 {
      %c0_10 = arith.constant 0 : index
      %c0_11 = arith.constant 0 : index
      %12 = vector.load %arg7[%c0_10, %c0_11] : memref<16x256xf32, #tpu.memory_space<vmem>>, vector<16x256xf32>
      %c0_12 = arith.constant 0 : index
      %c0_13 = arith.constant 0 : index
      %13 = vector.load %arg5[%c0_12, %c0_13] : memref<1x256xf32, #tpu.memory_space<vmem>>, vector<1x256xf32>
      %14 = vector.broadcast %13 : vector<1x256xf32> to vector<16x256xf32>
      %15 = arith.addf %12, %14 : vector<16x256xf32>
      %16 = arith.truncf %15 : vector<16x256xf32> to vector<16x256xbf16>
      %c0_14 = arith.constant 0 : index
      %c0_15 = arith.constant 0 : index
      %17 = vector.load %arg6[%c0_14, %c0_15] : memref<16x256xbf16, #tpu.memory_space<vmem>>, vector<16x256xbf16>
      tpu.vector_store %arg6[%c0_14, %c0_15], %16 {strides = array<i32>} : memref<16x256xbf16, #tpu.memory_space<vmem>>, vector<16x256xbf16>,
    } else {
    }
    return
  }
  func.func @transform_0(%arg0: i32, %arg1: i32, %arg2: i32) -> (i32, i32) {
    %c0_i32 = arith.constant 0 : i32
    return %arg0, %arg2 : i32, i32
  }
  func.func @transform_1(%arg0: i32, %arg1: i32, %arg2: i32) -> (i32, i32) {
    %c0_i32 = arith.constant 0 : i32
    return %arg2, %arg1 : i32, i32
  }
  func.func @transform_2(%arg0: i32, %arg1: i32, %arg2: i32) -> (i32, i32) {
    %c0_i32 = arith.constant 0 : i32
    %c0_i32_0 = arith.constant 0 : i32
    return %c0_i32, %arg1 : i32, i32
  }
  func.func @transform_3(%arg0: i32, %arg1: i32, %arg2: i32) -> (i32, i32) {
    %c0_i32 = arith.constant 0 : i32
    return %arg0, %arg1 : i32, i32
  }
}

module attributes {stable_mosaic.version = 11 : i64} {
  func.func @_mm_bias_kernel(%arg0: i32, %arg1: i32, %arg2: i32, %arg3: memref<16x256xbf16, #tpu.memory_space<vmem>>, %arg4: memref<256x128xbf16, #tpu.memory_space<vmem>>, %arg5: memref<1x128xf32, #tpu.memory_space<vmem>>, %arg6: memref<16x128xbf16, #tpu.memory_space<vmem>>, %arg7: memref<16x128xf32, #tpu.memory_space<vmem>>) attributes {dimension_semantics = [#tpu.dimension_semantics<parallel>, #tpu.dimension_semantics<parallel>, #tpu.dimension_semantics<arbitrary>], iteration_bounds = array<i64: 1, 1, 1>, scalar_prefetch = 0 : i64, scratch_operands = 1 : i64, tpu.core_type = #tpu.core_type<tc>, window_params = [{transform_indices = @transform_0, window_bounds = array<i64: 16, 256>}, {transform_indices = @transform_1, window_bounds = array<i64: 256, 128>}, {transform_indices = @transform_2, window_bounds = array<i64: 1, 128>}, {transform_indices = @transform_3, window_bounds = array<i64: 16, 128>}]} {
    %c0_i32 = arith.constant 0 : i32
    %0 = arith.cmpi eq, %arg2, %c0_i32 : i32
    %1 = arith.extui %0 : i1 to i32
    %c0_i32_0 = arith.constant 0 : i32
    %2 = arith.cmpi ne, %1, %c0_i32_0 : i32
    scf.if %2 {
      %cst_10 = arith.constant 0.000000e+00 : f32
      %12 = vector.broadcast %cst_10 : f32 to vector<16x128xf32>
      %c0_11 = arith.constant 0 : index
      %c0_12 = arith.constant 0 : index
      %13 = vector.load %arg7[%c0_11, %c0_12] : memref<16x128xf32, #tpu.memory_space<vmem>>, vector<16x128xf32>
      tpu.vector_store %arg7[%c0_11, %c0_12], %12 {strides = array<i32>} : memref<16x128xf32, #tpu.memory_space<vmem>>, vector<16x128xf32>,
    } else {
    }
    %c0 = arith.constant 0 : index
    %c0_1 = arith.constant 0 : index
    %3 = vector.load %arg7[%c0, %c0_1] : memref<16x128xf32, #tpu.memory_space<vmem>>, vector<16x128xf32>
    %c0_2 = arith.constant 0 : index
    %c0_3 = arith.constant 0 : index
    %4 = vector.load %arg3[%c0_2, %c0_3] : memref<16x256xbf16, #tpu.memory_space<vmem>>, vector<16x256xbf16>
    %c0_4 = arith.constant 0 : index
    %c0_5 = arith.constant 0 : index
    %5 = vector.load %arg4[%c0_4, %c0_5] : memref<256x128xbf16, #tpu.memory_space<vmem>>, vector<256x128xbf16>
    %cst = arith.constant dense<0.000000e+00> : vector<16x128xf32>
    %6 = tpu.matmul %4, %5, %cst {dimension_numbers = #tpu.dot_dimension_numbers<[1], [0], [0], [1], [0, 0, 1, 1], [], []>} : vector<16x256xbf16>, vector<256x128xbf16>, vector<16x128xf32> -> vector<16x128xf32>
    %7 = arith.addf %3, %6 : vector<16x128xf32>
    %c0_6 = arith.constant 0 : index
    %c0_7 = arith.constant 0 : index
    %8 = vector.load %arg7[%c0_6, %c0_7] : memref<16x128xf32, #tpu.memory_space<vmem>>, vector<16x128xf32>
    tpu.vector_store %arg7[%c0_6, %c0_7], %7 {strides = array<i32>} : memref<16x128xf32, #tpu.memory_space<vmem>>, vector<16x128xf32>,
    %c0_i32_8 = arith.constant 0 : i32
    %9 = arith.cmpi eq, %arg2, %c0_i32_8 : i32
    %10 = arith.extui %9 : i1 to i32
    %c0_i32_9 = arith.constant 0 : i32
    %11 = arith.cmpi ne, %10, %c0_i32_9 : i32
    scf.if %11 {
      %c0_10 = arith.constant 0 : index
      %c0_11 = arith.constant 0 : index
      %12 = vector.load %arg7[%c0_10, %c0_11] : memref<16x128xf32, #tpu.memory_space<vmem>>, vector<16x128xf32>
      %c0_12 = arith.constant 0 : index
      %c0_13 = arith.constant 0 : index
      %13 = vector.load %arg5[%c0_12, %c0_13] : memref<1x128xf32, #tpu.memory_space<vmem>>, vector<1x128xf32>
      %14 = vector.broadcast %13 : vector<1x128xf32> to vector<16x128xf32>
      %15 = arith.addf %12, %14 : vector<16x128xf32>
      %cst_14 = arith.constant 0.000000e+00 : f32
      %16 = vector.broadcast %cst_14 : f32 to vector<16x128xf32>
      %17 = arith.maximumf %15, %16 : vector<16x128xf32>
      %18 = arith.truncf %17 : vector<16x128xf32> to vector<16x128xbf16>
      %c0_15 = arith.constant 0 : index
      %c0_16 = arith.constant 0 : index
      %19 = vector.load %arg6[%c0_15, %c0_16] : memref<16x128xbf16, #tpu.memory_space<vmem>>, vector<16x128xbf16>
      tpu.vector_store %arg6[%c0_15, %c0_16], %18 {strides = array<i32>} : memref<16x128xbf16, #tpu.memory_space<vmem>>, vector<16x128xbf16>,
    } else {
    }
    return
  }
  func.func @transform_0(%arg0: i32, %arg1: i32, %arg2: i32) -> (i32, i32) {
    %c0_i32 = arith.constant 0 : i32
    return %arg0, %arg2 : i32, i32
  }
  func.func @transform_1(%arg0: i32, %arg1: i32, %arg2: i32) -> (i32, i32) {
    %c0_i32 = arith.constant 0 : i32
    return %arg2, %arg1 : i32, i32
  }
  func.func @transform_2(%arg0: i32, %arg1: i32, %arg2: i32) -> (i32, i32) {
    %c0_i32 = arith.constant 0 : i32
    %c0_i32_0 = arith.constant 0 : i32
    return %c0_i32, %arg1 : i32, i32
  }
  func.func @transform_3(%arg0: i32, %arg1: i32, %arg2: i32) -> (i32, i32) {
    %c0_i32 = arith.constant 0 : i32
    return %arg0, %arg1 : i32, i32
  }
}

module attributes {stable_mosaic.version = 11 : i64} {
  func.func @_mm_bias_res_kernel(%arg0: i32, %arg1: i32, %arg2: i32, %arg3: memref<16x128xbf16, #tpu.memory_space<vmem>>, %arg4: memref<128x256xbf16, #tpu.memory_space<vmem>>, %arg5: memref<1x256xf32, #tpu.memory_space<vmem>>, %arg6: memref<16x256xbf16, #tpu.memory_space<vmem>>, %arg7: memref<16x256xbf16, #tpu.memory_space<vmem>>, %arg8: memref<16x256xf32, #tpu.memory_space<vmem>>) attributes {dimension_semantics = [#tpu.dimension_semantics<parallel>, #tpu.dimension_semantics<parallel>, #tpu.dimension_semantics<arbitrary>], iteration_bounds = array<i64: 1, 1, 1>, scalar_prefetch = 0 : i64, scratch_operands = 1 : i64, tpu.core_type = #tpu.core_type<tc>, window_params = [{transform_indices = @transform_0, window_bounds = array<i64: 16, 128>}, {transform_indices = @transform_1, window_bounds = array<i64: 128, 256>}, {transform_indices = @transform_2, window_bounds = array<i64: 1, 256>}, {transform_indices = @transform_3, window_bounds = array<i64: 16, 256>}, {transform_indices = @transform_4, window_bounds = array<i64: 16, 256>}]} {
    %c0_i32 = arith.constant 0 : i32
    %0 = arith.cmpi eq, %arg2, %c0_i32 : i32
    %1 = arith.extui %0 : i1 to i32
    %c0_i32_0 = arith.constant 0 : i32
    %2 = arith.cmpi ne, %1, %c0_i32_0 : i32
    scf.if %2 {
      %cst_10 = arith.constant 0.000000e+00 : f32
      %12 = vector.broadcast %cst_10 : f32 to vector<16x256xf32>
      %c0_11 = arith.constant 0 : index
      %c0_12 = arith.constant 0 : index
      %13 = vector.load %arg8[%c0_11, %c0_12] : memref<16x256xf32, #tpu.memory_space<vmem>>, vector<16x256xf32>
      tpu.vector_store %arg8[%c0_11, %c0_12], %12 {strides = array<i32>} : memref<16x256xf32, #tpu.memory_space<vmem>>, vector<16x256xf32>,
    } else {
    }
    %c0 = arith.constant 0 : index
    %c0_1 = arith.constant 0 : index
    %3 = vector.load %arg8[%c0, %c0_1] : memref<16x256xf32, #tpu.memory_space<vmem>>, vector<16x256xf32>
    %c0_2 = arith.constant 0 : index
    %c0_3 = arith.constant 0 : index
    %4 = vector.load %arg3[%c0_2, %c0_3] : memref<16x128xbf16, #tpu.memory_space<vmem>>, vector<16x128xbf16>
    %c0_4 = arith.constant 0 : index
    %c0_5 = arith.constant 0 : index
    %5 = vector.load %arg4[%c0_4, %c0_5] : memref<128x256xbf16, #tpu.memory_space<vmem>>, vector<128x256xbf16>
    %cst = arith.constant dense<0.000000e+00> : vector<16x256xf32>
    %6 = tpu.matmul %4, %5, %cst {dimension_numbers = #tpu.dot_dimension_numbers<[1], [0], [0], [1], [0, 0, 1, 1], [], []>} : vector<16x128xbf16>, vector<128x256xbf16>, vector<16x256xf32> -> vector<16x256xf32>
    %7 = arith.addf %3, %6 : vector<16x256xf32>
    %c0_6 = arith.constant 0 : index
    %c0_7 = arith.constant 0 : index
    %8 = vector.load %arg8[%c0_6, %c0_7] : memref<16x256xf32, #tpu.memory_space<vmem>>, vector<16x256xf32>
    tpu.vector_store %arg8[%c0_6, %c0_7], %7 {strides = array<i32>} : memref<16x256xf32, #tpu.memory_space<vmem>>, vector<16x256xf32>,
    %c0_i32_8 = arith.constant 0 : i32
    %9 = arith.cmpi eq, %arg2, %c0_i32_8 : i32
    %10 = arith.extui %9 : i1 to i32
    %c0_i32_9 = arith.constant 0 : i32
    %11 = arith.cmpi ne, %10, %c0_i32_9 : i32
    scf.if %11 {
      %c0_10 = arith.constant 0 : index
      %c0_11 = arith.constant 0 : index
      %12 = vector.load %arg8[%c0_10, %c0_11] : memref<16x256xf32, #tpu.memory_space<vmem>>, vector<16x256xf32>
      %c0_12 = arith.constant 0 : index
      %c0_13 = arith.constant 0 : index
      %13 = vector.load %arg5[%c0_12, %c0_13] : memref<1x256xf32, #tpu.memory_space<vmem>>, vector<1x256xf32>
      %14 = vector.broadcast %13 : vector<1x256xf32> to vector<16x256xf32>
      %15 = arith.addf %12, %14 : vector<16x256xf32>
      %c0_14 = arith.constant 0 : index
      %c0_15 = arith.constant 0 : index
      %16 = vector.load %arg6[%c0_14, %c0_15] : memref<16x256xbf16, #tpu.memory_space<vmem>>, vector<16x256xbf16>
      %17 = arith.extf %16 : vector<16x256xbf16> to vector<16x256xf32>
      %18 = arith.addf %15, %17 : vector<16x256xf32>
      %cst_16 = arith.constant 0.000000e+00 : f32
      %19 = vector.broadcast %cst_16 : f32 to vector<16x256xf32>
      %20 = arith.maximumf %18, %19 : vector<16x256xf32>
      %21 = arith.truncf %20 : vector<16x256xf32> to vector<16x256xbf16>
      %c0_17 = arith.constant 0 : index
      %c0_18 = arith.constant 0 : index
      %22 = vector.load %arg7[%c0_17, %c0_18] : memref<16x256xbf16, #tpu.memory_space<vmem>>, vector<16x256xbf16>
      tpu.vector_store %arg7[%c0_17, %c0_18], %21 {strides = array<i32>} : memref<16x256xbf16, #tpu.memory_space<vmem>>, vector<16x256xbf16>,
    } else {
    }
    return
  }
  func.func @transform_0(%arg0: i32, %arg1: i32, %arg2: i32) -> (i32, i32) {
    %c0_i32 = arith.constant 0 : i32
    return %arg0, %arg2 : i32, i32
  }
  func.func @transform_1(%arg0: i32, %arg1: i32, %arg2: i32) -> (i32, i32) {
    %c0_i32 = arith.constant 0 : i32
    return %arg2, %arg1 : i32, i32
  }
  func.func @transform_2(%arg0: i32, %arg1: i32, %arg2: i32) -> (i32, i32) {
    %c0_i32 = arith.constant 0 : i32
    %c0_i32_0 = arith.constant 0 : i32
    return %c0_i32, %arg1 : i32, i32
  }
  func.func @transform_3(%arg0: i32, %arg1: i32, %arg2: i32) -> (i32, i32) {
    %c0_i32 = arith.constant 0 : i32
    return %arg0, %arg1 : i32, i32
  }
  func.func @transform_4(%arg0: i32, %arg1: i32, %arg2: i32) -> (i32, i32) {
    %c0_i32 = arith.constant 0 : i32
    return %arg0, %arg1 : i32, i32
  }
}

module attributes {stable_mosaic.version = 11 : i64} {
  func.func @_pool_embed_kernel(%arg0: i32, %arg1: memref<2x1x256xbf16, #tpu.memory_space<vmem>>, %arg2: memref<256x32xf32, #tpu.memory_space<vmem>>, %arg3: memref<1x32xf32, #tpu.memory_space<vmem>>, %arg4: memref<2x32xf32, #tpu.memory_space<vmem>>) attributes {dimension_semantics = [#tpu.dimension_semantics<arbitrary>], iteration_bounds = array<i64: 1>, scalar_prefetch = 0 : i64, scratch_operands = 0 : i64, tpu.core_type = #tpu.core_type<tc>, window_params = [{pipeline_mode = #tpu.pipeline_mode<synchronous>, transform_indices = @transform_0, window_bounds = array<i64: 2, 1, 256>}, {pipeline_mode = #tpu.pipeline_mode<synchronous>, transform_indices = @transform_1, window_bounds = array<i64: 256, 32>}, {pipeline_mode = #tpu.pipeline_mode<synchronous>, transform_indices = @transform_2, window_bounds = array<i64: 1, 32>}, {pipeline_mode = #tpu.pipeline_mode<synchronous>, transform_indices = @transform_3, window_bounds = array<i64: 2, 32>}]} {
    %c0 = arith.constant 0 : index
    %c0_0 = arith.constant 0 : index
    %c0_1 = arith.constant 0 : index
    %0 = vector.load %arg1[%c0, %c0_0, %c0_1] : memref<2x1x256xbf16, #tpu.memory_space<vmem>>, vector<2x1x256xbf16>
    %1 = arith.extf %0 : vector<2x1x256xbf16> to vector<2x1x256xf32>
    %cst = arith.constant dense<0.000000e+00> : vector<2x256xf32>
    %2 = vector.multi_reduction <add>, %1, %cst [1] : vector<2x1x256xf32> to vector<2x256xf32>
    %cst_2 = arith.constant 1.000000e+00 : f32
    %3 = vector.broadcast %cst_2 : f32 to vector<2x256xf32>
    %4 = arith.divf %2, %3 : vector<2x256xf32>
    %c0_3 = arith.constant 0 : index
    %c0_4 = arith.constant 0 : index
    %5 = vector.load %arg2[%c0_3, %c0_4] : memref<256x32xf32, #tpu.memory_space<vmem>>, vector<256x32xf32>
    %cst_5 = arith.constant dense<0.000000e+00> : vector<2x32xf32>
    %6 = tpu.matmul %4, %5, %cst_5 {dimension_numbers = #tpu.dot_dimension_numbers<[1], [0], [0], [1], [0, 0, 1, 1], [], []>} : vector<2x256xf32>, vector<256x32xf32>, vector<2x32xf32> -> vector<2x32xf32>
    %c0_6 = arith.constant 0 : index
    %c0_7 = arith.constant 0 : index
    %7 = vector.load %arg3[%c0_6, %c0_7] : memref<1x32xf32, #tpu.memory_space<vmem>>, vector<1x32xf32>
    %8 = vector.broadcast %7 : vector<1x32xf32> to vector<2x32xf32>
    %9 = arith.addf %6, %8 : vector<2x32xf32>
    %c0_8 = arith.constant 0 : index
    %c0_9 = arith.constant 0 : index
    %10 = vector.load %arg4[%c0_8, %c0_9] : memref<2x32xf32, #tpu.memory_space<vmem>>, vector<2x32xf32>
    tpu.vector_store %arg4[%c0_8, %c0_9], %9 {strides = array<i32>} : memref<2x32xf32, #tpu.memory_space<vmem>>, vector<2x32xf32>,
    return
  }
  func.func @transform_0(%arg0: i32) -> (i32, i32, i32) {
    %c0_i32 = arith.constant 0 : i32
    %c0_i32_0 = arith.constant 0 : i32
    %c0_i32_1 = arith.constant 0 : i32
    %c0_i32_2 = arith.constant 0 : i32
    return %c0_i32, %c0_i32_0, %c0_i32_1 : i32, i32, i32
  }
  func.func @transform_1(%arg0: i32) -> (i32, i32) {
    %c0_i32 = arith.constant 0 : i32
    %c0_i32_0 = arith.constant 0 : i32
    %c0_i32_1 = arith.constant 0 : i32
    return %c0_i32, %c0_i32_0 : i32, i32
  }
  func.func @transform_2(%arg0: i32) -> (i32, i32) {
    %c0_i32 = arith.constant 0 : i32
    %c0_i32_0 = arith.constant 0 : i32
    %c0_i32_1 = arith.constant 0 : i32
    return %c0_i32, %c0_i32_0 : i32, i32
  }
  func.func @transform_3(%arg0: i32) -> (i32, i32) {
    %c0_i32 = arith.constant 0 : i32
    %c0_i32_0 = arith.constant 0 : i32
    %c0_i32_1 = arith.constant 0 : i32
    return %c0_i32, %c0_i32_0 : i32, i32
  }
}

</mosaic_0001>

<llo_original>
// kernel: _lambda_.55
$region0: #{_lambda_.55}
  #allocation0 [shape = 'u32[]', space=smem, size = 0x4, offset = 0x4, fixed_abs, tag = 'smem constant byte address 0x4 - core index']
  #allocation1 [shape = 'u32[72,128]{1,0:T(1,128)}', space=vmem, size = 0x9000, scoped, tag = 'internal scratch']
  #allocation2 [shape = 'f32[128,128]{1,0:T(8,128)}', space=vmem, size = 0x10000, scoped, tag = 'scratch operand']
  %s0 = inlined_call_operand.vmem [shape: bf16[128,128], index: 0, kind: input, shape index: {}]
  %s1 = inlined_call_operand.vmem [shape: bf16[128,128], index: 1, kind: input, shape index: {}]
  %s2 = inlined_call_operand.vmem [shape: f32[1,128], index: 2, kind: input, shape index: {}]
  %s3 = inlined_call_operand.vmem [shape: bf16[128,128], index: 3, kind: output, shape index: {}]
  %s4 = sld [smem:[#allocation0]]
  $region30: #{_lambda_.55} parent=0
    _
  %s6 = ssub.s32 1, %s4
  %s7 = scalar_select 0, %s6, %s4
  // Predicated region
  $region2: #{_lambda_.55} parent=0 // pred_check
    _
  $region3: #{_lambda_.55} parent=0 // pred_check_branch
    %9 = sbr.rel (0) target = $region5
  $region4: #{_lambda_.55} parent=0 // pred_region
    _
  $region5: #{_lambda_.55} parent=0 // pred_fallthru
    _
  // Predicated region
  $region6: #{_lambda_.55} parent=0 // pred_check
    _
  $region7: #{_lambda_.55} parent=0 // pred_check_branch
    %11 = sbr.rel (0) target = $region9
  $region8: #{_lambda_.55} parent=0 // pred_region
    _
  $region9: #{_lambda_.55} parent=0 // pred_fallthru
    _
  // Predicated region
  $region10: #{_lambda_.55} parent=0 // pred_check
    _
  $region11: #{_lambda_.55} parent=0 // pred_check_branch
    %13 = sbr.rel (0) target = $region13
  $region12: #{_lambda_.55} parent=0 // pred_region
    _
  $region13: #{_lambda_.55} parent=0 // pred_fallthru
    _
  %p14 = scmp.eq.s32.totalorder 0, 0
  // Predicated region
  $region14: #{_lambda_.55} parent=0 // pred_check
    %p15 = pneg %p14
  $region15: #{_lambda_.55} parent=0 // pred_check_branch
    %17 = sbr.rel (%p15) target = $region17
  $region16: #{_lambda_.55} parent=0 // pred_region
    %18 = vst [vmem:[#allocation2] sm:$0xff] 0.0
    %19 = vst [vmem:[#allocation2 + $0x8] sm:$0xff] 0.0
    %20 = vst [vmem:[#allocation2 + $0x10] sm:$0xff] 0.0
    %21 = vst [vmem:[#allocation2 + $0x18] sm:$0xff] 0.0
    %22 = vst [vmem:[#allocation2 + $0x20] sm:$0xff] 0.0
    %23 = vst [vmem:[#allocation2 + $0x28] sm:$0xff] 0.0
    %24 = vst [vmem:[#allocation2 + $0x30] sm:$0xff] 0.0
    %25 = vst [vmem:[#allocation2 + $0x38] sm:$0xff] 0.0
    %26 = vst [vmem:[#allocation2 + $0x40] sm:$0xff] 0.0
    %27 = vst [vmem:[#allocation2 + $0x48] sm:$0xff] 0.0
    %28 = vst [vmem:[#allocation2 + $0x50] sm:$0xff] 0.0
    %29 = vst [vmem:[#allocation2 + $0x58] sm:$0xff] 0.0
    %30 = vst [vmem:[#allocation2 + $0x60] sm:$0xff] 0.0
    %31 = vst [vmem:[#allocation2 + $0x68] sm:$0xff] 0.0
    %32 = vst [vmem:[#allocation2 + $0x70] sm:$0xff] 0.0
    %33 = vst [vmem:[#allocation2 + $0x78] sm:$0xff] 0.0
  $region17: #{_lambda_.55} parent=0 // pred_fallthru
    _
  %v34 = vld [vmem:[#allocation2] sm:$0xff]
  %v35 = vld [vmem:[#allocation2 + $0x8] sm:$0xff]
  %v36 = vld [vmem:[#allocation2 + $0x10] sm:$0xff]
  %v37 = vld [vmem:[#allocation2 + $0x18] sm:$0xff]
  %v38 = vld [vmem:[#allocation2 + $0x20] sm:$0xff]
  %v39 = vld [vmem:[#allocation2 + $0x28] sm:$0xff]
  %v40 = vld [vmem:[#allocation2 + $0x30] sm:$0xff]
  %v41 = vld [vmem:[#allocation2 + $0x38] sm:$0xff]
  %v42 = vld [vmem:[#allocation2 + $0x40] sm:$0xff]
  %v43 = vld [vmem:[#allocation2 + $0x48] sm:$0xff]
  %v44 = vld [vmem:[#allocation2 + $0x50] sm:$0xff]
  %v45 = vld [vmem:[#allocation2 + $0x58] sm:$0xff]
  %v46 = vld [vmem:[#allocation2 + $0x60] sm:$0xff]
  %v47 = vld [vmem:[#allocation2 + $0x68] sm:$0xff]
  %v48 = vld [vmem:[#allocation2 + $0x70] sm:$0xff]
  %v49 = vld [vmem:[#allocation2 + $0x78] sm:$0xff]
  %v50 = vld [vmem:[%s0] sm:$0xf]
  %v51 = vld [vmem:[%s0 + $0x4] sm:$0xf]
  %v52 = vld [vmem:[%s0 + $0x8] sm:$0xf]
  %v53 = vld [vmem:[%s0 + $0xc] sm:$0xf]
  %v54 = vld [vmem:[%s0 + $0x10] sm:$0xf]
  %v55 = vld [vmem:[%s0 + $0x14] sm:$0xf]
  %v56 = vld [vmem:[%s0 + $0x18] sm:$0xf]
  %v57 = vld [vmem:[%s0 + $0x1c] sm:$0xf]
  %v58 = vld [vmem:[%s0 + $0x20] sm:$0xf]
  %v59 = vld [vmem:[%s0 + $0x24] sm:$0xf]
  %v60 = vld [vmem:[%s0 + $0x28] sm:$0xf]
  %v61 = vld [vmem:[%s0 + $0x2c] sm:$0xf]
  %v62 = vld [vmem:[%s0 + $0x30] sm:$0xf]
  %v63 = vld [vmem:[%s0 + $0x34] sm:$0xf]
  %v64 = vld [vmem:[%s0 + $0x38] sm:$0xf]
  %v65 = vld [vmem:[%s0 + $0x3c] sm:$0xf]
  %v66 = vld [vmem:[%s1] sm:$0xf]
  %v67 = vld [vmem:[%s1 + $0x4] sm:$0xf]
  %v68 = vld [vmem:[%s1 + $0x8] sm:$0xf]
  %v69 = vld [vmem:[%s1 + $0xc] sm:$0xf]
  %v70 = vld [vmem:[%s1 + $0x10] sm:$0xf]
  %v71 = vld [vmem:[%s1 + $0x14] sm:$0xf]
  %v72 = vld [vmem:[%s1 + $0x18] sm:$0xf]
  %v73 = vld [vmem:[%s1 + $0x1c] sm:$0xf]
  %v74 = vld [vmem:[%s1 + $0x20] sm:$0xf]
  %v75 = vld [vmem:[%s1 + $0x24] sm:$0xf]
  %v76 = vld [vmem:[%s1 + $0x28] sm:$0xf]
  %v77 = vld [vmem:[%s1 + $0x2c] sm:$0xf]
  %v78 = vld [vmem:[%s1 + $0x30] sm:$0xf]
  %v79 = vld [vmem:[%s1 + $0x34] sm:$0xf]
  %v80 = vld [vmem:[%s1 + $0x38] sm:$0xf]
  %v81 = vld [vmem:[%s1 + $0x3c] sm:$0xf]
  %v98 = vunpack.c.l.b16 %v50
  %v99 = vunpack.c.l.b16 %v51
  %v100 = vunpack.c.l.b16 %v52
  %v101 = vunpack.c.l.b16 %v53
  %v102 = vunpack.c.l.b16 %v54
  %v103 = vunpack.c.l.b16 %v55
  %v104 = vunpack.c.l.b16 %v56
  %v105 = vunpack.c.l.b16 %v57
  %v106 = vunpack.c.l.b16 %v58
  %v107 = vunpack.c.l.b16 %v59
  %v108 = vunpack.c.l.b16 %v60
  %v109 = vunpack.c.l.b16 %v61
  %v110 = vunpack.c.l.b16 %v62
  %v111 = vunpack.c.l.b16 %v63
  %v112 = vunpack.c.l.b16 %v64
  %v113 = vunpack.c.l.b16 %v65
  %v114 = vpack.c.b16 %v99, %v98
  %v115 = vpack.c.b16 %v101, %v100
  %v116 = vpack.c.b16 %v103, %v102
  %v117 = vpack.c.b16 %v105, %v104
  %v118 = vpack.c.b16 %v107, %v106
  %v119 = vpack.c.b16 %v109, %v108
  %v120 = vpack.c.b16 %v111, %v110
  %v121 = vpack.c.b16 %v113, %v112
  %v146 = vunpack.c.l.b16 %v66
  %v147 = vunpack.c.l.b16 %v67
  %v148 = vunpack.c.l.b16 %v68
  %v149 = vunpack.c.l.b16 %v69
  %v150 = vunpack.c.l.b16 %v70
  %v151 = vunpack.c.l.b16 %v71
  %v152 = vunpack.c.l.b16 %v72
  %v153 = vunpack.c.l.b16 %v73
  %v154 = vunpack.c.l.b16 %v74
  %v155 = vunpack.c.l.b16 %v75
  %v156 = vunpack.c.l.b16 %v76
  %v157 = vunpack.c.l.b16 %v77
  %v158 = vunpack.c.l.b16 %v78
  %v159 = vunpack.c.l.b16 %v79
  %v160 = vunpack.c.l.b16 %v80
  %v161 = vunpack.c.l.b16 %v81
  %v162 = vpack.c.b16 %v147, %v146
  %v163 = vpack.c.b16 %v149, %v148
  %v164 = vpack.c.b16 %v151, %v150
  %v165 = vpack.c.b16 %v153, %v152
  %v166 = vpack.c.b16 %v155, %v154
  %v167 = vpack.c.b16 %v157, %v156
  %v168 = vpack.c.b16 %v159, %v158
  %v169 = vpack.c.b16 %v161, %v160
  %178 = vmatpush.bf16.msra.mxu0 %v169
  %179 = vmatpush.bf16.msra.mxu0 %v168
  %180 = vmatpush.bf16.msra.mxu0 %v167
  %181 = vmatpush.bf16.msra.mxu0 %v166
  %182 = vmatpush.bf16.msra.mxu0 %v165
  %183 = vmatpush.bf16.msra.mxu0 %v164
  %184 = vmatpush.bf16.msra.mxu0 %v163
  %185 = vmatpush.bf16.msra.mxu0 %v162
  %186 = vmatmul.bf16.gmra.mxu0 %v114
  %v187 = vpop.f32.mrf.mxu0
  %v188 = vadd.f32 0.0, %v187
  %v189 = vpop.f32.mrf.mxu0
  %v190 = vadd.f32 0.0, %v189
  %191 = vmatmul.bf16.gmra.mxu0 %v115
  %v192 = vpop.f32.mrf.mxu0
  %v193 = vadd.f32 0.0, %v192
  %v194 = vpop.f32.mrf.mxu0
  %v195 = vadd.f32 0.0, %v194
  %196 = vmatmul.bf16.gmra.mxu0 %v116
  %v197 = vpop.f32.mrf.mxu0
  %v198 = vadd.f32 0.0, %v197
  %v199 = vpop.f32.mrf.mxu0
  %v200 = vadd.f32 0.0, %v199
  %201 = vmatmul.bf16.gmra.mxu0 %v117
  %v202 = vpop.f32.mrf.mxu0
  %v203 = vadd.f32 0.0, %v202
  %v204 = vpop.f32.mrf.mxu0
  %v205 = vadd.f32 0.0, %v204
  %206 = vmatmul.bf16.gmra.mxu0 %v118
  %v207 = vpop.f32.mrf.mxu0
  %v208 = vadd.f32 0.0, %v207
  %v209 = vpop.f32.mrf.mxu0
  %v210 = vadd.f32 0.0, %v209
  %211 = vmatmul.bf16.gmra.mxu0 %v119
  %v212 = vpop.f32.mrf.mxu0
  %v213 = vadd.f32 0.0, %v212
  %v214 = vpop.f32.mrf.mxu0
  %v215 = vadd.f32 0.0, %v214
  %216 = vmatmul.bf16.gmra.mxu0 %v120
  %v217 = vpop.f32.mrf.mxu0
  %v218 = vadd.f32 0.0, %v217
  %v219 = vpop.f32.mrf.mxu0
  %v220 = vadd.f32 0.0, %v219
  %221 = vmatmul.bf16.gmra.mxu0 %v121
  %v222 = vpop.f32.mrf.mxu0
  %v223 = vadd.f32 0.0, %v222
  %v224 = vpop.f32.mrf.mxu0
  %v225 = vadd.f32 0.0, %v224
  %226 = vdwg.mxu0
  %v227 = vadd.f32 %v34, %v188
  %v228 = vadd.f32 %v35, %v190
  %v229 = vadd.f32 %v36, %v193
  %v230 = vadd.f32 %v37, %v195
  %v231 = vadd.f32 %v38, %v198
  %v232 = vadd.f32 %v39, %v200
  %v233 = vadd.f32 %v40, %v203
  %v234 = vadd.f32 %v41, %v205
  %v235 = vadd.f32 %v42, %v208
  %v236 = vadd.f32 %v43, %v210
  %v237 = vadd.f32 %v44, %v213
  %v238 = vadd.f32 %v45, %v215
  %v239 = vadd.f32 %v46, %v218
  %v240 = vadd.f32 %v47, %v220
  %v241 = vadd.f32 %v48, %v223
  %v242 = vadd.f32 %v49, %v225
  %243 = vst [vmem:[#allocation2] sm:$0xff] %v227
  %244 = vst [vmem:[#allocation2 + $0x8] sm:$0xff] %v228
  %245 = vst [vmem:[#allocation2 + $0x10] sm:$0xff] %v229
  %246 = vst [vmem:[#allocation2 + $0x18] sm:$0xff] %v230
  %247 = vst [vmem:[#allocation2 + $0x20] sm:$0xff] %v231
  %248 = vst [vmem:[#allocation2 + $0x28] sm:$0xff] %v232
  %249 = vst [vmem:[#allocation2 + $0x30] sm:$0xff] %v233
  %250 = vst [vmem:[#allocation2 + $0x38] sm:$0xff] %v234
  %251 = vst [vmem:[#allocation2 + $0x40] sm:$0xff] %v235
  %252 = vst [vmem:[#allocation2 + $0x48] sm:$0xff] %v236
  %253 = vst [vmem:[#allocation2 + $0x50] sm:$0xff] %v237
  %254 = vst [vmem:[#allocation2 + $0x58] sm:$0xff] %v238
  %255 = vst [vmem:[#allocation2 + $0x60] sm:$0xff] %v239
  %256 = vst [vmem:[#allocation2 + $0x68] sm:$0xff] %v240
  %257 = vst [vmem:[#allocation2 + $0x70] sm:$0xff] %v241
  %258 = vst [vmem:[#allocation2 + $0x78] sm:$0xff] %v242
  // Predicated region
  $region18: #{_lambda_.55} parent=0 // pred_check
    %p259 = pneg %p14
  $region19: #{_lambda_.55} parent=0 // pred_check_branch
    %261 = sbr.rel (%p259) target = $region21
  $region20: #{_lambda_.55} parent=0 // pred_region
    %v262 = vld [vmem:[#allocation2] sm:$0xff]
    %v263 = vld [vmem:[#allocation2 + $0x8] sm:$0xff]
    %v264 = vld [vmem:[#allocation2 + $0x10] sm:$0xff]
    %v265 = vld [vmem:[#allocation2 + $0x18] sm:$0xff]
    %v266 = vld [vmem:[#allocation2 + $0x20] sm:$0xff]
    %v267 = vld [vmem:[#allocation2 + $0x28] sm:$0xff]
    %v268 = vld [vmem:[#allocation2 + $0x30] sm:$0xff]
    %v269 = vld [vmem:[#allocation2 + $0x38] sm:$0xff]
    %v270 = vld [vmem:[#allocation2 + $0x40] sm:$0xff]
    %v271 = vld [vmem:[#allocation2 + $0x48] sm:$0xff]
    %v272 = vld [vmem:[#allocation2 + $0x50] sm:$0xff]
    %v273 = vld [vmem:[#allocation2 + $0x58] sm:$0xff]
    %v274 = vld [vmem:[#allocation2 + $0x60] sm:$0xff]
    %v275 = vld [vmem:[#allocation2 + $0x68] sm:$0xff]
    %v276 = vld [vmem:[#allocation2 + $0x70] sm:$0xff]
    %v277 = vld [vmem:[#allocation2 + $0x78] sm:$0xff]
    %v278 = vld [vmem:[%s2] sm:$0x1]
    %v280 = vperm.slane %v278, 0
    %v282 = vadd.f32 %v262, %v280
    %v283 = vadd.f32 %v263, %v280
    %v284 = vadd.f32 %v264, %v280
    %v285 = vadd.f32 %v265, %v280
    %v286 = vadd.f32 %v266, %v280
    %v287 = vadd.f32 %v267, %v280
    %v288 = vadd.f32 %v268, %v280
    %v289 = vadd.f32 %v269, %v280
    %v290 = vadd.f32 %v270, %v280
    %v291 = vadd.f32 %v271, %v280
    %v292 = vadd.f32 %v272, %v280
    %v293 = vadd.f32 %v273, %v280
    %v294 = vadd.f32 %v274, %v280
    %v295 = vadd.f32 %v275, %v280
    %v296 = vadd.f32 %v276, %v280
    %v297 = vadd.f32 %v277, %v280
    %v298 = vmax.f32 %v282, 0.0
    %v299 = vmax.f32 %v283, 0.0
    %v300 = vmax.f32 %v284, 0.0
    %v301 = vmax.f32 %v285, 0.0
    %v302 = vmax.f32 %v286, 0.0
    %v303 = vmax.f32 %v287, 0.0
    %v304 = vmax.f32 %v288, 0.0
    %v305 = vmax.f32 %v289, 0.0
    %v306 = vmax.f32 %v290, 0.0
    %v307 = vmax.f32 %v291, 0.0
    %v308 = vmax.f32 %v292, 0.0
    %v309 = vmax.f32 %v293, 0.0
    %v310 = vmax.f32 %v294, 0.0
    %v311 = vmax.f32 %v295, 0.0
    %v312 = vmax.f32 %v296, 0.0
    %v313 = vmax.f32 %v297, 0.0
    %v314 = vpack.c.bf16 %v298, %v298
    %v315 = vpack.c.bf16 %v299, %v299
    %v316 = vpack.c.bf16 %v300, %v300
    %v317 = vpack.c.bf16 %v301, %v301
    %v318 = vpack.c.bf16 %v302, %v302
    %v319 = vpack.c.bf16 %v303, %v303
    %v320 = vpack.c.bf16 %v304, %v304
    %v321 = vpack.c.bf16 %v305, %v305
    %v322 = vpack.c.bf16 %v306, %v306
    %v323 = vpack.c.bf16 %v307, %v307
    %v324 = vpack.c.bf16 %v308, %v308
    %v325 = vpack.c.bf16 %v309, %v309
    %v326 = vpack.c.bf16 %v310, %v310
    %v327 = vpack.c.bf16 %v311, %v311
    %v328 = vpack.c.bf16 %v312, %v312
    %v329 = vpack.c.bf16 %v313, %v313
    %330 = vst [vmem:[%s3] sm:$0xf] %v314
    %331 = vst [vmem:[%s3 + $0x4] sm:$0xf] %v315
    %332 = vst [vmem:[%s3 + $0x8] sm:$0xf] %v316
    %333 = vst [vmem:[%s3 + $0xc] sm:$0xf] %v317
    %334 = vst [vmem:[%s3 + $0x10] sm:$0xf] %v318
    %335 = vst [vmem:[%s3 + $0x14] sm:$0xf] %v319
    %336 = vst [vmem:[%s3 + $0x18] sm:$0xf] %v320
    %337 = vst [vmem:[%s3 + $0x1c] sm:$0xf] %v321
    %338 = vst [vmem:[%s3 + $0x20] sm:$0xf] %v322
    %339 = vst [vmem:[%s3 + $0x24] sm:$0xf] %v323
    %340 = vst [vmem:[%s3 + $0x28] sm:$0xf] %v324
    %341 = vst [vmem:[%s3 + $0x2c] sm:$0xf] %v325
    %342 = vst [vmem:[%s3 + $0x30] sm:$0xf] %v326
    %343 = vst [vmem:[%s3 + $0x34] sm:$0xf] %v327
    %344 = vst [vmem:[%s3 + $0x38] sm:$0xf] %v328
    %345 = vst [vmem:[%s3 + $0x3c] sm:$0xf] %v329
  $region21: #{_lambda_.55} parent=0 // pred_fallthru
    _
  // Predicated region
  $region22: #{_lambda_.55} parent=0 // pred_check
    _
  $region23: #{_lambda_.55} parent=0 // pred_check_branch
    %347 = sbr.rel (0) target = $region25
  $region24: #{_lambda_.55} parent=0 // pred_region
    _
  $region25: #{_lambda_.55} parent=0 // pred_fallthru
    _
  // Predicated region
  $region26: #{_lambda_.55} parent=0 // pred_check
    _
  $region27: #{_lambda_.55} parent=0 // pred_check_branch
    %349 = sbr.rel (0) target = $region29
  $region28: #{_lambda_.55} parent=0 // pred_region
    _
  $region29: #{_lambda_.55} parent=0 // pred_fallthru
    _

// kernel: _lambda_.54
$region0: #{_lambda_.54}
  #allocation0 [shape = 'u32[]', space=smem, size = 0x4, offset = 0x4, fixed_abs, tag = 'smem constant byte address 0x4 - core index']
  #allocation1 [shape = 'u32[72,128]{1,0:T(1,128)}', space=vmem, size = 0x9000, scoped, tag = 'internal scratch']
  #allocation2 [shape = 'f32[512,128]{1,0:T(8,128)}', space=vmem, size = 0x40000, scoped, tag = 'scratch operand']
  %s0 = inlined_call_operand.vmem [shape: bf16[512,256], index: 0, kind: input, shape index: {}]
  %s1 = inlined_call_operand.vmem [shape: bf16[256,128], index: 1, kind: input, shape index: {}]
  %s2 = inlined_call_operand.vmem [shape: f32[1,128], index: 2, kind: input, shape index: {}]
  %s3 = inlined_call_operand.vmem [shape: bf16[512,128], index: 3, kind: output, shape index: {}]
  %s4 = sld [smem:[#allocation0]]
  $region30: #{_lambda_.54} parent=0
    _
  %s6 = ssub.s32 1, %s4
  %s7 = scalar_select 0, %s6, %s4
  // Predicated region
  $region2: #{_lambda_.54} parent=0 // pred_check
    _
  $region3: #{_lambda_.54} parent=0 // pred_check_branch
    %9 = sbr.rel (0) target = $region5
  $region4: #{_lambda_.54} parent=0 // pred_region
    _
  $region5: #{_lambda_.54} parent=0 // pred_fallthru
    _
  // Predicated region
  $region6: #{_lambda_.54} parent=0 // pred_check
    _
  $region7: #{_lambda_.54} parent=0 // pred_check_branch
    %11 = sbr.rel (0) target = $region9
  $region8: #{_lambda_.54} parent=0 // pred_region
    _
  $region9: #{_lambda_.54} parent=0 // pred_fallthru
    _
  // Predicated region
  $region10: #{_lambda_.54} parent=0 // pred_check
    _
  $region11: #{_lambda_.54} parent=0 // pred_check_branch
    %13 = sbr.rel (0) target = $region13
  $region12: #{_lambda_.54} parent=0 // pred_region
    _
  $region13: #{_lambda_.54} parent=0 // pred_fallthru
    _
  %p14 = scmp.eq.s32.totalorder 0, 0
  // Predicated region
  $region14: #{_lambda_.54} parent=0 // pred_check
    %p15 = pneg %p14
  $region15: #{_lambda_.54} parent=0 // pred_check_branch
    %17 = sbr.rel (%p15) target = $region17
  $region16: #{_lambda_.54} parent=0 // pred_region
    %18 = vst [vmem:[#allocation2] sm:$0xff] 0.0
    %19 = vst [vmem:[#allocation2 + $0x8] sm:$0xff] 0.0
    %20 = vst [vmem:[#allocation2 + $0x10] sm:$0xff] 0.0
    %21 = vst [vmem:[#allocation2 + $0x18] sm:$0xff] 0.0
    %22 = vst [vmem:[#allocation2 + $0x20] sm:$0xff] 0.0
    %23 = vst [vmem:[#allocation2 + $0x28] sm:$0xff] 0.0
    %24 = vst [vmem:[#allocation2 + $0x30] sm:$0xff] 0.0
    %25 = vst [vmem:[#allocation2 + $0x38] sm:$0xff] 0.0
    %26 = vst [vmem:[#allocation2 + $0x40] sm:$0xff] 0.0
    %27 = vst [vmem:[#allocation2 + $0x48] sm:$0xff] 0.0
    %28 = vst [vmem:[#allocation2 + $0x50] sm:$0xff] 0.0
    %29 = vst [vmem:[#allocation2 + $0x58] sm:$0xff] 0.0
    %30 = vst [vmem:[#allocation2 + $0x60] sm:$0xff] 0.0
    %31 = vst [vmem:[#allocation2 + $0x68] sm:$0xff] 0.0
    %32 = vst [vmem:[#allocation2 + $0x70] sm:$0xff] 0.0
    %33 = vst [vmem:[#allocation2 + $0x78] sm:$0xff] 0.0
    %34 = vst [vmem:[#allocation2 + $0x80] sm:$0xff] 0.0
    %35 = vst [vmem:[#allocation2 + $0x88] sm:$0xff] 0.0
    %36 = vst [vmem:[#allocation2 + $0x90] sm:$0xff] 0.0
    %37 = vst [vmem:[#allocation2 + $0x98] sm:$0xff] 0.0
    %38 = vst [vmem:[#allocation2 + $0xa0] sm:$0xff] 0.0
    %39 = vst [vmem:[#allocation2 + $0xa8] sm:$0xff] 0.0
    %40 = vst [vmem:[#allocation2 + $0xb0] sm:$0xff] 0.0
    %41 = vst [vmem:[#allocation2 + $0xb8] sm:$0xff] 0.0
    %42 = vst [vmem:[#allocation2 + $0xc0] sm:$0xff] 0.0
    %43 = vst [vmem:[#allocation2 + $0xc8] sm:$0xff] 0.0
    %44 = vst [vmem:[#allocation2 + $0xd0] sm:$0xff] 0.0
    %45 = vst [vmem:[#allocation2 + $0xd8] sm:$0xff] 0.0
    %46 = vst [vmem:[#allocation2 + $0xe0] sm:$0xff] 0.0
    %47 = vst [vmem:[#allocation2 + $0xe8] sm:$0xff] 0.0
    %48 = vst [vmem:[#allocation2 + $0xf0] sm:$0xff] 0.0
    %49 = vst [vmem:[#allocation2 + $0xf8] sm:$0xff] 0.0
    %50 = vst [vmem:[#allocation2 + $0x100] sm:$0xff] 0.0
    %51 = vst [vmem:[#allocation2 + $0x108] sm:$0xff] 0.0
    %52 = vst [vmem:[#allocation2 + $0x110] sm:$0xff] 0.0
    %53 = vst [vmem:[#allocation2 + $0x118] sm:$0xff] 0.0
    %54 = vst [vmem:[#allocation2 + $0x120] sm:$0xff] 0.0
    %55 = vst [vmem:[#allocation2 + $0x128] sm:$0xff] 0.0
    %56 = vst [vmem:[#allocation2 + $0x130] sm:$0xff] 0.0
    %57 = vst [vmem:[#allocation2 + $0x138] sm:$0xff] 0.0
    %58 = vst [vmem:[#allocation2 + $0x140] sm:$0xff] 0.0
    %59 = vst [vmem:[#allocation2 + $0x148] sm:$0xff] 0.0
    %60 = vst [vmem:[#allocation2 + $0x150] sm:$0xff] 0.0
    %61 = vst [vmem:[#allocation2 + $0x158] sm:$0xff] 0.0
    %62 = vst [vmem:[#allocation2 + $0x160] sm:$0xff] 0.0
    %63 = vst [vmem:[#allocation2 + $0x168] sm:$0xff] 0.0
    %64 = vst [vmem:[#allocation2 + $0x170] sm:$0xff] 0.0
    %65 = vst [vmem:[#allocation2 + $0x178] sm:$0xff] 0.0
    %66 = vst [vmem:[#allocation2 + $0x180] sm:$0xff] 0.0
    %67 = vst [vmem:[#allocation2 + $0x188] sm:$0xff] 0.0
    %68 = vst [vmem:[#allocation2 + $0x190] sm:$0xff] 0.0
    %69 = vst [vmem:[#allocation2 + $0x198] sm:$0xff] 0.0
    %70 = vst [vmem:[#allocation2 + $0x1a0] sm:$0xff] 0.0
    %71 = vst [vmem:[#allocation2 + $0x1a8] sm:$0xff] 0.0
    %72 = vst [vmem:[#allocation2 + $0x1b0] sm:$0xff] 0.0
    %73 = vst [vmem:[#allocation2 + $0x1b8] sm:$0xff] 0.0
    %74 = vst [vmem:[#allocation2 + $0x1c0] sm:$0xff] 0.0
    %75 = vst [vmem:[#allocation2 + $0x1c8] sm:$0xff] 0.0
    %76 = vst [vmem:[#allocation2 + $0x1d0] sm:$0xff] 0.0
    %77 = vst [vmem:[#allocation2 + $0x1d8] sm:$0xff] 0.0
    %78 = vst [vmem:[#allocation2 + $0x1e0] sm:$0xff] 0.0
    %79 = vst [vmem:[#allocation2 + $0x1e8] sm:$0xff] 0.0
    %80 = vst [vmem:[#allocation2 + $0x1f0] sm:$0xff] 0.0
    %81 = vst [vmem:[#allocation2 + $0x1f8] sm:$0xff] 0.0
  $region17: #{_lambda_.54} parent=0 // pred_fallthru
    _
  %v82 = vld [vmem:[#allocation2] sm:$0xff]
  %v83 = vld [vmem:[#allocation2 + $0x8] sm:$0xff]
  %v84 = vld [vmem:[#allocation2 + $0x10] sm:$0xff]
  %v85 = vld [vmem:[#allocation2 + $0x18] sm:$0xff]
  %v86 = vld [vmem:[#allocation2 + $0x20] sm:$0xff]
  %v87 = vld [vmem:[#allocation2 + $0x28] sm:$0xff]
  %v88 = vld [vmem:[#allocation2 + $0x30] sm:$0xff]
  %v89 = vld [vmem:[#allocation2 + $0x38] sm:$0xff]
  %v90 = vld [vmem:[#allocation2 + $0x40] sm:$0xff]
  %v91 = vld [vmem:[#allocation2 + $0x48] sm:$0xff]
  %v92 = vld [vmem:[#allocation2 + $0x50] sm:$0xff]
  %v93 = vld [vmem:[#allocation2 + $0x58] sm:$0xff]
  %v94 = vld [vmem:[#allocation2 + $0x60] sm:$0xff]
  %v95 = vld [vmem:[#allocation2 + $0x68] sm:$0xff]
  %v96 = vld [vmem:[#allocation2 + $0x70] sm:$0xff]
  %v97 = vld [vmem:[#allocation2 + $0x78] sm:$0xff]
  %v98 = vld [vmem:[#allocation2 + $0x80] sm:$0xff]
  %v99 = vld [vmem:[#allocation2 + $0x88] sm:$0xff]
  %v100 = vld [vmem:[#allocation2 + $0x90] sm:$0xff]
  %v101 = vld [vmem:[#allocation2 + $0x98] sm:$0xff]
  %v102 = vld [vmem:[#allocation2 + $0xa0] sm:$0xff]
  %v103 = vld [vmem:[#allocation2 + $0xa8] sm:$0xff]
  %v104 = vld [vmem:[#allocation2 + $0xb0] sm:$0xff]
  %v105 = vld [vmem:[#allocation2 + $0xb8] sm:$0xff]
  %v106 = vld [vmem:[#allocation2 + $0xc0] sm:$0xff]
  %v107 = vld [vmem:[#allocation2 + $0xc8] sm:$0xff]
  %v108 = vld [vmem:[#allocation2 + $0xd0] sm:$0xff]
  %v109 = vld [vmem:[#allocation2 + $0xd8] sm:$0xff]
  %v110 = vld [vmem:[#allocation2 + $0xe0] sm:$0xff]
  %v111 = vld [vmem:[#allocation2 + $0xe8] sm:$0xff]
  %v112 = vld [vmem:[#allocation2 + $0xf0] sm:$0xff]
  %v113 = vld [vmem:[#allocation2 + $0xf8] sm:$0xff]
  %v114 = vld [vmem:[#allocation2 + $0x100] sm:$0xff]
  %v115 = vld [vmem:[#allocation2 + $0x108] sm:$0xff]
  %v116 = vld [vmem:[#allocation2 + $0x110] sm:$0xff]
  %v117 = vld [vmem:[#allocation2 + $0x118] sm:$0xff]
  %v118 = vld [vmem:[#allocation2 + $0x120] sm:$0xff]
  %v119 = vld [vmem:[#allocation2 + $0x128] sm:$0xff]
  %v120 = vld [vmem:[#allocation2 + $0x130] sm:$0xff]
  %v121 = vld [vmem:[#allocation2 + $0x138] sm:$0xff]
  %v122 = vld [vmem:[#allocation2 + $0x140] sm:$0xff]
  %v123 = vld [vmem:[#allocation2 + $0x148] sm:$0xff]
  %v124 = vld [vmem:[#allocation2 + $0x150] sm:$0xff]
  %v125 = vld [vmem:[#allocation2 + $0x158] sm:$0xff]
  %v126 = vld [vmem:[#allocation2 + $0x160] sm:$0xff]
  %v127 = vld [vmem:[#allocation2 + $0x168] sm:$0xff]
  %v128 = vld [vmem:[#allocation2 + $0x170] sm:$0xff]
  %v129 = vld [vmem:[#allocation2 + $0x178] sm:$0xff]
  %v130 = vld [vmem:[#allocation2 + $0x180] sm:$0xff]
  %v131 = vld [vmem:[#allocation2 + $0x188] sm:$0xff]
  %v132 = vld [vmem:[#allocation2 + $0x190] sm:$0xff]
  %v133 = vld [vmem:[#allocation2 + $0x198] sm:$0xff]
  %v134 = vld [vmem:[#allocation2 + $0x1a0] sm:$0xff]
  %v135 = vld [vmem:[#allocation2 + $0x1a8] sm:$0xff]
  %v136 = vld [vmem:[#allocation2 + $0x1b0] sm:$0xff]
  %v137 = vld [vmem:[#allocation2 + $0x1b8] sm:$0xff]
  %v138 = vld [vmem:[#allocation2 + $0x1c0] sm:$0xff]
  %v139 = vld [vmem:[#allocation2 + $0x1c8] sm:$0xff]
  %v140 = vld [vmem:[#allocation2 + $0x1d0] sm:$0xff]
  %v141 = vld [vmem:[#allocation2 + $0x1d8] sm:$0xff]
  %v142 = vld [vmem:[#allocation2 + $0x1e0] sm:$0xff]
  %v143 = vld [vmem:[#allocation2 + $0x1e8] sm:$0xff]
  %v144 = vld [vmem:[#allocation2 + $0x1f0] sm:$0xff]
  %v145 = vld [vmem:[#allocation2 + $0x1f8] sm:$0xff]
  %v146 = vld [vmem:[%s0] sm:$0xff]
  %v147 = vld [vmem:[%s0 + $0x8] sm:$0xff]
  %v148 = vld [vmem:[%s0 + $0x10] sm:$0xff]
  %v149 = vld [vmem:[%s0 + $0x18] sm:$0xff]
  %v150 = vld [vmem:[%s0 + $0x20] sm:$0xff]
  %v151 = vld [vmem:[%s0 + $0x28] sm:$0xff]
  %v152 = vld [vmem:[%s0 + $0x30] sm:$0xff]
  %v153 = vld [vmem:[%s0 + $0x38] sm:$0xff]
  %v154 = vld [vmem:[%s0 + $0x40] sm:$0xff]
  %v155 = vld [vmem:[%s0 + $0x48] sm:$0xff]
  %v156 = vld [vmem:[%s0 + $0x50] sm:$0xff]
  %v157 = vld [vmem:[%s0 + $0x58] sm:$0xff]
  %v158 = vld [vmem:[%s0 + $0x60] sm:$0xff]
  %v159 = vld [vmem:[%s0 + $0x68] sm:$0xff]
  %v160 = vld [vmem:[%s0 + $0x70] sm:$0xff]
  %v161 = vld [vmem:[%s0 + $0x78] sm:$0xff]
  %v162 = vld [vmem:[%s0 + $0x80] sm:$0xff]
  %v163 = vld [vmem:[%s0 + $0x88] sm:$0xff]
  %v164 = vld [vmem:[%s0 + $0x90] sm:$0xff]
  %v165 = vld [vmem:[%s0 + $0x98] sm:$0xff]
  %v166 = vld [vmem:[%s0 + $0xa0] sm:$0xff]
  %v167 = vld [vmem:[%s0 + $0xa8] sm:$0xff]
  %v168 = vld [vmem:[%s0 + $0xb0] sm:$0xff]
  %v169 = vld [vmem:[%s0 + $0xb8] sm:$0xff]
  %v170 = vld [vmem:[%s0 + $0xc0] sm:$0xff]
  %v171 = vld [vmem:[%s0 + $0xc8] sm:$0xff]
  %v172 = vld [vmem:[%s0 + $0xd0] sm:$0xff]
  %v173 = vld [vmem:[%s0 + $0xd8] sm:$0xff]
  %v174 = vld [vmem:[%s0 + $0xe0] sm:$0xff]
  %v175 = vld [vmem:[%s0 + $0xe8] sm:$0xff]
  %v176 = vld [vmem:[%s0 + $0xf0] sm:$0xff]
  %v177 = vld [vmem:[%s0 + $0xf8] sm:$0xff]
  %v178 = vld [vmem:[%s0 + $0x100] sm:$0xff]
  %v179 = vld [vmem:[%s0 + $0x108] sm:$0xff]
  %v180 = vld [vmem:[%s0 + $0x110] sm:$0xff]
  %v181 = vld [vmem:[%s0 + $0x118] sm:$0xff]
  %v182 = vld [vmem:[%s0 + $0x120] sm:$0xff]
  %v183 = vld [vmem:[%s0 + $0x128] sm:$0xff]
  %v184 = vld [vmem:[%s0 + $0x130] sm:$0xff]
  %v185 = vld [vmem:[%s0 + $0x138] sm:$0xff]
  %v186 = vld [vmem:[%s0 + $0x140] sm:$0xff]
  %v187 = vld [vmem:[%s0 + $0x148] sm:$0xff]
  %v188 = vld [vmem:[%s0 + $0x150] sm:$0xff]
  %v189 = vld [vmem:[%s0 + $0x158] sm:$0xff]
  %v190 = vld [vmem:[%s0 + $0x160] sm:$0xff]
  %v191 = vld [vmem:[%s0 + $0x168] sm:$0xff]
  %v192 = vld [vmem:[%s0 + $0x170] sm:$0xff]
  %v193 = vld [vmem:[%s0 + $0x178] sm:$0xff]
  %v194 = vld [vmem:[%s0 + $0x180] sm:$0xff]
  %v195 = vld [vmem:[%s0 + $0x188] sm:$0xff]
  %v196 = vld [vmem:[%s0 + $0x190] sm:$0xff]
  %v197 = vld [vmem:[%s0 + $0x198] sm:$0xff]
  %v198 = vld [vmem:[%s0 + $0x1a0] sm:$0xff]
  %v199 = vld [vmem:[%s0 + $0x1a8] sm:$0xff]
  %v200 = vld [vmem:[%s0 + $0x1b0] sm:$0xff]
  %v201 = vld [vmem:[%s0 + $0x1b8] sm:$0xff]
  %v202 = vld [vmem:[%s0 + $0x1c0] sm:$0xff]
  %v203 = vld [vmem:[%s0 + $0x1c8] sm:$0xff]
  %v204 = vld [vmem:[%s0 + $0x1d0] sm:$0xff]
  %v205 = vld [vmem:[%s0 + $0x1d8] sm:$0xff]
  %v206 = vld [vmem:[%s0 + $0x1e0] sm:$0xff]
  %v207 = vld [vmem:[%s0 + $0x1e8] sm:$0xff]
  %v208 = vld [vmem:[%s0 + $0x1f0] sm:$0xff]
  %v209 = vld [vmem:[%s0 + $0x1f8] sm:$0xff]
  %v210 = vld [vmem:[%s1] sm:$0xf]
  %v211 = vld [vmem:[%s1 + $0x4] sm:$0xf]
  %v212 = vld [vmem:[%s1 + $0x8] sm:$0xf]
  %v213 = vld [vmem:[%s1 + $0xc] sm:$0xf]
  %v214 = vld [vmem:[%s1 + $0x10] sm:$0xf]
  %v215 = vld [vmem:[%s1 + $0x14] sm:$0xf]
  %v216 = vld [vmem:[%s1 + $0x18] sm:$0xf]
  %v217 = vld [vmem:[%s1 + $0x1c] sm:$0xf]
  %v218 = vld [vmem:[%s1 + $0x20] sm:$0xf]
  %v219 = vld [vmem:[%s1 + $0x24] sm:$0xf]
  %v220 = vld [vmem:[%s1 + $0x28] sm:$0xf]
  %v221 = vld [vmem:[%s1 + $0x2c] sm:$0xf]
  %v222 = vld [vmem:[%s1 + $0x30] sm:$0xf]
  %v223 = vld [vmem:[%s1 + $0x34] sm:$0xf]
  %v224 = vld [vmem:[%s1 + $0x38] sm:$0xf]
  %v225 = vld [vmem:[%s1 + $0x3c] sm:$0xf]
  %v226 = vld [vmem:[%s1 + $0x40] sm:$0xf]
  %v227 = vld [vmem:[%s1 + $0x44] sm:$0xf]
  %v228 = vld [vmem:[%s1 + $0x48] sm:$0xf]
  %v229 = vld [vmem:[%s1 + $0x4c] sm:$0xf]
  %v230 = vld [vmem:[%s1 + $0x50] sm:$0xf]
  %v231 = vld [vmem:[%s1 + $0x54] sm:$0xf]
  %v232 = vld [vmem:[%s1 + $0x58] sm:$0xf]
  %v233 = vld [vmem:[%s1 + $0x5c] sm:$0xf]
  %v234 = vld [vmem:[%s1 + $0x60] sm:$0xf]
  %v235 = vld [vmem:[%s1 + $0x64] sm:$0xf]
  %v236 = vld [vmem:[%s1 + $0x68] sm:$0xf]
  %v237 = vld [vmem:[%s1 + $0x6c] sm:$0xf]
  %v238 = vld [vmem:[%s1 + $0x70] sm:$0xf]
  %v239 = vld [vmem:[%s1 + $0x74] sm:$0xf]
  %v240 = vld [vmem:[%s1 + $0x78] sm:$0xf]
  %v241 = vld [vmem:[%s1 + $0x7c] sm:$0xf]
  %v306 = vunpack.c.l.b16 %v146
  %v307 = vunpack.c.h.b16 %v146
  %v308 = vunpack.c.l.b16 %v147
  %v309 = vunpack.c.h.b16 %v147
  %v310 = vunpack.c.l.b16 %v148
  %v311 = vunpack.c.h.b16 %v148
  %v312 = vunpack.c.l.b16 %v149
  %v313 = vunpack.c.h.b16 %v149
  %v314 = vunpack.c.l.b16 %v150
  %v315 = vunpack.c.h.b16 %v150
  %v316 = vunpack.c.l.b16 %v151
  %v317 = vunpack.c.h.b16 %v151
  %v318 = vunpack.c.l.b16 %v152
  %v319 = vunpack.c.h.b16 %v152
  %v320 = vunpack.c.l.b16 %v153
  %v321 = vunpack.c.h.b16 %v153
  %v322 = vunpack.c.l.b16 %v154
  %v323 = vunpack.c.h.b16 %v154
  %v324 = vunpack.c.l.b16 %v155
  %v325 = vunpack.c.h.b16 %v155
  %v326 = vunpack.c.l.b16 %v156
  %v327 = vunpack.c.h.b16 %v156
  %v328 = vunpack.c.l.b16 %v157
  %v329 = vunpack.c.h.b16 %v157
  %v330 = vunpack.c.l.b16 %v158
  %v331 = vunpack.c.h.b16 %v158
  %v332 = vunpack.c.l.b16 %v159
  %v333 = vunpack.c.h.b16 %v159
  %v334 = vunpack.c.l.b16 %v160
  %v335 = vunpack.c.h.b16 %v160
  %v336 = vunpack.c.l.b16 %v161
  %v337 = vunpack.c.h.b16 %v161
  %v338 = vunpack.c.l.b16 %v162
  %v339 = vunpack.c.h.b16 %v162
  %v340 = vunpack.c.l.b16 %v163
  %v341 = vunpack.c.h.b16 %v163
  %v342 = vunpack.c.l.b16 %v164
  %v343 = vunpack.c.h.b16 %v164
  %v344 = vunpack.c.l.b16 %v165
  %v345 = vunpack.c.h.b16 %v165
  %v346 = vunpack.c.l.b16 %v166
  %v347 = vunpack.c.h.b16 %v166
  %v348 = vunpack.c.l.b16 %v167
  %v349 = vunpack.c.h.b16 %v167
  %v350 = vunpack.c.l.b16 %v168
  %v351 = vunpack.c.h.b16 %v168
  %v352 = vunpack.c.l.b16 %v169
  %v353 = vunpack.c.h.b16 %v169
  %v354 = vunpack.c.l.b16 %v170
  %v355 = vunpack.c.h.b16 %v170
  %v356 = vunpack.c.l.b16 %v171
  %v357 = vunpack.c.h.b16 %v171
  %v358 = vunpack.c.l.b16 %v172
  %v359 = vunpack.c.h.b16 %v172
  %v360 = vunpack.c.l.b16 %v173
  %v361 = vunpack.c.h.b16 %v173
  %v362 = vunpack.c.l.b16 %v174
  %v363 = vunpack.c.h.b16 %v174
  %v364 = vunpack.c.l.b16 %v175
  %v365 = vunpack.c.h.b16 %v175
  %v366 = vunpack.c.l.b16 %v176
  %v367 = vunpack.c.h.b16 %v176
  %v368 = vunpack.c.l.b16 %v177
  %v369 = vunpack.c.h.b16 %v177
  %v370 = vunpack.c.l.b16 %v178
  %v371 = vunpack.c.h.b16 %v178
  %v372 = vunpack.c.l.b16 %v179
  %v373 = vunpack.c.h.b16 %v179
  %v374 = vunpack.c.l.b16 %v180
  %v375 = vunpack.c.h.b16 %v180
  %v376 = vunpack.c.l.b16 %v181
  %v377 = vunpack.c.h.b16 %v181
  %v378 = vunpack.c.l.b16 %v182
  %v379 = vunpack.c.h.b16 %v182
  %v380 = vunpack.c.l.b16 %v183
  %v381 = vunpack.c.h.b16 %v183
  %v382 = vunpack.c.l.b16 %v184
  %v383 = vunpack.c.h.b16 %v184
  %v384 = vunpack.c.l.b16 %v185
  %v385 = vunpack.c.h.b16 %v185
  %v386 = vunpack.c.l.b16 %v186
  %v387 = vunpack.c.h.b16 %v186
  %v388 = vunpack.c.l.b16 %v187
  %v389 = vunpack.c.h.b16 %v187
  %v390 = vunpack.c.l.b16 %v188
  %v391 = vunpack.c.h.b16 %v188
  %v392 = vunpack.c.l.b16 %v189
  %v393 = vunpack.c.h.b16 %v189
  %v394 = vunpack.c.l.b16 %v190
  %v395 = vunpack.c.h.b16 %v190
  %v396 = vunpack.c.l.b16 %v191
  %v397 = vunpack.c.h.b16 %v191
  %v398 = vunpack.c.l.b16 %v192
  %v399 = vunpack.c.h.b16 %v192
  %v400 = vunpack.c.l.b16 %v193
  %v401 = vunpack.c.h.b16 %v193
  %v402 = vunpack.c.l.b16 %v194
  %v403 = vunpack.c.h.b16 %v194
  %v404 = vunpack.c.l.b16 %v195
  %v405 = vunpack.c.h.b16 %v195
  %v406 = vunpack.c.l.b16 %v196
  %v407 = vunpack.c.h.b16 %v196
  %v408 = vunpack.c.l.b16 %v197
  %v409 = vunpack.c.h.b16 %v197
  %v410 = vunpack.c.l.b16 %v198
  %v411 = vunpack.c.h.b16 %v198
  %v412 = vunpack.c.l.b16 %v199
  %v413 = vunpack.c.h.b16 %v199
  %v414 = vunpack.c.l.b16 %v200
  %v415 = vunpack.c.h.b16 %v200
  %v416 = vunpack.c.l.b16 %v201
  %v417 = vunpack.c.h.b16 %v201
  %v418 = vunpack.c.l.b16 %v202
  %v419 = vunpack.c.h.b16 %v202
  %v420 = vunpack.c.l.b16 %v203
  %v421 = vunpack.c.h.b16 %v203
  %v422 = vunpack.c.l.b16 %v204
  %v423 = vunpack.c.h.b16 %v204
  %v424 = vunpack.c.l.b16 %v205
  %v425 = vunpack.c.h.b16 %v205
  %v426 = vunpack.c.l.b16 %v206
  %v427 = vunpack.c.h.b16 %v206
  %v428 = vunpack.c.l.b16 %v207
  %v429 = vunpack.c.h.b16 %v207
  %v430 = vunpack.c.l.b16 %v208
  %v431 = vunpack.c.h.b16 %v208
  %v432 = vunpack.c.l.b16 %v209
  %v433 = vunpack.c.h.b16 %v209
  %v434 = vpack.c.b16 %v308, %v306
  %v435 = vpack.c.b16 %v309, %v307
  %v436 = vpack.c.b16 %v312, %v310
  %v437 = vpack.c.b16 %v313, %v311
  %v438 = vpack.c.b16 %v316, %v314
  %v439 = vpack.c.b16 %v317, %v315
  %v440 = vpack.c.b16 %v320, %v318
  %v441 = vpack.c.b16 %v321, %v319
  %v442 = vpack.c.b16 %v324, %v322
  %v443 = vpack.c.b16 %v325, %v323
  %v444 = vpack.c.b16 %v328, %v326
  %v445 = vpack.c.b16 %v329, %v327
  %v446 = vpack.c.b16 %v332, %v330
  %v447 = vpack.c.b16 %v333, %v331
  %v448 = vpack.c.b16 %v336, %v334
  %v449 = vpack.c.b16 %v337, %v335
  %v450 = vpack.c.b16 %v340, %v338
  %v451 = vpack.c.b16 %v341, %v339
  %v452 = vpack.c.b16 %v344, %v342
  %v453 = vpack.c.b16 %v345, %v343
  %v454 = vpack.c.b16 %v348, %v346
  %v455 = vpack.c.b16 %v349, %v347
  %v456 = vpack.c.b16 %v352, %v350
  %v457 = vpack.c.b16 %v353, %v351
  %v458 = vpack.c.b16 %v356, %v354
  %v459 = vpack.c.b16 %v357, %v355
  %v460 = vpack.c.b16 %v360, %v358
  %v461 = vpack.c.b16 %v361, %v359
  %v462 = vpack.c.b16 %v364, %v362
  %v463 = vpack.c.b16 %v365, %v363
  %v464 = vpack.c.b16 %v368, %v366
  %v465 = vpack.c.b16 %v369, %v367
  %v466 = vpack.c.b16 %v372, %v370
  %v467 = vpack.c.b16 %v373, %v371
  %v468 = vpack.c.b16 %v376, %v374
  %v469 = vpack.c.b16 %v377, %v375
  %v470 = vpack.c.b16 %v380, %v378
  %v471 = vpack.c.b16 %v381, %v379
  %v472 = vpack.c.b16 %v384, %v382
  %v473 = vpack.c.b16 %v385, %v383
  %v474 = vpack.c.b16 %v388, %v386
  %v475 = vpack.c.b16 %v389, %v387
  %v476 = vpack.c.b16 %v392, %v390
  %v477 = vpack.c.b16 %v393, %v391
  %v478 = vpack.c.b16 %v396, %v394
  %v479 = vpack.c.b16 %v397, %v395
  %v480 = vpack.c.b16 %v400, %v398
  %v481 = vpack.c.b16 %v401, %v399
  %v482 = vpack.c.b16 %v404, %v402
  %v483 = vpack.c.b16 %v405, %v403
  %v484 = vpack.c.b16 %v408, %v406
  %v485 = vpack.c.b16 %v409, %v407
  %v486 = vpack.c.b16 %v412, %v410
  %v487 = vpack.c.b16 %v413, %v411
  %v488 = vpack.c.b16 %v416, %v414
  %v489 = vpack.c.b16 %v417, %v415
  %v490 = vpack.c.b16 %v420, %v418
  %v491 = vpack.c.b16 %v421, %v419
  %v492 = vpack.c.b16 %v424, %v422
  %v493 = vpack.c.b16 %v425, %v423
  %v494 = vpack.c.b16 %v428, %v426
  %v495 = vpack.c.b16 %v429, %v427
  %v496 = vpack.c.b16 %v432, %v430
  %v497 = vpack.c.b16 %v433, %v431
  %v594 = vunpack.c.l.b16 %v210
  %v595 = vunpack.c.l.b16 %v211
  %v596 = vunpack.c.l.b16 %v212
  %v597 = vunpack.c.l.b16 %v213
  %v598 = vunpack.c.l.b16 %v214
  %v599 = vunpack.c.l.b16 %v215
  %v600 = vunpack.c.l.b16 %v216
  %v601 = vunpack.c.l.b16 %v217
  %v602 = vunpack.c.l.b16 %v218
  %v603 = vunpack.c.l.b16 %v219
  %v604 = vunpack.c.l.b16 %v220
  %v605 = vunpack.c.l.b16 %v221
  %v606 = vunpack.c.l.b16 %v222
  %v607 = vunpack.c.l.b16 %v223
  %v608 = vunpack.c.l.b16 %v224
  %v609 = vunpack.c.l.b16 %v225
  %v610 = vunpack.c.l.b16 %v226
  %v611 = vunpack.c.l.b16 %v227
  %v612 = vunpack.c.l.b16 %v228
  %v613 = vunpack.c.l.b16 %v229
  %v614 = vunpack.c.l.b16 %v230
  %v615 = vunpack.c.l.b16 %v231
  %v616 = vunpack.c.l.b16 %v232
  %v617 = vunpack.c.l.b16 %v233
  %v618 = vunpack.c.l.b16 %v234
  %v619 = vunpack.c.l.b16 %v235
  %v620 = vunpack.c.l.b16 %v236
  %v621 = vunpack.c.l.b16 %v237
  %v622 = vunpack.c.l.b16 %v238
  %v623 = vunpack.c.l.b16 %v239
  %v624 = vunpack.c.l.b16 %v240
  %v625 = vunpack.c.l.b16 %v241
  %v626 = vpack.c.b16 %v595, %v594
  %v627 = vpack.c.b16 %v597, %v596
  %v628 = vpack.c.b16 %v599, %v598
  %v629 = vpack.c.b16 %v601, %v600
  %v630 = vpack.c.b16 %v603, %v602
  %v631 = vpack.c.b16 %v605, %v604
  %v632 = vpack.c.b16 %v607, %v606
  %v633 = vpack.c.b16 %v609, %v608
  %v634 = vpack.c.b16 %v611, %v610
  %v635 = vpack.c.b16 %v613, %v612
  %v636 = vpack.c.b16 %v615, %v614
  %v637 = vpack.c.b16 %v617, %v616
  %v638 = vpack.c.b16 %v619, %v618
  %v639 = vpack.c.b16 %v621, %v620
  %v640 = vpack.c.b16 %v623, %v622
  %v641 = vpack.c.b16 %v625, %v624
  %658 = vmatpush.bf16.msra.mxu0 %v633
  %659 = vmatpush.bf16.msra.mxu0 %v632
  %660 = vmatpush.bf16.msra.mxu0 %v631
  %661 = vmatpush.bf16.msra.mxu0 %v630
  %662 = vmatpush.bf16.msra.mxu0 %v629
  %663 = vmatpush.bf16.msra.mxu0 %v628
  %664 = vmatpush.bf16.msra.mxu0 %v627
  %665 = vmatpush.bf16.msra.mxu0 %v626
  %666 = vmatmul.bf16.gmra.mxu0 %v434
  %v667 = vpop.f32.mrf.mxu0
  %v668 = vadd.f32 0.0, %v667
  %v669 = vpop.f32.mrf.mxu0
  %v670 = vadd.f32 0.0, %v669
  %671 = vmatmul.bf16.gmra.mxu0 %v436
  %v672 = vpop.f32.mrf.mxu0
  %v673 = vadd.f32 0.0, %v672
  %v674 = vpop.f32.mrf.mxu0
  %v675 = vadd.f32 0.0, %v674
  %676 = vmatmul.bf16.gmra.mxu0 %v438
  %v677 = vpop.f32.mrf.mxu0
  %v678 = vadd.f32 0.0, %v677
  %v679 = vpop.f32.mrf.mxu0
  %v680 = vadd.f32 0.0, %v679
  %681 = vmatmul.bf16.gmra.mxu0 %v440
  %v682 = vpop.f32.mrf.mxu0
  %v683 = vadd.f32 0.0, %v682
  %v684 = vpop.f32.mrf.mxu0
  %v685 = vadd.f32 0.0, %v684
  %686 = vmatmul.bf16.gmra.mxu0 %v442
  %v687 = vpop.f32.mrf.mxu0
  %v688 = vadd.f32 0.0, %v687
  %v689 = vpop.f32.mrf.mxu0
  %v690 = vadd.f32 0.0, %v689
  %691 = vmatmul.bf16.gmra.mxu0 %v444
  %v692 = vpop.f32.mrf.mxu0
  %v693 = vadd.f32 0.0, %v692
  %v694 = vpop.f32.mrf.mxu0
  %v695 = vadd.f32 0.0, %v694
  %696 = vmatmul.bf16.gmra.mxu0 %v446
  %v697 = vpop.f32.mrf.mxu0
  %v698 = vadd.f32 0.0, %v697
  %v699 = vpop.f32.mrf.mxu0
  %v700 = vadd.f32 0.0, %v699
  %701 = vmatmul.bf16.gmra.mxu0 %v448
  %v702 = vpop.f32.mrf.mxu0
  %v703 = vadd.f32 0.0, %v702
  %v704 = vpop.f32.mrf.mxu0
  %v705 = vadd.f32 0.0, %v704
  %706 = vmatmul.bf16.gmra.mxu0 %v450
  %v707 = vpop.f32.mrf.mxu0
  %v708 = vadd.f32 0.0, %v707
  %v709 = vpop.f32.mrf.mxu0
  %v710 = vadd.f32 0.0, %v709
  %711 = vmatmul.bf16.gmra.mxu0 %v452
  %v712 = vpop.f32.mrf.mxu0
  %v713 = vadd.f32 0.0, %v712
  %v714 = vpop.f32.mrf.mxu0
  %v715 = vadd.f32 0.0, %v714
  %716 = vmatmul.bf16.gmra.mxu0 %v454
  %v717 = vpop.f32.mrf.mxu0
  %v718 = vadd.f32 0.0, %v717
  %v719 = vpop.f32.mrf.mxu0
  %v720 = vadd.f32 0.0, %v719
  %721 = vmatmul.bf16.gmra.mxu0 %v456
  %v722 = vpop.f32.mrf.mxu0
  %v723 = vadd.f32 0.0, %v722
  %v724 = vpop.f32.mrf.mxu0
  %v725 = vadd.f32 0.0, %v724
  %726 = vmatmul.bf16.gmra.mxu0 %v458
  %v727 = vpop.f32.mrf.mxu0
  %v728 = vadd.f32 0.0, %v727
  %v729 = vpop.f32.mrf.mxu0
  %v730 = vadd.f32 0.0, %v729
  %731 = vmatmul.bf16.gmra.mxu0 %v460
  %v732 = vpop.f32.mrf.mxu0
  %v733 = vadd.f32 0.0, %v732
  %v734 = vpop.f32.mrf.mxu0
  %v735 = vadd.f32 0.0, %v734
  %736 = vmatmul.bf16.gmra.mxu0 %v462
  %v737 = vpop.f32.mrf.mxu0
  %v738 = vadd.f32 0.0, %v737
  %v739 = vpop.f32.mrf.mxu0
  %v740 = vadd.f32 0.0, %v739
  %741 = vmatmul.bf16.gmra.mxu0 %v464
  %v742 = vpop.f32.mrf.mxu0
  %v743 = vadd.f32 0.0, %v742
  %v744 = vpop.f32.mrf.mxu0
  %v745 = vadd.f32 0.0, %v744
  %746 = vmatmul.bf16.gmra.mxu0 %v466
  %v747 = vpop.f32.mrf.mxu0
  %v748 = vadd.f32 0.0, %v747
  %v749 = vpop.f32.mrf.mxu0
  %v750 = vadd.f32 0.0, %v749
  %751 = vmatmul.bf16.gmra.mxu0 %v468
  %v752 = vpop.f32.mrf.mxu0
  %v753 = vadd.f32 0.0, %v752
  %v754 = vpop.f32.mrf.mxu0
  %v755 = vadd.f32 0.0, %v754
  %756 = vmatmul.bf16.gmra.mxu0 %v470
  %v757 = vpop.f32.mrf.mxu0
  %v758 = vadd.f32 0.0, %v757
  %v759 = vpop.f32.mrf.mxu0
  %v760 = vadd.f32 0.0, %v759
  %761 = vmatmul.bf16.gmra.mxu0 %v472
  %v762 = vpop.f32.mrf.mxu0
  %v763 = vadd.f32 0.0, %v762
  %v764 = vpop.f32.mrf.mxu0
  %v765 = vadd.f32 0.0, %v764
  %766 = vmatmul.bf16.gmra.mxu0 %v474
  %v767 = vpop.f32.mrf.mxu0
  %v768 = vadd.f32 0.0, %v767
  %v769 = vpop.f32.mrf.mxu0
  %v770 = vadd.f32 0.0, %v769
  %771 = vmatmul.bf16.gmra.mxu0 %v476
  %v772 = vpop.f32.mrf.mxu0
  %v773 = vadd.f32 0.0, %v772
  %v774 = vpop.f32.mrf.mxu0
  %v775 = vadd.f32 0.0, %v774
  %776 = vmatmul.bf16.gmra.mxu0 %v478
  %v777 = vpop.f32.mrf.mxu0
  %v778 = vadd.f32 0.0, %v777
  %v779 = vpop.f32.mrf.mxu0
  %v780 = vadd.f32 0.0, %v779
  %781 = vmatmul.bf16.gmra.mxu0 %v480
  %v782 = vpop.f32.mrf.mxu0
  %v783 = vadd.f32 0.0, %v782
  %v784 = vpop.f32.mrf.mxu0
  %v785 = vadd.f32 0.0, %v784
  %786 = vmatmul.bf16.gmra.mxu0 %v482
  %v787 = vpop.f32.mrf.mxu0
  %v788 = vadd.f32 0.0, %v787
  %v789 = vpop.f32.mrf.mxu0
  %v790 = vadd.f32 0.0, %v789
  %791 = vmatmul.bf16.gmra.mxu0 %v484
  %v792 = vpop.f32.mrf.mxu0
  %v793 = vadd.f32 0.0, %v792
  %v794 = vpop.f32.mrf.mxu0
  %v795 = vadd.f32 0.0, %v794
  %796 = vmatmul.bf16.gmra.mxu0 %v486
  %v797 = vpop.f32.mrf.mxu0
  %v798 = vadd.f32 0.0, %v797
  %v799 = vpop.f32.mrf.mxu0
  %v800 = vadd.f32 0.0, %v799
  %801 = vmatmul.bf16.gmra.mxu0 %v488
  %v802 = vpop.f32.mrf.mxu0
  %v803 = vadd.f32 0.0, %v802
  %v804 = vpop.f32.mrf.mxu0
  %v805 = vadd.f32 0.0, %v804
  %806 = vmatmul.bf16.gmra.mxu0 %v490
  %v807 = vpop.f32.mrf.mxu0
  %v808 = vadd.f32 0.0, %v807
  %v809 = vpop.f32.mrf.mxu0
  %v810 = vadd.f32 0.0, %v809
  %811 = vmatmul.bf16.gmra.mxu0 %v492
  %v812 = vpop.f32.mrf.mxu0
  %v813 = vadd.f32 0.0, %v812
  %v814 = vpop.f32.mrf.mxu0
  %v815 = vadd.f32 0.0, %v814
  %816 = vmatmul.bf16.gmra.mxu0 %v494
  %v817 = vpop.f32.mrf.mxu0
  %v818 = vadd.f32 0.0, %v817
  %v819 = vpop.f32.mrf.mxu0
  %v820 = vadd.f32 0.0, %v819
  %821 = vmatmul.bf16.gmra.mxu0 %v496
  %v822 = vpop.f32.mrf.mxu0
  %v823 = vadd.f32 0.0, %v822
  %v824 = vpop.f32.mrf.mxu0
  %v825 = vadd.f32 0.0, %v824
  %826 = vdwg.mxu0
  %827 = vmatpush.bf16.msra.mxu0 %v641
  %828 = vmatpush.bf16.msra.mxu0 %v640
  %829 = vmatpush.bf16.msra.mxu0 %v639
  %830 = vmatpush.bf16.msra.mxu0 %v638
  %831 = vmatpush.bf16.msra.mxu0 %v637
  %832 = vmatpush.bf16.msra.mxu0 %v636
  %833 = vmatpush.bf16.msra.mxu0 %v635
  %834 = vmatpush.bf16.msra.mxu0 %v634
  %835 = vmatmul.bf16.gmra.mxu0 %v435
  %v836 = vpop.f32.mrf.mxu0
  %v837 = vadd.f32 %v668, %v836
  %v838 = vpop.f32.mrf.mxu0
  %v839 = vadd.f32 %v670, %v838
  %840 = vmatmul.bf16.gmra.mxu0 %v437
  %v841 = vpop.f32.mrf.mxu0
  %v842 = vadd.f32 %v673, %v841
  %v843 = vpop.f32.mrf.mxu0
  %v844 = vadd.f32 %v675, %v843
  %845 = vmatmul.bf16.gmra.mxu0 %v439
  %v846 = vpop.f32.mrf.mxu0
  %v847 = vadd.f32 %v678, %v846
  %v848 = vpop.f32.mrf.mxu0
  %v849 = vadd.f32 %v680, %v848
  %850 = vmatmul.bf16.gmra.mxu0 %v441
  %v851 = vpop.f32.mrf.mxu0
  %v852 = vadd.f32 %v683, %v851
  %v853 = vpop.f32.mrf.mxu0
  %v854 = vadd.f32 %v685, %v853
  %855 = vmatmul.bf16.gmra.mxu0 %v443
  %v856 = vpop.f32.mrf.mxu0
  %v857 = vadd.f32 %v688, %v856
  %v858 = vpop.f32.mrf.mxu0
  %v859 = vadd.f32 %v690, %v858
  %860 = vmatmul.bf16.gmra.mxu0 %v445
  %v861 = vpop.f32.mrf.mxu0
  %v862 = vadd.f32 %v693, %v861
  %v863 = vpop.f32.mrf.mxu0
  %v864 = vadd.f32 %v695, %v863
  %865 = vmatmul.bf16.gmra.mxu0 %v447
  %v866 = vpop.f32.mrf.mxu0
  %v867 = vadd.f32 %v698, %v866
  %v868 = vpop.f32.mrf.mxu0
  %v869 = vadd.f32 %v700, %v868
  %870 = vmatmul.bf16.gmra.mxu0 %v449
  %v871 = vpop.f32.mrf.mxu0
  %v872 = vadd.f32 %v703, %v871
  %v873 = vpop.f32.mrf.mxu0
  %v874 = vadd.f32 %v705, %v873
  %875 = vmatmul.bf16.gmra.mxu0 %v451
  %v876 = vpop.f32.mrf.mxu0
  %v877 = vadd.f32 %v708, %v876
  %v878 = vpop.f32.mrf.mxu0
  %v879 = vadd.f32 %v710, %v878
  %880 = vmatmul.bf16.gmra.mxu0 %v453
  %v881 = vpop.f32.mrf.mxu0
  %v882 = vadd.f32 %v713, %v881
  %v883 = vpop.f32.mrf.mxu0
  %v884 = vadd.f32 %v715, %v883
  %885 = vmatmul.bf16.gmra.mxu0 %v455
  %v886 = vpop.f32.mrf.mxu0
  %v887 = vadd.f32 %v718, %v886
  %v888 = vpop.f32.mrf.mxu0
  %v889 = vadd.f32 %v720, %v888
  %890 = vmatmul.bf16.gmra.mxu0 %v457
  %v891 = vpop.f32.mrf.mxu0
  %v892 = vadd.f32 %v723, %v891
  %v893 = vpop.f32.mrf.mxu0
  %v894 = vadd.f32 %v725, %v893
  %895 = vmatmul.bf16.gmra.mxu0 %v459
  %v896 = vpop.f32.mrf.mxu0
  %v897 = vadd.f32 %v728, %v896
  %v898 = vpop.f32.mrf.mxu0
  %v899 = vadd.f32 %v730, %v898
  %900 = vmatmul.bf16.gmra.mxu0 %v461
  %v901 = vpop.f32.mrf.mxu0
  %v902 = vadd.f32 %v733, %v901
  %v903 = vpop.f32.mrf.mxu0
  %v904 = vadd.f32 %v735, %v903
  %905 = vmatmul.bf16.gmra.mxu0 %v463
  %v906 = vpop.f32.mrf.mxu0
  %v907 = vadd.f32 %v738, %v906
  %v908 = vpop.f32.mrf.mxu0
  %v909 = vadd.f32 %v740, %v908
  %910 = vmatmul.bf16.gmra.mxu0 %v465
  %v911 = vpop.f32.mrf.mxu0
  %v912 = vadd.f32 %v743, %v911
  %v913 = vpop.f32.mrf.mxu0
  %v914 = vadd.f32 %v745, %v913
  %915 = vmatmul.bf16.gmra.mxu0 %v467
  %v916 = vpop.f32.mrf.mxu0
  %v917 = vadd.f32 %v748, %v916
  %v918 = vpop.f32.mrf.mxu0
  %v919 = vadd.f32 %v750, %v918
  %920 = vmatmul.bf16.gmra.mxu0 %v469
  %v921 = vpop.f32.mrf.mxu0
  %v922 = vadd.f32 %v753, %v921
  %v923 = vpop.f32.mrf.mxu0
  %v924 = vadd.f32 %v755, %v923
  %925 = vmatmul.bf16.gmra.mxu0 %v471
  %v926 = vpop.f32.mrf.mxu0
  %v927 = vadd.f32 %v758, %v926
  %v928 = vpop.f32.mrf.mxu0
  %v929 = vadd.f32 %v760, %v928
  %930 = vmatmul.bf16.gmra.mxu0 %v473
  %v931 = vpop.f32.mrf.mxu0
  %v932 = vadd.f32 %v763, %v931
  %v933 = vpop.f32.mrf.mxu0
  %v934 = vadd.f32 %v765, %v933
  %935 = vmatmul.bf16.gmra.mxu0 %v475
  %v936 = vpop.f32.mrf.mxu0
  %v937 = vadd.f32 %v768, %v936
  %v938 = vpop.f32.mrf.mxu0
  %v939 = vadd.f32 %v770, %v938
  %940 = vmatmul.bf16.gmra.mxu0 %v477
  %v941 = vpop.f32.mrf.mxu0
  %v942 = vadd.f32 %v773, %v941
  %v943 = vpop.f32.mrf.mxu0
  %v944 = vadd.f32 %v775, %v943
  %945 = vmatmul.bf16.gmra.mxu0 %v479
  %v946 = vpop.f32.mrf.mxu0
  %v947 = vadd.f32 %v778, %v946
  %v948 = vpop.f32.mrf.mxu0
  %v949 = vadd.f32 %v780, %v948
  %950 = vmatmul.bf16.gmra.mxu0 %v481
  %v951 = vpop.f32.mrf.mxu0
  %v952 = vadd.f32 %v783, %v951
  %v953 = vpop.f32.mrf.mxu0
  %v954 = vadd.f32 %v785, %v953
  %955 = vmatmul.bf16.gmra.mxu0 %v483
  %v956 = vpop.f32.mrf.mxu0
  %v957 = vadd.f32 %v788, %v956
  %v958 = vpop.f32.mrf.mxu0
  %v959 = vadd.f32 %v790, %v958
  %960 = vmatmul.bf16.gmra.mxu0 %v485
  %v961 = vpop.f32.mrf.mxu0
  %v962 = vadd.f32 %v793, %v961
  %v963 = vpop.f32.mrf.mxu0
  %v964 = vadd.f32 %v795, %v963
  %965 = vmatmul.bf16.gmra.mxu0 %v487
  %v966 = vpop.f32.mrf.mxu0
  %v967 = vadd.f32 %v798, %v966
  %v968 = vpop.f32.mrf.mxu0
  %v969 = vadd.f32 %v800, %v968
  %970 = vmatmul.bf16.gmra.mxu0 %v489
  %v971 = vpop.f32.mrf.mxu0
  %v972 = vadd.f32 %v803, %v971
  %v973 = vpop.f32.mrf.mxu0
  %v974 = vadd.f32 %v805, %v973
  %975 = vmatmul.bf16.gmra.mxu0 %v491
  %v976 = vpop.f32.mrf.mxu0
  %v977 = vadd.f32 %v808, %v976
  %v978 = vpop.f32.mrf.mxu0
  %v979 = vadd.f32 %v810, %v978
  %980 = vmatmul.bf16.gmra.mxu0 %v493
  %v981 = vpop.f32.mrf.mxu0
  %v982 = vadd.f32 %v813, %v981
  %v983 = vpop.f32.mrf.mxu0
  %v984 = vadd.f32 %v815, %v983
  %985 = vmatmul.bf16.gmra.mxu0 %v495
  %v986 = vpop.f32.mrf.mxu0
  %v987 = vadd.f32 %v818, %v986
  %v988 = vpop.f32.mrf.mxu0
  %v989 = vadd.f32 %v820, %v988
  %990 = vmatmul.bf16.gmra.mxu0 %v497
  %v991 = vpop.f32.mrf.mxu0
  %v992 = vadd.f32 %v823, %v991
  %v993 = vpop.f32.mrf.mxu0
  %v994 = vadd.f32 %v825, %v993
  %995 = vdwg.mxu0
  %v996 = vadd.f32 %v82, %v837
  %v997 = vadd.f32 %v83, %v839
  %v998 = vadd.f32 %v84, %v842
  %v999 = vadd.f32 %v85, %v844
  %v1000 = vadd.f32 %v86, %v847
  %v1001 = vadd.f32 %v87, %v849
  %v1002 = vadd.f32 %v88, %v852
  %v1003 = vadd.f32 %v89, %v854
  %v1004 = vadd.f32 %v90, %v857
  %v1005 = vadd.f32 %v91, %v859
  %v1006 = vadd.f32 %v92, %v862
  %v1007 = vadd.f32 %v93, %v864
  %v1008 = vadd.f32 %v94, %v867
  %v1009 = vadd.f32 %v95, %v869
  %v1010 = vadd.f32 %v96, %v872
  %v1011 = vadd.f32 %v97, %v874
  %v1012 = vadd.f32 %v98, %v877
  %v1013 = vadd.f32 %v99, %v879
  %v1014 = vadd.f32 %v100, %v882
  %v1015 = vadd.f32 %v101, %v884
  %v1016 = vadd.f32 %v102, %v887
  %v1017 = vadd.f32 %v103, %v889
  %v1018 = vadd.f32 %v104, %v892
  %v1019 = vadd.f32 %v105, %v894
  %v1020 = vadd.f32 %v106, %v897
  %v1021 = vadd.f32 %v107, %v899
  %v1022 = vadd.f32 %v108, %v902
  %v1023 = vadd.f32 %v109, %v904
  %v1024 = vadd.f32 %v110, %v907
  %v1025 = vadd.f32 %v111, %v909
  %v1026 = vadd.f32 %v112, %v912
  %v1027 = vadd.f32 %v113, %v914
  %v1028 = vadd.f32 %v114, %v917
  %v1029 = vadd.f32 %v115, %v919
  %v1030 = vadd.f32 %v116, %v922
  %v1031 = vadd.f32 %v117, %v924
  %v1032 = vadd.f32 %v118, %v927
  %v1033 = vadd.f32 %v119, %v929
  %v1034 = vadd.f32 %v120, %v932
  %v1035 = vadd.f32 %v121, %v934
  %v1036 = vadd.f32 %v122, %v937
  %v1037 = vadd.f32 %v123, %v939
  %v1038 = vadd.f32 %v124, %v942
  %v1039 = vadd.f32 %v125, %v944
  %v1040 = vadd.f32 %v126, %v947
  %v1041 = vadd.f32 %v127, %v949
  %v1042 = vadd.f32 %v128, %v952
  %v1043 = vadd.f32 %v129, %v954
  %v1044 = vadd.f32 %v130, %v957
  %v1045 = vadd.f32 %v131, %v959
  %v1046 = vadd.f32 %v132, %v962
  %v1047 = vadd.f32 %v133, %v964
  %v1048 = vadd.f32 %v134, %v967
  %v1049 = vadd.f32 %v135, %v969
  %v1050 = vadd.f32 %v136, %v972
  %v1051 = vadd.f32 %v137, %v974
  %v1052 = vadd.f32 %v138, %v977
  %v1053 = vadd.f32 %v139, %v979
  %v1054 = vadd.f32 %v140, %v982
  %v1055 = vadd.f32 %v141, %v984
  %v1056 = vadd.f32 %v142, %v987
  %v1057 = vadd.f32 %v143, %v989
  %v1058 = vadd.f32 %v144, %v992
  %v1059 = vadd.f32 %v145, %v994
  %1060 = vst [vmem:[#allocation2] sm:$0xff] %v996
  %1061 = vst [vmem:[#allocation2 + $0x8] sm:$0xff] %v997
  %1062 = vst [vmem:[#allocation2 + $0x10] sm:$0xff] %v998
  %1063 = vst [vmem:[#allocation2 + $0x18] sm:$0xff] %v999
  %1064 = vst [vmem:[#allocation2 + $0x20] sm:$0xff] %v1000
  %1065 = vst [vmem:[#allocation2 + $0x28] sm:$0xff] %v1001
  %1066 = vst [vmem:[#allocation2 + $0x30] sm:$0xff] %v1002
  %1067 = vst [vmem:[#allocation2 + $0x38] sm:$0xff] %v1003
  %1068 = vst [vmem:[#allocation2 + $0x40] sm:$0xff] %v1004
  %1069 = vst [vmem:[#allocation2 + $0x48] sm:$0xff] %v1005
  %1070 = vst [vmem:[#allocation2 + $0x50] sm:$0xff] %v1006
  %1071 = vst [vmem:[#allocation2 + $0x58] sm:$0xff] %v1007
  %1072 = vst [vmem:[#allocation2 + $0x60] sm:$0xff] %v1008
  %1073 = vst [vmem:[#allocation2 + $0x68] sm:$0xff] %v1009
  %1074 = vst [vmem:[#allocation2 + $0x70] sm:$0xff] %v1010
  %1075 = vst [vmem:[#allocation2 + $0x78] sm:$0xff] %v1011
  %1076 = vst [vmem:[#allocation2 + $0x80] sm:$0xff] %v1012
  %1077 = vst [vmem:[#allocation2 + $0x88] sm:$0xff] %v1013
  %1078 = vst [vmem:[#allocation2 + $0x90] sm:$0xff] %v1014
  %1079 = vst [vmem:[#allocation2 + $0x98] sm:$0xff] %v1015
  %1080 = vst [vmem:[#allocation2 + $0xa0] sm:$0xff] %v1016
  %1081 = vst [vmem:[#allocation2 + $0xa8] sm:$0xff] %v1017
  %1082 = vst [vmem:[#allocation2 + $0xb0] sm:$0xff] %v1018
  %1083 = vst [vmem:[#allocation2 + $0xb8] sm:$0xff] %v1019
  %1084 = vst [vmem:[#allocation2 + $0xc0] sm:$0xff] %v1020
  %1085 = vst [vmem:[#allocation2 + $0xc8] sm:$0xff] %v1021
  %1086 = vst [vmem:[#allocation2 + $0xd0] sm:$0xff] %v1022
  %1087 = vst [vmem:[#allocation2 + $0xd8] sm:$0xff] %v1023
  %1088 = vst [vmem:[#allocation2 + $0xe0] sm:$0xff] %v1024
  %1089 = vst [vmem:[#allocation2 + $0xe8] sm:$0xff] %v1025
  %1090 = vst [vmem:[#allocation2 + $0xf0] sm:$0xff] %v1026
  %1091 = vst [vmem:[#allocation2 + $0xf8] sm:$0xff] %v1027
  %1092 = vst [vmem:[#allocation2 + $0x100] sm:$0xff] %v1028
  %1093 = vst [vmem:[#allocation2 + $0x108] sm:$0xff] %v1029
  %1094 = vst [vmem:[#allocation2 + $0x110] sm:$0xff] %v1030
  %1095 = vst [vmem:[#allocation2 + $0x118] sm:$0xff] %v1031
  %1096 = vst [vmem:[#allocation2 + $0x120] sm:$0xff] %v1032
  %1097 = vst [vmem:[#allocation2 + $0x128] sm:$0xff] %v1033
  %1098 = vst [vmem:[#allocation2 + $0x130] sm:$0xff] %v1034
  %1099 = vst [vmem:[#allocation2 + $0x138] sm:$0xff] %v1035
  %1100 = vst [vmem:[#allocation2 + $0x140] sm:$0xff] %v1036
  %1101 = vst [vmem:[#allocation2 + $0x148] sm:$0xff] %v1037
  %1102 = vst [vmem:[#allocation2 + $0x150] sm:$0xff] %v1038
  %1103 = vst [vmem:[#allocation2 + $0x158] sm:$0xff] %v1039
  %1104 = vst [vmem:[#allocation2 + $0x160] sm:$0xff] %v1040
  %1105 = vst [vmem:[#allocation2 + $0x168] sm:$0xff] %v1041
  %1106 = vst [vmem:[#allocation2 + $0x170] sm:$0xff] %v1042
  %1107 = vst [vmem:[#allocation2 + $0x178] sm:$0xff] %v1043
  %1108 = vst [vmem:[#allocation2 + $0x180] sm:$0xff] %v1044
  %1109 = vst [vmem:[#allocation2 + $0x188] sm:$0xff] %v1045
  %1110 = vst [vmem:[#allocation2 + $0x190] sm:$0xff] %v1046
  %1111 = vst [vmem:[#allocation2 + $0x198] sm:$0xff] %v1047
  %1112 = vst [vmem:[#allocation2 + $0x1a0] sm:$0xff] %v1048
  %1113 = vst [vmem:[#allocation2 + $0x1a8] sm:$0xff] %v1049
  %1114 = vst [vmem:[#allocation2 + $0x1b0] sm:$0xff] %v1050
  %1115 = vst [vmem:[#allocation2 + $0x1b8] sm:$0xff] %v1051
  %1116 = vst [vmem:[#allocation2 + $0x1c0] sm:$0xff] %v1052
  %1117 = vst [vmem:[#allocation2 + $0x1c8] sm:$0xff] %v1053
  %1118 = vst [vmem:[#allocation2 + $0x1d0] sm:$0xff] %v1054
  %1119 = vst [vmem:[#allocation2 + $0x1d8] sm:$0xff] %v1055
  %1120 = vst [vmem:[#allocation2 + $0x1e0] sm:$0xff] %v1056
  %1121 = vst [vmem:[#allocation2 + $0x1e8] sm:$0xff] %v1057
  %1122 = vst [vmem:[#allocation2 + $0x1f0] sm:$0xff] %v1058
  %1123 = vst [vmem:[#allocation2 + $0x1f8] sm:$0xff] %v1059
  // Predicated region
  $region18: #{_lambda_.54} parent=0 // pred_check
    %p1124 = pneg %p14
  $region19: #{_lambda_.54} parent=0 // pred_check_branch
    %1126 = sbr.rel (%p1124) target = $region21
  $region20: #{_lambda_.54} parent=0 // pred_region
    %v1127 = vld [vmem:[#allocation2] sm:$0xff]
    %v1128 = vld [vmem:[#allocation2 + $0x8] sm:$0xff]
    %v1129 = vld [vmem:[#allocation2 + $0x10] sm:$0xff]
    %v1130 = vld [vmem:[#allocation2 + $0x18] sm:$0xff]
    %v1131 = vld [vmem:[#allocation2 + $0x20] sm:$0xff]
    %v1132 = vld [vmem:[#allocation2 + $0x28] sm:$0xff]
    %v1133 = vld [vmem:[#allocation2 + $0x30] sm:$0xff]
    %v1134 = vld [vmem:[#allocation2 + $0x38] sm:$0xff]
    %v1135 = vld [vmem:[#allocation2 + $0x40] sm:$0xff]
    %v1136 = vld [vmem:[#allocation2 + $0x48] sm:$0xff]
    %v1137 = vld [vmem:[#allocation2 + $0x50] sm:$0xff]
    %v1138 = vld [vmem:[#allocation2 + $0x58] sm:$0xff]
    %v1139 = vld [vmem:[#allocation2 + $0x60] sm:$0xff]
    %v1140 = vld [vmem:[#allocation2 + $0x68] sm:$0xff]
    %v1141 = vld [vmem:[#allocation2 + $0x70] sm:$0xff]
    %v1142 = vld [vmem:[#allocation2 + $0x78] sm:$0xff]
    %v1143 = vld [vmem:[#allocation2 + $0x80] sm:$0xff]
    %v1144 = vld [vmem:[#allocation2 + $0x88] sm:$0xff]
    %v1145 = vld [vmem:[#allocation2 + $0x90] sm:$0xff]
    %v1146 = vld [vmem:[#allocation2 + $0x98] sm:$0xff]
    %v1147 = vld [vmem:[#allocation2 + $0xa0] sm:$0xff]
    %v1148 = vld [vmem:[#allocation2 + $0xa8] sm:$0xff]
    %v1149 = vld [vmem:[#allocation2 + $0xb0] sm:$0xff]
    %v1150 = vld [vmem:[#allocation2 + $0xb8] sm:$0xff]
    %v1151 = vld [vmem:[#allocation2 + $0xc0] sm:$0xff]
    %v1152 = vld [vmem:[#allocation2 + $0xc8] sm:$0xff]
    %v1153 = vld [vmem:[#allocation2 + $0xd0] sm:$0xff]
    %v1154 = vld [vmem:[#allocation2 + $0xd8] sm:$0xff]
    %v1155 = vld [vmem:[#allocation2 + $0xe0] sm:$0xff]
    %v1156 = vld [vmem:[#allocation2 + $0xe8] sm:$0xff]
    %v1157 = vld [vmem:[#allocation2 + $0xf0] sm:$0xff]
    %v1158 = vld [vmem:[#allocation2 + $0xf8] sm:$0xff]
    %v1159 = vld [vmem:[#allocation2 + $0x100] sm:$0xff]
    %v1160 = vld [vmem:[#allocation2 + $0x108] sm:$0xff]
    %v1161 = vld [vmem:[#allocation2 + $0x110] sm:$0xff]
    %v1162 = vld [vmem:[#allocation2 + $0x118] sm:$0xff]
    %v1163 = vld [vmem:[#allocation2 + $0x120] sm:$0xff]
    %v1164 = vld [vmem:[#allocation2 + $0x128] sm:$0xff]
    %v1165 = vld [vmem:[#allocation2 + $0x130] sm:$0xff]
    %v1166 = vld [vmem:[#allocation2 + $0x138] sm:$0xff]
    %v1167 = vld [vmem:[#allocation2 + $0x140] sm:$0xff]
    %v1168 = vld [vmem:[#allocation2 + $0x148] sm:$0xff]
    %v1169 = vld [vmem:[#allocation2 + $0x150] sm:$0xff]
    %v1170 = vld [vmem:[#allocation2 + $0x158] sm:$0xff]
    %v1171 = vld [vmem:[#allocation2 + $0x160] sm:$0xff]
    %v1172 = vld [vmem:[#allocation2 + $0x168] sm:$0xff]
    %v1173 = vld [vmem:[#allocation2 + $0x170] sm:$0xff]
    %v1174 = vld [vmem:[#allocation2 + $0x178] sm:$0xff]
    %v1175 = vld [vmem:[#allocation2 + $0x180] sm:$0xff]
    %v1176 = vld [vmem:[#allocation2 + $0x188] sm:$0xff]
    %v1177 = vld [vmem:[#allocation2 + $0x190] sm:$0xff]
    %v1178 = vld [vmem:[#allocation2 + $0x198] sm:$0xff]
    %v1179 = vld [vmem:[#allocation2 + $0x1a0] sm:$0xff]
    %v1180 = vld [vmem:[#allocation2 + $0x1a8] sm:$0xff]
    %v1181 = vld [vmem:[#allocation2 + $0x1b0] sm:$0xff]
    %v1182 = vld [vmem:[#allocation2 + $0x1b8] sm:$0xff]
    %v1183 = vld [vmem:[#allocation2 + $0x1c0] sm:$0xff]
    %v1184 = vld [vmem:[#allocation2 + $0x1c8] sm:$0xff]
    %v1185 = vld [vmem:[#allocation2 + $0x1d0] sm:$0xff]
    %v1186 = vld [vmem:[#allocation2 + $0x1d8] sm:$0xff]
    %v1187 = vld [vmem:[#allocation2 + $0x1e0] sm:$0xff]
    %v1188 = vld [vmem:[#allocation2 + $0x1e8] sm:$0xff]
    %v1189 = vld [vmem:[#allocation2 + $0x1f0] sm:$0xff]
    %v1190 = vld [vmem:[#allocation2 + $0x1f8] sm:$0xff]
    %v1191 = vld [vmem:[%s2] sm:$0x1]
    %v1193 = vperm.slane %v1191, 0
    %v1195 = vadd.f32 %v1127, %v1193
    %v1196 = vadd.f32 %v1128, %v1193
    %v1197 = vadd.f32 %v1129, %v1193
    %v1198 = vadd.f32 %v1130, %v1193
    %v1199 = vadd.f32 %v1131, %v1193
    %v1200 = vadd.f32 %v1132, %v1193
    %v1201 = vadd.f32 %v1133, %v1193
    %v1202 = vadd.f32 %v1134, %v1193
    %v1203 = vadd.f32 %v1135, %v1193
    %v1204 = vadd.f32 %v1136, %v1193
    %v1205 = vadd.f32 %v1137, %v1193
    %v1206 = vadd.f32 %v1138, %v1193
    %v1207 = vadd.f32 %v1139, %v1193
    %v1208 = vadd.f32 %v1140, %v1193
    %v1209 = vadd.f32 %v1141, %v1193
    %v1210 = vadd.f32 %v1142, %v1193
    %v1211 = vadd.f32 %v1143, %v1193
    %v1212 = vadd.f32 %v1144, %v1193
    %v1213 = vadd.f32 %v1145, %v1193
    %v1214 = vadd.f32 %v1146, %v1193
    %v1215 = vadd.f32 %v1147, %v1193
    %v1216 = vadd.f32 %v1148, %v1193
    %v1217 = vadd.f32 %v1149, %v1193
    %v1218 = vadd.f32 %v1150, %v1193
    %v1219 = vadd.f32 %v1151, %v1193
    %v1220 = vadd.f32 %v1152, %v1193
    %v1221 = vadd.f32 %v1153, %v1193
    %v1222 = vadd.f32 %v1154, %v1193
    %v1223 = vadd.f32 %v1155, %v1193
    %v1224 = vadd.f32 %v1156, %v1193
    %v1225 = vadd.f32 %v1157, %v1193
    %v1226 = vadd.f32 %v1158, %v1193
    %v1227 = vadd.f32 %v1159, %v1193
    %v1228 = vadd.f32 %v1160, %v1193
    %v1229 = vadd.f32 %v1161, %v1193
    %v1230 = vadd.f32 %v1162, %v1193
    %v1231 = vadd.f32 %v1163, %v1193
    %v1232 = vadd.f32 %v1164, %v1193
    %v1233 = vadd.f32 %v1165, %v1193
    %v1234 = vadd.f32 %v1166, %v1193
    %v1235 = vadd.f32 %v1167, %v1193
    %v1236 = vadd.f32 %v1168, %v1193
    %v1237 = vadd.f32 %v1169, %v1193
    %v1238 = vadd.f32 %v1170, %v1193
    %v1239 = vadd.f32 %v1171, %v1193
    %v1240 = vadd.f32 %v1172, %v1193
    %v1241 = vadd.f32 %v1173, %v1193
    %v1242 = vadd.f32 %v1174, %v1193
    %v1243 = vadd.f32 %v1175, %v1193
    %v1244 = vadd.f32 %v1176, %v1193
    %v1245 = vadd.f32 %v1177, %v1193
    %v1246 = vadd.f32 %v1178, %v1193
    %v1247 = vadd.f32 %v1179, %v1193
    %v1248 = vadd.f32 %v1180, %v1193
    %v1249 = vadd.f32 %v1181, %v1193
    %v1250 = vadd.f32 %v1182, %v1193
    %v1251 = vadd.f32 %v1183, %v1193
    %v1252 = vadd.f32 %v1184, %v1193
    %v1253 = vadd.f32 %v1185, %v1193
    %v1254 = vadd.f32 %v1186, %v1193
    %v1255 = vadd.f32 %v1187, %v1193
    %v1256 = vadd.f32 %v1188, %v1193
    %v1257 = vadd.f32 %v1189, %v1193
    %v1258 = vadd.f32 %v1190, %v1193
    %v1259 = vmax.f32 %v1195, 0.0
    %v1260 = vmax.f32 %v1196, 0.0
    %v1261 = vmax.f32 %v1197, 0.0
    %v1262 = vmax.f32 %v1198, 0.0
    %v1263 = vmax.f32 %v1199, 0.0
    %v1264 = vmax.f32 %v1200, 0.0
    %v1265 = vmax.f32 %v1201, 0.0
    %v1266 = vmax.f32 %v1202, 0.0
    %v1267 = vmax.f32 %v1203, 0.0
    %v1268 = vmax.f32 %v1204, 0.0
    %v1269 = vmax.f32 %v1205, 0.0
    %v1270 = vmax.f32 %v1206, 0.0
    %v1271 = vmax.f32 %v1207, 0.0
    %v1272 = vmax.f32 %v1208, 0.0
    %v1273 = vmax.f32 %v1209, 0.0
    %v1274 = vmax.f32 %v1210, 0.0
    %v1275 = vmax.f32 %v1211, 0.0
    %v1276 = vmax.f32 %v1212, 0.0
    %v1277 = vmax.f32 %v1213, 0.0
    %v1278 = vmax.f32 %v1214, 0.0
    %v1279 = vmax.f32 %v1215, 0.0
    %v1280 = vmax.f32 %v1216, 0.0
    %v1281 = vmax.f32 %v1217, 0.0
    %v1282 = vmax.f32 %v1218, 0.0
    %v1283 = vmax.f32 %v1219, 0.0
    %v1284 = vmax.f32 %v1220, 0.0
    %v1285 = vmax.f32 %v1221, 0.0
    %v1286 = vmax.f32 %v1222, 0.0
    %v1287 = vmax.f32 %v1223, 0.0
    %v1288 = vmax.f32 %v1224, 0.0
    %v1289 = vmax.f32 %v1225, 0.0
    %v1290 = vmax.f32 %v1226, 0.0
    %v1291 = vmax.f32 %v1227, 0.0
    %v1292 = vmax.f32 %v1228, 0.0
    %v1293 = vmax.f32 %v1229, 0.0
    %v1294 = vmax.f32 %v1230, 0.0
    %v1295 = vmax.f32 %v1231, 0.0
    %v1296 = vmax.f32 %v1232, 0.0
    %v1297 = vmax.f32 %v1233, 0.0
    %v1298 = vmax.f32 %v1234, 0.0
    %v1299 = vmax.f32 %v1235, 0.0
    %v1300 = vmax.f32 %v1236, 0.0
    %v1301 = vmax.f32 %v1237, 0.0
    %v1302 = vmax.f32 %v1238, 0.0
    %v1303 = vmax.f32 %v1239, 0.0
    %v1304 = vmax.f32 %v1240, 0.0
    %v1305 = vmax.f32 %v1241, 0.0
    %v1306 = vmax.f32 %v1242, 0.0
    %v1307 = vmax.f32 %v1243, 0.0
    %v1308 = vmax.f32 %v1244, 0.0
    %v1309 = vmax.f32 %v1245, 0.0
    %v1310 = vmax.f32 %v1246, 0.0
    %v1311 = vmax.f32 %v1247, 0.0
    %v1312 = vmax.f32 %v1248, 0.0
    %v1313 = vmax.f32 %v1249, 0.0
    %v1314 = vmax.f32 %v1250, 0.0
    %v1315 = vmax.f32 %v1251, 0.0
    %v1316 = vmax.f32 %v1252, 0.0
    %v1317 = vmax.f32 %v1253, 0.0
    %v1318 = vmax.f32 %v1254, 0.0
    %v1319 = vmax.f32 %v1255, 0.0
    %v1320 = vmax.f32 %v1256, 0.0
    %v1321 = vmax.f32 %v1257, 0.0
    %v1322 = vmax.f32 %v1258, 0.0
    %v1323 = vpack.c.bf16 %v1259, %v1259
    %v1324 = vpack.c.bf16 %v1260, %v1260
    %v1325 = vpack.c.bf16 %v1261, %v1261
    %v1326 = vpack.c.bf16 %v1262, %v1262
    %v1327 = vpack.c.bf16 %v1263, %v1263
    %v1328 = vpack.c.bf16 %v1264, %v1264
    %v1329 = vpack.c.bf16 %v1265, %v1265
    %v1330 = vpack.c.bf16 %v1266, %v1266
    %v1331 = vpack.c.bf16 %v1267, %v1267
    %v1332 = vpack.c.bf16 %v1268, %v1268
    %v1333 = vpack.c.bf16 %v1269, %v1269
    %v1334 = vpack.c.bf16 %v1270, %v1270
    %v1335 = vpack.c.bf16 %v1271, %v1271
    %v1336 = vpack.c.bf16 %v1272, %v1272
    %v1337 = vpack.c.bf16 %v1273, %v1273
    %v1338 = vpack.c.bf16 %v1274, %v1274
    %v1339 = vpack.c.bf16 %v1275, %v1275
    %v1340 = vpack.c.bf16 %v1276, %v1276
    %v1341 = vpack.c.bf16 %v1277, %v1277
    %v1342 = vpack.c.bf16 %v1278, %v1278
    %v1343 = vpack.c.bf16 %v1279, %v1279
    %v1344 = vpack.c.bf16 %v1280, %v1280
    %v1345 = vpack.c.bf16 %v1281, %v1281
    %v1346 = vpack.c.bf16 %v1282, %v1282
    %v1347 = vpack.c.bf16 %v1283, %v1283
    %v1348 = vpack.c.bf16 %v1284, %v1284
    %v1349 = vpack.c.bf16 %v1285, %v1285
    %v1350 = vpack.c.bf16 %v1286, %v1286
    %v1351 = vpack.c.bf16 %v1287, %v1287
    %v1352 = vpack.c.bf16 %v1288, %v1288
    %v1353 = vpack.c.bf16 %v1289, %v1289
    %v1354 = vpack.c.bf16 %v1290, %v1290
    %v1355 = vpack.c.bf16 %v1291, %v1291
    %v1356 = vpack.c.bf16 %v1292, %v1292
    %v1357 = vpack.c.bf16 %v1293, %v1293
    %v1358 = vpack.c.bf16 %v1294, %v1294
    %v1359 = vpack.c.bf16 %v1295, %v1295
    %v1360 = vpack.c.bf16 %v1296, %v1296
    %v1361 = vpack.c.bf16 %v1297, %v1297
    %v1362 = vpack.c.bf16 %v1298, %v1298
    %v1363 = vpack.c.bf16 %v1299, %v1299
    %v1364 = vpack.c.bf16 %v1300, %v1300
    %v1365 = vpack.c.bf16 %v1301, %v1301
    %v1366 = vpack.c.bf16 %v1302, %v1302
    %v1367 = vpack.c.bf16 %v1303, %v1303
    %v1368 = vpack.c.bf16 %v1304, %v1304
    %v1369 = vpack.c.bf16 %v1305, %v1305
    %v1370 = vpack.c.bf16 %v1306, %v1306
    %v1371 = vpack.c.bf16 %v1307, %v1307
    %v1372 = vpack.c.bf16 %v1308, %v1308
    %v1373 = vpack.c.bf16 %v1309, %v1309
    %v1374 = vpack.c.bf16 %v1310, %v1310
    %v1375 = vpack.c.bf16 %v1311, %v1311
    %v1376 = vpack.c.bf16 %v1312, %v1312
    %v1377 = vpack.c.bf16 %v1313, %v1313
    %v1378 = vpack.c.bf16 %v1314, %v1314
    %v1379 = vpack.c.bf16 %v1315, %v1315
    %v1380 = vpack.c.bf16 %v1316, %v1316
    %v1381 = vpack.c.bf16 %v1317, %v1317
    %v1382 = vpack.c.bf16 %v1318, %v1318
    %v1383 = vpack.c.bf16 %v1319, %v1319
    %v1384 = vpack.c.bf16 %v1320, %v1320
    %v1385 = vpack.c.bf16 %v1321, %v1321
    %v1386 = vpack.c.bf16 %v1322, %v1322
    %1387 = vst [vmem:[%s3] sm:$0xf] %v1323
    %1388 = vst [vmem:[%s3 + $0x4] sm:$0xf] %v1324
    %1389 = vst [vmem:[%s3 + $0x8] sm:$0xf] %v1325
    %1390 = vst [vmem:[%s3 + $0xc] sm:$0xf] %v1326
    %1391 = vst [vmem:[%s3 + $0x10] sm:$0xf] %v1327
    %1392 = vst [vmem:[%s3 + $0x14] sm:$0xf] %v1328
    %1393 = vst [vmem:[%s3 + $0x18] sm:$0xf] %v1329
    %1394 = vst [vmem:[%s3 + $0x1c] sm:$0xf] %v1330
    %1395 = vst [vmem:[%s3 + $0x20] sm:$0xf] %v1331
    %1396 = vst [vmem:[%s3 + $0x24] sm:$0xf] %v1332
    %1397 = vst [vmem:[%s3 + $0x28] sm:$0xf] %v1333
    %1398 = vst [vmem:[%s3 + $0x2c] sm:$0xf] %v1334
    %1399 = vst [vmem:[%s3 + $0x30] sm:$0xf] %v1335
    %1400 = vst [vmem:[%s3 + $0x34] sm:$0xf] %v1336
    %1401 = vst [vmem:[%s3 + $0x38] sm:$0xf] %v1337
    %1402 = vst [vmem:[%s3 + $0x3c] sm:$0xf] %v1338
    %1403 = vst [vmem:[%s3 + $0x40] sm:$0xf] %v1339
    %1404 = vst [vmem:[%s3 + $0x44] sm:$0xf] %v1340
    %1405 = vst [vmem:[%s3 + $0x48] sm:$0xf] %v1341
    %1406 = vst [vmem:[%s3 + $0x4c] sm:$0xf] %v1342
    %1407 = vst [vmem:[%s3 + $0x50] sm:$0xf] %v1343
    %1408 = vst [vmem:[%s3 + $0x54] sm:$0xf] %v1344
    %1409 = vst [vmem:[%s3 + $0x58] sm:$0xf] %v1345
    %1410 = vst [vmem:[%s3 + $0x5c] sm:$0xf] %v1346
    %1411 = vst [vmem:[%s3 + $0x60] sm:$0xf] %v1347
    %1412 = vst [vmem:[%s3 + $0x64] sm:$0xf] %v1348
    %1413 = vst [vmem:[%s3 + $0x68] sm:$0xf] %v1349
    %1414 = vst [vmem:[%s3 + $0x6c] sm:$0xf] %v1350
    %1415 = vst [vmem:[%s3 + $0x70] sm:$0xf] %v1351
    %1416 = vst [vmem:[%s3 + $0x74] sm:$0xf] %v1352
    %1417 = vst [vmem:[%s3 + $0x78] sm:$0xf] %v1353
    %1418 = vst [vmem:[%s3 + $0x7c] sm:$0xf] %v1354
    %1419 = vst [vmem:[%s3 + $0x80] sm:$0xf] %v1355
    %1420 = vst [vmem:[%s3 + $0x84] sm:$0xf] %v1356
    %1421 = vst [vmem:[%s3 + $0x88] sm:$0xf] %v1357
    %1422 = vst [vmem:[%s3 + $0x8c] sm:$0xf] %v1358
    %1423 = vst [vmem:[%s3 + $0x90] sm:$0xf] %v1359
    %1424 = vst [vmem:[%s3 + $0x94] sm:$0xf] %v1360
    %1425 = vst [vmem:[%s3 + $0x98] sm:$0xf] %v1361
    %1426 = vst [vmem:[%s3 + $0x9c] sm:$0xf] %v1362
    %1427 = vst [vmem:[%s3 + $0xa0] sm:$0xf] %v1363
    %1428 = vst [vmem:[%s3 + $0xa4] sm:$0xf] %v1364
    %1429 = vst [vmem:[%s3 + $0xa8] sm:$0xf] %v1365
    %1430 = vst [vmem:[%s3 + $0xac] sm:$0xf] %v1366
    %1431 = vst [vmem:[%s3 + $0xb0] sm:$0xf] %v1367
    %1432 = vst [vmem:[%s3 + $0xb4] sm:$0xf] %v1368
    %1433 = vst [vmem:[%s3 + $0xb8] sm:$0xf] %v1369
    %1434 = vst [vmem:[%s3 + $0xbc] sm:$0xf] %v1370
    %1435 = vst [vmem:[%s3 + $0xc0] sm:$0xf] %v1371
    %1436 = vst [vmem:[%s3 + $0xc4] sm:$0xf] %v1372
    %1437 = vst [vmem:[%s3 + $0xc8] sm:$0xf] %v1373
    %1438 = vst [vmem:[%s3 + $0xcc] sm:$0xf] %v1374
    %1439 = vst [vmem:[%s3 + $0xd0] sm:$0xf] %v1375
    %1440 = vst [vmem:[%s3 + $0xd4] sm:$0xf] %v1376
    %1441 = vst [vmem:[%s3 + $0xd8] sm:$0xf] %v1377
    %1442 = vst [vmem:[%s3 + $0xdc] sm:$0xf] %v1378
    %1443 = vst [vmem:[%s3 + $0xe0] sm:$0xf] %v1379
    %1444 = vst [vmem:[%s3 + $0xe4] sm:$0xf] %v1380
    %1445 = vst [vmem:[%s3 + $0xe8] sm:$0xf] %v1381
    %1446 = vst [vmem:[%s3 + $0xec] sm:$0xf] %v1382
    %1447 = vst [vmem:[%s3 + $0xf0] sm:$0xf] %v1383
    %1448 = vst [vmem:[%s3 + $0xf4] sm:$0xf] %v1384
    %1449 = vst [vmem:[%s3 + $0xf8] sm:$0xf] %v1385
    %1450 = vst [vmem:[%s3 + $0xfc] sm:$0xf] %v1386
  $region21: #{_lambda_.54} parent=0 // pred_fallthru
    _
  // Predicated region
  $region22: #{_lambda_.54} parent=0 // pred_check
    _
  $region23: #{_lambda_.54} parent=0 // pred_check_branch
    %1452 = sbr.rel (0) target = $region25
  $region24: #{_lambda_.54} parent=0 // pred_region
    _
  $region25: #{_lambda_.54} parent=0 // pred_fallthru
    _
  // Predicated region
  $region26: #{_lambda_.54} parent=0 // pred_check
    _
  $region27: #{_lambda_.54} parent=0 // pred_check_branch
    %1454 = sbr.rel (0) target = $region29
  $region28: #{_lambda_.54} parent=0 // pred_region
    _
  $region29: #{_lambda_.54} parent=0 // pred_fallthru
    _

// kernel: _lambda_.57
$region0: #{_lambda_.57}
  #allocation0 [shape = 'u32[]', space=smem, size = 0x4, offset = 0x4, fixed_abs, tag = 'smem constant byte address 0x4 - core index']
  #allocation1 [shape = 'u32[72,128]{1,0:T(1,128)}', space=vmem, size = 0x9000, scoped, tag = 'internal scratch']
  #allocation2 [shape = 'f32[128,128]{1,0:T(8,128)}', space=vmem, size = 0x10000, scoped, tag = 'scratch operand']
  %s0 = inlined_call_operand.vmem [shape: bf16[128,128], index: 0, kind: input, shape index: {}]
  %s1 = inlined_call_operand.vmem [shape: bf16[128,128], index: 1, kind: input, shape index: {}]
  %s2 = inlined_call_operand.vmem [shape: f32[1,128], index: 2, kind: input, shape index: {}]
  %s3 = inlined_call_operand.vmem [shape: bf16[128,128], index: 3, kind: output, shape index: {}]
  %s4 = sld [smem:[#allocation0]]
  $region30: #{_lambda_.57} parent=0
    _
  %s6 = ssub.s32 1, %s4
  %s7 = scalar_select 0, %s6, %s4
  // Predicated region
  $region2: #{_lambda_.57} parent=0 // pred_check
    _
  $region3: #{_lambda_.57} parent=0 // pred_check_branch
    %9 = sbr.rel (0) target = $region5
  $region4: #{_lambda_.57} parent=0 // pred_region
    _
  $region5: #{_lambda_.57} parent=0 // pred_fallthru
    _
  // Predicated region
  $region6: #{_lambda_.57} parent=0 // pred_check
    _
  $region7: #{_lambda_.57} parent=0 // pred_check_branch
    %11 = sbr.rel (0) target = $region9
  $region8: #{_lambda_.57} parent=0 // pred_region
    _
  $region9: #{_lambda_.57} parent=0 // pred_fallthru
    _
  // Predicated region
  $region10: #{_lambda_.57} parent=0 // pred_check
    _
  $region11: #{_lambda_.57} parent=0 // pred_check_branch
    %13 = sbr.rel (0) target = $region13
  $region12: #{_lambda_.57} parent=0 // pred_region
    _
  $region13: #{_lambda_.57} parent=0 // pred_fallthru
    _
  %p14 = scmp.eq.s32.totalorder 0, 0
  // Predicated region
  $region14: #{_lambda_.57} parent=0 // pred_check
    %p15 = pneg %p14
  $region15: #{_lambda_.57} parent=0 // pred_check_branch
    %17 = sbr.rel (%p15) target = $region17
  $region16: #{_lambda_.57} parent=0 // pred_region
    %18 = vst [vmem:[#allocation2] sm:$0xff] 0.0
    %19 = vst [vmem:[#allocation2 + $0x8] sm:$0xff] 0.0
    %20 = vst [vmem:[#allocation2 + $0x10] sm:$0xff] 0.0
    %21 = vst [vmem:[#allocation2 + $0x18] sm:$0xff] 0.0
    %22 = vst [vmem:[#allocation2 + $0x20] sm:$0xff] 0.0
    %23 = vst [vmem:[#allocation2 + $0x28] sm:$0xff] 0.0
    %24 = vst [vmem:[#allocation2 + $0x30] sm:$0xff] 0.0
    %25 = vst [vmem:[#allocation2 + $0x38] sm:$0xff] 0.0
    %26 = vst [vmem:[#allocation2 + $0x40] sm:$0xff] 0.0
    %27 = vst [vmem:[#allocation2 + $0x48] sm:$0xff] 0.0
    %28 = vst [vmem:[#allocation2 + $0x50] sm:$0xff] 0.0
    %29 = vst [vmem:[#allocation2 + $0x58] sm:$0xff] 0.0
    %30 = vst [vmem:[#allocation2 + $0x60] sm:$0xff] 0.0
    %31 = vst [vmem:[#allocation2 + $0x68] sm:$0xff] 0.0
    %32 = vst [vmem:[#allocation2 + $0x70] sm:$0xff] 0.0
    %33 = vst [vmem:[#allocation2 + $0x78] sm:$0xff] 0.0
  $region17: #{_lambda_.57} parent=0 // pred_fallthru
    _
  %v34 = vld [vmem:[#allocation2] sm:$0xff]
  %v35 = vld [vmem:[#allocation2 + $0x8] sm:$0xff]
  %v36 = vld [vmem:[#allocation2 + $0x10] sm:$0xff]
  %v37 = vld [vmem:[#allocation2 + $0x18] sm:$0xff]
  %v38 = vld [vmem:[#allocation2 + $0x20] sm:$0xff]
  %v39 = vld [vmem:[#allocation2 + $0x28] sm:$0xff]
  %v40 = vld [vmem:[#allocation2 + $0x30] sm:$0xff]
  %v41 = vld [vmem:[#allocation2 + $0x38] sm:$0xff]
  %v42 = vld [vmem:[#allocation2 + $0x40] sm:$0xff]
  %v43 = vld [vmem:[#allocation2 + $0x48] sm:$0xff]
  %v44 = vld [vmem:[#allocation2 + $0x50] sm:$0xff]
  %v45 = vld [vmem:[#allocation2 + $0x58] sm:$0xff]
  %v46 = vld [vmem:[#allocation2 + $0x60] sm:$0xff]
  %v47 = vld [vmem:[#allocation2 + $0x68] sm:$0xff]
  %v48 = vld [vmem:[#allocation2 + $0x70] sm:$0xff]
  %v49 = vld [vmem:[#allocation2 + $0x78] sm:$0xff]
  %v50 = vld [vmem:[%s0] sm:$0xf]
  %v51 = vld [vmem:[%s0 + $0x4] sm:$0xf]
  %v52 = vld [vmem:[%s0 + $0x8] sm:$0xf]
  %v53 = vld [vmem:[%s0 + $0xc] sm:$0xf]
  %v54 = vld [vmem:[%s0 + $0x10] sm:$0xf]
  %v55 = vld [vmem:[%s0 + $0x14] sm:$0xf]
  %v56 = vld [vmem:[%s0 + $0x18] sm:$0xf]
  %v57 = vld [vmem:[%s0 + $0x1c] sm:$0xf]
  %v58 = vld [vmem:[%s0 + $0x20] sm:$0xf]
  %v59 = vld [vmem:[%s0 + $0x24] sm:$0xf]
  %v60 = vld [vmem:[%s0 + $0x28] sm:$0xf]
  %v61 = vld [vmem:[%s0 + $0x2c] sm:$0xf]
  %v62 = vld [vmem:[%s0 + $0x30] sm:$0xf]
  %v63 = vld [vmem:[%s0 + $0x34] sm:$0xf]
  %v64 = vld [vmem:[%s0 + $0x38] sm:$0xf]
  %v65 = vld [vmem:[%s0 + $0x3c] sm:$0xf]
  %v66 = vld [vmem:[%s1] sm:$0xf]
  %v67 = vld [vmem:[%s1 + $0x4] sm:$0xf]
  %v68 = vld [vmem:[%s1 + $0x8] sm:$0xf]
  %v69 = vld [vmem:[%s1 + $0xc] sm:$0xf]
  %v70 = vld [vmem:[%s1 + $0x10] sm:$0xf]
  %v71 = vld [vmem:[%s1 + $0x14] sm:$0xf]
  %v72 = vld [vmem:[%s1 + $0x18] sm:$0xf]
  %v73 = vld [vmem:[%s1 + $0x1c] sm:$0xf]
  %v74 = vld [vmem:[%s1 + $0x20] sm:$0xf]
  %v75 = vld [vmem:[%s1 + $0x24] sm:$0xf]
  %v76 = vld [vmem:[%s1 + $0x28] sm:$0xf]
  %v77 = vld [vmem:[%s1 + $0x2c] sm:$0xf]
  %v78 = vld [vmem:[%s1 + $0x30] sm:$0xf]
  %v79 = vld [vmem:[%s1 + $0x34] sm:$0xf]
  %v80 = vld [vmem:[%s1 + $0x38] sm:$0xf]
  %v81 = vld [vmem:[%s1 + $0x3c] sm:$0xf]
  %v98 = vunpack.c.l.b16 %v50
  %v99 = vunpack.c.l.b16 %v51
  %v100 = vunpack.c.l.b16 %v52
  %v101 = vunpack.c.l.b16 %v53
  %v102 = vunpack.c.l.b16 %v54
  %v103 = vunpack.c.l.b16 %v55
  %v104 = vunpack.c.l.b16 %v56
  %v105 = vunpack.c.l.b16 %v57
  %v106 = vunpack.c.l.b16 %v58
  %v107 = vunpack.c.l.b16 %v59
  %v108 = vunpack.c.l.b16 %v60
  %v109 = vunpack.c.l.b16 %v61
  %v110 = vunpack.c.l.b16 %v62
  %v111 = vunpack.c.l.b16 %v63
  %v112 = vunpack.c.l.b16 %v64
  %v113 = vunpack.c.l.b16 %v65
  %v114 = vpack.c.b16 %v99, %v98
  %v115 = vpack.c.b16 %v101, %v100
  %v116 = vpack.c.b16 %v103, %v102
  %v117 = vpack.c.b16 %v105, %v104
  %v118 = vpack.c.b16 %v107, %v106
  %v119 = vpack.c.b16 %v109, %v108
  %v120 = vpack.c.b16 %v111, %v110
  %v121 = vpack.c.b16 %v113, %v112
  %v146 = vunpack.c.l.b16 %v66
  %v147 = vunpack.c.l.b16 %v67
  %v148 = vunpack.c.l.b16 %v68
  %v149 = vunpack.c.l.b16 %v69
  %v150 = vunpack.c.l.b16 %v70
  %v151 = vunpack.c.l.b16 %v71
  %v152 = vunpack.c.l.b16 %v72
  %v153 = vunpack.c.l.b16 %v73
  %v154 = vunpack.c.l.b16 %v74
  %v155 = vunpack.c.l.b16 %v75
  %v156 = vunpack.c.l.b16 %v76
  %v157 = vunpack.c.l.b16 %v77
  %v158 = vunpack.c.l.b16 %v78
  %v159 = vunpack.c.l.b16 %v79
  %v160 = vunpack.c.l.b16 %v80
  %v161 = vunpack.c.l.b16 %v81
  %v162 = vpack.c.b16 %v147, %v146
  %v163 = vpack.c.b16 %v149, %v148
  %v164 = vpack.c.b16 %v151, %v150
  %v165 = vpack.c.b16 %v153, %v152
  %v166 = vpack.c.b16 %v155, %v154
  %v167 = vpack.c.b16 %v157, %v156
  %v168 = vpack.c.b16 %v159, %v158
  %v169 = vpack.c.b16 %v161, %v160
  %178 = vmatpush.bf16.msra.mxu0 %v169
  %179 = vmatpush.bf16.msra.mxu0 %v168
  %180 = vmatpush.bf16.msra.mxu0 %v167
  %181 = vmatpush.bf16.msra.mxu0 %v166
  %182 = vmatpush.bf16.msra.mxu0 %v165
  %183 = vmatpush.bf16.msra.mxu0 %v164
  %184 = vmatpush.bf16.msra.mxu0 %v163
  %185 = vmatpush.bf16.msra.mxu0 %v162
  %186 = vmatmul.bf16.gmra.mxu0 %v114
  %v187 = vpop.f32.mrf.mxu0
  %v188 = vadd.f32 0.0, %v187
  %v189 = vpop.f32.mrf.mxu0
  %v190 = vadd.f32 0.0, %v189
  %191 = vmatmul.bf16.gmra.mxu0 %v115
  %v192 = vpop.f32.mrf.mxu0
  %v193 = vadd.f32 0.0, %v192
  %v194 = vpop.f32.mrf.mxu0
  %v195 = vadd.f32 0.0, %v194
  %196 = vmatmul.bf16.gmra.mxu0 %v116
  %v197 = vpop.f32.mrf.mxu0
  %v198 = vadd.f32 0.0, %v197
  %v199 = vpop.f32.mrf.mxu0
  %v200 = vadd.f32 0.0, %v199
  %201 = vmatmul.bf16.gmra.mxu0 %v117
  %v202 = vpop.f32.mrf.mxu0
  %v203 = vadd.f32 0.0, %v202
  %v204 = vpop.f32.mrf.mxu0
  %v205 = vadd.f32 0.0, %v204
  %206 = vmatmul.bf16.gmra.mxu0 %v118
  %v207 = vpop.f32.mrf.mxu0
  %v208 = vadd.f32 0.0, %v207
  %v209 = vpop.f32.mrf.mxu0
  %v210 = vadd.f32 0.0, %v209
  %211 = vmatmul.bf16.gmra.mxu0 %v119
  %v212 = vpop.f32.mrf.mxu0
  %v213 = vadd.f32 0.0, %v212
  %v214 = vpop.f32.mrf.mxu0
  %v215 = vadd.f32 0.0, %v214
  %216 = vmatmul.bf16.gmra.mxu0 %v120
  %v217 = vpop.f32.mrf.mxu0
  %v218 = vadd.f32 0.0, %v217
  %v219 = vpop.f32.mrf.mxu0
  %v220 = vadd.f32 0.0, %v219
  %221 = vmatmul.bf16.gmra.mxu0 %v121
  %v222 = vpop.f32.mrf.mxu0
  %v223 = vadd.f32 0.0, %v222
  %v224 = vpop.f32.mrf.mxu0
  %v225 = vadd.f32 0.0, %v224
  %226 = vdwg.mxu0
  %v227 = vadd.f32 %v34, %v188
  %v228 = vadd.f32 %v35, %v190
  %v229 = vadd.f32 %v36, %v193
  %v230 = vadd.f32 %v37, %v195
  %v231 = vadd.f32 %v38, %v198
  %v232 = vadd.f32 %v39, %v200
  %v233 = vadd.f32 %v40, %v203
  %v234 = vadd.f32 %v41, %v205
  %v235 = vadd.f32 %v42, %v208
  %v236 = vadd.f32 %v43, %v210
  %v237 = vadd.f32 %v44, %v213
  %v238 = vadd.f32 %v45, %v215
  %v239 = vadd.f32 %v46, %v218
  %v240 = vadd.f32 %v47, %v220
  %v241 = vadd.f32 %v48, %v223
  %v242 = vadd.f32 %v49, %v225
  %243 = vst [vmem:[#allocation2] sm:$0xff] %v227
  %244 = vst [vmem:[#allocation2 + $0x8] sm:$0xff] %v228
  %245 = vst [vmem:[#allocation2 + $0x10] sm:$0xff] %v229
  %246 = vst [vmem:[#allocation2 + $0x18] sm:$0xff] %v230
  %247 = vst [vmem:[#allocation2 + $0x20] sm:$0xff] %v231
  %248 = vst [vmem:[#allocation2 + $0x28] sm:$0xff] %v232
  %249 = vst [vmem:[#allocation2 + $0x30] sm:$0xff] %v233
  %250 = vst [vmem:[#allocation2 + $0x38] sm:$0xff] %v234
  %251 = vst [vmem:[#allocation2 + $0x40] sm:$0xff] %v235
  %252 = vst [vmem:[#allocation2 + $0x48] sm:$0xff] %v236
  %253 = vst [vmem:[#allocation2 + $0x50] sm:$0xff] %v237
  %254 = vst [vmem:[#allocation2 + $0x58] sm:$0xff] %v238
  %255 = vst [vmem:[#allocation2 + $0x60] sm:$0xff] %v239
  %256 = vst [vmem:[#allocation2 + $0x68] sm:$0xff] %v240
  %257 = vst [vmem:[#allocation2 + $0x70] sm:$0xff] %v241
  %258 = vst [vmem:[#allocation2 + $0x78] sm:$0xff] %v242
  // Predicated region
  $region18: #{_lambda_.57} parent=0 // pred_check
    %p259 = pneg %p14
  $region19: #{_lambda_.57} parent=0 // pred_check_branch
    %261 = sbr.rel (%p259) target = $region21
  $region20: #{_lambda_.57} parent=0 // pred_region
    %v262 = vld [vmem:[#allocation2] sm:$0xff]
    %v263 = vld [vmem:[#allocation2 + $0x8] sm:$0xff]
    %v264 = vld [vmem:[#allocation2 + $0x10] sm:$0xff]
    %v265 = vld [vmem:[#allocation2 + $0x18] sm:$0xff]
    %v266 = vld [vmem:[#allocation2 + $0x20] sm:$0xff]
    %v267 = vld [vmem:[#allocation2 + $0x28] sm:$0xff]
    %v268 = vld [vmem:[#allocation2 + $0x30] sm:$0xff]
    %v269 = vld [vmem:[#allocation2 + $0x38] sm:$0xff]
    %v270 = vld [vmem:[#allocation2 + $0x40] sm:$0xff]
    %v271 = vld [vmem:[#allocation2 + $0x48] sm:$0xff]
    %v272 = vld [vmem:[#allocation2 + $0x50] sm:$0xff]
    %v273 = vld [vmem:[#allocation2 + $0x58] sm:$0xff]
    %v274 = vld [vmem:[#allocation2 + $0x60] sm:$0xff]
    %v275 = vld [vmem:[#allocation2 + $0x68] sm:$0xff]
    %v276 = vld [vmem:[#allocation2 + $0x70] sm:$0xff]
    %v277 = vld [vmem:[#allocation2 + $0x78] sm:$0xff]
    %v278 = vld [vmem:[%s2] sm:$0x1]
    %v280 = vperm.slane %v278, 0
    %v282 = vadd.f32 %v262, %v280
    %v283 = vadd.f32 %v263, %v280
    %v284 = vadd.f32 %v264, %v280
    %v285 = vadd.f32 %v265, %v280
    %v286 = vadd.f32 %v266, %v280
    %v287 = vadd.f32 %v267, %v280
    %v288 = vadd.f32 %v268, %v280
    %v289 = vadd.f32 %v269, %v280
    %v290 = vadd.f32 %v270, %v280
    %v291 = vadd.f32 %v271, %v280
    %v292 = vadd.f32 %v272, %v280
    %v293 = vadd.f32 %v273, %v280
    %v294 = vadd.f32 %v274, %v280
    %v295 = vadd.f32 %v275, %v280
    %v296 = vadd.f32 %v276, %v280
    %v297 = vadd.f32 %v277, %v280
    %v298 = vpack.c.bf16 %v282, %v282
    %v299 = vpack.c.bf16 %v283, %v283
    %v300 = vpack.c.bf16 %v284, %v284
    %v301 = vpack.c.bf16 %v285, %v285
    %v302 = vpack.c.bf16 %v286, %v286
    %v303 = vpack.c.bf16 %v287, %v287
    %v304 = vpack.c.bf16 %v288, %v288
    %v305 = vpack.c.bf16 %v289, %v289
    %v306 = vpack.c.bf16 %v290, %v290
    %v307 = vpack.c.bf16 %v291, %v291
    %v308 = vpack.c.bf16 %v292, %v292
    %v309 = vpack.c.bf16 %v293, %v293
    %v310 = vpack.c.bf16 %v294, %v294
    %v311 = vpack.c.bf16 %v295, %v295
    %v312 = vpack.c.bf16 %v296, %v296
    %v313 = vpack.c.bf16 %v297, %v297
    %314 = vst [vmem:[%s3] sm:$0xf] %v298
    %315 = vst [vmem:[%s3 + $0x4] sm:$0xf] %v299
    %316 = vst [vmem:[%s3 + $0x8] sm:$0xf] %v300
    %317 = vst [vmem:[%s3 + $0xc] sm:$0xf] %v301
    %318 = vst [vmem:[%s3 + $0x10] sm:$0xf] %v302
    %319 = vst [vmem:[%s3 + $0x14] sm:$0xf] %v303
    %320 = vst [vmem:[%s3 + $0x18] sm:$0xf] %v304
    %321 = vst [vmem:[%s3 + $0x1c] sm:$0xf] %v305
    %322 = vst [vmem:[%s3 + $0x20] sm:$0xf] %v306
    %323 = vst [vmem:[%s3 + $0x24] sm:$0xf] %v307
    %324 = vst [vmem:[%s3 + $0x28] sm:$0xf] %v308
    %325 = vst [vmem:[%s3 + $0x2c] sm:$0xf] %v309
    %326 = vst [vmem:[%s3 + $0x30] sm:$0xf] %v310
    %327 = vst [vmem:[%s3 + $0x34] sm:$0xf] %v311
    %328 = vst [vmem:[%s3 + $0x38] sm:$0xf] %v312
    %329 = vst [vmem:[%s3 + $0x3c] sm:$0xf] %v313
  $region21: #{_lambda_.57} parent=0 // pred_fallthru
    _
  // Predicated region
  $region22: #{_lambda_.57} parent=0 // pred_check
    _
  $region23: #{_lambda_.57} parent=0 // pred_check_branch
    %331 = sbr.rel (0) target = $region25
  $region24: #{_lambda_.57} parent=0 // pred_region
    _
  $region25: #{_lambda_.57} parent=0 // pred_fallthru
    _
  // Predicated region
  $region26: #{_lambda_.57} parent=0 // pred_check
    _
  $region27: #{_lambda_.57} parent=0 // pred_check_branch
    %333 = sbr.rel (0) target = $region29
  $region28: #{_lambda_.57} parent=0 // pred_region
    _
  $region29: #{_lambda_.57} parent=0 // pred_fallthru
    _

// kernel: _lambda_.58
$region0: #{_lambda_.58}
  #allocation0 [shape = 'u32[]', space=smem, size = 0x4, offset = 0x4, fixed_abs, tag = 'smem constant byte address 0x4 - core index']
  #allocation1 [shape = 'u32[72,128]{1,0:T(1,128)}', space=vmem, size = 0x9000, scoped, tag = 'internal scratch']
  #allocation2 [shape = 'f32[128,128]{1,0:T(8,128)}', space=vmem, size = 0x10000, scoped, tag = 'scratch operand']
  %s0 = inlined_call_operand.vmem [shape: bf16[128,128], index: 0, kind: input, shape index: {}]
  %s1 = inlined_call_operand.vmem [shape: bf16[128,128], index: 1, kind: input, shape index: {}]
  %s2 = inlined_call_operand.vmem [shape: f32[1,128], index: 2, kind: input, shape index: {}]
  %s3 = inlined_call_operand.vmem [shape: bf16[128,128], index: 3, kind: input, shape index: {}]
  %s4 = inlined_call_operand.vmem [shape: bf16[128,128], index: 4, kind: output, shape index: {}]
  %s5 = sld [smem:[#allocation0]]
  $region34: #{_lambda_.58} parent=0
    _
  %s7 = ssub.s32 1, %s5
  %s8 = scalar_select 0, %s7, %s5
  // Predicated region
  $region2: #{_lambda_.58} parent=0 // pred_check
    _
  $region3: #{_lambda_.58} parent=0 // pred_check_branch
    %10 = sbr.rel (0) target = $region5
  $region4: #{_lambda_.58} parent=0 // pred_region
    _
  $region5: #{_lambda_.58} parent=0 // pred_fallthru
    _
  // Predicated region
  $region6: #{_lambda_.58} parent=0 // pred_check
    _
  $region7: #{_lambda_.58} parent=0 // pred_check_branch
    %12 = sbr.rel (0) target = $region9
  $region8: #{_lambda_.58} parent=0 // pred_region
    _
  $region9: #{_lambda_.58} parent=0 // pred_fallthru
    _
  // Predicated region
  $region10: #{_lambda_.58} parent=0 // pred_check
    _
  $region11: #{_lambda_.58} parent=0 // pred_check_branch
    %14 = sbr.rel (0) target = $region13
  $region12: #{_lambda_.58} parent=0 // pred_region
    _
  $region13: #{_lambda_.58} parent=0 // pred_fallthru
    _
  // Predicated region
  $region14: #{_lambda_.58} parent=0 // pred_check
    _
  $region15: #{_lambda_.58} parent=0 // pred_check_branch
    %16 = sbr.rel (0) target = $region17
  $region16: #{_lambda_.58} parent=0 // pred_region
    _
  $region17: #{_lambda_.58} parent=0 // pred_fallthru
    _
  %p17 = scmp.eq.s32.totalorder 0, 0
  // Predicated region
  $region18: #{_lambda_.58} parent=0 // pred_check
    %p18 = pneg %p17
  $region19: #{_lambda_.58} parent=0 // pred_check_branch
    %20 = sbr.rel (%p18) target = $region21
  $region20: #{_lambda_.58} parent=0 // pred_region
    %21 = vst [vmem:[#allocation2] sm:$0xff] 0.0
    %22 = vst [vmem:[#allocation2 + $0x8] sm:$0xff] 0.0
    %23 = vst [vmem:[#allocation2 + $0x10] sm:$0xff] 0.0
    %24 = vst [vmem:[#allocation2 + $0x18] sm:$0xff] 0.0
    %25 = vst [vmem:[#allocation2 + $0x20] sm:$0xff] 0.0
    %26 = vst [vmem:[#allocation2 + $0x28] sm:$0xff] 0.0
    %27 = vst [vmem:[#allocation2 + $0x30] sm:$0xff] 0.0
    %28 = vst [vmem:[#allocation2 + $0x38] sm:$0xff] 0.0
    %29 = vst [vmem:[#allocation2 + $0x40] sm:$0xff] 0.0
    %30 = vst [vmem:[#allocation2 + $0x48] sm:$0xff] 0.0
    %31 = vst [vmem:[#allocation2 + $0x50] sm:$0xff] 0.0
    %32 = vst [vmem:[#allocation2 + $0x58] sm:$0xff] 0.0
    %33 = vst [vmem:[#allocation2 + $0x60] sm:$0xff] 0.0
    %34 = vst [vmem:[#allocation2 + $0x68] sm:$0xff] 0.0
    %35 = vst [vmem:[#allocation2 + $0x70] sm:$0xff] 0.0
    %36 = vst [vmem:[#allocation2 + $0x78] sm:$0xff] 0.0
  $region21: #{_lambda_.58} parent=0 // pred_fallthru
    _
  %v37 = vld [vmem:[#allocation2] sm:$0xff]
  %v38 = vld [vmem:[#allocation2 + $0x8] sm:$0xff]
  %v39 = vld [vmem:[#allocation2 + $0x10] sm:$0xff]
  %v40 = vld [vmem:[#allocation2 + $0x18] sm:$0xff]
  %v41 = vld [vmem:[#allocation2 + $0x20] sm:$0xff]
  %v42 = vld [vmem:[#allocation2 + $0x28] sm:$0xff]
  %v43 = vld [vmem:[#allocation2 + $0x30] sm:$0xff]
  %v44 = vld [vmem:[#allocation2 + $0x38] sm:$0xff]
  %v45 = vld [vmem:[#allocation2 + $0x40] sm:$0xff]
  %v46 = vld [vmem:[#allocation2 + $0x48] sm:$0xff]
  %v47 = vld [vmem:[#allocation2 + $0x50] sm:$0xff]
  %v48 = vld [vmem:[#allocation2 + $0x58] sm:$0xff]
  %v49 = vld [vmem:[#allocation2 + $0x60] sm:$0xff]
  %v50 = vld [vmem:[#allocation2 + $0x68] sm:$0xff]
  %v51 = vld [vmem:[#allocation2 + $0x70] sm:$0xff]
  %v52 = vld [vmem:[#allocation2 + $0x78] sm:$0xff]
  %v53 = vld [vmem:[%s0] sm:$0xf]
  %v54 = vld [vmem:[%s0 + $0x4] sm:$0xf]
  %v55 = vld [vmem:[%s0 + $0x8] sm:$0xf]
  %v56 = vld [vmem:[%s0 + $0xc] sm:$0xf]
  %v57 = vld [vmem:[%s0 + $0x10] sm:$0xf]
  %v58 = vld [vmem:[%s0 + $0x14] sm:$0xf]
  %v59 = vld [vmem:[%s0 + $0x18] sm:$0xf]
  %v60 = vld [vmem:[%s0 + $0x1c] sm:$0xf]
  %v61 = vld [vmem:[%s0 + $0x20] sm:$0xf]
  %v62 = vld [vmem:[%s0 + $0x24] sm:$0xf]
  %v63 = vld [vmem:[%s0 + $0x28] sm:$0xf]
  %v64 = vld [vmem:[%s0 + $0x2c] sm:$0xf]
  %v65 = vld [vmem:[%s0 + $0x30] sm:$0xf]
  %v66 = vld [vmem:[%s0 + $0x34] sm:$0xf]
  %v67 = vld [vmem:[%s0 + $0x38] sm:$0xf]
  %v68 = vld [vmem:[%s0 + $0x3c] sm:$0xf]
  %v69 = vld [vmem:[%s1] sm:$0xf]
  %v70 = vld [vmem:[%s1 + $0x4] sm:$0xf]
  %v71 = vld [vmem:[%s1 + $0x8] sm:$0xf]
  %v72 = vld [vmem:[%s1 + $0xc] sm:$0xf]
  %v73 = vld [vmem:[%s1 + $0x10] sm:$0xf]
  %v74 = vld [vmem:[%s1 + $0x14] sm:$0xf]
  %v75 = vld [vmem:[%s1 + $0x18] sm:$0xf]
  %v76 = vld [vmem:[%s1 + $0x1c] sm:$0xf]
  %v77 = vld [vmem:[%s1 + $0x20] sm:$0xf]
  %v78 = vld [vmem:[%s1 + $0x24] sm:$0xf]
  %v79 = vld [vmem:[%s1 + $0x28] sm:$0xf]
  %v80 = vld [vmem:[%s1 + $0x2c] sm:$0xf]
  %v81 = vld [vmem:[%s1 + $0x30] sm:$0xf]
  %v82 = vld [vmem:[%s1 + $0x34] sm:$0xf]
  %v83 = vld [vmem:[%s1 + $0x38] sm:$0xf]
  %v84 = vld [vmem:[%s1 + $0x3c] sm:$0xf]
  %v101 = vunpack.c.l.b16 %v53
  %v102 = vunpack.c.l.b16 %v54
  %v103 = vunpack.c.l.b16 %v55
  %v104 = vunpack.c.l.b16 %v56
  %v105 = vunpack.c.l.b16 %v57
  %v106 = vunpack.c.l.b16 %v58
  %v107 = vunpack.c.l.b16 %v59
  %v108 = vunpack.c.l.b16 %v60
  %v109 = vunpack.c.l.b16 %v61
  %v110 = vunpack.c.l.b16 %v62
  %v111 = vunpack.c.l.b16 %v63
  %v112 = vunpack.c.l.b16 %v64
  %v113 = vunpack.c.l.b16 %v65
  %v114 = vunpack.c.l.b16 %v66
  %v115 = vunpack.c.l.b16 %v67
  %v116 = vunpack.c.l.b16 %v68
  %v117 = vpack.c.b16 %v102, %v101
  %v118 = vpack.c.b16 %v104, %v103
  %v119 = vpack.c.b16 %v106, %v105
  %v120 = vpack.c.b16 %v108, %v107
  %v121 = vpack.c.b16 %v110, %v109
  %v122 = vpack.c.b16 %v112, %v111
  %v123 = vpack.c.b16 %v114, %v113
  %v124 = vpack.c.b16 %v116, %v115
  %v149 = vunpack.c.l.b16 %v69
  %v150 = vunpack.c.l.b16 %v70
  %v151 = vunpack.c.l.b16 %v71
  %v152 = vunpack.c.l.b16 %v72
  %v153 = vunpack.c.l.b16 %v73
  %v154 = vunpack.c.l.b16 %v74
  %v155 = vunpack.c.l.b16 %v75
  %v156 = vunpack.c.l.b16 %v76
  %v157 = vunpack.c.l.b16 %v77
  %v158 = vunpack.c.l.b16 %v78
  %v159 = vunpack.c.l.b16 %v79
  %v160 = vunpack.c.l.b16 %v80
  %v161 = vunpack.c.l.b16 %v81
  %v162 = vunpack.c.l.b16 %v82
  %v163 = vunpack.c.l.b16 %v83
  %v164 = vunpack.c.l.b16 %v84
  %v165 = vpack.c.b16 %v150, %v149
  %v166 = vpack.c.b16 %v152, %v151
  %v167 = vpack.c.b16 %v154, %v153
  %v168 = vpack.c.b16 %v156, %v155
  %v169 = vpack.c.b16 %v158, %v157
  %v170 = vpack.c.b16 %v160, %v159
  %v171 = vpack.c.b16 %v162, %v161
  %v172 = vpack.c.b16 %v164, %v163
  %181 = vmatpush.bf16.msra.mxu0 %v172
  %182 = vmatpush.bf16.msra.mxu0 %v171
  %183 = vmatpush.bf16.msra.mxu0 %v170
  %184 = vmatpush.bf16.msra.mxu0 %v169
  %185 = vmatpush.bf16.msra.mxu0 %v168
  %186 = vmatpush.bf16.msra.mxu0 %v167
  %187 = vmatpush.bf16.msra.mxu0 %v166
  %188 = vmatpush.bf16.msra.mxu0 %v165
  %189 = vmatmul.bf16.gmra.mxu0 %v117
  %v190 = vpop.f32.mrf.mxu0
  %v191 = vadd.f32 0.0, %v190
  %v192 = vpop.f32.mrf.mxu0
  %v193 = vadd.f32 0.0, %v192
  %194 = vmatmul.bf16.gmra.mxu0 %v118
  %v195 = vpop.f32.mrf.mxu0
  %v196 = vadd.f32 0.0, %v195
  %v197 = vpop.f32.mrf.mxu0
  %v198 = vadd.f32 0.0, %v197
  %199 = vmatmul.bf16.gmra.mxu0 %v119
  %v200 = vpop.f32.mrf.mxu0
  %v201 = vadd.f32 0.0, %v200
  %v202 = vpop.f32.mrf.mxu0
  %v203 = vadd.f32 0.0, %v202
  %204 = vmatmul.bf16.gmra.mxu0 %v120
  %v205 = vpop.f32.mrf.mxu0
  %v206 = vadd.f32 0.0, %v205
  %v207 = vpop.f32.mrf.mxu0
  %v208 = vadd.f32 0.0, %v207
  %209 = vmatmul.bf16.gmra.mxu0 %v121
  %v210 = vpop.f32.mrf.mxu0
  %v211 = vadd.f32 0.0, %v210
  %v212 = vpop.f32.mrf.mxu0
  %v213 = vadd.f32 0.0, %v212
  %214 = vmatmul.bf16.gmra.mxu0 %v122
  %v215 = vpop.f32.mrf.mxu0
  %v216 = vadd.f32 0.0, %v215
  %v217 = vpop.f32.mrf.mxu0
  %v218 = vadd.f32 0.0, %v217
  %219 = vmatmul.bf16.gmra.mxu0 %v123
  %v220 = vpop.f32.mrf.mxu0
  %v221 = vadd.f32 0.0, %v220
  %v222 = vpop.f32.mrf.mxu0
  %v223 = vadd.f32 0.0, %v222
  %224 = vmatmul.bf16.gmra.mxu0 %v124
  %v225 = vpop.f32.mrf.mxu0
  %v226 = vadd.f32 0.0, %v225
  %v227 = vpop.f32.mrf.mxu0
  %v228 = vadd.f32 0.0, %v227
  %229 = vdwg.mxu0
  %v230 = vadd.f32 %v37, %v191
  %v231 = vadd.f32 %v38, %v193
  %v232 = vadd.f32 %v39, %v196
  %v233 = vadd.f32 %v40, %v198
  %v234 = vadd.f32 %v41, %v201
  %v235 = vadd.f32 %v42, %v203
  %v236 = vadd.f32 %v43, %v206
  %v237 = vadd.f32 %v44, %v208
  %v238 = vadd.f32 %v45, %v211
  %v239 = vadd.f32 %v46, %v213
  %v240 = vadd.f32 %v47, %v216
  %v241 = vadd.f32 %v48, %v218
  %v242 = vadd.f32 %v49, %v221
  %v243 = vadd.f32 %v50, %v223
  %v244 = vadd.f32 %v51, %v226
  %v245 = vadd.f32 %v52, %v228
  %246 = vst [vmem:[#allocation2] sm:$0xff] %v230
  %247 = vst [vmem:[#allocation2 + $0x8] sm:$0xff] %v231
  %248 = vst [vmem:[#allocation2 + $0x10] sm:$0xff] %v232
  %249 = vst [vmem:[#allocation2 + $0x18] sm:$0xff] %v233
  %250 = vst [vmem:[#allocation2 + $0x20] sm:$0xff] %v234
  %251 = vst [vmem:[#allocation2 + $0x28] sm:$0xff] %v235
  %252 = vst [vmem:[#allocation2 + $0x30] sm:$0xff] %v236
  %253 = vst [vmem:[#allocation2 + $0x38] sm:$0xff] %v237
  %254 = vst [vmem:[#allocation2 + $0x40] sm:$0xff] %v238
  %255 = vst [vmem:[#allocation2 + $0x48] sm:$0xff] %v239
  %256 = vst [vmem:[#allocation2 + $0x50] sm:$0xff] %v240
  %257 = vst [vmem:[#allocation2 + $0x58] sm:$0xff] %v241
  %258 = vst [vmem:[#allocation2 + $0x60] sm:$0xff] %v242
  %259 = vst [vmem:[#allocation2 + $0x68] sm:$0xff] %v243
  %260 = vst [vmem:[#allocation2 + $0x70] sm:$0xff] %v244
  %261 = vst [vmem:[#allocation2 + $0x78] sm:$0xff] %v245
  // Predicated region
  $region22: #{_lambda_.58} parent=0 // pred_check
    %p262 = pneg %p17
  $region23: #{_lambda_.58} parent=0 // pred_check_branch
    %264 = sbr.rel (%p262) target = $region25
  $region24: #{_lambda_.58} parent=0 // pred_region
    %v265 = vld [vmem:[#allocation2] sm:$0xff]
    %v266 = vld [vmem:[#allocation2 + $0x8] sm:$0xff]
    %v267 = vld [vmem:[#allocation2 + $0x10] sm:$0xff]
    %v268 = vld [vmem:[#allocation2 + $0x18] sm:$0xff]
    %v269 = vld [vmem:[#allocation2 + $0x20] sm:$0xff]
    %v270 = vld [vmem:[#allocation2 + $0x28] sm:$0xff]
    %v271 = vld [vmem:[#allocation2 + $0x30] sm:$0xff]
    %v272 = vld [vmem:[#allocation2 + $0x38] sm:$0xff]
    %v273 = vld [vmem:[#allocation2 + $0x40] sm:$0xff]
    %v274 = vld [vmem:[#allocation2 + $0x48] sm:$0xff]
    %v275 = vld [vmem:[#allocation2 + $0x50] sm:$0xff]
    %v276 = vld [vmem:[#allocation2 + $0x58] sm:$0xff]
    %v277 = vld [vmem:[#allocation2 + $0x60] sm:$0xff]
    %v278 = vld [vmem:[#allocation2 + $0x68] sm:$0xff]
    %v279 = vld [vmem:[#allocation2 + $0x70] sm:$0xff]
    %v280 = vld [vmem:[#allocation2 + $0x78] sm:$0xff]
    %v281 = vld [vmem:[%s2] sm:$0x1]
    %v283 = vperm.slane %v281, 0
    %v285 = vadd.f32 %v265, %v283
    %v286 = vadd.f32 %v266, %v283
    %v287 = vadd.f32 %v267, %v283
    %v288 = vadd.f32 %v268, %v283
    %v289 = vadd.f32 %v269, %v283
    %v290 = vadd.f32 %v270, %v283
    %v291 = vadd.f32 %v271, %v283
    %v292 = vadd.f32 %v272, %v283
    %v293 = vadd.f32 %v273, %v283
    %v294 = vadd.f32 %v274, %v283
    %v295 = vadd.f32 %v275, %v283
    %v296 = vadd.f32 %v276, %v283
    %v297 = vadd.f32 %v277, %v283
    %v298 = vadd.f32 %v278, %v283
    %v299 = vadd.f32 %v279, %v283
    %v300 = vadd.f32 %v280, %v283
    %v301 = vld [vmem:[%s3] sm:$0xf]
    %v302 = vld [vmem:[%s3 + $0x4] sm:$0xf]
    %v303 = vld [vmem:[%s3 + $0x8] sm:$0xf]
    %v304 = vld [vmem:[%s3 + $0xc] sm:$0xf]
    %v305 = vld [vmem:[%s3 + $0x10] sm:$0xf]
    %v306 = vld [vmem:[%s3 + $0x14] sm:$0xf]
    %v307 = vld [vmem:[%s3 + $0x18] sm:$0xf]
    %v308 = vld [vmem:[%s3 + $0x1c] sm:$0xf]
    %v309 = vld [vmem:[%s3 + $0x20] sm:$0xf]
    %v310 = vld [vmem:[%s3 + $0x24] sm:$0xf]
    %v311 = vld [vmem:[%s3 + $0x28] sm:$0xf]
    %v312 = vld [vmem:[%s3 + $0x2c] sm:$0xf]
    %v313 = vld [vmem:[%s3 + $0x30] sm:$0xf]
    %v314 = vld [vmem:[%s3 + $0x34] sm:$0xf]
    %v315 = vld [vmem:[%s3 + $0x38] sm:$0xf]
    %v316 = vld [vmem:[%s3 + $0x3c] sm:$0xf]
    %v317 = vunpack.c.l.bf16 %v301
    %v318 = vunpack.c.l.bf16 %v302
    %v319 = vunpack.c.l.bf16 %v303
    %v320 = vunpack.c.l.bf16 %v304
    %v321 = vunpack.c.l.bf16 %v305
    %v322 = vunpack.c.l.bf16 %v306
    %v323 = vunpack.c.l.bf16 %v307
    %v324 = vunpack.c.l.bf16 %v308
    %v325 = vunpack.c.l.bf16 %v309
    %v326 = vunpack.c.l.bf16 %v310
    %v327 = vunpack.c.l.bf16 %v311
    %v328 = vunpack.c.l.bf16 %v312
    %v329 = vunpack.c.l.bf16 %v313
    %v330 = vunpack.c.l.bf16 %v314
    %v331 = vunpack.c.l.bf16 %v315
    %v332 = vunpack.c.l.bf16 %v316
    %v333 = vadd.f32 %v285, %v317
    %v334 = vadd.f32 %v286, %v318
    %v335 = vadd.f32 %v287, %v319
    %v336 = vadd.f32 %v288, %v320
    %v337 = vadd.f32 %v289, %v321
    %v338 = vadd.f32 %v290, %v322
    %v339 = vadd.f32 %v291, %v323
    %v340 = vadd.f32 %v292, %v324
    %v341 = vadd.f32 %v293, %v325
    %v342 = vadd.f32 %v294, %v326
    %v343 = vadd.f32 %v295, %v327
    %v344 = vadd.f32 %v296, %v328
    %v345 = vadd.f32 %v297, %v329
    %v346 = vadd.f32 %v298, %v330
    %v347 = vadd.f32 %v299, %v331
    %v348 = vadd.f32 %v300, %v332
    %v349 = vmax.f32 %v333, 0.0
    %v350 = vmax.f32 %v334, 0.0
    %v351 = vmax.f32 %v335, 0.0
    %v352 = vmax.f32 %v336, 0.0
    %v353 = vmax.f32 %v337, 0.0
    %v354 = vmax.f32 %v338, 0.0
    %v355 = vmax.f32 %v339, 0.0
    %v356 = vmax.f32 %v340, 0.0
    %v357 = vmax.f32 %v341, 0.0
    %v358 = vmax.f32 %v342, 0.0
    %v359 = vmax.f32 %v343, 0.0
    %v360 = vmax.f32 %v344, 0.0
    %v361 = vmax.f32 %v345, 0.0
    %v362 = vmax.f32 %v346, 0.0
    %v363 = vmax.f32 %v347, 0.0
    %v364 = vmax.f32 %v348, 0.0
    %v365 = vpack.c.bf16 %v349, %v349
    %v366 = vpack.c.bf16 %v350, %v350
    %v367 = vpack.c.bf16 %v351, %v351
    %v368 = vpack.c.bf16 %v352, %v352
    %v369 = vpack.c.bf16 %v353, %v353
    %v370 = vpack.c.bf16 %v354, %v354
    %v371 = vpack.c.bf16 %v355, %v355
    %v372 = vpack.c.bf16 %v356, %v356
    %v373 = vpack.c.bf16 %v357, %v357
    %v374 = vpack.c.bf16 %v358, %v358
    %v375 = vpack.c.bf16 %v359, %v359
    %v376 = vpack.c.bf16 %v360, %v360
    %v377 = vpack.c.bf16 %v361, %v361
    %v378 = vpack.c.bf16 %v362, %v362
    %v379 = vpack.c.bf16 %v363, %v363
    %v380 = vpack.c.bf16 %v364, %v364
    %381 = vst [vmem:[%s4] sm:$0xf] %v365
    %382 = vst [vmem:[%s4 + $0x4] sm:$0xf] %v366
    %383 = vst [vmem:[%s4 + $0x8] sm:$0xf] %v367
    %384 = vst [vmem:[%s4 + $0xc] sm:$0xf] %v368
    %385 = vst [vmem:[%s4 + $0x10] sm:$0xf] %v369
    %386 = vst [vmem:[%s4 + $0x14] sm:$0xf] %v370
    %387 = vst [vmem:[%s4 + $0x18] sm:$0xf] %v371
    %388 = vst [vmem:[%s4 + $0x1c] sm:$0xf] %v372
    %389 = vst [vmem:[%s4 + $0x20] sm:$0xf] %v373
    %390 = vst [vmem:[%s4 + $0x24] sm:$0xf] %v374
    %391 = vst [vmem:[%s4 + $0x28] sm:$0xf] %v375
    %392 = vst [vmem:[%s4 + $0x2c] sm:$0xf] %v376
    %393 = vst [vmem:[%s4 + $0x30] sm:$0xf] %v377
    %394 = vst [vmem:[%s4 + $0x34] sm:$0xf] %v378
    %395 = vst [vmem:[%s4 + $0x38] sm:$0xf] %v379
    %396 = vst [vmem:[%s4 + $0x3c] sm:$0xf] %v380
  $region25: #{_lambda_.58} parent=0 // pred_fallthru
    _
  // Predicated region
  $region26: #{_lambda_.58} parent=0 // pred_check
    _
  $region27: #{_lambda_.58} parent=0 // pred_check_branch
    %398 = sbr.rel (0) target = $region29
  $region28: #{_lambda_.58} parent=0 // pred_region
    _
  $region29: #{_lambda_.58} parent=0 // pred_fallthru
    _
  // Predicated region
  $region30: #{_lambda_.58} parent=0 // pred_check
    _
  $region31: #{_lambda_.58} parent=0 // pred_check_branch
    %400 = sbr.rel (0) target = $region33
  $region32: #{_lambda_.58} parent=0 // pred_region
    _
  $region33: #{_lambda_.58} parent=0 // pred_fallthru
    _

// kernel: _lambda_.67
$region0: #{_lambda_.67}
  #allocation0 [shape = 'u32[]', space=smem, size = 0x4, offset = 0x4, fixed_abs, tag = 'smem constant byte address 0x4 - core index']
  #allocation1 [shape = 'u32[72,128]{1,0:T(1,128)}', space=vmem, size = 0x9000, scoped, tag = 'internal scratch']
  #allocation2 [shape = 'f32[32,128]{1,0:T(8,128)}', space=vmem, size = 0x4000, scoped, tag = 'scratch operand']
  %s0 = inlined_call_operand.vmem [shape: bf16[32,128], index: 0, kind: input, shape index: {}]
  %s1 = inlined_call_operand.vmem [shape: bf16[128,128], index: 1, kind: input, shape index: {}]
  %s2 = inlined_call_operand.vmem [shape: f32[1,128], index: 2, kind: input, shape index: {}]
  %s3 = inlined_call_operand.vmem [shape: bf16[32,128], index: 3, kind: output, shape index: {}]
  %s4 = sld [smem:[#allocation0]]
  $region30: #{_lambda_.67} parent=0
    _
  %s6 = ssub.s32 1, %s4
  %s7 = scalar_select 0, %s6, %s4
  // Predicated region
  $region2: #{_lambda_.67} parent=0 // pred_check
    _
  $region3: #{_lambda_.67} parent=0 // pred_check_branch
    %9 = sbr.rel (0) target = $region5
  $region4: #{_lambda_.67} parent=0 // pred_region
    _
  $region5: #{_lambda_.67} parent=0 // pred_fallthru
    _
  // Predicated region
  $region6: #{_lambda_.67} parent=0 // pred_check
    _
  $region7: #{_lambda_.67} parent=0 // pred_check_branch
    %11 = sbr.rel (0) target = $region9
  $region8: #{_lambda_.67} parent=0 // pred_region
    _
  $region9: #{_lambda_.67} parent=0 // pred_fallthru
    _
  // Predicated region
  $region10: #{_lambda_.67} parent=0 // pred_check
    _
  $region11: #{_lambda_.67} parent=0 // pred_check_branch
    %13 = sbr.rel (0) target = $region13
  $region12: #{_lambda_.67} parent=0 // pred_region
    _
  $region13: #{_lambda_.67} parent=0 // pred_fallthru
    _
  %p14 = scmp.eq.s32.totalorder 0, 0
  // Predicated region
  $region14: #{_lambda_.67} parent=0 // pred_check
    %p15 = pneg %p14
  $region15: #{_lambda_.67} parent=0 // pred_check_branch
    %17 = sbr.rel (%p15) target = $region17
  $region16: #{_lambda_.67} parent=0 // pred_region
    %18 = vst [vmem:[#allocation2] sm:$0xff] 0.0
    %19 = vst [vmem:[#allocation2 + $0x8] sm:$0xff] 0.0
    %20 = vst [vmem:[#allocation2 + $0x10] sm:$0xff] 0.0
    %21 = vst [vmem:[#allocation2 + $0x18] sm:$0xff] 0.0
  $region17: #{_lambda_.67} parent=0 // pred_fallthru
    _
  %v22 = vld [vmem:[#allocation2] sm:$0xff]
  %v23 = vld [vmem:[#allocation2 + $0x8] sm:$0xff]
  %v24 = vld [vmem:[#allocation2 + $0x10] sm:$0xff]
  %v25 = vld [vmem:[#allocation2 + $0x18] sm:$0xff]
  %v26 = vld [vmem:[%s0] sm:$0xf]
  %v27 = vld [vmem:[%s0 + $0x4] sm:$0xf]
  %v28 = vld [vmem:[%s0 + $0x8] sm:$0xf]
  %v29 = vld [vmem:[%s0 + $0xc] sm:$0xf]
  %v30 = vld [vmem:[%s1] sm:$0xf]
  %v31 = vld [vmem:[%s1 + $0x4] sm:$0xf]
  %v32 = vld [vmem:[%s1 + $0x8] sm:$0xf]
  %v33 = vld [vmem:[%s1 + $0xc] sm:$0xf]
  %v34 = vld [vmem:[%s1 + $0x10] sm:$0xf]
  %v35 = vld [vmem:[%s1 + $0x14] sm:$0xf]
  %v36 = vld [vmem:[%s1 + $0x18] sm:$0xf]
  %v37 = vld [vmem:[%s1 + $0x1c] sm:$0xf]
  %v38 = vld [vmem:[%s1 + $0x20] sm:$0xf]
  %v39 = vld [vmem:[%s1 + $0x24] sm:$0xf]
  %v40 = vld [vmem:[%s1 + $0x28] sm:$0xf]
  %v41 = vld [vmem:[%s1 + $0x2c] sm:$0xf]
  %v42 = vld [vmem:[%s1 + $0x30] sm:$0xf]
  %v43 = vld [vmem:[%s1 + $0x34] sm:$0xf]
  %v44 = vld [vmem:[%s1 + $0x38] sm:$0xf]
  %v45 = vld [vmem:[%s1 + $0x3c] sm:$0xf]
  %v50 = vunpack.c.l.b16 %v26
  %v51 = vunpack.c.l.b16 %v27
  %v52 = vunpack.c.l.b16 %v28
  %v53 = vunpack.c.l.b16 %v29
  %v54 = vpack.c.b16 %v51, %v50
  %v55 = vpack.c.b16 %v53, %v52
  %v74 = vunpack.c.l.b16 %v30
  %v75 = vunpack.c.l.b16 %v31
  %v76 = vunpack.c.l.b16 %v32
  %v77 = vunpack.c.l.b16 %v33
  %v78 = vunpack.c.l.b16 %v34
  %v79 = vunpack.c.l.b16 %v35
  %v80 = vunpack.c.l.b16 %v36
  %v81 = vunpack.c.l.b16 %v37
  %v82 = vunpack.c.l.b16 %v38
  %v83 = vunpack.c.l.b16 %v39
  %v84 = vunpack.c.l.b16 %v40
  %v85 = vunpack.c.l.b16 %v41
  %v86 = vunpack.c.l.b16 %v42
  %v87 = vunpack.c.l.b16 %v43
  %v88 = vunpack.c.l.b16 %v44
  %v89 = vunpack.c.l.b16 %v45
  %v90 = vpack.c.b16 %v75, %v74
  %v91 = vpack.c.b16 %v77, %v76
  %v92 = vpack.c.b16 %v79, %v78
  %v93 = vpack.c.b16 %v81, %v80
  %v94 = vpack.c.b16 %v83, %v82
  %v95 = vpack.c.b16 %v85, %v84
  %v96 = vpack.c.b16 %v87, %v86
  %v97 = vpack.c.b16 %v89, %v88
  %106 = vmatpush.bf16.msra.mxu0 %v97
  %107 = vmatpush.bf16.msra.mxu0 %v96
  %108 = vmatpush.bf16.msra.mxu0 %v95
  %109 = vmatpush.bf16.msra.mxu0 %v94
  %110 = vmatpush.bf16.msra.mxu0 %v93
  %111 = vmatpush.bf16.msra.mxu0 %v92
  %112 = vmatpush.bf16.msra.mxu0 %v91
  %113 = vmatpush.bf16.msra.mxu0 %v90
  %114 = vmatmul.bf16.gmra.mxu0 %v54
  %v115 = vpop.f32.mrf.mxu0
  %v116 = vadd.f32 0.0, %v115
  %v117 = vpop.f32.mrf.mxu0
  %v118 = vadd.f32 0.0, %v117
  %119 = vmatmul.bf16.gmra.mxu0 %v55
  %v120 = vpop.f32.mrf.mxu0
  %v121 = vadd.f32 0.0, %v120
  %v122 = vpop.f32.mrf.mxu0
  %v123 = vadd.f32 0.0, %v122
  %124 = vdwg.mxu0
  %v125 = vadd.f32 %v22, %v116
  %v126 = vadd.f32 %v23, %v118
  %v127 = vadd.f32 %v24, %v121
  %v128 = vadd.f32 %v25, %v123
  %129 = vst [vmem:[#allocation2] sm:$0xff] %v125
  %130 = vst [vmem:[#allocation2 + $0x8] sm:$0xff] %v126
  %131 = vst [vmem:[#allocation2 + $0x10] sm:$0xff] %v127
  %132 = vst [vmem:[#allocation2 + $0x18] sm:$0xff] %v128
  // Predicated region
  $region18: #{_lambda_.67} parent=0 // pred_check
    %p133 = pneg %p14
  $region19: #{_lambda_.67} parent=0 // pred_check_branch
    %135 = sbr.rel (%p133) target = $region21
  $region20: #{_lambda_.67} parent=0 // pred_region
    %v136 = vld [vmem:[#allocation2] sm:$0xff]
    %v137 = vld [vmem:[#allocation2 + $0x8] sm:$0xff]
    %v138 = vld [vmem:[#allocation2 + $0x10] sm:$0xff]
    %v139 = vld [vmem:[#allocation2 + $0x18] sm:$0xff]
    %v140 = vld [vmem:[%s2] sm:$0x1]
    %v142 = vperm.slane %v140, 0
    %v144 = vadd.f32 %v136, %v142
    %v145 = vadd.f32 %v137, %v142
    %v146 = vadd.f32 %v138, %v142
    %v147 = vadd.f32 %v139, %v142
    %v148 = vpack.c.bf16 %v144, %v144
    %v149 = vpack.c.bf16 %v145, %v145
    %v150 = vpack.c.bf16 %v146, %v146
    %v151 = vpack.c.bf16 %v147, %v147
    %152 = vst [vmem:[%s3] sm:$0xf] %v148
    %153 = vst [vmem:[%s3 + $0x4] sm:$0xf] %v149
    %154 = vst [vmem:[%s3 + $0x8] sm:$0xf] %v150
    %155 = vst [vmem:[%s3 + $0xc] sm:$0xf] %v151
  $region21: #{_lambda_.67} parent=0 // pred_fallthru
    _
  // Predicated region
  $region22: #{_lambda_.67} parent=0 // pred_check
    _
  $region23: #{_lambda_.67} parent=0 // pred_check_branch
    %157 = sbr.rel (0) target = $region25
  $region24: #{_lambda_.67} parent=0 // pred_region
    _
  $region25: #{_lambda_.67} parent=0 // pred_fallthru
    _
  // Predicated region
  $region26: #{_lambda_.67} parent=0 // pred_check
    _
  $region27: #{_lambda_.67} parent=0 // pred_check_branch
    %159 = sbr.rel (0) target = $region29
  $region28: #{_lambda_.67} parent=0 // pred_region
    _
  $region29: #{_lambda_.67} parent=0 // pred_fallthru
    _

// kernel: _lambda_.69
$region0: #{_lambda_.69}
  #allocation0 [shape = 'u32[]', space=smem, size = 0x4, offset = 0x4, fixed_abs, tag = 'smem constant byte address 0x4 - core index']
  #allocation1 [shape = 'u32[72,128]{1,0:T(1,128)}', space=vmem, size = 0x9000, scoped, tag = 'internal scratch']
  #allocation2 [shape = 'f32[32,128]{1,0:T(8,128)}', space=vmem, size = 0x4000, scoped, tag = 'scratch operand']
  %s0 = inlined_call_operand.vmem [shape: bf16[32,128], index: 0, kind: input, shape index: {}]
  %s1 = inlined_call_operand.vmem [shape: bf16[128,128], index: 1, kind: input, shape index: {}]
  %s2 = inlined_call_operand.vmem [shape: f32[1,128], index: 2, kind: input, shape index: {}]
  %s3 = inlined_call_operand.vmem [shape: bf16[32,128], index: 3, kind: output, shape index: {}]
  %s4 = sld [smem:[#allocation0]]
  $region30: #{_lambda_.69} parent=0
    _
  %s6 = ssub.s32 1, %s4
  %s7 = scalar_select 0, %s6, %s4
  // Predicated region
  $region2: #{_lambda_.69} parent=0 // pred_check
    _
  $region3: #{_lambda_.69} parent=0 // pred_check_branch
    %9 = sbr.rel (0) target = $region5
  $region4: #{_lambda_.69} parent=0 // pred_region
    _
  $region5: #{_lambda_.69} parent=0 // pred_fallthru
    _
  // Predicated region
  $region6: #{_lambda_.69} parent=0 // pred_check
    _
  $region7: #{_lambda_.69} parent=0 // pred_check_branch
    %11 = sbr.rel (0) target = $region9
  $region8: #{_lambda_.69} parent=0 // pred_region
    _
  $region9: #{_lambda_.69} parent=0 // pred_fallthru
    _
  // Predicated region
  $region10: #{_lambda_.69} parent=0 // pred_check
    _
  $region11: #{_lambda_.69} parent=0 // pred_check_branch
    %13 = sbr.rel (0) target = $region13
  $region12: #{_lambda_.69} parent=0 // pred_region
    _
  $region13: #{_lambda_.69} parent=0 // pred_fallthru
    _
  %p14 = scmp.eq.s32.totalorder 0, 0
  // Predicated region
  $region14: #{_lambda_.69} parent=0 // pred_check
    %p15 = pneg %p14
  $region15: #{_lambda_.69} parent=0 // pred_check_branch
    %17 = sbr.rel (%p15) target = $region17
  $region16: #{_lambda_.69} parent=0 // pred_region
    %18 = vst [vmem:[#allocation2] sm:$0xff] 0.0
    %19 = vst [vmem:[#allocation2 + $0x8] sm:$0xff] 0.0
    %20 = vst [vmem:[#allocation2 + $0x10] sm:$0xff] 0.0
    %21 = vst [vmem:[#allocation2 + $0x18] sm:$0xff] 0.0
  $region17: #{_lambda_.69} parent=0 // pred_fallthru
    _
  %v22 = vld [vmem:[#allocation2] sm:$0xff]
  %v23 = vld [vmem:[#allocation2 + $0x8] sm:$0xff]
  %v24 = vld [vmem:[#allocation2 + $0x10] sm:$0xff]
  %v25 = vld [vmem:[#allocation2 + $0x18] sm:$0xff]
  %v26 = vld [vmem:[%s0] sm:$0xf]
  %v27 = vld [vmem:[%s0 + $0x4] sm:$0xf]
  %v28 = vld [vmem:[%s0 + $0x8] sm:$0xf]
  %v29 = vld [vmem:[%s0 + $0xc] sm:$0xf]
  %v30 = vld [vmem:[%s1] sm:$0xf]
  %v31 = vld [vmem:[%s1 + $0x4] sm:$0xf]
  %v32 = vld [vmem:[%s1 + $0x8] sm:$0xf]
  %v33 = vld [vmem:[%s1 + $0xc] sm:$0xf]
  %v34 = vld [vmem:[%s1 + $0x10] sm:$0xf]
  %v35 = vld [vmem:[%s1 + $0x14] sm:$0xf]
  %v36 = vld [vmem:[%s1 + $0x18] sm:$0xf]
  %v37 = vld [vmem:[%s1 + $0x1c] sm:$0xf]
  %v38 = vld [vmem:[%s1 + $0x20] sm:$0xf]
  %v39 = vld [vmem:[%s1 + $0x24] sm:$0xf]
  %v40 = vld [vmem:[%s1 + $0x28] sm:$0xf]
  %v41 = vld [vmem:[%s1 + $0x2c] sm:$0xf]
  %v42 = vld [vmem:[%s1 + $0x30] sm:$0xf]
  %v43 = vld [vmem:[%s1 + $0x34] sm:$0xf]
  %v44 = vld [vmem:[%s1 + $0x38] sm:$0xf]
  %v45 = vld [vmem:[%s1 + $0x3c] sm:$0xf]
  %v50 = vunpack.c.l.b16 %v26
  %v51 = vunpack.c.l.b16 %v27
  %v52 = vunpack.c.l.b16 %v28
  %v53 = vunpack.c.l.b16 %v29
  %v54 = vpack.c.b16 %v51, %v50
  %v55 = vpack.c.b16 %v53, %v52
  %v74 = vunpack.c.l.b16 %v30
  %v75 = vunpack.c.l.b16 %v31
  %v76 = vunpack.c.l.b16 %v32
  %v77 = vunpack.c.l.b16 %v33
  %v78 = vunpack.c.l.b16 %v34
  %v79 = vunpack.c.l.b16 %v35
  %v80 = vunpack.c.l.b16 %v36
  %v81 = vunpack.c.l.b16 %v37
  %v82 = vunpack.c.l.b16 %v38
  %v83 = vunpack.c.l.b16 %v39
  %v84 = vunpack.c.l.b16 %v40
  %v85 = vunpack.c.l.b16 %v41
  %v86 = vunpack.c.l.b16 %v42
  %v87 = vunpack.c.l.b16 %v43
  %v88 = vunpack.c.l.b16 %v44
  %v89 = vunpack.c.l.b16 %v45
  %v90 = vpack.c.b16 %v75, %v74
  %v91 = vpack.c.b16 %v77, %v76
  %v92 = vpack.c.b16 %v79, %v78
  %v93 = vpack.c.b16 %v81, %v80
  %v94 = vpack.c.b16 %v83, %v82
  %v95 = vpack.c.b16 %v85, %v84
  %v96 = vpack.c.b16 %v87, %v86
  %v97 = vpack.c.b16 %v89, %v88
  %106 = vmatpush.bf16.msra.mxu0 %v97
  %107 = vmatpush.bf16.msra.mxu0 %v96
  %108 = vmatpush.bf16.msra.mxu0 %v95
  %109 = vmatpush.bf16.msra.mxu0 %v94
  %110 = vmatpush.bf16.msra.mxu0 %v93
  %111 = vmatpush.bf16.msra.mxu0 %v92
  %112 = vmatpush.bf16.msra.mxu0 %v91
  %113 = vmatpush.bf16.msra.mxu0 %v90
  %114 = vmatmul.bf16.gmra.mxu0 %v54
  %v115 = vpop.f32.mrf.mxu0
  %v116 = vadd.f32 0.0, %v115
  %v117 = vpop.f32.mrf.mxu0
  %v118 = vadd.f32 0.0, %v117
  %119 = vmatmul.bf16.gmra.mxu0 %v55
  %v120 = vpop.f32.mrf.mxu0
  %v121 = vadd.f32 0.0, %v120
  %v122 = vpop.f32.mrf.mxu0
  %v123 = vadd.f32 0.0, %v122
  %124 = vdwg.mxu0
  %v125 = vadd.f32 %v22, %v116
  %v126 = vadd.f32 %v23, %v118
  %v127 = vadd.f32 %v24, %v121
  %v128 = vadd.f32 %v25, %v123
  %129 = vst [vmem:[#allocation2] sm:$0xff] %v125
  %130 = vst [vmem:[#allocation2 + $0x8] sm:$0xff] %v126
  %131 = vst [vmem:[#allocation2 + $0x10] sm:$0xff] %v127
  %132 = vst [vmem:[#allocation2 + $0x18] sm:$0xff] %v128
  // Predicated region
  $region18: #{_lambda_.69} parent=0 // pred_check
    %p133 = pneg %p14
  $region19: #{_lambda_.69} parent=0 // pred_check_branch
    %135 = sbr.rel (%p133) target = $region21
  $region20: #{_lambda_.69} parent=0 // pred_region
    %v136 = vld [vmem:[#allocation2] sm:$0xff]
    %v137 = vld [vmem:[#allocation2 + $0x8] sm:$0xff]
    %v138 = vld [vmem:[#allocation2 + $0x10] sm:$0xff]
    %v139 = vld [vmem:[#allocation2 + $0x18] sm:$0xff]
    %v140 = vld [vmem:[%s2] sm:$0x1]
    %v142 = vperm.slane %v140, 0
    %v144 = vadd.f32 %v136, %v142
    %v145 = vadd.f32 %v137, %v142
    %v146 = vadd.f32 %v138, %v142
    %v147 = vadd.f32 %v139, %v142
    %v148 = vmax.f32 %v144, 0.0
    %v149 = vmax.f32 %v145, 0.0
    %v150 = vmax.f32 %v146, 0.0
    %v151 = vmax.f32 %v147, 0.0
    %v152 = vpack.c.bf16 %v148, %v148
    %v153 = vpack.c.bf16 %v149, %v149
    %v154 = vpack.c.bf16 %v150, %v150
    %v155 = vpack.c.bf16 %v151, %v151
    %156 = vst [vmem:[%s3] sm:$0xf] %v152
    %157 = vst [vmem:[%s3 + $0x4] sm:$0xf] %v153
    %158 = vst [vmem:[%s3 + $0x8] sm:$0xf] %v154
    %159 = vst [vmem:[%s3 + $0xc] sm:$0xf] %v155
  $region21: #{_lambda_.69} parent=0 // pred_fallthru
    _
  // Predicated region
  $region22: #{_lambda_.69} parent=0 // pred_check
    _
  $region23: #{_lambda_.69} parent=0 // pred_check_branch
    %161 = sbr.rel (0) target = $region25
  $region24: #{_lambda_.69} parent=0 // pred_region
    _
  $region25: #{_lambda_.69} parent=0 // pred_fallthru
    _
  // Predicated region
  $region26: #{_lambda_.69} parent=0 // pred_check
    _
  $region27: #{_lambda_.69} parent=0 // pred_check_branch
    %163 = sbr.rel (0) target = $region29
  $region28: #{_lambda_.69} parent=0 // pred_region
    _
  $region29: #{_lambda_.69} parent=0 // pred_fallthru
    _

// kernel: _lambda_.68
$region0: #{_lambda_.68}
  #allocation0 [shape = 'u32[]', space=smem, size = 0x4, offset = 0x4, fixed_abs, tag = 'smem constant byte address 0x4 - core index']
  #allocation1 [shape = 'u32[72,128]{1,0:T(1,128)}', space=vmem, size = 0x9000, scoped, tag = 'internal scratch']
  #allocation2 [shape = 'f32[32,128]{1,0:T(8,128)}', space=vmem, size = 0x4000, scoped, tag = 'scratch operand']
  %s0 = inlined_call_operand.vmem [shape: bf16[32,128], index: 0, kind: input, shape index: {}]
  %s1 = inlined_call_operand.vmem [shape: bf16[128,128], index: 1, kind: input, shape index: {}]
  %s2 = inlined_call_operand.vmem [shape: f32[1,128], index: 2, kind: input, shape index: {}]
  %s3 = inlined_call_operand.vmem [shape: bf16[32,128], index: 3, kind: input, shape index: {}]
  %s4 = inlined_call_operand.vmem [shape: bf16[32,128], index: 4, kind: output, shape index: {}]
  %s5 = sld [smem:[#allocation0]]
  $region34: #{_lambda_.68} parent=0
    _
  %s7 = ssub.s32 1, %s5
  %s8 = scalar_select 0, %s7, %s5
  // Predicated region
  $region2: #{_lambda_.68} parent=0 // pred_check
    _
  $region3: #{_lambda_.68} parent=0 // pred_check_branch
    %10 = sbr.rel (0) target = $region5
  $region4: #{_lambda_.68} parent=0 // pred_region
    _
  $region5: #{_lambda_.68} parent=0 // pred_fallthru
    _
  // Predicated region
  $region6: #{_lambda_.68} parent=0 // pred_check
    _
  $region7: #{_lambda_.68} parent=0 // pred_check_branch
    %12 = sbr.rel (0) target = $region9
  $region8: #{_lambda_.68} parent=0 // pred_region
    _
  $region9: #{_lambda_.68} parent=0 // pred_fallthru
    _
  // Predicated region
  $region10: #{_lambda_.68} parent=0 // pred_check
    _
  $region11: #{_lambda_.68} parent=0 // pred_check_branch
    %14 = sbr.rel (0) target = $region13
  $region12: #{_lambda_.68} parent=0 // pred_region
    _
  $region13: #{_lambda_.68} parent=0 // pred_fallthru
    _
  // Predicated region
  $region14: #{_lambda_.68} parent=0 // pred_check
    _
  $region15: #{_lambda_.68} parent=0 // pred_check_branch
    %16 = sbr.rel (0) target = $region17
  $region16: #{_lambda_.68} parent=0 // pred_region
    _
  $region17: #{_lambda_.68} parent=0 // pred_fallthru
    _
  %p17 = scmp.eq.s32.totalorder 0, 0
  // Predicated region
  $region18: #{_lambda_.68} parent=0 // pred_check
    %p18 = pneg %p17
  $region19: #{_lambda_.68} parent=0 // pred_check_branch
    %20 = sbr.rel (%p18) target = $region21
  $region20: #{_lambda_.68} parent=0 // pred_region
    %21 = vst [vmem:[#allocation2] sm:$0xff] 0.0
    %22 = vst [vmem:[#allocation2 + $0x8] sm:$0xff] 0.0
    %23 = vst [vmem:[#allocation2 + $0x10] sm:$0xff] 0.0
    %24 = vst [vmem:[#allocation2 + $0x18] sm:$0xff] 0.0
  $region21: #{_lambda_.68} parent=0 // pred_fallthru
    _
  %v25 = vld [vmem:[#allocation2] sm:$0xff]
  %v26 = vld [vmem:[#allocation2 + $0x8] sm:$0xff]
  %v27 = vld [vmem:[#allocation2 + $0x10] sm:$0xff]
  %v28 = vld [vmem:[#allocation2 + $0x18] sm:$0xff]
  %v29 = vld [vmem:[%s0] sm:$0xf]
  %v30 = vld [vmem:[%s0 + $0x4] sm:$0xf]
  %v31 = vld [vmem:[%s0 + $0x8] sm:$0xf]
  %v32 = vld [vmem:[%s0 + $0xc] sm:$0xf]
  %v33 = vld [vmem:[%s1] sm:$0xf]
  %v34 = vld [vmem:[%s1 + $0x4] sm:$0xf]
  %v35 = vld [vmem:[%s1 + $0x8] sm:$0xf]
  %v36 = vld [vmem:[%s1 + $0xc] sm:$0xf]
  %v37 = vld [vmem:[%s1 + $0x10] sm:$0xf]
  %v38 = vld [vmem:[%s1 + $0x14] sm:$0xf]
  %v39 = vld [vmem:[%s1 + $0x18] sm:$0xf]
  %v40 = vld [vmem:[%s1 + $0x1c] sm:$0xf]
  %v41 = vld [vmem:[%s1 + $0x20] sm:$0xf]
  %v42 = vld [vmem:[%s1 + $0x24] sm:$0xf]
  %v43 = vld [vmem:[%s1 + $0x28] sm:$0xf]
  %v44 = vld [vmem:[%s1 + $0x2c] sm:$0xf]
  %v45 = vld [vmem:[%s1 + $0x30] sm:$0xf]
  %v46 = vld [vmem:[%s1 + $0x34] sm:$0xf]
  %v47 = vld [vmem:[%s1 + $0x38] sm:$0xf]
  %v48 = vld [vmem:[%s1 + $0x3c] sm:$0xf]
  %v53 = vunpack.c.l.b16 %v29
  %v54 = vunpack.c.l.b16 %v30
  %v55 = vunpack.c.l.b16 %v31
  %v56 = vunpack.c.l.b16 %v32
  %v57 = vpack.c.b16 %v54, %v53
  %v58 = vpack.c.b16 %v56, %v55
  %v77 = vunpack.c.l.b16 %v33
  %v78 = vunpack.c.l.b16 %v34
  %v79 = vunpack.c.l.b16 %v35
  %v80 = vunpack.c.l.b16 %v36
  %v81 = vunpack.c.l.b16 %v37
  %v82 = vunpack.c.l.b16 %v38
  %v83 = vunpack.c.l.b16 %v39
  %v84 = vunpack.c.l.b16 %v40
  %v85 = vunpack.c.l.b16 %v41
  %v86 = vunpack.c.l.b16 %v42
  %v87 = vunpack.c.l.b16 %v43
  %v88 = vunpack.c.l.b16 %v44
  %v89 = vunpack.c.l.b16 %v45
  %v90 = vunpack.c.l.b16 %v46
  %v91 = vunpack.c.l.b16 %v47
  %v92 = vunpack.c.l.b16 %v48
  %v93 = vpack.c.b16 %v78, %v77
  %v94 = vpack.c.b16 %v80, %v79
  %v95 = vpack.c.b16 %v82, %v81
  %v96 = vpack.c.b16 %v84, %v83
  %v97 = vpack.c.b16 %v86, %v85
  %v98 = vpack.c.b16 %v88, %v87
  %v99 = vpack.c.b16 %v90, %v89
  %v100 = vpack.c.b16 %v92, %v91
  %109 = vmatpush.bf16.msra.mxu0 %v100
  %110 = vmatpush.bf16.msra.mxu0 %v99
  %111 = vmatpush.bf16.msra.mxu0 %v98
  %112 = vmatpush.bf16.msra.mxu0 %v97
  %113 = vmatpush.bf16.msra.mxu0 %v96
  %114 = vmatpush.bf16.msra.mxu0 %v95
  %115 = vmatpush.bf16.msra.mxu0 %v94
  %116 = vmatpush.bf16.msra.mxu0 %v93
  %117 = vmatmul.bf16.gmra.mxu0 %v57
  %v118 = vpop.f32.mrf.mxu0
  %v119 = vadd.f32 0.0, %v118
  %v120 = vpop.f32.mrf.mxu0
  %v121 = vadd.f32 0.0, %v120
  %122 = vmatmul.bf16.gmra.mxu0 %v58
  %v123 = vpop.f32.mrf.mxu0
  %v124 = vadd.f32 0.0, %v123
  %v125 = vpop.f32.mrf.mxu0
  %v126 = vadd.f32 0.0, %v125
  %127 = vdwg.mxu0
  %v128 = vadd.f32 %v25, %v119
  %v129 = vadd.f32 %v26, %v121
  %v130 = vadd.f32 %v27, %v124
  %v131 = vadd.f32 %v28, %v126
  %132 = vst [vmem:[#allocation2] sm:$0xff] %v128
  %133 = vst [vmem:[#allocation2 + $0x8] sm:$0xff] %v129
  %134 = vst [vmem:[#allocation2 + $0x10] sm:$0xff] %v130
  %135 = vst [vmem:[#allocation2 + $0x18] sm:$0xff] %v131
  // Predicated region
  $region22: #{_lambda_.68} parent=0 // pred_check
    %p136 = pneg %p17
  $region23: #{_lambda_.68} parent=0 // pred_check_branch
    %138 = sbr.rel (%p136) target = $region25
  $region24: #{_lambda_.68} parent=0 // pred_region
    %v139 = vld [vmem:[#allocation2] sm:$0xff]
    %v140 = vld [vmem:[#allocation2 + $0x8] sm:$0xff]
    %v141 = vld [vmem:[#allocation2 + $0x10] sm:$0xff]
    %v142 = vld [vmem:[#allocation2 + $0x18] sm:$0xff]
    %v143 = vld [vmem:[%s2] sm:$0x1]
    %v145 = vperm.slane %v143, 0
    %v147 = vadd.f32 %v139, %v145
    %v148 = vadd.f32 %v140, %v145
    %v149 = vadd.f32 %v141, %v145
    %v150 = vadd.f32 %v142, %v145
    %v151 = vld [vmem:[%s3] sm:$0xf]
    %v152 = vld [vmem:[%s3 + $0x4] sm:$0xf]
    %v153 = vld [vmem:[%s3 + $0x8] sm:$0xf]
    %v154 = vld [vmem:[%s3 + $0xc] sm:$0xf]
    %v155 = vunpack.c.l.bf16 %v151
    %v156 = vunpack.c.l.bf16 %v152
    %v157 = vunpack.c.l.bf16 %v153
    %v158 = vunpack.c.l.bf16 %v154
    %v159 = vadd.f32 %v147, %v155
    %v160 = vadd.f32 %v148, %v156
    %v161 = vadd.f32 %v149, %v157
    %v162 = vadd.f32 %v150, %v158
    %v163 = vmax.f32 %v159, 0.0
    %v164 = vmax.f32 %v160, 0.0
    %v165 = vmax.f32 %v161, 0.0
    %v166 = vmax.f32 %v162, 0.0
    %v167 = vpack.c.bf16 %v163, %v163
    %v168 = vpack.c.bf16 %v164, %v164
    %v169 = vpack.c.bf16 %v165, %v165
    %v170 = vpack.c.bf16 %v166, %v166
    %171 = vst [vmem:[%s4] sm:$0xf] %v167
    %172 = vst [vmem:[%s4 + $0x4] sm:$0xf] %v168
    %173 = vst [vmem:[%s4 + $0x8] sm:$0xf] %v169
    %174 = vst [vmem:[%s4 + $0xc] sm:$0xf] %v170
  $region25: #{_lambda_.68} parent=0 // pred_fallthru
    _
  // Predicated region
  $region26: #{_lambda_.68} parent=0 // pred_check
    _
  $region27: #{_lambda_.68} parent=0 // pred_check_branch
    %176 = sbr.rel (0) target = $region29
  $region28: #{_lambda_.68} parent=0 // pred_region
    _
  $region29: #{_lambda_.68} parent=0 // pred_fallthru
    _
  // Predicated region
  $region30: #{_lambda_.68} parent=0 // pred_check
    _
  $region31: #{_lambda_.68} parent=0 // pred_check_branch
    %178 = sbr.rel (0) target = $region33
  $region32: #{_lambda_.68} parent=0 // pred_region
    _
  $region33: #{_lambda_.68} parent=0 // pred_fallthru
    _

// kernel: _lambda_.66
$region0: #{_lambda_.66}
  #allocation0 [shape = 'u32[]', space=smem, size = 0x4, offset = 0x4, fixed_abs, tag = 'smem constant byte address 0x4 - core index']
  #allocation1 [shape = 'u32[72,128]{1,0:T(1,128)}', space=vmem, size = 0x9000, scoped, tag = 'internal scratch']
  #allocation2 [shape = 'f32[32,128]{1,0:T(8,128)}', space=vmem, size = 0x4000, scoped, tag = 'scratch operand']
  %s0 = inlined_call_operand.vmem [shape: bf16[32,256], index: 0, kind: input, shape index: {}]
  %s1 = inlined_call_operand.vmem [shape: bf16[256,128], index: 1, kind: input, shape index: {}]
  %s2 = inlined_call_operand.vmem [shape: f32[1,128], index: 2, kind: input, shape index: {}]
  %s3 = inlined_call_operand.vmem [shape: bf16[32,128], index: 3, kind: output, shape index: {}]
  %s4 = sld [smem:[#allocation0]]
  $region30: #{_lambda_.66} parent=0
    _
  %s6 = ssub.s32 1, %s4
  %s7 = scalar_select 0, %s6, %s4
  // Predicated region
  $region2: #{_lambda_.66} parent=0 // pred_check
    _
  $region3: #{_lambda_.66} parent=0 // pred_check_branch
    %9 = sbr.rel (0) target = $region5
  $region4: #{_lambda_.66} parent=0 // pred_region
    _
  $region5: #{_lambda_.66} parent=0 // pred_fallthru
    _
  // Predicated region
  $region6: #{_lambda_.66} parent=0 // pred_check
    _
  $region7: #{_lambda_.66} parent=0 // pred_check_branch
    %11 = sbr.rel (0) target = $region9
  $region8: #{_lambda_.66} parent=0 // pred_region
    _
  $region9: #{_lambda_.66} parent=0 // pred_fallthru
    _
  // Predicated region
  $region10: #{_lambda_.66} parent=0 // pred_check
    _
  $region11: #{_lambda_.66} parent=0 // pred_check_branch
    %13 = sbr.rel (0) target = $region13
  $region12: #{_lambda_.66} parent=0 // pred_region
    _
  $region13: #{_lambda_.66} parent=0 // pred_fallthru
    _
  %p14 = scmp.eq.s32.totalorder 0, 0
  // Predicated region
  $region14: #{_lambda_.66} parent=0 // pred_check
    %p15 = pneg %p14
  $region15: #{_lambda_.66} parent=0 // pred_check_branch
    %17 = sbr.rel (%p15) target = $region17
  $region16: #{_lambda_.66} parent=0 // pred_region
    %18 = vst [vmem:[#allocation2] sm:$0xff] 0.0
    %19 = vst [vmem:[#allocation2 + $0x8] sm:$0xff] 0.0
    %20 = vst [vmem:[#allocation2 + $0x10] sm:$0xff] 0.0
    %21 = vst [vmem:[#allocation2 + $0x18] sm:$0xff] 0.0
  $region17: #{_lambda_.66} parent=0 // pred_fallthru
    _
  %v22 = vld [vmem:[#allocation2] sm:$0xff]
  %v23 = vld [vmem:[#allocation2 + $0x8] sm:$0xff]
  %v24 = vld [vmem:[#allocation2 + $0x10] sm:$0xff]
  %v25 = vld [vmem:[#allocation2 + $0x18] sm:$0xff]
  %v26 = vld [vmem:[%s0] sm:$0xff]
  %v27 = vld [vmem:[%s0 + $0x8] sm:$0xff]
  %v28 = vld [vmem:[%s0 + $0x10] sm:$0xff]
  %v29 = vld [vmem:[%s0 + $0x18] sm:$0xff]
  %v30 = vld [vmem:[%s1] sm:$0xf]
  %v31 = vld [vmem:[%s1 + $0x4] sm:$0xf]
  %v32 = vld [vmem:[%s1 + $0x8] sm:$0xf]
  %v33 = vld [vmem:[%s1 + $0xc] sm:$0xf]
  %v34 = vld [vmem:[%s1 + $0x10] sm:$0xf]
  %v35 = vld [vmem:[%s1 + $0x14] sm:$0xf]
  %v36 = vld [vmem:[%s1 + $0x18] sm:$0xf]
  %v37 = vld [vmem:[%s1 + $0x1c] sm:$0xf]
  %v38 = vld [vmem:[%s1 + $0x20] sm:$0xf]
  %v39 = vld [vmem:[%s1 + $0x24] sm:$0xf]
  %v40 = vld [vmem:[%s1 + $0x28] sm:$0xf]
  %v41 = vld [vmem:[%s1 + $0x2c] sm:$0xf]
  %v42 = vld [vmem:[%s1 + $0x30] sm:$0xf]
  %v43 = vld [vmem:[%s1 + $0x34] sm:$0xf]
  %v44 = vld [vmem:[%s1 + $0x38] sm:$0xf]
  %v45 = vld [vmem:[%s1 + $0x3c] sm:$0xf]
  %v46 = vld [vmem:[%s1 + $0x40] sm:$0xf]
  %v47 = vld [vmem:[%s1 + $0x44] sm:$0xf]
  %v48 = vld [vmem:[%s1 + $0x48] sm:$0xf]
  %v49 = vld [vmem:[%s1 + $0x4c] sm:$0xf]
  %v50 = vld [vmem:[%s1 + $0x50] sm:$0xf]
  %v51 = vld [vmem:[%s1 + $0x54] sm:$0xf]
  %v52 = vld [vmem:[%s1 + $0x58] sm:$0xf]
  %v53 = vld [vmem:[%s1 + $0x5c] sm:$0xf]
  %v54 = vld [vmem:[%s1 + $0x60] sm:$0xf]
  %v55 = vld [vmem:[%s1 + $0x64] sm:$0xf]
  %v56 = vld [vmem:[%s1 + $0x68] sm:$0xf]
  %v57 = vld [vmem:[%s1 + $0x6c] sm:$0xf]
  %v58 = vld [vmem:[%s1 + $0x70] sm:$0xf]
  %v59 = vld [vmem:[%s1 + $0x74] sm:$0xf]
  %v60 = vld [vmem:[%s1 + $0x78] sm:$0xf]
  %v61 = vld [vmem:[%s1 + $0x7c] sm:$0xf]
  %v66 = vunpack.c.l.b16 %v26
  %v67 = vunpack.c.h.b16 %v26
  %v68 = vunpack.c.l.b16 %v27
  %v69 = vunpack.c.h.b16 %v27
  %v70 = vunpack.c.l.b16 %v28
  %v71 = vunpack.c.h.b16 %v28
  %v72 = vunpack.c.l.b16 %v29
  %v73 = vunpack.c.h.b16 %v29
  %v74 = vpack.c.b16 %v68, %v66
  %v75 = vpack.c.b16 %v69, %v67
  %v76 = vpack.c.b16 %v72, %v70
  %v77 = vpack.c.b16 %v73, %v71
  %v114 = vunpack.c.l.b16 %v30
  %v115 = vunpack.c.l.b16 %v31
  %v116 = vunpack.c.l.b16 %v32
  %v117 = vunpack.c.l.b16 %v33
  %v118 = vunpack.c.l.b16 %v34
  %v119 = vunpack.c.l.b16 %v35
  %v120 = vunpack.c.l.b16 %v36
  %v121 = vunpack.c.l.b16 %v37
  %v122 = vunpack.c.l.b16 %v38
  %v123 = vunpack.c.l.b16 %v39
  %v124 = vunpack.c.l.b16 %v40
  %v125 = vunpack.c.l.b16 %v41
  %v126 = vunpack.c.l.b16 %v42
  %v127 = vunpack.c.l.b16 %v43
  %v128 = vunpack.c.l.b16 %v44
  %v129 = vunpack.c.l.b16 %v45
  %v130 = vunpack.c.l.b16 %v46
  %v131 = vunpack.c.l.b16 %v47
  %v132 = vunpack.c.l.b16 %v48
  %v133 = vunpack.c.l.b16 %v49
  %v134 = vunpack.c.l.b16 %v50
  %v135 = vunpack.c.l.b16 %v51
  %v136 = vunpack.c.l.b16 %v52
  %v137 = vunpack.c.l.b16 %v53
  %v138 = vunpack.c.l.b16 %v54
  %v139 = vunpack.c.l.b16 %v55
  %v140 = vunpack.c.l.b16 %v56
  %v141 = vunpack.c.l.b16 %v57
  %v142 = vunpack.c.l.b16 %v58
  %v143 = vunpack.c.l.b16 %v59
  %v144 = vunpack.c.l.b16 %v60
  %v145 = vunpack.c.l.b16 %v61
  %v146 = vpack.c.b16 %v115, %v114
  %v147 = vpack.c.b16 %v117, %v116
  %v148 = vpack.c.b16 %v119, %v118
  %v149 = vpack.c.b16 %v121, %v120
  %v150 = vpack.c.b16 %v123, %v122
  %v151 = vpack.c.b16 %v125, %v124
  %v152 = vpack.c.b16 %v127, %v126
  %v153 = vpack.c.b16 %v129, %v128
  %v154 = vpack.c.b16 %v131, %v130
  %v155 = vpack.c.b16 %v133, %v132
  %v156 = vpack.c.b16 %v135, %v134
  %v157 = vpack.c.b16 %v137, %v136
  %v158 = vpack.c.b16 %v139, %v138
  %v159 = vpack.c.b16 %v141, %v140
  %v160 = vpack.c.b16 %v143, %v142
  %v161 = vpack.c.b16 %v145, %v144
  %178 = vmatpush.bf16.msra.mxu0 %v153
  %179 = vmatpush.bf16.msra.mxu0 %v152
  %180 = vmatpush.bf16.msra.mxu0 %v151
  %181 = vmatpush.bf16.msra.mxu0 %v150
  %182 = vmatpush.bf16.msra.mxu0 %v149
  %183 = vmatpush.bf16.msra.mxu0 %v148
  %184 = vmatpush.bf16.msra.mxu0 %v147
  %185 = vmatpush.bf16.msra.mxu0 %v146
  %186 = vmatmul.bf16.gmra.mxu0 %v74
  %v187 = vpop.f32.mrf.mxu0
  %v188 = vadd.f32 0.0, %v187
  %v189 = vpop.f32.mrf.mxu0
  %v190 = vadd.f32 0.0, %v189
  %191 = vmatmul.bf16.gmra.mxu0 %v76
  %v192 = vpop.f32.mrf.mxu0
  %v193 = vadd.f32 0.0, %v192
  %v194 = vpop.f32.mrf.mxu0
  %v195 = vadd.f32 0.0, %v194
  %196 = vdwg.mxu0
  %197 = vmatpush.bf16.msra.mxu0 %v161
  %198 = vmatpush.bf16.msra.mxu0 %v160
  %199 = vmatpush.bf16.msra.mxu0 %v159
  %200 = vmatpush.bf16.msra.mxu0 %v158
  %201 = vmatpush.bf16.msra.mxu0 %v157
  %202 = vmatpush.bf16.msra.mxu0 %v156
  %203 = vmatpush.bf16.msra.mxu0 %v155
  %204 = vmatpush.bf16.msra.mxu0 %v154
  %205 = vmatmul.bf16.gmra.mxu0 %v75
  %v206 = vpop.f32.mrf.mxu0
  %v207 = vadd.f32 %v188, %v206
  %v208 = vpop.f32.mrf.mxu0
  %v209 = vadd.f32 %v190, %v208
  %210 = vmatmul.bf16.gmra.mxu0 %v77
  %v211 = vpop.f32.mrf.mxu0
  %v212 = vadd.f32 %v193, %v211
  %v213 = vpop.f32.mrf.mxu0
  %v214 = vadd.f32 %v195, %v213
  %215 = vdwg.mxu0
  %v216 = vadd.f32 %v22, %v207
  %v217 = vadd.f32 %v23, %v209
  %v218 = vadd.f32 %v24, %v212
  %v219 = vadd.f32 %v25, %v214
  %220 = vst [vmem:[#allocation2] sm:$0xff] %v216
  %221 = vst [vmem:[#allocation2 + $0x8] sm:$0xff] %v217
  %222 = vst [vmem:[#allocation2 + $0x10] sm:$0xff] %v218
  %223 = vst [vmem:[#allocation2 + $0x18] sm:$0xff] %v219
  // Predicated region
  $region18: #{_lambda_.66} parent=0 // pred_check
    %p224 = pneg %p14
  $region19: #{_lambda_.66} parent=0 // pred_check_branch
    %226 = sbr.rel (%p224) target = $region21
  $region20: #{_lambda_.66} parent=0 // pred_region
    %v227 = vld [vmem:[#allocation2] sm:$0xff]
    %v228 = vld [vmem:[#allocation2 + $0x8] sm:$0xff]
    %v229 = vld [vmem:[#allocation2 + $0x10] sm:$0xff]
    %v230 = vld [vmem:[#allocation2 + $0x18] sm:$0xff]
    %v231 = vld [vmem:[%s2] sm:$0x1]
    %v233 = vperm.slane %v231, 0
    %v235 = vadd.f32 %v227, %v233
    %v236 = vadd.f32 %v228, %v233
    %v237 = vadd.f32 %v229, %v233
    %v238 = vadd.f32 %v230, %v233
    %v239 = vmax.f32 %v235, 0.0
    %v240 = vmax.f32 %v236, 0.0
    %v241 = vmax.f32 %v237, 0.0
    %v242 = vmax.f32 %v238, 0.0
    %v243 = vpack.c.bf16 %v239, %v239
    %v244 = vpack.c.bf16 %v240, %v240
    %v245 = vpack.c.bf16 %v241, %v241
    %v246 = vpack.c.bf16 %v242, %v242
    %247 = vst [vmem:[%s3] sm:$0xf] %v243
    %248 = vst [vmem:[%s3 + $0x4] sm:$0xf] %v244
    %249 = vst [vmem:[%s3 + $0x8] sm:$0xf] %v245
    %250 = vst [vmem:[%s3 + $0xc] sm:$0xf] %v246
  $region21: #{_lambda_.66} parent=0 // pred_fallthru
    _
  // Predicated region
  $region22: #{_lambda_.66} parent=0 // pred_check
    _
  $region23: #{_lambda_.66} parent=0 // pred_check_branch
    %252 = sbr.rel (0) target = $region25
  $region24: #{_lambda_.66} parent=0 // pred_region
    _
  $region25: #{_lambda_.66} parent=0 // pred_fallthru
    _
  // Predicated region
  $region26: #{_lambda_.66} parent=0 // pred_check
    _
  $region27: #{_lambda_.66} parent=0 // pred_check_branch
    %254 = sbr.rel (0) target = $region29
  $region28: #{_lambda_.66} parent=0 // pred_region
    _
  $region29: #{_lambda_.66} parent=0 // pred_fallthru
    _

// kernel: _lambda_.79
$region0: #{_lambda_.79}
  #allocation0 [shape = 'u32[]', space=smem, size = 0x4, offset = 0x4, fixed_abs, tag = 'smem constant byte address 0x4 - core index']
  #allocation1 [shape = 'u32[72,128]{1,0:T(1,128)}', space=vmem, size = 0x9000, scoped, tag = 'internal scratch']
  #allocation2 [shape = 'f32[16,128]{1,0:T(8,128)}', space=vmem, size = 0x2000, scoped, tag = 'scratch operand']
  %s0 = inlined_call_operand.vmem [shape: bf16[16,384], index: 0, kind: input, shape index: {}]
  %s1 = inlined_call_operand.vmem [shape: bf16[384,128], index: 1, kind: input, shape index: {}]
  %s2 = inlined_call_operand.vmem [shape: f32[1,128], index: 2, kind: input, shape index: {}]
  %s3 = inlined_call_operand.vmem [shape: bf16[16,128], index: 3, kind: output, shape index: {}]
  %s4 = sld [smem:[#allocation0]]
  $region30: #{_lambda_.79} parent=0
    _
  %s6 = ssub.s32 1, %s4
  %s7 = scalar_select 0, %s6, %s4
  // Predicated region
  $region2: #{_lambda_.79} parent=0 // pred_check
    _
  $region3: #{_lambda_.79} parent=0 // pred_check_branch
    %9 = sbr.rel (0) target = $region5
  $region4: #{_lambda_.79} parent=0 // pred_region
    _
  $region5: #{_lambda_.79} parent=0 // pred_fallthru
    _
  // Predicated region
  $region6: #{_lambda_.79} parent=0 // pred_check
    _
  $region7: #{_lambda_.79} parent=0 // pred_check_branch
    %11 = sbr.rel (0) target = $region9
  $region8: #{_lambda_.79} parent=0 // pred_region
    _
  $region9: #{_lambda_.79} parent=0 // pred_fallthru
    _
  // Predicated region
  $region10: #{_lambda_.79} parent=0 // pred_check
    _
  $region11: #{_lambda_.79} parent=0 // pred_check_branch
    %13 = sbr.rel (0) target = $region13
  $region12: #{_lambda_.79} parent=0 // pred_region
    _
  $region13: #{_lambda_.79} parent=0 // pred_fallthru
    _
  %p14 = scmp.eq.s32.totalorder 0, 0
  // Predicated region
  $region14: #{_lambda_.79} parent=0 // pred_check
    %p15 = pneg %p14
  $region15: #{_lambda_.79} parent=0 // pred_check_branch
    %17 = sbr.rel (%p15) target = $region17
  $region16: #{_lambda_.79} parent=0 // pred_region
    %18 = vst [vmem:[#allocation2] sm:$0xff] 0.0
    %19 = vst [vmem:[#allocation2 + $0x8] sm:$0xff] 0.0
  $region17: #{_lambda_.79} parent=0 // pred_fallthru
    _
  %v20 = vld [vmem:[#allocation2] sm:$0xff]
  %v21 = vld [vmem:[#allocation2 + $0x8] sm:$0xff]
  %v22 = vld [vmem:[%s0] sm:$0xff]
  %v23 = vld [vmem:[%s0 + $0x8] sm:$0xf]
  %v24 = vld [vmem:[%s0 + $0xc] sm:$0xff]
  %v25 = vld [vmem:[%s0 + $0x14] sm:$0xf]
  %v26 = vld [vmem:[%s1] sm:$0xf]
  %v27 = vld [vmem:[%s1 + $0x4] sm:$0xf]
  %v28 = vld [vmem:[%s1 + $0x8] sm:$0xf]
  %v29 = vld [vmem:[%s1 + $0xc] sm:$0xf]
  %v30 = vld [vmem:[%s1 + $0x10] sm:$0xf]
  %v31 = vld [vmem:[%s1 + $0x14] sm:$0xf]
  %v32 = vld [vmem:[%s1 + $0x18] sm:$0xf]
  %v33 = vld [vmem:[%s1 + $0x1c] sm:$0xf]
  %v34 = vld [vmem:[%s1 + $0x20] sm:$0xf]
  %v35 = vld [vmem:[%s1 + $0x24] sm:$0xf]
  %v36 = vld [vmem:[%s1 + $0x28] sm:$0xf]
  %v37 = vld [vmem:[%s1 + $0x2c] sm:$0xf]
  %v38 = vld [vmem:[%s1 + $0x30] sm:$0xf]
  %v39 = vld [vmem:[%s1 + $0x34] sm:$0xf]
  %v40 = vld [vmem:[%s1 + $0x38] sm:$0xf]
  %v41 = vld [vmem:[%s1 + $0x3c] sm:$0xf]
  %v42 = vld [vmem:[%s1 + $0x40] sm:$0xf]
  %v43 = vld [vmem:[%s1 + $0x44] sm:$0xf]
  %v44 = vld [vmem:[%s1 + $0x48] sm:$0xf]
  %v45 = vld [vmem:[%s1 + $0x4c] sm:$0xf]
  %v46 = vld [vmem:[%s1 + $0x50] sm:$0xf]
  %v47 = vld [vmem:[%s1 + $0x54] sm:$0xf]
  %v48 = vld [vmem:[%s1 + $0x58] sm:$0xf]
  %v49 = vld [vmem:[%s1 + $0x5c] sm:$0xf]
  %v50 = vld [vmem:[%s1 + $0x60] sm:$0xf]
  %v51 = vld [vmem:[%s1 + $0x64] sm:$0xf]
  %v52 = vld [vmem:[%s1 + $0x68] sm:$0xf]
  %v53 = vld [vmem:[%s1 + $0x6c] sm:$0xf]
  %v54 = vld [vmem:[%s1 + $0x70] sm:$0xf]
  %v55 = vld [vmem:[%s1 + $0x74] sm:$0xf]
  %v56 = vld [vmem:[%s1 + $0x78] sm:$0xf]
  %v57 = vld [vmem:[%s1 + $0x7c] sm:$0xf]
  %v58 = vld [vmem:[%s1 + $0x80] sm:$0xf]
  %v59 = vld [vmem:[%s1 + $0x84] sm:$0xf]
  %v60 = vld [vmem:[%s1 + $0x88] sm:$0xf]
  %v61 = vld [vmem:[%s1 + $0x8c] sm:$0xf]
  %v62 = vld [vmem:[%s1 + $0x90] sm:$0xf]
  %v63 = vld [vmem:[%s1 + $0x94] sm:$0xf]
  %v64 = vld [vmem:[%s1 + $0x98] sm:$0xf]
  %v65 = vld [vmem:[%s1 + $0x9c] sm:$0xf]
  %v66 = vld [vmem:[%s1 + $0xa0] sm:$0xf]
  %v67 = vld [vmem:[%s1 + $0xa4] sm:$0xf]
  %v68 = vld [vmem:[%s1 + $0xa8] sm:$0xf]
  %v69 = vld [vmem:[%s1 + $0xac] sm:$0xf]
  %v70 = vld [vmem:[%s1 + $0xb0] sm:$0xf]
  %v71 = vld [vmem:[%s1 + $0xb4] sm:$0xf]
  %v72 = vld [vmem:[%s1 + $0xb8] sm:$0xf]
  %v73 = vld [vmem:[%s1 + $0xbc] sm:$0xf]
  %v78 = vunpack.c.l.b16 %v22
  %v79 = vunpack.c.h.b16 %v22
  %v80 = vunpack.c.l.b16 %v23
  %v81 = vunpack.c.l.b16 %v24
  %v82 = vunpack.c.h.b16 %v24
  %v83 = vunpack.c.l.b16 %v25
  %v84 = vpack.c.b16 %v81, %v78
  %v85 = vpack.c.b16 %v82, %v79
  %v86 = vpack.c.b16 %v83, %v80
  %v138 = vunpack.c.l.b16 %v26
  %v139 = vunpack.c.l.b16 %v27
  %v140 = vunpack.c.l.b16 %v28
  %v141 = vunpack.c.l.b16 %v29
  %v142 = vunpack.c.l.b16 %v30
  %v143 = vunpack.c.l.b16 %v31
  %v144 = vunpack.c.l.b16 %v32
  %v145 = vunpack.c.l.b16 %v33
  %v146 = vunpack.c.l.b16 %v34
  %v147 = vunpack.c.l.b16 %v35
  %v148 = vunpack.c.l.b16 %v36
  %v149 = vunpack.c.l.b16 %v37
  %v150 = vunpack.c.l.b16 %v38
  %v151 = vunpack.c.l.b16 %v39
  %v152 = vunpack.c.l.b16 %v40
  %v153 = vunpack.c.l.b16 %v41
  %v154 = vunpack.c.l.b16 %v42
  %v155 = vunpack.c.l.b16 %v43
  %v156 = vunpack.c.l.b16 %v44
  %v157 = vunpack.c.l.b16 %v45
  %v158 = vunpack.c.l.b16 %v46
  %v159 = vunpack.c.l.b16 %v47
  %v160 = vunpack.c.l.b16 %v48
  %v161 = vunpack.c.l.b16 %v49
  %v162 = vunpack.c.l.b16 %v50
  %v163 = vunpack.c.l.b16 %v51
  %v164 = vunpack.c.l.b16 %v52
  %v165 = vunpack.c.l.b16 %v53
  %v166 = vunpack.c.l.b16 %v54
  %v167 = vunpack.c.l.b16 %v55
  %v168 = vunpack.c.l.b16 %v56
  %v169 = vunpack.c.l.b16 %v57
  %v170 = vunpack.c.l.b16 %v58
  %v171 = vunpack.c.l.b16 %v59
  %v172 = vunpack.c.l.b16 %v60
  %v173 = vunpack.c.l.b16 %v61
  %v174 = vunpack.c.l.b16 %v62
  %v175 = vunpack.c.l.b16 %v63
  %v176 = vunpack.c.l.b16 %v64
  %v177 = vunpack.c.l.b16 %v65
  %v178 = vunpack.c.l.b16 %v66
  %v179 = vunpack.c.l.b16 %v67
  %v180 = vunpack.c.l.b16 %v68
  %v181 = vunpack.c.l.b16 %v69
  %v182 = vunpack.c.l.b16 %v70
  %v183 = vunpack.c.l.b16 %v71
  %v184 = vunpack.c.l.b16 %v72
  %v185 = vunpack.c.l.b16 %v73
  %v186 = vpack.c.b16 %v139, %v138
  %v187 = vpack.c.b16 %v141, %v140
  %v188 = vpack.c.b16 %v143, %v142
  %v189 = vpack.c.b16 %v145, %v144
  %v190 = vpack.c.b16 %v147, %v146
  %v191 = vpack.c.b16 %v149, %v148
  %v192 = vpack.c.b16 %v151, %v150
  %v193 = vpack.c.b16 %v153, %v152
  %v194 = vpack.c.b16 %v155, %v154
  %v195 = vpack.c.b16 %v157, %v156
  %v196 = vpack.c.b16 %v159, %v158
  %v197 = vpack.c.b16 %v161, %v160
  %v198 = vpack.c.b16 %v163, %v162
  %v199 = vpack.c.b16 %v165, %v164
  %v200 = vpack.c.b16 %v167, %v166
  %v201 = vpack.c.b16 %v169, %v168
  %v202 = vpack.c.b16 %v171, %v170
  %v203 = vpack.c.b16 %v173, %v172
  %v204 = vpack.c.b16 %v175, %v174
  %v205 = vpack.c.b16 %v177, %v176
  %v206 = vpack.c.b16 %v179, %v178
  %v207 = vpack.c.b16 %v181, %v180
  %v208 = vpack.c.b16 %v183, %v182
  %v209 = vpack.c.b16 %v185, %v184
  %234 = vmatpush.bf16.msra.mxu0 %v193
  %235 = vmatpush.bf16.msra.mxu0 %v192
  %236 = vmatpush.bf16.msra.mxu0 %v191
  %237 = vmatpush.bf16.msra.mxu0 %v190
  %238 = vmatpush.bf16.msra.mxu0 %v189
  %239 = vmatpush.bf16.msra.mxu0 %v188
  %240 = vmatpush.bf16.msra.mxu0 %v187
  %241 = vmatpush.bf16.msra.mxu0 %v186
  %242 = vmatmul.bf16.gmra.mxu0 %v84
  %v243 = vpop.f32.mrf.mxu0
  %v244 = vadd.f32 0.0, %v243
  %v245 = vpop.f32.mrf.mxu0
  %v246 = vadd.f32 0.0, %v245
  %247 = vdwg.mxu0
  %248 = vmatpush.bf16.msra.mxu0 %v201
  %249 = vmatpush.bf16.msra.mxu0 %v200
  %250 = vmatpush.bf16.msra.mxu0 %v199
  %251 = vmatpush.bf16.msra.mxu0 %v198
  %252 = vmatpush.bf16.msra.mxu0 %v197
  %253 = vmatpush.bf16.msra.mxu0 %v196
  %254 = vmatpush.bf16.msra.mxu0 %v195
  %255 = vmatpush.bf16.msra.mxu0 %v194
  %256 = vmatmul.bf16.gmra.mxu0 %v85
  %v257 = vpop.f32.mrf.mxu0
  %v258 = vadd.f32 %v244, %v257
  %v259 = vpop.f32.mrf.mxu0
  %v260 = vadd.f32 %v246, %v259
  %261 = vdwg.mxu0
  %262 = vmatpush.bf16.msra.mxu0 %v209
  %263 = vmatpush.bf16.msra.mxu0 %v208
  %264 = vmatpush.bf16.msra.mxu0 %v207
  %265 = vmatpush.bf16.msra.mxu0 %v206
  %266 = vmatpush.bf16.msra.mxu0 %v205
  %267 = vmatpush.bf16.msra.mxu0 %v204
  %268 = vmatpush.bf16.msra.mxu0 %v203
  %269 = vmatpush.bf16.msra.mxu0 %v202
  %270 = vmatmul.bf16.gmra.mxu0 %v86
  %v271 = vpop.f32.mrf.mxu0
  %v272 = vadd.f32 %v258, %v271
  %v273 = vpop.f32.mrf.mxu0
  %v274 = vadd.f32 %v260, %v273
  %275 = vdwg.mxu0
  %v276 = vadd.f32 %v20, %v272
  %v277 = vadd.f32 %v21, %v274
  %278 = vst [vmem:[#allocation2] sm:$0xff] %v276
  %279 = vst [vmem:[#allocation2 + $0x8] sm:$0xff] %v277
  // Predicated region
  $region18: #{_lambda_.79} parent=0 // pred_check
    %p280 = pneg %p14
  $region19: #{_lambda_.79} parent=0 // pred_check_branch
    %282 = sbr.rel (%p280) target = $region21
  $region20: #{_lambda_.79} parent=0 // pred_region
    %v283 = vld [vmem:[#allocation2] sm:$0xff]
    %v284 = vld [vmem:[#allocation2 + $0x8] sm:$0xff]
    %v285 = vld [vmem:[%s2] sm:$0x1]
    %v287 = vperm.slane %v285, 0
    %v289 = vadd.f32 %v283, %v287
    %v290 = vadd.f32 %v284, %v287
    %v291 = vmax.f32 %v289, 0.0
    %v292 = vmax.f32 %v290, 0.0
    %v293 = vpack.c.bf16 %v291, %v291
    %v294 = vpack.c.bf16 %v292, %v292
    %295 = vst [vmem:[%s3] sm:$0xf] %v293
    %296 = vst [vmem:[%s3 + $0x4] sm:$0xf] %v294
  $region21: #{_lambda_.79} parent=0 // pred_fallthru
    _
  // Predicated region
  $region22: #{_lambda_.79} parent=0 // pred_check
    _
  $region23: #{_lambda_.79} parent=0 // pred_check_branch
    %298 = sbr.rel (0) target = $region25
  $region24: #{_lambda_.79} parent=0 // pred_region
    _
  $region25: #{_lambda_.79} parent=0 // pred_fallthru
    _
  // Predicated region
  $region26: #{_lambda_.79} parent=0 // pred_check
    _
  $region27: #{_lambda_.79} parent=0 // pred_check_branch
    %300 = sbr.rel (0) target = $region29
  $region28: #{_lambda_.79} parent=0 // pred_region
    _
  $region29: #{_lambda_.79} parent=0 // pred_fallthru
    _

// kernel: _lambda_.81
$region0: #{_lambda_.81}
  #allocation0 [shape = 'u32[]', space=smem, size = 0x4, offset = 0x4, fixed_abs, tag = 'smem constant byte address 0x4 - core index']
  #allocation1 [shape = 'u32[72,128]{1,0:T(1,128)}', space=vmem, size = 0x9000, scoped, tag = 'internal scratch']
  #allocation2 [shape = 'f32[16,128]{1,0:T(8,128)}', space=vmem, size = 0x2000, scoped, tag = 'scratch operand']
  %s0 = inlined_call_operand.vmem [shape: bf16[16,128], index: 0, kind: input, shape index: {}]
  %s1 = inlined_call_operand.vmem [shape: bf16[128,128], index: 1, kind: input, shape index: {}]
  %s2 = inlined_call_operand.vmem [shape: f32[1,128], index: 2, kind: input, shape index: {}]
  %s3 = inlined_call_operand.vmem [shape: bf16[16,128], index: 3, kind: input, shape index: {}]
  %s4 = inlined_call_operand.vmem [shape: bf16[16,128], index: 4, kind: output, shape index: {}]
  %s5 = sld [smem:[#allocation0]]
  $region34: #{_lambda_.81} parent=0
    _
  %s7 = ssub.s32 1, %s5
  %s8 = scalar_select 0, %s7, %s5
  // Predicated region
  $region2: #{_lambda_.81} parent=0 // pred_check
    _
  $region3: #{_lambda_.81} parent=0 // pred_check_branch
    %10 = sbr.rel (0) target = $region5
  $region4: #{_lambda_.81} parent=0 // pred_region
    _
  $region5: #{_lambda_.81} parent=0 // pred_fallthru
    _
  // Predicated region
  $region6: #{_lambda_.81} parent=0 // pred_check
    _
  $region7: #{_lambda_.81} parent=0 // pred_check_branch
    %12 = sbr.rel (0) target = $region9
  $region8: #{_lambda_.81} parent=0 // pred_region
    _
  $region9: #{_lambda_.81} parent=0 // pred_fallthru
    _
  // Predicated region
  $region10: #{_lambda_.81} parent=0 // pred_check
    _
  $region11: #{_lambda_.81} parent=0 // pred_check_branch
    %14 = sbr.rel (0) target = $region13
  $region12: #{_lambda_.81} parent=0 // pred_region
    _
  $region13: #{_lambda_.81} parent=0 // pred_fallthru
    _
  // Predicated region
  $region14: #{_lambda_.81} parent=0 // pred_check
    _
  $region15: #{_lambda_.81} parent=0 // pred_check_branch
    %16 = sbr.rel (0) target = $region17
  $region16: #{_lambda_.81} parent=0 // pred_region
    _
  $region17: #{_lambda_.81} parent=0 // pred_fallthru
    _
  %p17 = scmp.eq.s32.totalorder 0, 0
  // Predicated region
  $region18: #{_lambda_.81} parent=0 // pred_check
    %p18 = pneg %p17
  $region19: #{_lambda_.81} parent=0 // pred_check_branch
    %20 = sbr.rel (%p18) target = $region21
  $region20: #{_lambda_.81} parent=0 // pred_region
    %21 = vst [vmem:[#allocation2] sm:$0xff] 0.0
    %22 = vst [vmem:[#allocation2 + $0x8] sm:$0xff] 0.0
  $region21: #{_lambda_.81} parent=0 // pred_fallthru
    _
  %v23 = vld [vmem:[#allocation2] sm:$0xff]
  %v24 = vld [vmem:[#allocation2 + $0x8] sm:$0xff]
  %v25 = vld [vmem:[%s0] sm:$0xf]
  %v26 = vld [vmem:[%s0 + $0x4] sm:$0xf]
  %v27 = vld [vmem:[%s1] sm:$0xf]
  %v28 = vld [vmem:[%s1 + $0x4] sm:$0xf]
  %v29 = vld [vmem:[%s1 + $0x8] sm:$0xf]
  %v30 = vld [vmem:[%s1 + $0xc] sm:$0xf]
  %v31 = vld [vmem:[%s1 + $0x10] sm:$0xf]
  %v32 = vld [vmem:[%s1 + $0x14] sm:$0xf]
  %v33 = vld [vmem:[%s1 + $0x18] sm:$0xf]
  %v34 = vld [vmem:[%s1 + $0x1c] sm:$0xf]
  %v35 = vld [vmem:[%s1 + $0x20] sm:$0xf]
  %v36 = vld [vmem:[%s1 + $0x24] sm:$0xf]
  %v37 = vld [vmem:[%s1 + $0x28] sm:$0xf]
  %v38 = vld [vmem:[%s1 + $0x2c] sm:$0xf]
  %v39 = vld [vmem:[%s1 + $0x30] sm:$0xf]
  %v40 = vld [vmem:[%s1 + $0x34] sm:$0xf]
  %v41 = vld [vmem:[%s1 + $0x38] sm:$0xf]
  %v42 = vld [vmem:[%s1 + $0x3c] sm:$0xf]
  %v45 = vunpack.c.l.b16 %v25
  %v46 = vunpack.c.l.b16 %v26
  %v47 = vpack.c.b16 %v46, %v45
  %v65 = vunpack.c.l.b16 %v27
  %v66 = vunpack.c.l.b16 %v28
  %v67 = vunpack.c.l.b16 %v29
  %v68 = vunpack.c.l.b16 %v30
  %v69 = vunpack.c.l.b16 %v31
  %v70 = vunpack.c.l.b16 %v32
  %v71 = vunpack.c.l.b16 %v33
  %v72 = vunpack.c.l.b16 %v34
  %v73 = vunpack.c.l.b16 %v35
  %v74 = vunpack.c.l.b16 %v36
  %v75 = vunpack.c.l.b16 %v37
  %v76 = vunpack.c.l.b16 %v38
  %v77 = vunpack.c.l.b16 %v39
  %v78 = vunpack.c.l.b16 %v40
  %v79 = vunpack.c.l.b16 %v41
  %v80 = vunpack.c.l.b16 %v42
  %v81 = vpack.c.b16 %v66, %v65
  %v82 = vpack.c.b16 %v68, %v67
  %v83 = vpack.c.b16 %v70, %v69
  %v84 = vpack.c.b16 %v72, %v71
  %v85 = vpack.c.b16 %v74, %v73
  %v86 = vpack.c.b16 %v76, %v75
  %v87 = vpack.c.b16 %v78, %v77
  %v88 = vpack.c.b16 %v80, %v79
  %97 = vmatpush.bf16.msra.mxu0 %v88
  %98 = vmatpush.bf16.msra.mxu0 %v87
  %99 = vmatpush.bf16.msra.mxu0 %v86
  %100 = vmatpush.bf16.msra.mxu0 %v85
  %101 = vmatpush.bf16.msra.mxu0 %v84
  %102 = vmatpush.bf16.msra.mxu0 %v83
  %103 = vmatpush.bf16.msra.mxu0 %v82
  %104 = vmatpush.bf16.msra.mxu0 %v81
  %105 = vmatmul.bf16.gmra.mxu0 %v47
  %v106 = vpop.f32.mrf.mxu0
  %v107 = vadd.f32 0.0, %v106
  %v108 = vpop.f32.mrf.mxu0
  %v109 = vadd.f32 0.0, %v108
  %110 = vdwg.mxu0
  %v111 = vadd.f32 %v23, %v107
  %v112 = vadd.f32 %v24, %v109
  %113 = vst [vmem:[#allocation2] sm:$0xff] %v111
  %114 = vst [vmem:[#allocation2 + $0x8] sm:$0xff] %v112
  // Predicated region
  $region22: #{_lambda_.81} parent=0 // pred_check
    %p115 = pneg %p17
  $region23: #{_lambda_.81} parent=0 // pred_check_branch
    %117 = sbr.rel (%p115) target = $region25
  $region24: #{_lambda_.81} parent=0 // pred_region
    %v118 = vld [vmem:[#allocation2] sm:$0xff]
    %v119 = vld [vmem:[#allocation2 + $0x8] sm:$0xff]
    %v120 = vld [vmem:[%s2] sm:$0x1]
    %v122 = vperm.slane %v120, 0
    %v124 = vadd.f32 %v118, %v122
    %v125 = vadd.f32 %v119, %v122
    %v126 = vld [vmem:[%s3] sm:$0xf]
    %v127 = vld [vmem:[%s3 + $0x4] sm:$0xf]
    %v128 = vunpack.c.l.bf16 %v126
    %v129 = vunpack.c.l.bf16 %v127
    %v130 = vadd.f32 %v124, %v128
    %v131 = vadd.f32 %v125, %v129
    %v132 = vmax.f32 %v130, 0.0
    %v133 = vmax.f32 %v131, 0.0
    %v134 = vpack.c.bf16 %v132, %v132
    %v135 = vpack.c.bf16 %v133, %v133
    %136 = vst [vmem:[%s4] sm:$0xf] %v134
    %137 = vst [vmem:[%s4 + $0x4] sm:$0xf] %v135
  $region25: #{_lambda_.81} parent=0 // pred_fallthru
    _
  // Predicated region
  $region26: #{_lambda_.81} parent=0 // pred_check
    _
  $region27: #{_lambda_.81} parent=0 // pred_check_branch
    %139 = sbr.rel (0) target = $region29
  $region28: #{_lambda_.81} parent=0 // pred_region
    _
  $region29: #{_lambda_.81} parent=0 // pred_fallthru
    _
  // Predicated region
  $region30: #{_lambda_.81} parent=0 // pred_check
    _
  $region31: #{_lambda_.81} parent=0 // pred_check_branch
    %141 = sbr.rel (0) target = $region33
  $region32: #{_lambda_.81} parent=0 // pred_region
    _
  $region33: #{_lambda_.81} parent=0 // pred_fallthru
    _

// kernel: _lambda_.82
$region0: #{_lambda_.82}
  #allocation0 [shape = 'u32[]', space=smem, size = 0x4, offset = 0x4, fixed_abs, tag = 'smem constant byte address 0x4 - core index']
  #allocation1 [shape = 'u32[72,128]{1,0:T(1,128)}', space=vmem, size = 0x9000, scoped, tag = 'internal scratch']
  #allocation2 [shape = 'f32[16,128]{1,0:T(8,128)}', space=vmem, size = 0x2000, scoped, tag = 'scratch operand']
  %s0 = inlined_call_operand.vmem [shape: bf16[16,128], index: 0, kind: input, shape index: {}]
  %s1 = inlined_call_operand.vmem [shape: bf16[128,128], index: 1, kind: input, shape index: {}]
  %s2 = inlined_call_operand.vmem [shape: f32[1,128], index: 2, kind: input, shape index: {}]
  %s3 = inlined_call_operand.vmem [shape: bf16[16,128], index: 3, kind: output, shape index: {}]
  %s4 = sld [smem:[#allocation0]]
  $region30: #{_lambda_.82} parent=0
    _
  %s6 = ssub.s32 1, %s4
  %s7 = scalar_select 0, %s6, %s4
  // Predicated region
  $region2: #{_lambda_.82} parent=0 // pred_check
    _
  $region3: #{_lambda_.82} parent=0 // pred_check_branch
    %9 = sbr.rel (0) target = $region5
  $region4: #{_lambda_.82} parent=0 // pred_region
    _
  $region5: #{_lambda_.82} parent=0 // pred_fallthru
    _
  // Predicated region
  $region6: #{_lambda_.82} parent=0 // pred_check
    _
  $region7: #{_lambda_.82} parent=0 // pred_check_branch
    %11 = sbr.rel (0) target = $region9
  $region8: #{_lambda_.82} parent=0 // pred_region
    _
  $region9: #{_lambda_.82} parent=0 // pred_fallthru
    _
  // Predicated region
  $region10: #{_lambda_.82} parent=0 // pred_check
    _
  $region11: #{_lambda_.82} parent=0 // pred_check_branch
    %13 = sbr.rel (0) target = $region13
  $region12: #{_lambda_.82} parent=0 // pred_region
    _
  $region13: #{_lambda_.82} parent=0 // pred_fallthru
    _
  %p14 = scmp.eq.s32.totalorder 0, 0
  // Predicated region
  $region14: #{_lambda_.82} parent=0 // pred_check
    %p15 = pneg %p14
  $region15: #{_lambda_.82} parent=0 // pred_check_branch
    %17 = sbr.rel (%p15) target = $region17
  $region16: #{_lambda_.82} parent=0 // pred_region
    %18 = vst [vmem:[#allocation2] sm:$0xff] 0.0
    %19 = vst [vmem:[#allocation2 + $0x8] sm:$0xff] 0.0
  $region17: #{_lambda_.82} parent=0 // pred_fallthru
    _
  %v20 = vld [vmem:[#allocation2] sm:$0xff]
  %v21 = vld [vmem:[#allocation2 + $0x8] sm:$0xff]
  %v22 = vld [vmem:[%s0] sm:$0xf]
  %v23 = vld [vmem:[%s0 + $0x4] sm:$0xf]
  %v24 = vld [vmem:[%s1] sm:$0xf]
  %v25 = vld [vmem:[%s1 + $0x4] sm:$0xf]
  %v26 = vld [vmem:[%s1 + $0x8] sm:$0xf]
  %v27 = vld [vmem:[%s1 + $0xc] sm:$0xf]
  %v28 = vld [vmem:[%s1 + $0x10] sm:$0xf]
  %v29 = vld [vmem:[%s1 + $0x14] sm:$0xf]
  %v30 = vld [vmem:[%s1 + $0x18] sm:$0xf]
  %v31 = vld [vmem:[%s1 + $0x1c] sm:$0xf]
  %v32 = vld [vmem:[%s1 + $0x20] sm:$0xf]
  %v33 = vld [vmem:[%s1 + $0x24] sm:$0xf]
  %v34 = vld [vmem:[%s1 + $0x28] sm:$0xf]
  %v35 = vld [vmem:[%s1 + $0x2c] sm:$0xf]
  %v36 = vld [vmem:[%s1 + $0x30] sm:$0xf]
  %v37 = vld [vmem:[%s1 + $0x34] sm:$0xf]
  %v38 = vld [vmem:[%s1 + $0x38] sm:$0xf]
  %v39 = vld [vmem:[%s1 + $0x3c] sm:$0xf]
  %v42 = vunpack.c.l.b16 %v22
  %v43 = vunpack.c.l.b16 %v23
  %v44 = vpack.c.b16 %v43, %v42
  %v62 = vunpack.c.l.b16 %v24
  %v63 = vunpack.c.l.b16 %v25
  %v64 = vunpack.c.l.b16 %v26
  %v65 = vunpack.c.l.b16 %v27
  %v66 = vunpack.c.l.b16 %v28
  %v67 = vunpack.c.l.b16 %v29
  %v68 = vunpack.c.l.b16 %v30
  %v69 = vunpack.c.l.b16 %v31
  %v70 = vunpack.c.l.b16 %v32
  %v71 = vunpack.c.l.b16 %v33
  %v72 = vunpack.c.l.b16 %v34
  %v73 = vunpack.c.l.b16 %v35
  %v74 = vunpack.c.l.b16 %v36
  %v75 = vunpack.c.l.b16 %v37
  %v76 = vunpack.c.l.b16 %v38
  %v77 = vunpack.c.l.b16 %v39
  %v78 = vpack.c.b16 %v63, %v62
  %v79 = vpack.c.b16 %v65, %v64
  %v80 = vpack.c.b16 %v67, %v66
  %v81 = vpack.c.b16 %v69, %v68
  %v82 = vpack.c.b16 %v71, %v70
  %v83 = vpack.c.b16 %v73, %v72
  %v84 = vpack.c.b16 %v75, %v74
  %v85 = vpack.c.b16 %v77, %v76
  %94 = vmatpush.bf16.msra.mxu0 %v85
  %95 = vmatpush.bf16.msra.mxu0 %v84
  %96 = vmatpush.bf16.msra.mxu0 %v83
  %97 = vmatpush.bf16.msra.mxu0 %v82
  %98 = vmatpush.bf16.msra.mxu0 %v81
  %99 = vmatpush.bf16.msra.mxu0 %v80
  %100 = vmatpush.bf16.msra.mxu0 %v79
  %101 = vmatpush.bf16.msra.mxu0 %v78
  %102 = vmatmul.bf16.gmra.mxu0 %v44
  %v103 = vpop.f32.mrf.mxu0
  %v104 = vadd.f32 0.0, %v103
  %v105 = vpop.f32.mrf.mxu0
  %v106 = vadd.f32 0.0, %v105
  %107 = vdwg.mxu0
  %v108 = vadd.f32 %v20, %v104
  %v109 = vadd.f32 %v21, %v106
  %110 = vst [vmem:[#allocation2] sm:$0xff] %v108
  %111 = vst [vmem:[#allocation2 + $0x8] sm:$0xff] %v109
  // Predicated region
  $region18: #{_lambda_.82} parent=0 // pred_check
    %p112 = pneg %p14
  $region19: #{_lambda_.82} parent=0 // pred_check_branch
    %114 = sbr.rel (%p112) target = $region21
  $region20: #{_lambda_.82} parent=0 // pred_region
    %v115 = vld [vmem:[#allocation2] sm:$0xff]
    %v116 = vld [vmem:[#allocation2 + $0x8] sm:$0xff]
    %v117 = vld [vmem:[%s2] sm:$0x1]
    %v119 = vperm.slane %v117, 0
    %v121 = vadd.f32 %v115, %v119
    %v122 = vadd.f32 %v116, %v119
    %v123 = vmax.f32 %v121, 0.0
    %v124 = vmax.f32 %v122, 0.0
    %v125 = vpack.c.bf16 %v123, %v123
    %v126 = vpack.c.bf16 %v124, %v124
    %127 = vst [vmem:[%s3] sm:$0xf] %v125
    %128 = vst [vmem:[%s3 + $0x4] sm:$0xf] %v126
  $region21: #{_lambda_.82} parent=0 // pred_fallthru
    _
  // Predicated region
  $region22: #{_lambda_.82} parent=0 // pred_check
    _
  $region23: #{_lambda_.82} parent=0 // pred_check_branch
    %130 = sbr.rel (0) target = $region25
  $region24: #{_lambda_.82} parent=0 // pred_region
    _
  $region25: #{_lambda_.82} parent=0 // pred_fallthru
    _
  // Predicated region
  $region26: #{_lambda_.82} parent=0 // pred_check
    _
  $region27: #{_lambda_.82} parent=0 // pred_check_branch
    %132 = sbr.rel (0) target = $region29
  $region28: #{_lambda_.82} parent=0 // pred_region
    _
  $region29: #{_lambda_.82} parent=0 // pred_fallthru
    _

// kernel: _lambda_.80
$region0: #{_lambda_.80}
  #allocation0 [shape = 'u32[]', space=smem, size = 0x4, offset = 0x4, fixed_abs, tag = 'smem constant byte address 0x4 - core index']
  #allocation1 [shape = 'u32[72,128]{1,0:T(1,128)}', space=vmem, size = 0x9000, scoped, tag = 'internal scratch']
  #allocation2 [shape = 'f32[16,128]{1,0:T(8,128)}', space=vmem, size = 0x2000, scoped, tag = 'scratch operand']
  %s0 = inlined_call_operand.vmem [shape: bf16[16,128], index: 0, kind: input, shape index: {}]
  %s1 = inlined_call_operand.vmem [shape: bf16[128,128], index: 1, kind: input, shape index: {}]
  %s2 = inlined_call_operand.vmem [shape: f32[1,128], index: 2, kind: input, shape index: {}]
  %s3 = inlined_call_operand.vmem [shape: bf16[16,128], index: 3, kind: output, shape index: {}]
  %s4 = sld [smem:[#allocation0]]
  $region30: #{_lambda_.80} parent=0
    _
  %s6 = ssub.s32 1, %s4
  %s7 = scalar_select 0, %s6, %s4
  // Predicated region
  $region2: #{_lambda_.80} parent=0 // pred_check
    _
  $region3: #{_lambda_.80} parent=0 // pred_check_branch
    %9 = sbr.rel (0) target = $region5
  $region4: #{_lambda_.80} parent=0 // pred_region
    _
  $region5: #{_lambda_.80} parent=0 // pred_fallthru
    _
  // Predicated region
  $region6: #{_lambda_.80} parent=0 // pred_check
    _
  $region7: #{_lambda_.80} parent=0 // pred_check_branch
    %11 = sbr.rel (0) target = $region9
  $region8: #{_lambda_.80} parent=0 // pred_region
    _
  $region9: #{_lambda_.80} parent=0 // pred_fallthru
    _
  // Predicated region
  $region10: #{_lambda_.80} parent=0 // pred_check
    _
  $region11: #{_lambda_.80} parent=0 // pred_check_branch
    %13 = sbr.rel (0) target = $region13
  $region12: #{_lambda_.80} parent=0 // pred_region
    _
  $region13: #{_lambda_.80} parent=0 // pred_fallthru
    _
  %p14 = scmp.eq.s32.totalorder 0, 0
  // Predicated region
  $region14: #{_lambda_.80} parent=0 // pred_check
    %p15 = pneg %p14
  $region15: #{_lambda_.80} parent=0 // pred_check_branch
    %17 = sbr.rel (%p15) target = $region17
  $region16: #{_lambda_.80} parent=0 // pred_region
    %18 = vst [vmem:[#allocation2] sm:$0xff] 0.0
    %19 = vst [vmem:[#allocation2 + $0x8] sm:$0xff] 0.0
  $region17: #{_lambda_.80} parent=0 // pred_fallthru
    _
  %v20 = vld [vmem:[#allocation2] sm:$0xff]
  %v21 = vld [vmem:[#allocation2 + $0x8] sm:$0xff]
  %v22 = vld [vmem:[%s0] sm:$0xf]
  %v23 = vld [vmem:[%s0 + $0x4] sm:$0xf]
  %v24 = vld [vmem:[%s1] sm:$0xf]
  %v25 = vld [vmem:[%s1 + $0x4] sm:$0xf]
  %v26 = vld [vmem:[%s1 + $0x8] sm:$0xf]
  %v27 = vld [vmem:[%s1 + $0xc] sm:$0xf]
  %v28 = vld [vmem:[%s1 + $0x10] sm:$0xf]
  %v29 = vld [vmem:[%s1 + $0x14] sm:$0xf]
  %v30 = vld [vmem:[%s1 + $0x18] sm:$0xf]
  %v31 = vld [vmem:[%s1 + $0x1c] sm:$0xf]
  %v32 = vld [vmem:[%s1 + $0x20] sm:$0xf]
  %v33 = vld [vmem:[%s1 + $0x24] sm:$0xf]
  %v34 = vld [vmem:[%s1 + $0x28] sm:$0xf]
  %v35 = vld [vmem:[%s1 + $0x2c] sm:$0xf]
  %v36 = vld [vmem:[%s1 + $0x30] sm:$0xf]
  %v37 = vld [vmem:[%s1 + $0x34] sm:$0xf]
  %v38 = vld [vmem:[%s1 + $0x38] sm:$0xf]
  %v39 = vld [vmem:[%s1 + $0x3c] sm:$0xf]
  %v42 = vunpack.c.l.b16 %v22
  %v43 = vunpack.c.l.b16 %v23
  %v44 = vpack.c.b16 %v43, %v42
  %v62 = vunpack.c.l.b16 %v24
  %v63 = vunpack.c.l.b16 %v25
  %v64 = vunpack.c.l.b16 %v26
  %v65 = vunpack.c.l.b16 %v27
  %v66 = vunpack.c.l.b16 %v28
  %v67 = vunpack.c.l.b16 %v29
  %v68 = vunpack.c.l.b16 %v30
  %v69 = vunpack.c.l.b16 %v31
  %v70 = vunpack.c.l.b16 %v32
  %v71 = vunpack.c.l.b16 %v33
  %v72 = vunpack.c.l.b16 %v34
  %v73 = vunpack.c.l.b16 %v35
  %v74 = vunpack.c.l.b16 %v36
  %v75 = vunpack.c.l.b16 %v37
  %v76 = vunpack.c.l.b16 %v38
  %v77 = vunpack.c.l.b16 %v39
  %v78 = vpack.c.b16 %v63, %v62
  %v79 = vpack.c.b16 %v65, %v64
  %v80 = vpack.c.b16 %v67, %v66
  %v81 = vpack.c.b16 %v69, %v68
  %v82 = vpack.c.b16 %v71, %v70
  %v83 = vpack.c.b16 %v73, %v72
  %v84 = vpack.c.b16 %v75, %v74
  %v85 = vpack.c.b16 %v77, %v76
  %94 = vmatpush.bf16.msra.mxu0 %v85
  %95 = vmatpush.bf16.msra.mxu0 %v84
  %96 = vmatpush.bf16.msra.mxu0 %v83
  %97 = vmatpush.bf16.msra.mxu0 %v82
  %98 = vmatpush.bf16.msra.mxu0 %v81
  %99 = vmatpush.bf16.msra.mxu0 %v80
  %100 = vmatpush.bf16.msra.mxu0 %v79
  %101 = vmatpush.bf16.msra.mxu0 %v78
  %102 = vmatmul.bf16.gmra.mxu0 %v44
  %v103 = vpop.f32.mrf.mxu0
  %v104 = vadd.f32 0.0, %v103
  %v105 = vpop.f32.mrf.mxu0
  %v106 = vadd.f32 0.0, %v105
  %107 = vdwg.mxu0
  %v108 = vadd.f32 %v20, %v104
  %v109 = vadd.f32 %v21, %v106
  %110 = vst [vmem:[#allocation2] sm:$0xff] %v108
  %111 = vst [vmem:[#allocation2 + $0x8] sm:$0xff] %v109
  // Predicated region
  $region18: #{_lambda_.80} parent=0 // pred_check
    %p112 = pneg %p14
  $region19: #{_lambda_.80} parent=0 // pred_check_branch
    %114 = sbr.rel (%p112) target = $region21
  $region20: #{_lambda_.80} parent=0 // pred_region
    %v115 = vld [vmem:[#allocation2] sm:$0xff]
    %v116 = vld [vmem:[#allocation2 + $0x8] sm:$0xff]
    %v117 = vld [vmem:[%s2] sm:$0x1]
    %v119 = vperm.slane %v117, 0
    %v121 = vadd.f32 %v115, %v119
    %v122 = vadd.f32 %v116, %v119
    %v123 = vpack.c.bf16 %v121, %v121
    %v124 = vpack.c.bf16 %v122, %v122
    %125 = vst [vmem:[%s3] sm:$0xf] %v123
    %126 = vst [vmem:[%s3 + $0x4] sm:$0xf] %v124
  $region21: #{_lambda_.80} parent=0 // pred_fallthru
    _
  // Predicated region
  $region22: #{_lambda_.80} parent=0 // pred_check
    _
  $region23: #{_lambda_.80} parent=0 // pred_check_branch
    %128 = sbr.rel (0) target = $region25
  $region24: #{_lambda_.80} parent=0 // pred_region
    _
  $region25: #{_lambda_.80} parent=0 // pred_fallthru
    _
  // Predicated region
  $region26: #{_lambda_.80} parent=0 // pred_check
    _
  $region27: #{_lambda_.80} parent=0 // pred_check_branch
    %130 = sbr.rel (0) target = $region29
  $region28: #{_lambda_.80} parent=0 // pred_region
    _
  $region29: #{_lambda_.80} parent=0 // pred_fallthru
    _

// kernel: _lambda_.99
$region0: #{_lambda_.99}
  #allocation0 [shape = 'u32[]', space=smem, size = 0x4, offset = 0x4, fixed_abs, tag = 'smem constant byte address 0x4 - core index']
  #allocation1 [shape = 'u32[72,128]{1,0:T(1,128)}', space=vmem, size = 0x9000, scoped, tag = 'internal scratch']
  #allocation2 [shape = 'f32[16,256]{1,0:T(8,128)}', space=vmem, size = 0x4000, scoped, tag = 'scratch operand']
  %s0 = inlined_call_operand.vmem [shape: bf16[16,128], index: 0, kind: input, shape index: {}]
  %s1 = inlined_call_operand.vmem [shape: bf16[128,256], index: 1, kind: input, shape index: {}]
  %s2 = inlined_call_operand.vmem [shape: f32[1,256], index: 2, kind: input, shape index: {}]
  %s3 = inlined_call_operand.vmem [shape: bf16[16,256], index: 3, kind: output, shape index: {}]
  %s4 = sld [smem:[#allocation0]]
  $region30: #{_lambda_.99} parent=0
    _
  %s6 = ssub.s32 1, %s4
  %s7 = scalar_select 0, %s6, %s4
  // Predicated region
  $region2: #{_lambda_.99} parent=0 // pred_check
    _
  $region3: #{_lambda_.99} parent=0 // pred_check_branch
    %9 = sbr.rel (0) target = $region5
  $region4: #{_lambda_.99} parent=0 // pred_region
    _
  $region5: #{_lambda_.99} parent=0 // pred_fallthru
    _
  // Predicated region
  $region6: #{_lambda_.99} parent=0 // pred_check
    _
  $region7: #{_lambda_.99} parent=0 // pred_check_branch
    %11 = sbr.rel (0) target = $region9
  $region8: #{_lambda_.99} parent=0 // pred_region
    _
  $region9: #{_lambda_.99} parent=0 // pred_fallthru
    _
  // Predicated region
  $region10: #{_lambda_.99} parent=0 // pred_check
    _
  $region11: #{_lambda_.99} parent=0 // pred_check_branch
    %13 = sbr.rel (0) target = $region13
  $region12: #{_lambda_.99} parent=0 // pred_region
    _
  $region13: #{_lambda_.99} parent=0 // pred_fallthru
    _
  %p14 = scmp.eq.s32.totalorder 0, 0
  // Predicated region
  $region14: #{_lambda_.99} parent=0 // pred_check
    %p15 = pneg %p14
  $region15: #{_lambda_.99} parent=0 // pred_check_branch
    %17 = sbr.rel (%p15) target = $region17
  $region16: #{_lambda_.99} parent=0 // pred_region
    %18 = vst [vmem:[#allocation2] sm:$0xff] 0.0
    %19 = vst [vmem:[#allocation2 + $0x8] sm:$0xff] 0.0
    %20 = vst [vmem:[#allocation2 + $0x10] sm:$0xff] 0.0
    %21 = vst [vmem:[#allocation2 + $0x18] sm:$0xff] 0.0
  $region17: #{_lambda_.99} parent=0 // pred_fallthru
    _
  %v22 = vld [vmem:[#allocation2] sm:$0xff]
  %v23 = vld [vmem:[#allocation2 + $0x8] sm:$0xff]
  %v24 = vld [vmem:[#allocation2 + $0x10] sm:$0xff]
  %v25 = vld [vmem:[#allocation2 + $0x18] sm:$0xff]
  %v26 = vld [vmem:[%s0] sm:$0xf]
  %v27 = vld [vmem:[%s0 + $0x4] sm:$0xf]
  %v28 = vld [vmem:[%s1] sm:$0xff]
  %v29 = vld [vmem:[%s1 + $0x8] sm:$0xff]
  %v30 = vld [vmem:[%s1 + $0x10] sm:$0xff]
  %v31 = vld [vmem:[%s1 + $0x18] sm:$0xff]
  %v32 = vld [vmem:[%s1 + $0x20] sm:$0xff]
  %v33 = vld [vmem:[%s1 + $0x28] sm:$0xff]
  %v34 = vld [vmem:[%s1 + $0x30] sm:$0xff]
  %v35 = vld [vmem:[%s1 + $0x38] sm:$0xff]
  %v36 = vld [vmem:[%s1 + $0x40] sm:$0xff]
  %v37 = vld [vmem:[%s1 + $0x48] sm:$0xff]
  %v38 = vld [vmem:[%s1 + $0x50] sm:$0xff]
  %v39 = vld [vmem:[%s1 + $0x58] sm:$0xff]
  %v40 = vld [vmem:[%s1 + $0x60] sm:$0xff]
  %v41 = vld [vmem:[%s1 + $0x68] sm:$0xff]
  %v42 = vld [vmem:[%s1 + $0x70] sm:$0xff]
  %v43 = vld [vmem:[%s1 + $0x78] sm:$0xff]
  %v46 = vunpack.c.l.b16 %v26
  %v47 = vunpack.c.l.b16 %v27
  %v48 = vpack.c.b16 %v47, %v46
  %v66 = vunpack.c.l.b16 %v28
  %v67 = vunpack.c.h.b16 %v28
  %v68 = vunpack.c.l.b16 %v29
  %v69 = vunpack.c.h.b16 %v29
  %v70 = vunpack.c.l.b16 %v30
  %v71 = vunpack.c.h.b16 %v30
  %v72 = vunpack.c.l.b16 %v31
  %v73 = vunpack.c.h.b16 %v31
  %v74 = vunpack.c.l.b16 %v32
  %v75 = vunpack.c.h.b16 %v32
  %v76 = vunpack.c.l.b16 %v33
  %v77 = vunpack.c.h.b16 %v33
  %v78 = vunpack.c.l.b16 %v34
  %v79 = vunpack.c.h.b16 %v34
  %v80 = vunpack.c.l.b16 %v35
  %v81 = vunpack.c.h.b16 %v35
  %v82 = vunpack.c.l.b16 %v36
  %v83 = vunpack.c.h.b16 %v36
  %v84 = vunpack.c.l.b16 %v37
  %v85 = vunpack.c.h.b16 %v37
  %v86 = vunpack.c.l.b16 %v38
  %v87 = vunpack.c.h.b16 %v38
  %v88 = vunpack.c.l.b16 %v39
  %v89 = vunpack.c.h.b16 %v39
  %v90 = vunpack.c.l.b16 %v40
  %v91 = vunpack.c.h.b16 %v40
  %v92 = vunpack.c.l.b16 %v41
  %v93 = vunpack.c.h.b16 %v41
  %v94 = vunpack.c.l.b16 %v42
  %v95 = vunpack.c.h.b16 %v42
  %v96 = vunpack.c.l.b16 %v43
  %v97 = vunpack.c.h.b16 %v43
  %v98 = vpack.c.b16 %v68, %v66
  %v99 = vpack.c.b16 %v69, %v67
  %v100 = vpack.c.b16 %v72, %v70
  %v101 = vpack.c.b16 %v73, %v71
  %v102 = vpack.c.b16 %v76, %v74
  %v103 = vpack.c.b16 %v77, %v75
  %v104 = vpack.c.b16 %v80, %v78
  %v105 = vpack.c.b16 %v81, %v79
  %v106 = vpack.c.b16 %v84, %v82
  %v107 = vpack.c.b16 %v85, %v83
  %v108 = vpack.c.b16 %v88, %v86
  %v109 = vpack.c.b16 %v89, %v87
  %v110 = vpack.c.b16 %v92, %v90
  %v111 = vpack.c.b16 %v93, %v91
  %v112 = vpack.c.b16 %v96, %v94
  %v113 = vpack.c.b16 %v97, %v95
  %130 = vmatpush.bf16.msra.mxu0 %v112
  %131 = vmatpush.bf16.msra.mxu0 %v110
  %132 = vmatpush.bf16.msra.mxu0 %v108
  %133 = vmatpush.bf16.msra.mxu0 %v106
  %134 = vmatpush.bf16.msra.mxu0 %v104
  %135 = vmatpush.bf16.msra.mxu0 %v102
  %136 = vmatpush.bf16.msra.mxu0 %v100
  %137 = vmatpush.bf16.msra.mxu0 %v98
  %138 = vmatmul.bf16.gmra.mxu0 %v48
  %v139 = vpop.f32.mrf.mxu0
  %v140 = vadd.f32 0.0, %v139
  %v141 = vpop.f32.mrf.mxu0
  %v142 = vadd.f32 0.0, %v141
  %143 = vdwg.mxu0
  %144 = vmatpush.bf16.msra.mxu0 %v113
  %145 = vmatpush.bf16.msra.mxu0 %v111
  %146 = vmatpush.bf16.msra.mxu0 %v109
  %147 = vmatpush.bf16.msra.mxu0 %v107
  %148 = vmatpush.bf16.msra.mxu0 %v105
  %149 = vmatpush.bf16.msra.mxu0 %v103
  %150 = vmatpush.bf16.msra.mxu0 %v101
  %151 = vmatpush.bf16.msra.mxu0 %v99
  %152 = vmatmul.bf16.gmra.mxu0 %v48
  %v153 = vpop.f32.mrf.mxu0
  %v154 = vadd.f32 0.0, %v153
  %v155 = vpop.f32.mrf.mxu0
  %v156 = vadd.f32 0.0, %v155
  %157 = vdwg.mxu0
  %v158 = vadd.f32 %v22, %v140
  %v159 = vadd.f32 %v23, %v154
  %v160 = vadd.f32 %v24, %v142
  %v161 = vadd.f32 %v25, %v156
  %162 = vst [vmem:[#allocation2] sm:$0xff] %v158
  %163 = vst [vmem:[#allocation2 + $0x8] sm:$0xff] %v159
  %164 = vst [vmem:[#allocation2 + $0x10] sm:$0xff] %v160
  %165 = vst [vmem:[#allocation2 + $0x18] sm:$0xff] %v161
  // Predicated region
  $region18: #{_lambda_.99} parent=0 // pred_check
    %p166 = pneg %p14
  $region19: #{_lambda_.99} parent=0 // pred_check_branch
    %168 = sbr.rel (%p166) target = $region21
  $region20: #{_lambda_.99} parent=0 // pred_region
    %v169 = vld [vmem:[#allocation2] sm:$0xff]
    %v170 = vld [vmem:[#allocation2 + $0x8] sm:$0xff]
    %v171 = vld [vmem:[#allocation2 + $0x10] sm:$0xff]
    %v172 = vld [vmem:[#allocation2 + $0x18] sm:$0xff]
    %v173 = vld [vmem:[%s2] sm:$0x3]
    %v175 = vperm.slane %v173, 0
    %v176 = vperm.slane %v173, 1
    %v179 = vadd.f32 %v169, %v175
    %v180 = vadd.f32 %v170, %v176
    %v181 = vadd.f32 %v171, %v175
    %v182 = vadd.f32 %v172, %v176
    %v183 = vpack.c.bf16 %v180, %v179
    %v184 = vpack.c.bf16 %v182, %v181
    %185 = vst [vmem:[%s3] sm:$0xff] %v183
    %186 = vst [vmem:[%s3 + $0x8] sm:$0xff] %v184
  $region21: #{_lambda_.99} parent=0 // pred_fallthru
    _
  // Predicated region
  $region22: #{_lambda_.99} parent=0 // pred_check
    _
  $region23: #{_lambda_.99} parent=0 // pred_check_branch
    %188 = sbr.rel (0) target = $region25
  $region24: #{_lambda_.99} parent=0 // pred_region
    _
  $region25: #{_lambda_.99} parent=0 // pred_fallthru
    _
  // Predicated region
  $region26: #{_lambda_.99} parent=0 // pred_check
    _
  $region27: #{_lambda_.99} parent=0 // pred_check_branch
    %190 = sbr.rel (0) target = $region29
  $region28: #{_lambda_.99} parent=0 // pred_region
    _
  $region29: #{_lambda_.99} parent=0 // pred_fallthru
    _

// kernel: _lambda_.98
$region0: #{_lambda_.98}
  #allocation0 [shape = 'u32[]', space=smem, size = 0x4, offset = 0x4, fixed_abs, tag = 'smem constant byte address 0x4 - core index']
  #allocation1 [shape = 'u32[72,128]{1,0:T(1,128)}', space=vmem, size = 0x9000, scoped, tag = 'internal scratch']
  #allocation2 [shape = 'f32[16,128]{1,0:T(8,128)}', space=vmem, size = 0x2000, scoped, tag = 'scratch operand']
  %s0 = inlined_call_operand.vmem [shape: bf16[16,1024], index: 0, kind: input, shape index: {}]
  %s1 = inlined_call_operand.vmem [shape: bf16[1024,128], index: 1, kind: input, shape index: {}]
  %s2 = inlined_call_operand.vmem [shape: f32[1,128], index: 2, kind: input, shape index: {}]
  %s3 = inlined_call_operand.vmem [shape: bf16[16,128], index: 3, kind: output, shape index: {}]
  %s4 = sld [smem:[#allocation0]]
  $region76: #{_lambda_.98} parent=0
    _
  %s6 = ssub.s32 1, %s4
  %s7 = scalar_select 0, %s6, %s4
  $region1: #{_lambda_.98} parent=0
    #allocation3 [shape = 'u8[32768]{0}', space=vmem, size = 0x8000, scoped, tag = 'input window, operand 0']
    loop: start=0, step=1, limit=4
    $region2: #{_lambda_.98} parent=1 // loop_pre_header
      _
    $region3: #{_lambda_.98} parent=1 // loop_header
      %s9 = sphi 0, %s13
      %p10 = scmp.ge.s32.totalorder %s9, 4
      %s16 = sphi 0, %s35
      %s17 = sphi 0, %s31
      %s18 = sphi 0, %s27
      %s19 = sphi 0, %s16
      %s20 = sphi 0, %s17
      %s21 = sphi 0, %s18
      %s22 = sphi 0, %s19
      %s23 = sphi 0, %s20
      %s24 = sphi 0, %s21
      %s40 = sphi 0, %s42
      %s43 = sphi 0, %s40
      %s44 = sphi 0, %s43
      %s60 = sphi 0, %s44
      %s68 = sphi 0, %s70
      %s71 = sphi 0, %s68
      %s72 = sphi 0, %s71
      %s88 = sphi 0, %s72
      %s94 = sphi 0, %s96
      %s97 = sphi 0, %s94
      %s98 = sphi 0, %s97
      %s114 = sphi 0, %s98
      %s122 = sphi 0, %s124
      %s125 = sphi 0, %s122
      %s126 = sphi 0, %s125
      %s142 = sphi 0, %s126
    $region4: #{_lambda_.98} parent=1 // loop_header_branch
      %12 = sbr.rel (%p10) target = $region8
    $region5: #{_lambda_.98} parent=1 // loop_body
      %s14 = ssub.s32 %s9, 1
      %s15 = ssub.s32 %s9, 2
      %s25 = sadd.s32 1, %s18
      %p26 = scmp.ge.s32.totalorder %s25, 2
      %s27 = scalar_select %p26, 0, %s25
      %s28 = sadd.s32 1, %s17
      %s29 = scalar_select %p26, %s28, %s17
      %p30 = scmp.ge.s32.totalorder %s29, 1
      %s31 = scalar_select %p30, 0, %s29
      %s32 = sadd.s32 1, %s16
      %s33 = scalar_select %p30, %s32, %s16
      %p34 = scmp.ge.s32.totalorder %s33, 1
      %s35 = scalar_select %p34, 0, %s33
      %s36 = ssub.s32 %s16, %s35
      %s37 = ssub.s32 %s18, %s27
      %s38 = sor.u32 %s36, %s37
      %p39 = scmp.eq.s32.totalorder %s38, 0
      %s41 = sadd.s32 %s40, 1
      %s42 = scalar_select %p39, %s40, %s41
      %p45 = pneg %p39
      %p46 = scmp.eq.s32.totalorder %s9, 1
      %p47 = por %p45, %p46
      %p48 = scmp.ne.s32.totalorder %s40, %s43
      %p49 = scmp.eq.s32.totalorder %s9, 0
      %p50 = por %p48, %p49
      %p51 = scmp.ne.s32.totalorder %s40, %s43
      %p52 = scmp.eq.s32.totalorder %s14, 1
      %p53 = por %p51, %p52
      %p54 = scmp.ne.s32.totalorder %s43, %s44
      %p55 = scmp.eq.s32.totalorder %s14, 0
      %p56 = por %p54, %p55
      %p57 = scmp.ne.s32.totalorder %s43, %s44
      %p58 = scmp.eq.s32.totalorder %s15, 1
      %p59 = por %p57, %p58
      %p61 = scmp.ne.s32.totalorder %s44, %s60
      %p62 = scmp.eq.s32.totalorder %s15, 0
      %p63 = por %p61, %p62
      %s64 = ssub.s32 %s18, %s27
      %s65 = ssub.s32 %s17, %s31
      %s66 = sor.u32 %s64, %s65
      %p67 = scmp.eq.s32.totalorder %s66, 0
      %s69 = sadd.s32 %s68, 1
      %s70 = scalar_select %p67, %s68, %s69
      %p73 = pneg %p67
      %p74 = scmp.eq.s32.totalorder %s9, 1
      %p75 = por %p73, %p74
      %p76 = scmp.ne.s32.totalorder %s68, %s71
      %p77 = scmp.eq.s32.totalorder %s9, 0
      %p78 = por %p76, %p77
      %p79 = scmp.ne.s32.totalorder %s68, %s71
      %p80 = scmp.eq.s32.totalorder %s14, 1
      %p81 = por %p79, %p80
      %p82 = scmp.ne.s32.totalorder %s71, %s72
      %p83 = scmp.eq.s32.totalorder %s14, 0
      %p84 = por %p82, %p83
      %p85 = scmp.ne.s32.totalorder %s71, %s72
      %p86 = scmp.eq.s32.totalorder %s15, 1
      %p87 = por %p85, %p86
      %p89 = scmp.ne.s32.totalorder %s72, %s88
      %p90 = scmp.eq.s32.totalorder %s15, 0
      %p91 = por %p89, %p90
      %s92 = ssub.s32 %s17, %s31
      %p93 = scmp.eq.s32.totalorder %s92, 0
      %s95 = sadd.s32 %s94, 1
      %s96 = scalar_select %p93, %s94, %s95
      %p99 = pneg %p93
      %p100 = scmp.eq.s32.totalorder %s9, 1
      %p101 = por %p99, %p100
      %p102 = scmp.ne.s32.totalorder %s94, %s97
      %p103 = scmp.eq.s32.totalorder %s9, 0
      %p104 = por %p102, %p103
      %p105 = scmp.ne.s32.totalorder %s94, %s97
      %p106 = scmp.eq.s32.totalorder %s14, 1
      %p107 = por %p105, %p106
      %p108 = scmp.ne.s32.totalorder %s97, %s98
      %p109 = scmp.eq.s32.totalorder %s14, 0
      %p110 = por %p108, %p109
      %p111 = scmp.ne.s32.totalorder %s97, %s98
      %p112 = scmp.eq.s32.totalorder %s15, 1
      %p113 = por %p111, %p112
      %p115 = scmp.ne.s32.totalorder %s98, %s114
      %p116 = scmp.eq.s32.totalorder %s15, 0
      %p117 = por %p115, %p116
      %s118 = ssub.s32 %s16, %s35
      %s119 = ssub.s32 %s17, %s31
      %s120 = sor.u32 %s118, %s119
      %p121 = scmp.eq.s32.totalorder %s120, 0
      %s123 = sadd.s32 %s122, 1
      %s124 = scalar_select %p121, %s122, %s123
      %p127 = pneg %p121
      %p128 = scmp.eq.s32.totalorder %s9, 1
      %p129 = por %p127, %p128
      %p130 = scmp.ne.s32.totalorder %s122, %s125
      %p131 = scmp.eq.s32.totalorder %s9, 0
      %p132 = por %p130, %p131
      %p133 = scmp.ne.s32.totalorder %s122, %s125
      %p134 = scmp.eq.s32.totalorder %s14, 1
      %p135 = por %p133, %p134
      %p136 = scmp.ne.s32.totalorder %s125, %s126
      %p137 = scmp.eq.s32.totalorder %s14, 0
      %p138 = por %p136, %p137
      %p139 = scmp.ne.s32.totalorder %s125, %s126
      %p140 = scmp.eq.s32.totalorder %s15, 1
      %p141 = por %p139, %p140
      %p143 = scmp.ne.s32.totalorder %s126, %s142
      %p144 = scmp.eq.s32.totalorder %s15, 0
      %p145 = por %p143, %p144
      %p146 = scmp.le.s32.totalorder 1, %s9
      %p147 = scmp.lt.s32.totalorder %s9, 3
      %p148 = pnand %p146, %p147
      %p149 = pneg %p148
      // Predicated region
      $region9: #{_lambda_.98} parent=5 // pred_check
        _
      $region10: #{_lambda_.98} parent=5 // pred_check_branch
        %151 = sbr.rel (%p148) target = $region12
      $region11: #{_lambda_.98} parent=5 // pred_region
        %s152 = ssub.s32 %s9, 1
        // Predicated region
        $region13: #{_lambda_.98} parent=11 // pred_check
          %p153 = pneg %p110
        $region14: #{_lambda_.98} parent=11 // pred_check_branch
          %155 = sbr.rel (%p153) target = $region16
        $region15: #{_lambda_.98} parent=11 // pred_region
          %p156 = scmp.lt.s32.totalorder %s20, 0
          %s157 = scalar_select %p156, %s20, 0
          %s158 = scalar_lea.vmem %s2, %s157
        $region16: #{_lambda_.98} parent=11 // pred_fallthru
          _
      $region12: #{_lambda_.98} parent=5 // pred_fallthru
        _
      %p159 = scmp.lt.s32.totalorder %s9, 2
      // Predicated region
      $region17: #{_lambda_.98} parent=5 // pred_check
        %p160 = pneg %p159
      $region18: #{_lambda_.98} parent=5 // pred_check_branch
        %162 = sbr.rel (%p160) target = $region20
      $region19: #{_lambda_.98} parent=5 // pred_region
        // Predicated region
        $region21: #{_lambda_.98} parent=19 // pred_check
          %p163 = pneg %p50
        $region22: #{_lambda_.98} parent=19 // pred_check_branch
          %165 = sbr.rel (%p163) target = $region24
        $region23: #{_lambda_.98} parent=19 // pred_region
          %s166 = sand.u32 %s40, 1
          %s167 = sand.u32 %s40, 1
          %s168 = smul.addr %s167, 32
          %s169 = scalar_lea.vmem [#allocation3], %s168
          %s170 = smul.u32 2, %s16
          %s171 = smul.u32 4, %s18
          %s172 = smul.addr %s170, 8
          %s173 = sadd.s32 %s171, %s172
          %s174 = smul.addr %s173, 4
          %s175 = scalar_lea.vmem %s0, %s174
          // Predicated region
          $region25: #{_lambda_.98} parent=23 // pred_check
            _
          $region26: #{_lambda_.98} parent=23 // pred_check_branch
            %177 = sbr.rel (0) target = $region28
          $region27: #{_lambda_.98} parent=23 // pred_region
            // Predicated region
            $region29: #{_lambda_.98} parent=27 // pred_check
              _
            $region30: #{_lambda_.98} parent=27 // pred_check_branch
              %179 = sbr.rel (0) target = $region32
            $region31: #{_lambda_.98} parent=27 // pred_region
              loop: start=0, step=1, limit=1
              $region33: #{_lambda_.98} parent=31 // loop_pre_header
                _
              $region34: #{_lambda_.98} parent=31 // loop_header
                %s181 = sphi 0, %s185
                %p182 = scmp.ge.s32.totalorder %s181, 1
                %s186 = sphi %s175, %s175
                %s187 = sphi %s169, %s169
              $region35: #{_lambda_.98} parent=31 // loop_header_branch
                %184 = sbr.rel (%p182) target = $region39
              $region36: #{_lambda_.98} parent=31 // loop_body
                %v188 = vld [vmem:[%s186] sm:$0xff]
                %189 = vst [vmem:[%s187] sm:$0xff] %v188
                %v190 = vld [vmem:[%s186 + $0x8] sm:$0xff]
                %191 = vst [vmem:[%s187 + $0x8] sm:$0xff] %v190
                %v192 = vld [vmem:[%s186 + $0x20] sm:$0xff]
                %193 = vst [vmem:[%s187 + $0x10] sm:$0xff] %v192
                %v194 = vld [vmem:[%s186 + $0x28] sm:$0xff]
                %195 = vst [vmem:[%s187 + $0x18] sm:$0xff] %v194
              $region37: #{_lambda_.98} parent=31 // loop_footer
                %s185 = sadd.s32 1, %s181
              $region38: #{_lambda_.98} parent=31 // loop_footer_branch
                %180 = sbr.rel target = $region34
              $region39: #{_lambda_.98} parent=31 // loop_exit
                _
            $region32: #{_lambda_.98} parent=27 // pred_fallthru
              _
            // Predicated region
            $region40: #{_lambda_.98} parent=27 // pred_check
              _
            $region41: #{_lambda_.98} parent=27 // pred_check_branch
              %197 = sbr.rel target = $region43
            $region42: #{_lambda_.98} parent=27 // pred_region
              _
            $region43: #{_lambda_.98} parent=27 // pred_fallthru
              _
          $region28: #{_lambda_.98} parent=23 // pred_fallthru
            _
          %198 = vnop
        $region24: #{_lambda_.98} parent=19 // pred_fallthru
          _
        // Predicated region
        $region44: #{_lambda_.98} parent=19 // pred_check
          %p199 = pneg %p78
        $region45: #{_lambda_.98} parent=19 // pred_check_branch
          %201 = sbr.rel (%p199) target = $region47
        $region46: #{_lambda_.98} parent=19 // pred_region
          %s202 = smul.u32 64, %s18
          %p203 = scmp.lt.s32.totalorder %s202, 127
          %s204 = scalar_select %p203, %s202, 127
          %p205 = scmp.lt.s32.totalorder %s17, 0
          %s206 = scalar_select %p205, %s17, 0
          %s207 = sadd.s32 %s206, %s204
          %s208 = smul.addr %s207, 4
          %s209 = scalar_lea.vmem %s1, %s208
          %s210 = smul.u32 64, %s18
        $region47: #{_lambda_.98} parent=19 // pred_fallthru
          _
      $region20: #{_lambda_.98} parent=5 // pred_fallthru
        _
      %p211 = scmp.le.s32.totalorder 1, %s9
      %p212 = scmp.lt.s32.totalorder %s9, 3
      %p213 = pnand %p211, %p212
      %p214 = pneg %p213
      // Predicated region
      $region48: #{_lambda_.98} parent=5 // pred_check
        _
      $region49: #{_lambda_.98} parent=5 // pred_check_branch
        %216 = sbr.rel (%p213) target = $region51
      $region50: #{_lambda_.98} parent=5 // pred_region
        %s217 = ssub.s32 %s9, 1
        %s218 = sand.u32 %s43, 1
        %s219 = sand.u32 %s43, 1
        %s220 = smul.addr %s219, 32
        %s221 = scalar_lea.vmem [#allocation3], %s220
        // Predicated region
        $region52: #{_lambda_.98} parent=50 // pred_check
          %p222 = pneg %p56
        $region53: #{_lambda_.98} parent=50 // pred_check_branch
          %224 = sbr.rel (%p222) target = $region55
        $region54: #{_lambda_.98} parent=50 // pred_region
          _
        $region55: #{_lambda_.98} parent=50 // pred_fallthru
          _
        %s225 = sand.u32 %s43, 1
        %s226 = sand.u32 %s43, 1
        %s227 = smul.addr %s226, 32
        %s228 = scalar_lea.vmem [#allocation3], %s227
        %p229 = pneg %p56
        %p230 = pneg %p53
        %s231 = smul.u32 64, %s21
        %p232 = scmp.lt.s32.totalorder %s231, 127
        %s233 = scalar_select %p232, %s231, 127
        %p234 = scmp.lt.s32.totalorder %s20, 0
        %s235 = scalar_select %p234, %s20, 0
        %s236 = sadd.s32 %s235, %s233
        %s237 = smul.addr %s236, 4
        %s238 = scalar_lea.vmem %s1, %s237
        %p239 = pneg %p84
        %p240 = pneg %p81
        %p241 = scmp.lt.s32.totalorder %s20, 0
        %s242 = scalar_select %p241, %s20, 0
        %s243 = scalar_lea.vmem %s2, %s242
        %p244 = pneg %p110
        %p245 = pneg %p107
        %p246 = pneg %p138
        %p247 = pneg %p135
        %s248 = smul.u32 2, %s19
        %p249 = scmp.lt.s32.totalorder %s248, 1
        %s250 = scalar_select %p249, %s248, 1
        %p251 = scmp.lt.s32.totalorder %s20, 0
        %s252 = scalar_select %p251, %s20, 0
        %s253 = sadd.s32 %s252, %s250
        %s254 = smul.addr %s253, 4
        %s255 = scalar_lea.vmem %s3, %s254
        %s256 = smul.u32 2, %s19
        %s257 = smul.u32 4, %s21
        %s258 = smul.u32 64, %s21
        %p259 = scmp.lt.s32.totalorder %s258, 127
        %s260 = scalar_select %p259, %s258, 127
        %p261 = scmp.lt.s32.totalorder %s20, 0
        %s262 = scalar_select %p261, %s20, 0
        %s263 = sadd.s32 %s262, %s260
        %s264 = smul.addr %s263, 4
        %s265 = scalar_lea.vmem %s1, %s264
        %s266 = smul.u32 64, %s21
        %p267 = scmp.lt.s32.totalorder %s20, 0
        %s268 = scalar_select %p267, %s20, 0
        %s269 = scalar_lea.vmem %s2, %s268
        %s270 = smul.u32 2, %s19
        %p271 = scmp.lt.s32.totalorder %s270, 1
        %s272 = scalar_select %p271, %s270, 1
        %p273 = scmp.lt.s32.totalorder %s20, 0
        %s274 = scalar_select %p273, %s20, 0
        %s275 = sadd.s32 %s274, %s272
        %s276 = smul.addr %s275, 4
        %s277 = scalar_lea.vmem %s3, %s276
        %s278 = smul.u32 2, %s19
        %p279 = scmp.eq.s32.totalorder %s21, 0
        // Predicated region
        $region56: #{_lambda_.98} parent=50 // pred_check
          %p280 = pneg %p279
        $region57: #{_lambda_.98} parent=50 // pred_check_branch
          %282 = sbr.rel (%p280) target = $region59
        $region58: #{_lambda_.98} parent=50 // pred_region
          %283 = vst [vmem:[#allocation2] sm:$0xff] 0.0
          %284 = vst [vmem:[#allocation2 + $0x8] sm:$0xff] 0.0
        $region59: #{_lambda_.98} parent=50 // pred_fallthru
          _
        %v285 = vld [vmem:[#allocation2] sm:$0xff]
        %v286 = vld [vmem:[#allocation2 + $0x8] sm:$0xff]
        %v287 = vld [vmem:[%s221] sm:$0xff]
        %v288 = vld [vmem:[%s221 + $0x8] sm:$0xff]
        %v289 = vld [vmem:[%s221 + $0x10] sm:$0xff]
        %v290 = vld [vmem:[%s221 + $0x18] sm:$0xff]
        %v291 = vld [vmem:[%s265] sm:$0xf]
        %v292 = vld [vmem:[%s265 + $0x4] sm:$0xf]
        %v293 = vld [vmem:[%s265 + $0x8] sm:$0xf]
        %v294 = vld [vmem:[%s265 + $0xc] sm:$0xf]
        %v295 = vld [vmem:[%s265 + $0x10] sm:$0xf]
        %v296 = vld [vmem:[%s265 + $0x14] sm:$0xf]
        %v297 = vld [vmem:[%s265 + $0x18] sm:$0xf]
        %v298 = vld [vmem:[%s265 + $0x1c] sm:$0xf]
        %v299 = vld [vmem:[%s265 + $0x20] sm:$0xf]
        %v300 = vld [vmem:[%s265 + $0x24] sm:$0xf]
        %v301 = vld [vmem:[%s265 + $0x28] sm:$0xf]
        %v302 = vld [vmem:[%s265 + $0x2c] sm:$0xf]
        %v303 = vld [vmem:[%s265 + $0x30] sm:$0xf]
        %v304 = vld [vmem:[%s265 + $0x34] sm:$0xf]
        %v305 = vld [vmem:[%s265 + $0x38] sm:$0xf]
        %v306 = vld [vmem:[%s265 + $0x3c] sm:$0xf]
        %v307 = vld [vmem:[%s265 + $0x40] sm:$0xf]
        %v308 = vld [vmem:[%s265 + $0x44] sm:$0xf]
        %v309 = vld [vmem:[%s265 + $0x48] sm:$0xf]
        %v310 = vld [vmem:[%s265 + $0x4c] sm:$0xf]
        %v311 = vld [vmem:[%s265 + $0x50] sm:$0xf]
        %v312 = vld [vmem:[%s265 + $0x54] sm:$0xf]
        %v313 = vld [vmem:[%s265 + $0x58] sm:$0xf]
        %v314 = vld [vmem:[%s265 + $0x5c] sm:$0xf]
        %v315 = vld [vmem:[%s265 + $0x60] sm:$0xf]
        %v316 = vld [vmem:[%s265 + $0x64] sm:$0xf]
        %v317 = vld [vmem:[%s265 + $0x68] sm:$0xf]
        %v318 = vld [vmem:[%s265 + $0x6c] sm:$0xf]
        %v319 = vld [vmem:[%s265 + $0x70] sm:$0xf]
        %v320 = vld [vmem:[%s265 + $0x74] sm:$0xf]
        %v321 = vld [vmem:[%s265 + $0x78] sm:$0xf]
        %v322 = vld [vmem:[%s265 + $0x7c] sm:$0xf]
        %v323 = vld [vmem:[%s265 + $0x80] sm:$0xf]
        %v324 = vld [vmem:[%s265 + $0x84] sm:$0xf]
        %v325 = vld [vmem:[%s265 + $0x88] sm:$0xf]
        %v326 = vld [vmem:[%s265 + $0x8c] sm:$0xf]
        %v327 = vld [vmem:[%s265 + $0x90] sm:$0xf]
        %v328 = vld [vmem:[%s265 + $0x94] sm:$0xf]
        %v329 = vld [vmem:[%s265 + $0x98] sm:$0xf]
        %v330 = vld [vmem:[%s265 + $0x9c] sm:$0xf]
        %v331 = vld [vmem:[%s265 + $0xa0] sm:$0xf]
        %v332 = vld [vmem:[%s265 + $0xa4] sm:$0xf]
        %v333 = vld [vmem:[%s265 + $0xa8] sm:$0xf]
        %v334 = vld [vmem:[%s265 + $0xac] sm:$0xf]
        %v335 = vld [vmem:[%s265 + $0xb0] sm:$0xf]
        %v336 = vld [vmem:[%s265 + $0xb4] sm:$0xf]
        %v337 = vld [vmem:[%s265 + $0xb8] sm:$0xf]
        %v338 = vld [vmem:[%s265 + $0xbc] sm:$0xf]
        %v339 = vld [vmem:[%s265 + $0xc0] sm:$0xf]
        %v340 = vld [vmem:[%s265 + $0xc4] sm:$0xf]
        %v341 = vld [vmem:[%s265 + $0xc8] sm:$0xf]
        %v342 = vld [vmem:[%s265 + $0xcc] sm:$0xf]
        %v343 = vld [vmem:[%s265 + $0xd0] sm:$0xf]
        %v344 = vld [vmem:[%s265 + $0xd4] sm:$0xf]
        %v345 = vld [vmem:[%s265 + $0xd8] sm:$0xf]
        %v346 = vld [vmem:[%s265 + $0xdc] sm:$0xf]
        %v347 = vld [vmem:[%s265 + $0xe0] sm:$0xf]
        %v348 = vld [vmem:[%s265 + $0xe4] sm:$0xf]
        %v349 = vld [vmem:[%s265 + $0xe8] sm:$0xf]
        %v350 = vld [vmem:[%s265 + $0xec] sm:$0xf]
        %v351 = vld [vmem:[%s265 + $0xf0] sm:$0xf]
        %v352 = vld [vmem:[%s265 + $0xf4] sm:$0xf]
        %v353 = vld [vmem:[%s265 + $0xf8] sm:$0xf]
        %v354 = vld [vmem:[%s265 + $0xfc] sm:$0xf]
        %v359 = vunpack.c.l.b16 %v287
        %v360 = vunpack.c.h.b16 %v287
        %v361 = vunpack.c.l.b16 %v288
        %v362 = vunpack.c.h.b16 %v288
        %v363 = vunpack.c.l.b16 %v289
        %v364 = vunpack.c.h.b16 %v289
        %v365 = vunpack.c.l.b16 %v290
        %v366 = vunpack.c.h.b16 %v290
        %v367 = vpack.c.b16 %v363, %v359
        %v368 = vpack.c.b16 %v364, %v360
        %v369 = vpack.c.b16 %v365, %v361
        %v370 = vpack.c.b16 %v366, %v362
        %v439 = vunpack.c.l.b16 %v291
        %v440 = vunpack.c.l.b16 %v292
        %v441 = vunpack.c.l.b16 %v293
        %v442 = vunpack.c.l.b16 %v294
        %v443 = vunpack.c.l.b16 %v295
        %v444 = vunpack.c.l.b16 %v296
        %v445 = vunpack.c.l.b16 %v297
        %v446 = vunpack.c.l.b16 %v298
        %v447 = vunpack.c.l.b16 %v299
        %v448 = vunpack.c.l.b16 %v300
        %v449 = vunpack.c.l.b16 %v301
        %v450 = vunpack.c.l.b16 %v302
        %v451 = vunpack.c.l.b16 %v303
        %v452 = vunpack.c.l.b16 %v304
        %v453 = vunpack.c.l.b16 %v305
        %v454 = vunpack.c.l.b16 %v306
        %v455 = vunpack.c.l.b16 %v307
        %v456 = vunpack.c.l.b16 %v308
        %v457 = vunpack.c.l.b16 %v309
        %v458 = vunpack.c.l.b16 %v310
        %v459 = vunpack.c.l.b16 %v311
        %v460 = vunpack.c.l.b16 %v312
        %v461 = vunpack.c.l.b16 %v313
        %v462 = vunpack.c.l.b16 %v314
        %v463 = vunpack.c.l.b16 %v315
        %v464 = vunpack.c.l.b16 %v316
        %v465 = vunpack.c.l.b16 %v317
        %v466 = vunpack.c.l.b16 %v318
        %v467 = vunpack.c.l.b16 %v319
        %v468 = vunpack.c.l.b16 %v320
        %v469 = vunpack.c.l.b16 %v321
        %v470 = vunpack.c.l.b16 %v322
        %v471 = vunpack.c.l.b16 %v323
        %v472 = vunpack.c.l.b16 %v324
        %v473 = vunpack.c.l.b16 %v325
        %v474 = vunpack.c.l.b16 %v326
        %v475 = vunpack.c.l.b16 %v327
        %v476 = vunpack.c.l.b16 %v328
        %v477 = vunpack.c.l.b16 %v329
        %v478 = vunpack.c.l.b16 %v330
        %v479 = vunpack.c.l.b16 %v331
        %v480 = vunpack.c.l.b16 %v332
        %v481 = vunpack.c.l.b16 %v333
        %v482 = vunpack.c.l.b16 %v334
        %v483 = vunpack.c.l.b16 %v335
        %v484 = vunpack.c.l.b16 %v336
        %v485 = vunpack.c.l.b16 %v337
        %v486 = vunpack.c.l.b16 %v338
        %v487 = vunpack.c.l.b16 %v339
        %v488 = vunpack.c.l.b16 %v340
        %v489 = vunpack.c.l.b16 %v341
        %v490 = vunpack.c.l.b16 %v342
        %v491 = vunpack.c.l.b16 %v343
        %v492 = vunpack.c.l.b16 %v344
        %v493 = vunpack.c.l.b16 %v345
        %v494 = vunpack.c.l.b16 %v346
        %v495 = vunpack.c.l.b16 %v347
        %v496 = vunpack.c.l.b16 %v348
        %v497 = vunpack.c.l.b16 %v349
        %v498 = vunpack.c.l.b16 %v350
        %v499 = vunpack.c.l.b16 %v351
        %v500 = vunpack.c.l.b16 %v352
        %v501 = vunpack.c.l.b16 %v353
        %v502 = vunpack.c.l.b16 %v354
        %v503 = vpack.c.b16 %v440, %v439
        %v504 = vpack.c.b16 %v442, %v441
        %v505 = vpack.c.b16 %v444, %v443
        %v506 = vpack.c.b16 %v446, %v445
        %v507 = vpack.c.b16 %v448, %v447
        %v508 = vpack.c.b16 %v450, %v449
        %v509 = vpack.c.b16 %v452, %v451
        %v510 = vpack.c.b16 %v454, %v453
        %v511 = vpack.c.b16 %v456, %v455
        %v512 = vpack.c.b16 %v458, %v457
        %v513 = vpack.c.b16 %v460, %v459
        %v514 = vpack.c.b16 %v462, %v461
        %v515 = vpack.c.b16 %v464, %v463
        %v516 = vpack.c.b16 %v466, %v465
        %v517 = vpack.c.b16 %v468, %v467
        %v518 = vpack.c.b16 %v470, %v469
        %v519 = vpack.c.b16 %v472, %v471
        %v520 = vpack.c.b16 %v474, %v473
        %v521 = vpack.c.b16 %v476, %v475
        %v522 = vpack.c.b16 %v478, %v477
        %v523 = vpack.c.b16 %v480, %v479
        %v524 = vpack.c.b16 %v482, %v481
        %v525 = vpack.c.b16 %v484, %v483
        %v526 = vpack.c.b16 %v486, %v485
        %v527 = vpack.c.b16 %v488, %v487
        %v528 = vpack.c.b16 %v490, %v489
        %v529 = vpack.c.b16 %v492, %v491
        %v530 = vpack.c.b16 %v494, %v493
        %v531 = vpack.c.b16 %v496, %v495
        %v532 = vpack.c.b16 %v498, %v497
        %v533 = vpack.c.b16 %v500, %v499
        %v534 = vpack.c.b16 %v502, %v501
        %567 = vmatpush.bf16.msra.mxu0 %v510
        %568 = vmatpush.bf16.msra.mxu0 %v509
        %569 = vmatpush.bf16.msra.mxu0 %v508
        %570 = vmatpush.bf16.msra.mxu0 %v507
        %571 = vmatpush.bf16.msra.mxu0 %v506
        %572 = vmatpush.bf16.msra.mxu0 %v505
        %573 = vmatpush.bf16.msra.mxu0 %v504
        %574 = vmatpush.bf16.msra.mxu0 %v503
        %575 = vmatmul.bf16.gmra.mxu0 %v367
        %v576 = vpop.f32.mrf.mxu0
        %v577 = vadd.f32 0.0, %v576
        %v578 = vpop.f32.mrf.mxu0
        %v579 = vadd.f32 0.0, %v578
        %580 = vdwg.mxu0
        %581 = vmatpush.bf16.msra.mxu0 %v518
        %582 = vmatpush.bf16.msra.mxu0 %v517
        %583 = vmatpush.bf16.msra.mxu0 %v516
        %584 = vmatpush.bf16.msra.mxu0 %v515
        %585 = vmatpush.bf16.msra.mxu0 %v514
        %586 = vmatpush.bf16.msra.mxu0 %v513
        %587 = vmatpush.bf16.msra.mxu0 %v512
        %588 = vmatpush.bf16.msra.mxu0 %v511
        %589 = vmatmul.bf16.gmra.mxu0 %v368
        %v590 = vpop.f32.mrf.mxu0
        %v591 = vadd.f32 %v577, %v590
        %v592 = vpop.f32.mrf.mxu0
        %v593 = vadd.f32 %v579, %v592
        %594 = vdwg.mxu0
        %595 = vmatpush.bf16.msra.mxu0 %v526
        %596 = vmatpush.bf16.msra.mxu0 %v525
        %597 = vmatpush.bf16.msra.mxu0 %v524
        %598 = vmatpush.bf16.msra.mxu0 %v523
        %599 = vmatpush.bf16.msra.mxu0 %v522
        %600 = vmatpush.bf16.msra.mxu0 %v521
        %601 = vmatpush.bf16.msra.mxu0 %v520
        %602 = vmatpush.bf16.msra.mxu0 %v519
        %603 = vmatmul.bf16.gmra.mxu0 %v369
        %v604 = vpop.f32.mrf.mxu0
        %v605 = vadd.f32 %v591, %v604
        %v606 = vpop.f32.mrf.mxu0
        %v607 = vadd.f32 %v593, %v606
        %608 = vdwg.mxu0
        %609 = vmatpush.bf16.msra.mxu0 %v534
        %610 = vmatpush.bf16.msra.mxu0 %v533
        %611 = vmatpush.bf16.msra.mxu0 %v532
        %612 = vmatpush.bf16.msra.mxu0 %v531
        %613 = vmatpush.bf16.msra.mxu0 %v530
        %614 = vmatpush.bf16.msra.mxu0 %v529
        %615 = vmatpush.bf16.msra.mxu0 %v528
        %616 = vmatpush.bf16.msra.mxu0 %v527
        %617 = vmatmul.bf16.gmra.mxu0 %v370
        %v618 = vpop.f32.mrf.mxu0
        %v619 = vadd.f32 %v605, %v618
        %v620 = vpop.f32.mrf.mxu0
        %v621 = vadd.f32 %v607, %v620
        %622 = vdwg.mxu0
        %v623 = vadd.f32 %v285, %v619
        %v624 = vadd.f32 %v286, %v621
        %625 = vst [vmem:[#allocation2] sm:$0xff] %v623
        %626 = vst [vmem:[#allocation2 + $0x8] sm:$0xff] %v624
        %p627 = scmp.eq.s32.totalorder %s21, 1
        // Predicated region
        $region60: #{_lambda_.98} parent=50 // pred_check
          %p628 = pneg %p627
        $region61: #{_lambda_.98} parent=50 // pred_check_branch
          %630 = sbr.rel (%p628) target = $region63
        $region62: #{_lambda_.98} parent=50 // pred_region
          %v631 = vld [vmem:[#allocation2] sm:$0xff]
          %v632 = vld [vmem:[#allocation2 + $0x8] sm:$0xff]
          %v633 = vld [vmem:[%s269] sm:$0x1]
          %v635 = vperm.slane %v633, 0
          %v637 = vadd.f32 %v631, %v635
          %v638 = vadd.f32 %v632, %v635
          %v639 = vmax.f32 %v637, 0.0
          %v640 = vmax.f32 %v638, 0.0
          %v641 = vpack.c.bf16 %v639, %v639
          %v642 = vpack.c.bf16 %v640, %v640
          %643 = vst [vmem:[%s277] sm:$0xf] %v641
          %644 = vst [vmem:[%s277 + $0x4] sm:$0xf] %v642
        $region63: #{_lambda_.98} parent=50 // pred_fallthru
          _
        %s645 = smul.u32 2, %s19
        %p646 = scmp.lt.s32.totalorder %s645, 1
        %s647 = scalar_select %p646, %s645, 1
        %p648 = scmp.lt.s32.totalorder %s20, 0
        %s649 = scalar_select %p648, %s20, 0
        %s650 = sadd.s32 %s649, %s647
        %s651 = smul.addr %s650, 4
        %s652 = scalar_lea.vmem %s3, %s651
        // Predicated region
        $region64: #{_lambda_.98} parent=50 // pred_check
          %p653 = pneg %p135
        $region65: #{_lambda_.98} parent=50 // pred_check_branch
          %655 = sbr.rel (%p653) target = $region67
        $region66: #{_lambda_.98} parent=50 // pred_region
          %s656 = smul.u32 2, %s19
        $region67: #{_lambda_.98} parent=50 // pred_fallthru
          _
        // Predicated region
        $region68: #{_lambda_.98} parent=50 // pred_check
          %p657 = pneg %p135
        $region69: #{_lambda_.98} parent=50 // pred_check_branch
          %659 = sbr.rel (%p657) target = $region71
        $region70: #{_lambda_.98} parent=50 // pred_region
          %s660 = smul.u32 2, %s19
          %p661 = scmp.lt.s32.totalorder %s660, 1
          %s662 = scalar_select %p661, %s660, 1
          %p663 = scmp.lt.s32.totalorder %s20, 0
          %s664 = scalar_select %p663, %s20, 0
          %s665 = sadd.s32 %s664, %s662
          %s666 = smul.addr %s665, 4
          %s667 = scalar_lea.vmem %s3, %s666
        $region71: #{_lambda_.98} parent=50 // pred_fallthru
          _
      $region51: #{_lambda_.98} parent=5 // pred_fallthru
        _
      %p668 = scmp.le.s32.totalorder 2, %s9
      // Predicated region
      $region72: #{_lambda_.98} parent=5 // pred_check
        %p669 = pneg %p668
      $region73: #{_lambda_.98} parent=5 // pred_check_branch
        %671 = sbr.rel (%p669) target = $region75
      $region74: #{_lambda_.98} parent=5 // pred_region
        %s672 = ssub.s32 %s9, 2
      $region75: #{_lambda_.98} parent=5 // pred_fallthru
        _
    $region6: #{_lambda_.98} parent=1 // loop_footer
      %s13 = sadd.s32 1, %s9
    $region7: #{_lambda_.98} parent=1 // loop_footer_branch
      %8 = sbr.rel target = $region3
    $region8: #{_lambda_.98} parent=1 // loop_exit
      _

// kernel: _lambda_.101
$region0: #{_lambda_.101}
  #allocation0 [shape = 'u32[]', space=smem, size = 0x4, offset = 0x4, fixed_abs, tag = 'smem constant byte address 0x4 - core index']
  #allocation1 [shape = 'u32[72,128]{1,0:T(1,128)}', space=vmem, size = 0x9000, scoped, tag = 'internal scratch']
  #allocation2 [shape = 'f32[16,128]{1,0:T(8,128)}', space=vmem, size = 0x2000, scoped, tag = 'scratch operand']
  %s0 = inlined_call_operand.vmem [shape: bf16[16,256], index: 0, kind: input, shape index: {}]
  %s1 = inlined_call_operand.vmem [shape: bf16[256,128], index: 1, kind: input, shape index: {}]
  %s2 = inlined_call_operand.vmem [shape: f32[1,128], index: 2, kind: input, shape index: {}]
  %s3 = inlined_call_operand.vmem [shape: bf16[16,128], index: 3, kind: output, shape index: {}]
  %s4 = sld [smem:[#allocation0]]
  $region30: #{_lambda_.101} parent=0
    _
  %s6 = ssub.s32 1, %s4
  %s7 = scalar_select 0, %s6, %s4
  // Predicated region
  $region2: #{_lambda_.101} parent=0 // pred_check
    _
  $region3: #{_lambda_.101} parent=0 // pred_check_branch
    %9 = sbr.rel (0) target = $region5
  $region4: #{_lambda_.101} parent=0 // pred_region
    _
  $region5: #{_lambda_.101} parent=0 // pred_fallthru
    _
  // Predicated region
  $region6: #{_lambda_.101} parent=0 // pred_check
    _
  $region7: #{_lambda_.101} parent=0 // pred_check_branch
    %11 = sbr.rel (0) target = $region9
  $region8: #{_lambda_.101} parent=0 // pred_region
    _
  $region9: #{_lambda_.101} parent=0 // pred_fallthru
    _
  // Predicated region
  $region10: #{_lambda_.101} parent=0 // pred_check
    _
  $region11: #{_lambda_.101} parent=0 // pred_check_branch
    %13 = sbr.rel (0) target = $region13
  $region12: #{_lambda_.101} parent=0 // pred_region
    _
  $region13: #{_lambda_.101} parent=0 // pred_fallthru
    _
  %p14 = scmp.eq.s32.totalorder 0, 0
  // Predicated region
  $region14: #{_lambda_.101} parent=0 // pred_check
    %p15 = pneg %p14
  $region15: #{_lambda_.101} parent=0 // pred_check_branch
    %17 = sbr.rel (%p15) target = $region17
  $region16: #{_lambda_.101} parent=0 // pred_region
    %18 = vst [vmem:[#allocation2] sm:$0xff] 0.0
    %19 = vst [vmem:[#allocation2 + $0x8] sm:$0xff] 0.0
  $region17: #{_lambda_.101} parent=0 // pred_fallthru
    _
  %v20 = vld [vmem:[#allocation2] sm:$0xff]
  %v21 = vld [vmem:[#allocation2 + $0x8] sm:$0xff]
  %v22 = vld [vmem:[%s0] sm:$0xff]
  %v23 = vld [vmem:[%s0 + $0x8] sm:$0xff]
  %v24 = vld [vmem:[%s1] sm:$0xf]
  %v25 = vld [vmem:[%s1 + $0x4] sm:$0xf]
  %v26 = vld [vmem:[%s1 + $0x8] sm:$0xf]
  %v27 = vld [vmem:[%s1 + $0xc] sm:$0xf]
  %v28 = vld [vmem:[%s1 + $0x10] sm:$0xf]
  %v29 = vld [vmem:[%s1 + $0x14] sm:$0xf]
  %v30 = vld [vmem:[%s1 + $0x18] sm:$0xf]
  %v31 = vld [vmem:[%s1 + $0x1c] sm:$0xf]
  %v32 = vld [vmem:[%s1 + $0x20] sm:$0xf]
  %v33 = vld [vmem:[%s1 + $0x24] sm:$0xf]
  %v34 = vld [vmem:[%s1 + $0x28] sm:$0xf]
  %v35 = vld [vmem:[%s1 + $0x2c] sm:$0xf]
  %v36 = vld [vmem:[%s1 + $0x30] sm:$0xf]
  %v37 = vld [vmem:[%s1 + $0x34] sm:$0xf]
  %v38 = vld [vmem:[%s1 + $0x38] sm:$0xf]
  %v39 = vld [vmem:[%s1 + $0x3c] sm:$0xf]
  %v40 = vld [vmem:[%s1 + $0x40] sm:$0xf]
  %v41 = vld [vmem:[%s1 + $0x44] sm:$0xf]
  %v42 = vld [vmem:[%s1 + $0x48] sm:$0xf]
  %v43 = vld [vmem:[%s1 + $0x4c] sm:$0xf]
  %v44 = vld [vmem:[%s1 + $0x50] sm:$0xf]
  %v45 = vld [vmem:[%s1 + $0x54] sm:$0xf]
  %v46 = vld [vmem:[%s1 + $0x58] sm:$0xf]
  %v47 = vld [vmem:[%s1 + $0x5c] sm:$0xf]
  %v48 = vld [vmem:[%s1 + $0x60] sm:$0xf]
  %v49 = vld [vmem:[%s1 + $0x64] sm:$0xf]
  %v50 = vld [vmem:[%s1 + $0x68] sm:$0xf]
  %v51 = vld [vmem:[%s1 + $0x6c] sm:$0xf]
  %v52 = vld [vmem:[%s1 + $0x70] sm:$0xf]
  %v53 = vld [vmem:[%s1 + $0x74] sm:$0xf]
  %v54 = vld [vmem:[%s1 + $0x78] sm:$0xf]
  %v55 = vld [vmem:[%s1 + $0x7c] sm:$0xf]
  %v58 = vunpack.c.l.b16 %v22
  %v59 = vunpack.c.h.b16 %v22
  %v60 = vunpack.c.l.b16 %v23
  %v61 = vunpack.c.h.b16 %v23
  %v62 = vpack.c.b16 %v60, %v58
  %v63 = vpack.c.b16 %v61, %v59
  %v98 = vunpack.c.l.b16 %v24
  %v99 = vunpack.c.l.b16 %v25
  %v100 = vunpack.c.l.b16 %v26
  %v101 = vunpack.c.l.b16 %v27
  %v102 = vunpack.c.l.b16 %v28
  %v103 = vunpack.c.l.b16 %v29
  %v104 = vunpack.c.l.b16 %v30
  %v105 = vunpack.c.l.b16 %v31
  %v106 = vunpack.c.l.b16 %v32
  %v107 = vunpack.c.l.b16 %v33
  %v108 = vunpack.c.l.b16 %v34
  %v109 = vunpack.c.l.b16 %v35
  %v110 = vunpack.c.l.b16 %v36
  %v111 = vunpack.c.l.b16 %v37
  %v112 = vunpack.c.l.b16 %v38
  %v113 = vunpack.c.l.b16 %v39
  %v114 = vunpack.c.l.b16 %v40
  %v115 = vunpack.c.l.b16 %v41
  %v116 = vunpack.c.l.b16 %v42
  %v117 = vunpack.c.l.b16 %v43
  %v118 = vunpack.c.l.b16 %v44
  %v119 = vunpack.c.l.b16 %v45
  %v120 = vunpack.c.l.b16 %v46
  %v121 = vunpack.c.l.b16 %v47
  %v122 = vunpack.c.l.b16 %v48
  %v123 = vunpack.c.l.b16 %v49
  %v124 = vunpack.c.l.b16 %v50
  %v125 = vunpack.c.l.b16 %v51
  %v126 = vunpack.c.l.b16 %v52
  %v127 = vunpack.c.l.b16 %v53
  %v128 = vunpack.c.l.b16 %v54
  %v129 = vunpack.c.l.b16 %v55
  %v130 = vpack.c.b16 %v99, %v98
  %v131 = vpack.c.b16 %v101, %v100
  %v132 = vpack.c.b16 %v103, %v102
  %v133 = vpack.c.b16 %v105, %v104
  %v134 = vpack.c.b16 %v107, %v106
  %v135 = vpack.c.b16 %v109, %v108
  %v136 = vpack.c.b16 %v111, %v110
  %v137 = vpack.c.b16 %v113, %v112
  %v138 = vpack.c.b16 %v115, %v114
  %v139 = vpack.c.b16 %v117, %v116
  %v140 = vpack.c.b16 %v119, %v118
  %v141 = vpack.c.b16 %v121, %v120
  %v142 = vpack.c.b16 %v123, %v122
  %v143 = vpack.c.b16 %v125, %v124
  %v144 = vpack.c.b16 %v127, %v126
  %v145 = vpack.c.b16 %v129, %v128
  %162 = vmatpush.bf16.msra.mxu0 %v137
  %163 = vmatpush.bf16.msra.mxu0 %v136
  %164 = vmatpush.bf16.msra.mxu0 %v135
  %165 = vmatpush.bf16.msra.mxu0 %v134
  %166 = vmatpush.bf16.msra.mxu0 %v133
  %167 = vmatpush.bf16.msra.mxu0 %v132
  %168 = vmatpush.bf16.msra.mxu0 %v131
  %169 = vmatpush.bf16.msra.mxu0 %v130
  %170 = vmatmul.bf16.gmra.mxu0 %v62
  %v171 = vpop.f32.mrf.mxu0
  %v172 = vadd.f32 0.0, %v171
  %v173 = vpop.f32.mrf.mxu0
  %v174 = vadd.f32 0.0, %v173
  %175 = vdwg.mxu0
  %176 = vmatpush.bf16.msra.mxu0 %v145
  %177 = vmatpush.bf16.msra.mxu0 %v144
  %178 = vmatpush.bf16.msra.mxu0 %v143
  %179 = vmatpush.bf16.msra.mxu0 %v142
  %180 = vmatpush.bf16.msra.mxu0 %v141
  %181 = vmatpush.bf16.msra.mxu0 %v140
  %182 = vmatpush.bf16.msra.mxu0 %v139
  %183 = vmatpush.bf16.msra.mxu0 %v138
  %184 = vmatmul.bf16.gmra.mxu0 %v63
  %v185 = vpop.f32.mrf.mxu0
  %v186 = vadd.f32 %v172, %v185
  %v187 = vpop.f32.mrf.mxu0
  %v188 = vadd.f32 %v174, %v187
  %189 = vdwg.mxu0
  %v190 = vadd.f32 %v20, %v186
  %v191 = vadd.f32 %v21, %v188
  %192 = vst [vmem:[#allocation2] sm:$0xff] %v190
  %193 = vst [vmem:[#allocation2 + $0x8] sm:$0xff] %v191
  // Predicated region
  $region18: #{_lambda_.101} parent=0 // pred_check
    %p194 = pneg %p14
  $region19: #{_lambda_.101} parent=0 // pred_check_branch
    %196 = sbr.rel (%p194) target = $region21
  $region20: #{_lambda_.101} parent=0 // pred_region
    %v197 = vld [vmem:[#allocation2] sm:$0xff]
    %v198 = vld [vmem:[#allocation2 + $0x8] sm:$0xff]
    %v199 = vld [vmem:[%s2] sm:$0x1]
    %v201 = vperm.slane %v199, 0
    %v203 = vadd.f32 %v197, %v201
    %v204 = vadd.f32 %v198, %v201
    %v205 = vmax.f32 %v203, 0.0
    %v206 = vmax.f32 %v204, 0.0
    %v207 = vpack.c.bf16 %v205, %v205
    %v208 = vpack.c.bf16 %v206, %v206
    %209 = vst [vmem:[%s3] sm:$0xf] %v207
    %210 = vst [vmem:[%s3 + $0x4] sm:$0xf] %v208
  $region21: #{_lambda_.101} parent=0 // pred_fallthru
    _
  // Predicated region
  $region22: #{_lambda_.101} parent=0 // pred_check
    _
  $region23: #{_lambda_.101} parent=0 // pred_check_branch
    %212 = sbr.rel (0) target = $region25
  $region24: #{_lambda_.101} parent=0 // pred_region
    _
  $region25: #{_lambda_.101} parent=0 // pred_fallthru
    _
  // Predicated region
  $region26: #{_lambda_.101} parent=0 // pred_check
    _
  $region27: #{_lambda_.101} parent=0 // pred_check_branch
    %214 = sbr.rel (0) target = $region29
  $region28: #{_lambda_.101} parent=0 // pred_region
    _
  $region29: #{_lambda_.101} parent=0 // pred_fallthru
    _

// kernel: _lambda_.100
$region0: #{_lambda_.100}
  #allocation0 [shape = 'u32[]', space=smem, size = 0x4, offset = 0x4, fixed_abs, tag = 'smem constant byte address 0x4 - core index']
  #allocation1 [shape = 'u32[72,128]{1,0:T(1,128)}', space=vmem, size = 0x9000, scoped, tag = 'internal scratch']
  #allocation2 [shape = 'f32[16,256]{1,0:T(8,128)}', space=vmem, size = 0x4000, scoped, tag = 'scratch operand']
  %s0 = inlined_call_operand.vmem [shape: bf16[16,128], index: 0, kind: input, shape index: {}]
  %s1 = inlined_call_operand.vmem [shape: bf16[128,256], index: 1, kind: input, shape index: {}]
  %s2 = inlined_call_operand.vmem [shape: f32[1,256], index: 2, kind: input, shape index: {}]
  %s3 = inlined_call_operand.vmem [shape: bf16[16,256], index: 3, kind: input, shape index: {}]
  %s4 = inlined_call_operand.vmem [shape: bf16[16,256], index: 4, kind: output, shape index: {}]
  %s5 = sld [smem:[#allocation0]]
  $region34: #{_lambda_.100} parent=0
    _
  %s7 = ssub.s32 1, %s5
  %s8 = scalar_select 0, %s7, %s5
  // Predicated region
  $region2: #{_lambda_.100} parent=0 // pred_check
    _
  $region3: #{_lambda_.100} parent=0 // pred_check_branch
    %10 = sbr.rel (0) target = $region5
  $region4: #{_lambda_.100} parent=0 // pred_region
    _
  $region5: #{_lambda_.100} parent=0 // pred_fallthru
    _
  // Predicated region
  $region6: #{_lambda_.100} parent=0 // pred_check
    _
  $region7: #{_lambda_.100} parent=0 // pred_check_branch
    %12 = sbr.rel (0) target = $region9
  $region8: #{_lambda_.100} parent=0 // pred_region
    _
  $region9: #{_lambda_.100} parent=0 // pred_fallthru
    _
  // Predicated region
  $region10: #{_lambda_.100} parent=0 // pred_check
    _
  $region11: #{_lambda_.100} parent=0 // pred_check_branch
    %14 = sbr.rel (0) target = $region13
  $region12: #{_lambda_.100} parent=0 // pred_region
    _
  $region13: #{_lambda_.100} parent=0 // pred_fallthru
    _
  // Predicated region
  $region14: #{_lambda_.100} parent=0 // pred_check
    _
  $region15: #{_lambda_.100} parent=0 // pred_check_branch
    %16 = sbr.rel (0) target = $region17
  $region16: #{_lambda_.100} parent=0 // pred_region
    _
  $region17: #{_lambda_.100} parent=0 // pred_fallthru
    _
  %p17 = scmp.eq.s32.totalorder 0, 0
  // Predicated region
  $region18: #{_lambda_.100} parent=0 // pred_check
    %p18 = pneg %p17
  $region19: #{_lambda_.100} parent=0 // pred_check_branch
    %20 = sbr.rel (%p18) target = $region21
  $region20: #{_lambda_.100} parent=0 // pred_region
    %21 = vst [vmem:[#allocation2] sm:$0xff] 0.0
    %22 = vst [vmem:[#allocation2 + $0x8] sm:$0xff] 0.0
    %23 = vst [vmem:[#allocation2 + $0x10] sm:$0xff] 0.0
    %24 = vst [vmem:[#allocation2 + $0x18] sm:$0xff] 0.0
  $region21: #{_lambda_.100} parent=0 // pred_fallthru
    _
  %v25 = vld [vmem:[#allocation2] sm:$0xff]
  %v26 = vld [vmem:[#allocation2 + $0x8] sm:$0xff]
  %v27 = vld [vmem:[#allocation2 + $0x10] sm:$0xff]
  %v28 = vld [vmem:[#allocation2 + $0x18] sm:$0xff]
  %v29 = vld [vmem:[%s0] sm:$0xf]
  %v30 = vld [vmem:[%s0 + $0x4] sm:$0xf]
  %v31 = vld [vmem:[%s1] sm:$0xff]
  %v32 = vld [vmem:[%s1 + $0x8] sm:$0xff]
  %v33 = vld [vmem:[%s1 + $0x10] sm:$0xff]
  %v34 = vld [vmem:[%s1 + $0x18] sm:$0xff]
  %v35 = vld [vmem:[%s1 + $0x20] sm:$0xff]
  %v36 = vld [vmem:[%s1 + $0x28] sm:$0xff]
  %v37 = vld [vmem:[%s1 + $0x30] sm:$0xff]
  %v38 = vld [vmem:[%s1 + $0x38] sm:$0xff]
  %v39 = vld [vmem:[%s1 + $0x40] sm:$0xff]
  %v40 = vld [vmem:[%s1 + $0x48] sm:$0xff]
  %v41 = vld [vmem:[%s1 + $0x50] sm:$0xff]
  %v42 = vld [vmem:[%s1 + $0x58] sm:$0xff]
  %v43 = vld [vmem:[%s1 + $0x60] sm:$0xff]
  %v44 = vld [vmem:[%s1 + $0x68] sm:$0xff]
  %v45 = vld [vmem:[%s1 + $0x70] sm:$0xff]
  %v46 = vld [vmem:[%s1 + $0x78] sm:$0xff]
  %v49 = vunpack.c.l.b16 %v29
  %v50 = vunpack.c.l.b16 %v30
  %v51 = vpack.c.b16 %v50, %v49
  %v69 = vunpack.c.l.b16 %v31
  %v70 = vunpack.c.h.b16 %v31
  %v71 = vunpack.c.l.b16 %v32
  %v72 = vunpack.c.h.b16 %v32
  %v73 = vunpack.c.l.b16 %v33
  %v74 = vunpack.c.h.b16 %v33
  %v75 = vunpack.c.l.b16 %v34
  %v76 = vunpack.c.h.b16 %v34
  %v77 = vunpack.c.l.b16 %v35
  %v78 = vunpack.c.h.b16 %v35
  %v79 = vunpack.c.l.b16 %v36
  %v80 = vunpack.c.h.b16 %v36
  %v81 = vunpack.c.l.b16 %v37
  %v82 = vunpack.c.h.b16 %v37
  %v83 = vunpack.c.l.b16 %v38
  %v84 = vunpack.c.h.b16 %v38
  %v85 = vunpack.c.l.b16 %v39
  %v86 = vunpack.c.h.b16 %v39
  %v87 = vunpack.c.l.b16 %v40
  %v88 = vunpack.c.h.b16 %v40
  %v89 = vunpack.c.l.b16 %v41
  %v90 = vunpack.c.h.b16 %v41
  %v91 = vunpack.c.l.b16 %v42
  %v92 = vunpack.c.h.b16 %v42
  %v93 = vunpack.c.l.b16 %v43
  %v94 = vunpack.c.h.b16 %v43
  %v95 = vunpack.c.l.b16 %v44
  %v96 = vunpack.c.h.b16 %v44
  %v97 = vunpack.c.l.b16 %v45
  %v98 = vunpack.c.h.b16 %v45
  %v99 = vunpack.c.l.b16 %v46
  %v100 = vunpack.c.h.b16 %v46
  %v101 = vpack.c.b16 %v71, %v69
  %v102 = vpack.c.b16 %v72, %v70
  %v103 = vpack.c.b16 %v75, %v73
  %v104 = vpack.c.b16 %v76, %v74
  %v105 = vpack.c.b16 %v79, %v77
  %v106 = vpack.c.b16 %v80, %v78
  %v107 = vpack.c.b16 %v83, %v81
  %v108 = vpack.c.b16 %v84, %v82
  %v109 = vpack.c.b16 %v87, %v85
  %v110 = vpack.c.b16 %v88, %v86
  %v111 = vpack.c.b16 %v91, %v89
  %v112 = vpack.c.b16 %v92, %v90
  %v113 = vpack.c.b16 %v95, %v93
  %v114 = vpack.c.b16 %v96, %v94
  %v115 = vpack.c.b16 %v99, %v97
  %v116 = vpack.c.b16 %v100, %v98
  %133 = vmatpush.bf16.msra.mxu0 %v115
  %134 = vmatpush.bf16.msra.mxu0 %v113
  %135 = vmatpush.bf16.msra.mxu0 %v111
  %136 = vmatpush.bf16.msra.mxu0 %v109
  %137 = vmatpush.bf16.msra.mxu0 %v107
  %138 = vmatpush.bf16.msra.mxu0 %v105
  %139 = vmatpush.bf16.msra.mxu0 %v103
  %140 = vmatpush.bf16.msra.mxu0 %v101
  %141 = vmatmul.bf16.gmra.mxu0 %v51
  %v142 = vpop.f32.mrf.mxu0
  %v143 = vadd.f32 0.0, %v142
  %v144 = vpop.f32.mrf.mxu0
  %v145 = vadd.f32 0.0, %v144
  %146 = vdwg.mxu0
  %147 = vmatpush.bf16.msra.mxu0 %v116
  %148 = vmatpush.bf16.msra.mxu0 %v114
  %149 = vmatpush.bf16.msra.mxu0 %v112
  %150 = vmatpush.bf16.msra.mxu0 %v110
  %151 = vmatpush.bf16.msra.mxu0 %v108
  %152 = vmatpush.bf16.msra.mxu0 %v106
  %153 = vmatpush.bf16.msra.mxu0 %v104
  %154 = vmatpush.bf16.msra.mxu0 %v102
  %155 = vmatmul.bf16.gmra.mxu0 %v51
  %v156 = vpop.f32.mrf.mxu0
  %v157 = vadd.f32 0.0, %v156
  %v158 = vpop.f32.mrf.mxu0
  %v159 = vadd.f32 0.0, %v158
  %160 = vdwg.mxu0
  %v161 = vadd.f32 %v25, %v143
  %v162 = vadd.f32 %v26, %v157
  %v163 = vadd.f32 %v27, %v145
  %v164 = vadd.f32 %v28, %v159
  %165 = vst [vmem:[#allocation2] sm:$0xff] %v161
  %166 = vst [vmem:[#allocation2 + $0x8] sm:$0xff] %v162
  %167 = vst [vmem:[#allocation2 + $0x10] sm:$0xff] %v163
  %168 = vst [vmem:[#allocation2 + $0x18] sm:$0xff] %v164
  // Predicated region
  $region22: #{_lambda_.100} parent=0 // pred_check
    %p169 = pneg %p17
  $region23: #{_lambda_.100} parent=0 // pred_check_branch
    %171 = sbr.rel (%p169) target = $region25
  $region24: #{_lambda_.100} parent=0 // pred_region
    %v172 = vld [vmem:[#allocation2] sm:$0xff]
    %v173 = vld [vmem:[#allocation2 + $0x8] sm:$0xff]
    %v174 = vld [vmem:[#allocation2 + $0x10] sm:$0xff]
    %v175 = vld [vmem:[#allocation2 + $0x18] sm:$0xff]
    %v176 = vld [vmem:[%s2] sm:$0x3]
    %v178 = vperm.slane %v176, 0
    %v179 = vperm.slane %v176, 1
    %v182 = vadd.f32 %v172, %v178
    %v183 = vadd.f32 %v173, %v179
    %v184 = vadd.f32 %v174, %v178
    %v185 = vadd.f32 %v175, %v179
    %v186 = vld [vmem:[%s3] sm:$0xff]
    %v187 = vld [vmem:[%s3 + $0x8] sm:$0xff]
    %v188 = vunpack.c.l.bf16 %v186
    %v189 = vunpack.c.h.bf16 %v186
    %v190 = vunpack.c.l.bf16 %v187
    %v191 = vunpack.c.h.bf16 %v187
    %v192 = vadd.f32 %v182, %v188
    %v193 = vadd.f32 %v183, %v189
    %v194 = vadd.f32 %v184, %v190
    %v195 = vadd.f32 %v185, %v191
    %v196 = vmax.f32 %v192, 0.0
    %v197 = vmax.f32 %v193, 0.0
    %v198 = vmax.f32 %v194, 0.0
    %v199 = vmax.f32 %v195, 0.0
    %v200 = vpack.c.bf16 %v197, %v196
    %v201 = vpack.c.bf16 %v199, %v198
    %202 = vst [vmem:[%s4] sm:$0xff] %v200
    %203 = vst [vmem:[%s4 + $0x8] sm:$0xff] %v201
  $region25: #{_lambda_.100} parent=0 // pred_fallthru
    _
  // Predicated region
  $region26: #{_lambda_.100} parent=0 // pred_check
    _
  $region27: #{_lambda_.100} parent=0 // pred_check_branch
    %205 = sbr.rel (0) target = $region29
  $region28: #{_lambda_.100} parent=0 // pred_region
    _
  $region29: #{_lambda_.100} parent=0 // pred_fallthru
    _
  // Predicated region
  $region30: #{_lambda_.100} parent=0 // pred_check
    _
  $region31: #{_lambda_.100} parent=0 // pred_check_branch
    %207 = sbr.rel (0) target = $region33
  $region32: #{_lambda_.100} parent=0 // pred_region
    _
  $region33: #{_lambda_.100} parent=0 // pred_fallthru
    _

// kernel: _lambda_.107
$region0: #{_lambda_.107}
  #allocation0 [shape = 'u32[]', space=smem, size = 0x4, offset = 0x4, fixed_abs, tag = 'smem constant byte address 0x4 - core index']
  #allocation1 [shape = 'u32[72,128]{1,0:T(1,128)}', space=vmem, size = 0x9000, scoped, tag = 'internal scratch']
  %s0 = inlined_call_operand.vmem [shape: bf16[2,1,256], index: 0, kind: input, shape index: {}]
  %s1 = inlined_call_operand.vmem [shape: f32[256,32], index: 1, kind: input, shape index: {}]
  %s2 = inlined_call_operand.vmem [shape: f32[1,32], index: 2, kind: input, shape index: {}]
  %s3 = inlined_call_operand.hbm [shape: f32[2,32], index: 3, kind: output, shape index: {}]
  %s4 = sld [smem:[#allocation0]]
  $region22: #{_lambda_.107} parent=0
    _
  %s6 = ssub.s32 1, %s4
  %s7 = scalar_select 0, %s6, %s4
  $region1: #{_lambda_.107} parent=0
    #allocation2 [shape = 'u8[1024]{0}', space=vmem, size = 0x400, scoped, tag = 'output window, operand 0, single buffered']
    #allocation3 [shape = 's32[1]{0}', space=sflag, size = 0x4, scoped, tag = 'scoped memory for _lambda_.107']
    %8 = vsyncpa [#allocation3], 0
    // Predicated region
    $region2: #{_lambda_.107} parent=1 // pred_check
      _
    $region3: #{_lambda_.107} parent=1 // pred_check_branch
      %10 = sbr.rel (0) target = $region5
    $region4: #{_lambda_.107} parent=1 // pred_region
      _
    $region5: #{_lambda_.107} parent=1 // pred_fallthru
      _
    // Predicated region
    $region6: #{_lambda_.107} parent=1 // pred_check
      _
    $region7: #{_lambda_.107} parent=1 // pred_check_branch
      %12 = sbr.rel (0) target = $region9
    $region8: #{_lambda_.107} parent=1 // pred_region
      _
    $region9: #{_lambda_.107} parent=1 // pred_fallthru
      _
    // Predicated region
    $region10: #{_lambda_.107} parent=1 // pred_check
      _
    $region11: #{_lambda_.107} parent=1 // pred_check_branch
      %14 = sbr.rel (0) target = $region13
    $region12: #{_lambda_.107} parent=1 // pred_region
      _
    $region13: #{_lambda_.107} parent=1 // pred_fallthru
      _
    %v15 = vld [vmem:[%s0] sm:$0x3]
    %v16 = vld [vmem:[%s0 + $0x2] sm:$0x3]
    %v17 = vunpack.c.l.bf16 %v15
    %v18 = vunpack.c.l.bf16 %v16
    %v19 = vadd.f32 %v17, 0.0
    %v20 = vadd.f32 %v18, 0.0
    %v21 = vld [vmem:[%s1] sm:$0xff]
    %v22 = vld [vmem:[%s1 + $0x8] sm:$0xff]
    %v23 = vld [vmem:[%s1 + $0x10] sm:$0xff]
    %v24 = vld [vmem:[%s1 + $0x18] sm:$0xff]
    %v25 = vld [vmem:[%s1 + $0x20] sm:$0xff]
    %v26 = vld [vmem:[%s1 + $0x28] sm:$0xff]
    %v27 = vld [vmem:[%s1 + $0x30] sm:$0xff]
    %v28 = vld [vmem:[%s1 + $0x38] sm:$0xff]
    %v29 = vld [vmem:[%s1 + $0x40] sm:$0xff]
    %v30 = vld [vmem:[%s1 + $0x48] sm:$0xff]
    %v31 = vld [vmem:[%s1 + $0x50] sm:$0xff]
    %v32 = vld [vmem:[%s1 + $0x58] sm:$0xff]
    %v33 = vld [vmem:[%s1 + $0x60] sm:$0xff]
    %v34 = vld [vmem:[%s1 + $0x68] sm:$0xff]
    %v35 = vld [vmem:[%s1 + $0x70] sm:$0xff]
    %v36 = vld [vmem:[%s1 + $0x78] sm:$0xff]
    %v37 = vld [vmem:[%s1 + $0x80] sm:$0xff]
    %v38 = vld [vmem:[%s1 + $0x88] sm:$0xff]
    %v39 = vld [vmem:[%s1 + $0x90] sm:$0xff]
    %v40 = vld [vmem:[%s1 + $0x98] sm:$0xff]
    %v41 = vld [vmem:[%s1 + $0xa0] sm:$0xff]
    %v42 = vld [vmem:[%s1 + $0xa8] sm:$0xff]
    %v43 = vld [vmem:[%s1 + $0xb0] sm:$0xff]
    %v44 = vld [vmem:[%s1 + $0xb8] sm:$0xff]
    %v45 = vld [vmem:[%s1 + $0xc0] sm:$0xff]
    %v46 = vld [vmem:[%s1 + $0xc8] sm:$0xff]
    %v47 = vld [vmem:[%s1 + $0xd0] sm:$0xff]
    %v48 = vld [vmem:[%s1 + $0xd8] sm:$0xff]
    %v49 = vld [vmem:[%s1 + $0xe0] sm:$0xff]
    %v50 = vld [vmem:[%s1 + $0xe8] sm:$0xff]
    %v51 = vld [vmem:[%s1 + $0xf0] sm:$0xff]
    %v52 = vld [vmem:[%s1 + $0xf8] sm:$0xff]
    %v53 = vld [vmem:[%s2] sm:$0x1]
    %v55 = vperm.slane %v53, 0
    %v59 = vperm.slane %v19, 0
    %v60 = vperm.slane %v19, 2
    %v61 = vperm.slane %v20, 0
    %v62 = vperm.slane %v20, 2
    %vm63 = vcmask 1041409
    %v64 = vsel %vm63, %v61, %v59
    %v65 = vsel %vm63, %v62, %v60
    %68 = vmatpush.msra.mxu0 %v36
    %69 = vmatpush.msra.mxu0 %v35
    %70 = vmatpush.msra.mxu0 %v34
    %71 = vmatpush.msra.mxu0 %v33
    %72 = vmatpush.msra.mxu0 %v32
    %73 = vmatpush.msra.mxu0 %v31
    %74 = vmatpush.msra.mxu0 %v30
    %75 = vmatpush.msra.mxu0 %v29
    %76 = vmatpush.msra.mxu0 %v28
    %77 = vmatpush.msra.mxu0 %v27
    %78 = vmatpush.msra.mxu0 %v26
    %79 = vmatpush.msra.mxu0 %v25
    %80 = vmatpush.msra.mxu0 %v24
    %81 = vmatpush.msra.mxu0 %v23
    %82 = vmatpush.msra.mxu0 %v22
    %83 = vmatpush.msra.mxu0 %v21
    %84 = vmatmul.f32.gmra.mxu0 %v64
    %v85 = vpop.f32.mrf.mxu0
    %v86 = vadd.f32 %v55, %v85
    %87 = vdwg.mxu0
    %88 = vmatpush.msra.mxu0 %v52
    %89 = vmatpush.msra.mxu0 %v51
    %90 = vmatpush.msra.mxu0 %v50
    %91 = vmatpush.msra.mxu0 %v49
    %92 = vmatpush.msra.mxu0 %v48
    %93 = vmatpush.msra.mxu0 %v47
    %94 = vmatpush.msra.mxu0 %v46
    %95 = vmatpush.msra.mxu0 %v45
    %96 = vmatpush.msra.mxu0 %v44
    %97 = vmatpush.msra.mxu0 %v43
    %98 = vmatpush.msra.mxu0 %v42
    %99 = vmatpush.msra.mxu0 %v41
    %100 = vmatpush.msra.mxu0 %v40
    %101 = vmatpush.msra.mxu0 %v39
    %102 = vmatpush.msra.mxu0 %v38
    %103 = vmatpush.msra.mxu0 %v37
    %104 = vmatmul.f32.gmra.mxu0 %v65
    %v105 = vpop.f32.mrf.mxu0
    %v106 = vadd.f32 %v86, %v105
    %107 = vdwg.mxu0
    %vm108 = vcmask 254976
    %109 = vst.msk [vmem:[#allocation2] sm:$0x3] %vm108, %v106
    // Predicated region
    $region14: #{_lambda_.107} parent=1 // pred_check
      _
    $region15: #{_lambda_.107} parent=1 // pred_check_branch
      %111 = sbr.rel (0) target = $region17
    $region16: #{_lambda_.107} parent=1 // pred_region
      %113 = vsyncadd [#allocation3], 0
      %s115 = sshll.u32 [#allocation2], 4
      %s116 = int_to_ptr.vmem [resolvable:$true] %s115
      %s117 = sshll.u32 %s3, 4
      %s118 = int_to_ptr.hbm [resolvable:$true] %s117
      %120 = dma.vmem_to_hbm [thread:$0]  %s116, 32, %s118, [#allocation3]
    $region17: #{_lambda_.107} parent=1 // pred_fallthru
      _
    // Predicated region
    $region18: #{_lambda_.107} parent=1 // pred_check
      _
    $region19: #{_lambda_.107} parent=1 // pred_check_branch
      %122 = sbr.rel (0) target = $region21
    $region20: #{_lambda_.107} parent=1 // pred_region
      %124 = dma.done [#allocation3], 32
    $region21: #{_lambda_.107} parent=1 // pred_fallthru
      _
    %125 = vsyncpa [#allocation3], 1

</llo_original>
